<compile_context>
chip_gen: v7x
topology: tpu7x:2x2x1
jax: 0.10.0
libtpu: 0.0.40
codegen_flags: <defaults>
</compile_context>

<pallas_src>
import functools

import numpy as np

import jax
import jax.numpy as jnp
from jax.experimental import pallas as pl
from jax.experimental.pallas import tpu as pltpu


# ---------------------------------------------------------------------------
# Layer configuration: (Hin, Win, Cin, Ho, Wo, Cout, stride, pad) per block.
# ---------------------------------------------------------------------------
def _layer_cfgs(channels, base, latent_dim, spatial):
    assert spatial == 64, "the final 4x4 valid conv requires a 64x64 input"
    chans = [channels, base, base * 2, base * 4, base * 8]
    cfgs, h = [], spatial
    for i in range(4):                       # stride-2, pad-1 blocks
        cfgs.append((h, h, chans[i], h // 2, h // 2, chans[i + 1], 2, 1))
        h //= 2
    cfgs.append((h, h, chans[4], 1, 1, latent_dim, 1, 0))   # final valid conv
    return tuple(cfgs)


# ---------------------------------------------------------------------------
# One-time parameter preparation (hoisted out of the jitted forward).
# ---------------------------------------------------------------------------
def _toeplitz_weight(w, stride, pad, win, wo):
    """(Cout,Cin,4,4) PyTorch conv weight -> stacked (4*Win*Cin, Wo*Cout) f32.

    T_kh[w*Cin+ci, wo*Cout+co] = W[co,ci,kh,kw] with kw = w - stride*wo + pad,
    zero where kw falls outside the 4-tap window (i.e. W-direction padding).
    """
    w = np.asarray(w, np.float32)
    cout, cin, K, _ = w.shape
    t = np.zeros((K, win * cin, wo * cout), np.float32)
    for kh in range(K):
        for o in range(wo):
            for kw in range(K):
                col = stride * o + kw - pad
                if 0 <= col < win:
                    t[kh, col * cin:(col + 1) * cin,
                      o * cout:(o + 1) * cout] = w[:, :, kh, kw].T
    return jnp.asarray(t.reshape(K * win * cin, wo * cout))


def prepare_params(params, cfgs):
    """Build all static kernel operands once (never re-done per forward)."""
    prep = {}
    for i, (hin, win, cin, ho, wo, cout, s, p) in enumerate(cfgs, start=1):
        prep[f"t{i}"] = _toeplitz_weight(params[f"w{i}"], s, p, win, wo)
    # Bias rows tiled to the (wo*cout) lane layout for the non-BN blocks.
    prep["b1"] = jnp.asarray(
        np.tile(np.asarray(params["b1"], np.float32), cfgs[0][4])[None, :])
    prep["b5"] = jnp.asarray(
        np.tile(np.asarray(params["b5"], np.float32), cfgs[4][4])[None, :])
    # BN blocks: conv bias cancels exactly under batch-stat BN -> dropped.
    # gamma/beta packed into a single (2, Cout) operand per block.
    for i in (2, 3, 4):
        prep[f"gb{i}"] = jnp.stack([jnp.asarray(params[f"g{i}"], jnp.float32),
                                    jnp.asarray(params[f"be{i}"], jnp.float32)])
    return prep


# ---------------------------------------------------------------------------
# The fused Pallas kernel (all five blocks, activations never leave VMEM).
# ---------------------------------------------------------------------------
def _encoder_kernel(x_ref, t1_ref, b1_ref, t2_ref, gb2_ref, t3_ref, gb3_ref,
                    t4_ref, gb4_ref, t5_ref, b5_ref, out_ref, *, cfg, batch):
    f32 = jnp.float32
    one, zero = f32(1.0), f32(0.0)

    def divmod_const(x, d):
        # d is a small positive Python int (always a power of two here).
        if d & (d - 1) == 0:
            return (jnp.right_shift(x, d.bit_length() - 1),
                    jnp.bitwise_and(x, d - 1))
        return x // d, x % d

    def row_select(y, layer, kh):
        # Exact 0/1 selection matmul picking input row (stride*ho + kh - pad)
        # for every output row; out-of-range rows select nothing (zero pad).
        hin, _, _, ho, _, _, stride, pad = layer
        rows, cols = batch * ho, batch * hin
        rr = jax.lax.broadcasted_iota(jnp.int32, (rows, cols), 0)
        cc = jax.lax.broadcasted_iota(jnp.int32, (rows, cols), 1)
        img, orow = divmod_const(rr, ho)
        h = stride * orow + (kh - pad)
        mask = (cc == img * hin + h) & (h >= 0) & (h < hin)
        sel = jnp.where(mask, one, zero)
        return jnp.dot(sel, y, preferred_element_type=f32)

    def conv(y, t_ref, layer):
        # y: (batch*Hin, Win*Cin) f32 -> (batch*Ho, Wo*Cout) f32.
        _, win, cin, _, _, _, _, _ = layer
        k_rows = win * cin
        acc = None
        for kh in range(4):
            rows = row_select(y, layer, kh)
            term = jnp.dot(rows, t_ref[kh * k_rows:(kh + 1) * k_rows, :],
                           preferred_element_type=f32)
            acc = term if acc is None else acc + term
        return acc

    def channel_maps(wo, cout):
        # reduce_m: (Wo*Cout, Cout) sums lanes belonging to the same channel.
        # bcast_m : (Cout, Wo*Cout) tiles a per-channel row over all Wo groups.
        lanes = wo * cout
        j = jax.lax.broadcasted_iota(jnp.int32, (lanes, cout), 0)
        c = jax.lax.broadcasted_iota(jnp.int32, (lanes, cout), 1)
        reduce_m = jnp.where(divmod_const(j, cout)[1] == c, one, zero)
        c2 = jax.lax.broadcasted_iota(jnp.int32, (cout, lanes), 0)
        j2 = jax.lax.broadcasted_iota(jnp.int32, (cout, lanes), 1)
        bcast_m = jnp.where(divmod_const(j2, cout)[1] == c2, one, zero)
        return reduce_m, bcast_m

    def bn_leaky(y, gb_ref, layer, eps=1e-5):
        # Batch-statistics BatchNorm (PyTorch training-mode default of a fresh
        # module, biased variance) with mean-centred two-pass variance,
        # then LeakyReLU(0.2).
        _, _, _, ho, wo, cout, _, _ = layer
        reduce_m, bcast_m = channel_maps(wo, cout)
        inv_cnt = f32(1.0 / (batch * ho * wo))
        gb = gb_ref[...]
        gamma, beta = gb[0:1, :], gb[1:2, :]
        mean_c = jnp.dot(jnp.sum(y, axis=0, keepdims=True), reduce_m,
                         preferred_element_type=f32) * inv_cnt
        yc = y - jnp.dot(mean_c, bcast_m, preferred_element_type=f32)
        var_c = jnp.dot(jnp.sum(yc * yc, axis=0, keepdims=True), reduce_m,
                        preferred_element_type=f32) * inv_cnt
        scale_c = gamma * jax.lax.rsqrt(var_c + eps)
        z = (yc * jnp.dot(scale_c, bcast_m, preferred_element_type=f32)
             + jnp.dot(beta, bcast_m, preferred_element_type=f32))
        return jnp.where(z > 0, z, 0.2 * z)

    # ---- block 1: conv + bias + LeakyReLU(0.2) (no BN) ----------------------
    y = conv(x_ref[...], t1_ref, cfg[0]) + b1_ref[...]
    y = jnp.where(y > 0, y, 0.2 * y)
    # ---- blocks 2-4: conv + BatchNorm(batch stats) + LeakyReLU(0.2) ---------
    for t_ref, gb_ref, layer in ((t2_ref, gb2_ref, cfg[1]),
                                 (t3_ref, gb3_ref, cfg[2]),
                                 (t4_ref, gb4_ref, cfg[3])):
        y = bn_leaky(conv(y, t_ref, layer), gb_ref, layer)
    # ---- final block: conv (valid, stride 1) + bias + Tanh ------------------
    y = conv(y, t5_ref, cfg[4]) + b5_ref[...]
    out_ref[...] = jnp.tanh(y)


# ---------------------------------------------------------------------------
# Forward wrapper: one pallas_call, full-array VMEM blocks, grid=(1,).
# ---------------------------------------------------------------------------
def _full_spec(shape):
    return pl.BlockSpec(shape, lambda i: (0,) * len(shape))


def encoder_forward(x_nchw, prep, *, cfgs):
    n, c, h, w = x_nchw.shape
    latent = cfgs[-1][5]
    # rows = (n, h), lanes = (w, c): the layout every fused layer consumes.
    x2d = jnp.transpose(x_nchw, (0, 2, 3, 1)).reshape(n * h, w * c)
    x2d = x2d.astype(jnp.float32)
    args = (x2d, prep["t1"], prep["b1"], prep["t2"], prep["gb2"],
            prep["t3"], prep["gb3"], prep["t4"], prep["gb4"],
            prep["t5"], prep["b5"])
    out = pl.pallas_call(
        functools.partial(_encoder_kernel, cfg=cfgs, batch=n),
        out_shape=jax.ShapeDtypeStruct((n, latent), jnp.float32),
        grid=(1,),
        in_specs=[_full_spec(a.shape) for a in args],
        out_specs=_full_spec((n, latent)),
        compiler_params=pltpu.CompilerParams(
            dimension_semantics=("arbitrary",),
            vmem_limit_bytes=32 * 1024 * 1024),
    )(*args)
    return out.reshape(n, latent, 1, 1)


# ---------------------------------------------------------------------------
# Pure-JAX reference (matches the PyTorch module forward) for validation.
# ---------------------------------------------------------------------------
def reference_forward(x, params, cfgs, eps=1e-5):
    y = x
    for i, (hin, win, cin, ho, wo, cout, s, p) in enumerate(cfgs, start=1):
        y = jax.lax.conv_general_dilated(
            y, params[f"w{i}"], window_strides=(s, s),
            padding=((p, p), (p, p)),
            dimension_numbers=("NCHW", "OIHW", "NCHW"),
            precision=jax.lax.Precision.HIGHEST)
        y = y + params[f"b{i}"].reshape(1, -1, 1, 1)
        if 2 <= i <= 4:
            mean = jnp.mean(y, axis=(0, 2, 3), keepdims=True)
            var = jnp.mean((y - mean) ** 2, axis=(0, 2, 3), keepdims=True)
            y = (y - mean) * jax.lax.rsqrt(var + eps)
            y = (y * params[f"g{i}"].reshape(1, -1, 1, 1)
                 + params[f"be{i}"].reshape(1, -1, 1, 1))
        if i < 5:
            y = jnp.where(y > 0, y, 0.2 * y)
        else:
            y = jnp.tanh(y)
    return y


# ---------------------------------------------------------------------------
# Parameter init (PyTorch layout: w (Cout,Cin,4,4), b (Cout,), BN gamma/beta).
# ---------------------------------------------------------------------------
def init_params(key, channels=3, base=8, latent_dim=16):
    dims = [channels, base, base * 2, base * 4, base * 8]
    keys = iter(jax.random.split(key, 16))
    params = {}
    for i in range(1, 5):
        cin, cout = dims[i - 1], dims[i]
        params[f"w{i}"] = 0.05 * jax.random.normal(next(keys), (cout, cin, 4, 4),
                                                   jnp.float32)
        params[f"b{i}"] = 0.05 * jax.random.normal(next(keys), (cout,),
                                                   jnp.float32)
        if i >= 2:
            params[f"g{i}"] = 1.0 + 0.1 * jax.random.normal(next(keys), (cout,),
                                                            jnp.float32)
            params[f"be{i}"] = 0.1 * jax.random.normal(next(keys), (cout,),
                                                       jnp.float32)
    params["w5"] = 0.05 * jax.random.normal(next(keys),
                                            (latent_dim, dims[4], 4, 4),
                                            jnp.float32)
    params["b5"] = 0.05 * jax.random.normal(next(keys), (latent_dim,),
                                            jnp.float32)
    return params


if __name__ == "__main__":
    key = jax.random.PRNGKey(0)
    k_param, k_x = jax.random.split(key)

    # Small config: base channels = 8, latent_dim = 16, batch = 2.
    # Spatial must be 64 so the final 4x4 valid conv yields a 1x1 map.
    batch, channels, base, latent, spatial = 2, 3, 8, 16, 64
    cfgs = _layer_cfgs(channels, base, latent, spatial)
    params = init_params(k_param, channels, base, latent)
    x = jax.random.normal(k_x, (batch, channels, spatial, spatial), jnp.float32)

    prep = prepare_params(params, cfgs)          # one-time, hoisted out of fwd
    fwd = jax.jit(functools.partial(encoder_forward, cfgs=cfgs))

    out = fwd(x, prep)
    jax.block_until_ready(out)
    assert out.shape == (batch, latent, 1, 1), out.shape

    ref = jax.jit(functools.partial(reference_forward, cfgs=cfgs))(x, params)
    jax.block_until_ready(ref)
    assert jnp.allclose(out, ref, atol=5e-3, rtol=5e-3), \
        float(jnp.max(jnp.abs(out - ref)))

    print("KERNEL_OK")
</pallas_src>

<mosaic_0001>
module attributes {stable_mosaic.version = 11 : i64} {
  func.func @_encoder_kernel(%arg0: i32, %arg1: memref<128x192xf32, #tpu.memory_space<vmem>>, %arg2: memref<768x256xf32, #tpu.memory_space<vmem>>, %arg3: memref<1x256xf32, #tpu.memory_space<vmem>>, %arg4: memref<1024x256xf32, #tpu.memory_space<vmem>>, %arg5: memref<2x16xf32, #tpu.memory_space<vmem>>, %arg6: memref<1024x256xf32, #tpu.memory_space<vmem>>, %arg7: memref<2x32xf32, #tpu.memory_space<vmem>>, %arg8: memref<1024x256xf32, #tpu.memory_space<vmem>>, %arg9: memref<2x64xf32, #tpu.memory_space<vmem>>, %arg10: memref<1024x16xf32, #tpu.memory_space<vmem>>, %arg11: memref<1x16xf32, #tpu.memory_space<vmem>>, %arg12: memref<2x16xf32, #tpu.memory_space<vmem>>) attributes {dimension_semantics = [#tpu.dimension_semantics<arbitrary>], iteration_bounds = array<i64: 1>, scalar_prefetch = 0 : i64, scratch_operands = 0 : i64, tpu.core_type = #tpu.core_type<tc>, window_params = [{pipeline_mode = #tpu.pipeline_mode<synchronous>, transform_indices = @transform_0, window_bounds = array<i64: 128, 192>}, {pipeline_mode = #tpu.pipeline_mode<synchronous>, transform_indices = @transform_1, window_bounds = array<i64: 768, 256>}, {pipeline_mode = #tpu.pipeline_mode<synchronous>, transform_indices = @transform_2, window_bounds = array<i64: 1, 256>}, {pipeline_mode = #tpu.pipeline_mode<synchronous>, transform_indices = @transform_3, window_bounds = array<i64: 1024, 256>}, {pipeline_mode = #tpu.pipeline_mode<synchronous>, transform_indices = @transform_4, window_bounds = array<i64: 2, 16>}, {pipeline_mode = #tpu.pipeline_mode<synchronous>, transform_indices = @transform_5, window_bounds = array<i64: 1024, 256>}, {pipeline_mode = #tpu.pipeline_mode<synchronous>, transform_indices = @transform_6, window_bounds = array<i64: 2, 32>}, {pipeline_mode = #tpu.pipeline_mode<synchronous>, transform_indices = @transform_7, window_bounds = array<i64: 1024, 256>}, {pipeline_mode = #tpu.pipeline_mode<synchronous>, transform_indices = @transform_8, window_bounds = array<i64: 2, 64>}, {pipeline_mode = #tpu.pipeline_mode<synchronous>, transform_indices = @transform_9, window_bounds = array<i64: 1024, 16>}, {pipeline_mode = #tpu.pipeline_mode<synchronous>, transform_indices = @transform_10, window_bounds = array<i64: 1, 16>}, {pipeline_mode = #tpu.pipeline_mode<synchronous>, transform_indices = @transform_11, window_bounds = array<i64: 2, 16>}]} {
    %c0 = arith.constant 0 : index
    %c0_0 = arith.constant 0 : index
    %0 = vector.load %arg1[%c0, %c0_0] : memref<128x192xf32, #tpu.memory_space<vmem>>, vector<128x192xf32>
    %1 = tpu.iota {dimensions = array<i32: 0>} : vector<64x128xi32>
    %2 = tpu.iota {dimensions = array<i32: 1>} : vector<64x128xi32>
    %c5_i32 = arith.constant 5 : i32
    %3 = vector.broadcast %c5_i32 : i32 to vector<64x128xi32>
    %4 = arith.shrsi %1, %3 : vector<64x128xi32>
    %c31_i32 = arith.constant 31 : i32
    %5 = vector.broadcast %c31_i32 : i32 to vector<64x128xi32>
    %6 = arith.andi %1, %5 : vector<64x128xi32>
    %c2_i32 = arith.constant 2 : i32
    %7 = vector.broadcast %c2_i32 : i32 to vector<64x128xi32>
    %8 = arith.muli %7, %6 : vector<64x128xi32>
    %c-1_i32 = arith.constant -1 : i32
    %9 = vector.broadcast %c-1_i32 : i32 to vector<64x128xi32>
    %10 = arith.addi %8, %9 : vector<64x128xi32>
    %c64_i32 = arith.constant 64 : i32
    %11 = vector.broadcast %c64_i32 : i32 to vector<64x128xi32>
    %12 = arith.muli %4, %11 : vector<64x128xi32>
    %13 = arith.addi %12, %10 : vector<64x128xi32>
    %14 = arith.cmpi eq, %2, %13 : vector<64x128xi32>
    %c0_i32 = arith.constant 0 : i32
    %15 = vector.broadcast %c0_i32 : i32 to vector<64x128xi32>
    %16 = arith.cmpi sge, %10, %15 : vector<64x128xi32>
    %17 = arith.andi %14, %16 : vector<64x128xi1>
    %c64_i32_1 = arith.constant 64 : i32
    %18 = vector.broadcast %c64_i32_1 : i32 to vector<64x128xi32>
    %19 = arith.cmpi slt, %10, %18 : vector<64x128xi32>
    %20 = arith.andi %17, %19 : vector<64x128xi1>
    %cst = arith.constant 1.000000e+00 : f32
    %cst_2 = arith.constant 0.000000e+00 : f32
    %21 = vector.broadcast %cst : f32 to vector<64x128xf32>
    %22 = vector.broadcast %cst_2 : f32 to vector<64x128xf32>
    %23 = arith.select %20, %21, %22 : vector<64x128xi1>, vector<64x128xf32>
    %cst_3 = arith.constant dense<0.000000e+00> : vector<64x192xf32>
    %24 = tpu.matmul %23, %0, %cst_3 {dimension_numbers = #tpu.dot_dimension_numbers<[1], [0], [0], [1], [0, 0, 1, 1], [], []>} : vector<64x128xf32>, vector<128x192xf32>, vector<64x192xf32> -> vector<64x192xf32>
    %c0_4 = arith.constant 0 : index
    %c0_5 = arith.constant 0 : index
    %25 = vector.load %arg2[%c0_4, %c0_5] : memref<768x256xf32, #tpu.memory_space<vmem>>, vector<192x256xf32>
    %cst_6 = arith.constant dense<0.000000e+00> : vector<64x256xf32>
    %26 = tpu.matmul %24, %25, %cst_6 {dimension_numbers = #tpu.dot_dimension_numbers<[1], [0], [0], [1], [0, 0, 1, 1], [], []>} : vector<64x192xf32>, vector<192x256xf32>, vector<64x256xf32> -> vector<64x256xf32>
    %27 = tpu.iota {dimensions = array<i32: 0>} : vector<64x128xi32>
    %28 = tpu.iota {dimensions = array<i32: 1>} : vector<64x128xi32>
    %c5_i32_7 = arith.constant 5 : i32
    %29 = vector.broadcast %c5_i32_7 : i32 to vector<64x128xi32>
    %30 = arith.shrsi %27, %29 : vector<64x128xi32>
    %c31_i32_8 = arith.constant 31 : i32
    %31 = vector.broadcast %c31_i32_8 : i32 to vector<64x128xi32>
    %32 = arith.andi %27, %31 : vector<64x128xi32>
    %c2_i32_9 = arith.constant 2 : i32
    %33 = vector.broadcast %c2_i32_9 : i32 to vector<64x128xi32>
    %34 = arith.muli %33, %32 : vector<64x128xi32>
    %c0_i32_10 = arith.constant 0 : i32
    %35 = vector.broadcast %c0_i32_10 : i32 to vector<64x128xi32>
    %36 = arith.addi %34, %35 : vector<64x128xi32>
    %c64_i32_11 = arith.constant 64 : i32
    %37 = vector.broadcast %c64_i32_11 : i32 to vector<64x128xi32>
    %38 = arith.muli %30, %37 : vector<64x128xi32>
    %39 = arith.addi %38, %36 : vector<64x128xi32>
    %40 = arith.cmpi eq, %28, %39 : vector<64x128xi32>
    %c0_i32_12 = arith.constant 0 : i32
    %41 = vector.broadcast %c0_i32_12 : i32 to vector<64x128xi32>
    %42 = arith.cmpi sge, %36, %41 : vector<64x128xi32>
    %43 = arith.andi %40, %42 : vector<64x128xi1>
    %c64_i32_13 = arith.constant 64 : i32
    %44 = vector.broadcast %c64_i32_13 : i32 to vector<64x128xi32>
    %45 = arith.cmpi slt, %36, %44 : vector<64x128xi32>
    %46 = arith.andi %43, %45 : vector<64x128xi1>
    %cst_14 = arith.constant 1.000000e+00 : f32
    %cst_15 = arith.constant 0.000000e+00 : f32
    %47 = vector.broadcast %cst_14 : f32 to vector<64x128xf32>
    %48 = vector.broadcast %cst_15 : f32 to vector<64x128xf32>
    %49 = arith.select %46, %47, %48 : vector<64x128xi1>, vector<64x128xf32>
    %cst_16 = arith.constant dense<0.000000e+00> : vector<64x192xf32>
    %50 = tpu.matmul %49, %0, %cst_16 {dimension_numbers = #tpu.dot_dimension_numbers<[1], [0], [0], [1], [0, 0, 1, 1], [], []>} : vector<64x128xf32>, vector<128x192xf32>, vector<64x192xf32> -> vector<64x192xf32>
    %c192 = arith.constant 192 : index
    %c0_17 = arith.constant 0 : index
    %51 = vector.load %arg2[%c192, %c0_17] : memref<768x256xf32, #tpu.memory_space<vmem>>, vector<192x256xf32>
    %cst_18 = arith.constant dense<0.000000e+00> : vector<64x256xf32>
    %52 = tpu.matmul %50, %51, %cst_18 {dimension_numbers = #tpu.dot_dimension_numbers<[1], [0], [0], [1], [0, 0, 1, 1], [], []>} : vector<64x192xf32>, vector<192x256xf32>, vector<64x256xf32> -> vector<64x256xf32>
    %53 = arith.addf %26, %52 : vector<64x256xf32>
    %54 = tpu.iota {dimensions = array<i32: 0>} : vector<64x128xi32>
    %55 = tpu.iota {dimensions = array<i32: 1>} : vector<64x128xi32>
    %c5_i32_19 = arith.constant 5 : i32
    %56 = vector.broadcast %c5_i32_19 : i32 to vector<64x128xi32>
    %57 = arith.shrsi %54, %56 : vector<64x128xi32>
    %c31_i32_20 = arith.constant 31 : i32
    %58 = vector.broadcast %c31_i32_20 : i32 to vector<64x128xi32>
    %59 = arith.andi %54, %58 : vector<64x128xi32>
    %c2_i32_21 = arith.constant 2 : i32
    %60 = vector.broadcast %c2_i32_21 : i32 to vector<64x128xi32>
    %61 = arith.muli %60, %59 : vector<64x128xi32>
    %c1_i32 = arith.constant 1 : i32
    %62 = vector.broadcast %c1_i32 : i32 to vector<64x128xi32>
    %63 = arith.addi %61, %62 : vector<64x128xi32>
    %c64_i32_22 = arith.constant 64 : i32
    %64 = vector.broadcast %c64_i32_22 : i32 to vector<64x128xi32>
    %65 = arith.muli %57, %64 : vector<64x128xi32>
    %66 = arith.addi %65, %63 : vector<64x128xi32>
    %67 = arith.cmpi eq, %55, %66 : vector<64x128xi32>
    %c0_i32_23 = arith.constant 0 : i32
    %68 = vector.broadcast %c0_i32_23 : i32 to vector<64x128xi32>
    %69 = arith.cmpi sge, %63, %68 : vector<64x128xi32>
    %70 = arith.andi %67, %69 : vector<64x128xi1>
    %c64_i32_24 = arith.constant 64 : i32
    %71 = vector.broadcast %c64_i32_24 : i32 to vector<64x128xi32>
    %72 = arith.cmpi slt, %63, %71 : vector<64x128xi32>
    %73 = arith.andi %70, %72 : vector<64x128xi1>
    %cst_25 = arith.constant 1.000000e+00 : f32
    %cst_26 = arith.constant 0.000000e+00 : f32
    %74 = vector.broadcast %cst_25 : f32 to vector<64x128xf32>
    %75 = vector.broadcast %cst_26 : f32 to vector<64x128xf32>
    %76 = arith.select %73, %74, %75 : vector<64x128xi1>, vector<64x128xf32>
    %cst_27 = arith.constant dense<0.000000e+00> : vector<64x192xf32>
    %77 = tpu.matmul %76, %0, %cst_27 {dimension_numbers = #tpu.dot_dimension_numbers<[1], [0], [0], [1], [0, 0, 1, 1], [], []>} : vector<64x128xf32>, vector<128x192xf32>, vector<64x192xf32> -> vector<64x192xf32>
    %c384 = arith.constant 384 : index
    %c0_28 = arith.constant 0 : index
    %78 = vector.load %arg2[%c384, %c0_28] : memref<768x256xf32, #tpu.memory_space<vmem>>, vector<192x256xf32>
    %cst_29 = arith.constant dense<0.000000e+00> : vector<64x256xf32>
    %79 = tpu.matmul %77, %78, %cst_29 {dimension_numbers = #tpu.dot_dimension_numbers<[1], [0], [0], [1], [0, 0, 1, 1], [], []>} : vector<64x192xf32>, vector<192x256xf32>, vector<64x256xf32> -> vector<64x256xf32>
    %80 = arith.addf %53, %79 : vector<64x256xf32>
    %81 = tpu.iota {dimensions = array<i32: 0>} : vector<64x128xi32>
    %82 = tpu.iota {dimensions = array<i32: 1>} : vector<64x128xi32>
    %c5_i32_30 = arith.constant 5 : i32
    %83 = vector.broadcast %c5_i32_30 : i32 to vector<64x128xi32>
    %84 = arith.shrsi %81, %83 : vector<64x128xi32>
    %c31_i32_31 = arith.constant 31 : i32
    %85 = vector.broadcast %c31_i32_31 : i32 to vector<64x128xi32>
    %86 = arith.andi %81, %85 : vector<64x128xi32>
    %c2_i32_32 = arith.constant 2 : i32
    %87 = vector.broadcast %c2_i32_32 : i32 to vector<64x128xi32>
    %88 = arith.muli %87, %86 : vector<64x128xi32>
    %c2_i32_33 = arith.constant 2 : i32
    %89 = vector.broadcast %c2_i32_33 : i32 to vector<64x128xi32>
    %90 = arith.addi %88, %89 : vector<64x128xi32>
    %c64_i32_34 = arith.constant 64 : i32
    %91 = vector.broadcast %c64_i32_34 : i32 to vector<64x128xi32>
    %92 = arith.muli %84, %91 : vector<64x128xi32>
    %93 = arith.addi %92, %90 : vector<64x128xi32>
    %94 = arith.cmpi eq, %82, %93 : vector<64x128xi32>
    %c0_i32_35 = arith.constant 0 : i32
    %95 = vector.broadcast %c0_i32_35 : i32 to vector<64x128xi32>
    %96 = arith.cmpi sge, %90, %95 : vector<64x128xi32>
    %97 = arith.andi %94, %96 : vector<64x128xi1>
    %c64_i32_36 = arith.constant 64 : i32
    %98 = vector.broadcast %c64_i32_36 : i32 to vector<64x128xi32>
    %99 = arith.cmpi slt, %90, %98 : vector<64x128xi32>
    %100 = arith.andi %97, %99 : vector<64x128xi1>
    %cst_37 = arith.constant 1.000000e+00 : f32
    %cst_38 = arith.constant 0.000000e+00 : f32
    %101 = vector.broadcast %cst_37 : f32 to vector<64x128xf32>
    %102 = vector.broadcast %cst_38 : f32 to vector<64x128xf32>
    %103 = arith.select %100, %101, %102 : vector<64x128xi1>, vector<64x128xf32>
    %cst_39 = arith.constant dense<0.000000e+00> : vector<64x192xf32>
    %104 = tpu.matmul %103, %0, %cst_39 {dimension_numbers = #tpu.dot_dimension_numbers<[1], [0], [0], [1], [0, 0, 1, 1], [], []>} : vector<64x128xf32>, vector<128x192xf32>, vector<64x192xf32> -> vector<64x192xf32>
    %c576 = arith.constant 576 : index
    %c0_40 = arith.constant 0 : index
    %105 = vector.load %arg2[%c576, %c0_40] : memref<768x256xf32, #tpu.memory_space<vmem>>, vector<192x256xf32>
    %cst_41 = arith.constant dense<0.000000e+00> : vector<64x256xf32>
    %106 = tpu.matmul %104, %105, %cst_41 {dimension_numbers = #tpu.dot_dimension_numbers<[1], [0], [0], [1], [0, 0, 1, 1], [], []>} : vector<64x192xf32>, vector<192x256xf32>, vector<64x256xf32> -> vector<64x256xf32>
    %107 = arith.addf %80, %106 : vector<64x256xf32>
    %c0_42 = arith.constant 0 : index
    %c0_43 = arith.constant 0 : index
    %108 = vector.load %arg3[%c0_42, %c0_43] : memref<1x256xf32, #tpu.memory_space<vmem>>, vector<1x256xf32>
    %109 = vector.broadcast %108 : vector<1x256xf32> to vector<64x256xf32>
    %110 = arith.addf %107, %109 : vector<64x256xf32>
    %cst_44 = arith.constant 0.000000e+00 : f32
    %111 = vector.broadcast %cst_44 : f32 to vector<64x256xf32>
    %112 = arith.cmpf ogt, %110, %111 : vector<64x256xf32>
    %cst_45 = arith.constant 2.000000e-01 : f32
    %113 = vector.broadcast %cst_45 : f32 to vector<64x256xf32>
    %114 = arith.mulf %113, %110 : vector<64x256xf32>
    %115 = arith.select %112, %110, %114 : vector<64x256xi1>, vector<64x256xf32>
    %116 = tpu.iota {dimensions = array<i32: 0>} : vector<32x64xi32>
    %117 = tpu.iota {dimensions = array<i32: 1>} : vector<32x64xi32>
    %c4_i32 = arith.constant 4 : i32
    %118 = vector.broadcast %c4_i32 : i32 to vector<32x64xi32>
    %119 = arith.shrsi %116, %118 : vector<32x64xi32>
    %c15_i32 = arith.constant 15 : i32
    %120 = vector.broadcast %c15_i32 : i32 to vector<32x64xi32>
    %121 = arith.andi %116, %120 : vector<32x64xi32>
    %c2_i32_46 = arith.constant 2 : i32
    %122 = vector.broadcast %c2_i32_46 : i32 to vector<32x64xi32>
    %123 = arith.muli %122, %121 : vector<32x64xi32>
    %c-1_i32_47 = arith.constant -1 : i32
    %124 = vector.broadcast %c-1_i32_47 : i32 to vector<32x64xi32>
    %125 = arith.addi %123, %124 : vector<32x64xi32>
    %c32_i32 = arith.constant 32 : i32
    %126 = vector.broadcast %c32_i32 : i32 to vector<32x64xi32>
    %127 = arith.muli %119, %126 : vector<32x64xi32>
    %128 = arith.addi %127, %125 : vector<32x64xi32>
    %129 = arith.cmpi eq, %117, %128 : vector<32x64xi32>
    %c0_i32_48 = arith.constant 0 : i32
    %130 = vector.broadcast %c0_i32_48 : i32 to vector<32x64xi32>
    %131 = arith.cmpi sge, %125, %130 : vector<32x64xi32>
    %132 = arith.andi %129, %131 : vector<32x64xi1>
    %c32_i32_49 = arith.constant 32 : i32
    %133 = vector.broadcast %c32_i32_49 : i32 to vector<32x64xi32>
    %134 = arith.cmpi slt, %125, %133 : vector<32x64xi32>
    %135 = arith.andi %132, %134 : vector<32x64xi1>
    %cst_50 = arith.constant 1.000000e+00 : f32
    %cst_51 = arith.constant 0.000000e+00 : f32
    %136 = vector.broadcast %cst_50 : f32 to vector<32x64xf32>
    %137 = vector.broadcast %cst_51 : f32 to vector<32x64xf32>
    %138 = arith.select %135, %136, %137 : vector<32x64xi1>, vector<32x64xf32>
    %cst_52 = arith.constant dense<0.000000e+00> : vector<32x256xf32>
    %139 = tpu.matmul %138, %115, %cst_52 {dimension_numbers = #tpu.dot_dimension_numbers<[1], [0], [0], [1], [0, 0, 1, 1], [], []>} : vector<32x64xf32>, vector<64x256xf32>, vector<32x256xf32> -> vector<32x256xf32>
    %c0_53 = arith.constant 0 : index
    %c0_54 = arith.constant 0 : index
    %140 = vector.load %arg4[%c0_53, %c0_54] : memref<1024x256xf32, #tpu.memory_space<vmem>>, vector<256x256xf32>
    %cst_55 = arith.constant dense<0.000000e+00> : vector<32x256xf32>
    %141 = tpu.matmul %139, %140, %cst_55 {dimension_numbers = #tpu.dot_dimension_numbers<[1], [0], [0], [1], [0, 0, 1, 1], [], []>} : vector<32x256xf32>, vector<256x256xf32>, vector<32x256xf32> -> vector<32x256xf32>
    %142 = tpu.iota {dimensions = array<i32: 0>} : vector<32x64xi32>
    %143 = tpu.iota {dimensions = array<i32: 1>} : vector<32x64xi32>
    %c4_i32_56 = arith.constant 4 : i32
    %144 = vector.broadcast %c4_i32_56 : i32 to vector<32x64xi32>
    %145 = arith.shrsi %142, %144 : vector<32x64xi32>
    %c15_i32_57 = arith.constant 15 : i32
    %146 = vector.broadcast %c15_i32_57 : i32 to vector<32x64xi32>
    %147 = arith.andi %142, %146 : vector<32x64xi32>
    %c2_i32_58 = arith.constant 2 : i32
    %148 = vector.broadcast %c2_i32_58 : i32 to vector<32x64xi32>
    %149 = arith.muli %148, %147 : vector<32x64xi32>
    %c0_i32_59 = arith.constant 0 : i32
    %150 = vector.broadcast %c0_i32_59 : i32 to vector<32x64xi32>
    %151 = arith.addi %149, %150 : vector<32x64xi32>
    %c32_i32_60 = arith.constant 32 : i32
    %152 = vector.broadcast %c32_i32_60 : i32 to vector<32x64xi32>
    %153 = arith.muli %145, %152 : vector<32x64xi32>
    %154 = arith.addi %153, %151 : vector<32x64xi32>
    %155 = arith.cmpi eq, %143, %154 : vector<32x64xi32>
    %c0_i32_61 = arith.constant 0 : i32
    %156 = vector.broadcast %c0_i32_61 : i32 to vector<32x64xi32>
    %157 = arith.cmpi sge, %151, %156 : vector<32x64xi32>
    %158 = arith.andi %155, %157 : vector<32x64xi1>
    %c32_i32_62 = arith.constant 32 : i32
    %159 = vector.broadcast %c32_i32_62 : i32 to vector<32x64xi32>
    %160 = arith.cmpi slt, %151, %159 : vector<32x64xi32>
    %161 = arith.andi %158, %160 : vector<32x64xi1>
    %cst_63 = arith.constant 1.000000e+00 : f32
    %cst_64 = arith.constant 0.000000e+00 : f32
    %162 = vector.broadcast %cst_63 : f32 to vector<32x64xf32>
    %163 = vector.broadcast %cst_64 : f32 to vector<32x64xf32>
    %164 = arith.select %161, %162, %163 : vector<32x64xi1>, vector<32x64xf32>
    %cst_65 = arith.constant dense<0.000000e+00> : vector<32x256xf32>
    %165 = tpu.matmul %164, %115, %cst_65 {dimension_numbers = #tpu.dot_dimension_numbers<[1], [0], [0], [1], [0, 0, 1, 1], [], []>} : vector<32x64xf32>, vector<64x256xf32>, vector<32x256xf32> -> vector<32x256xf32>
    %c256 = arith.constant 256 : index
    %c0_66 = arith.constant 0 : index
    %166 = vector.load %arg4[%c256, %c0_66] : memref<1024x256xf32, #tpu.memory_space<vmem>>, vector<256x256xf32>
    %cst_67 = arith.constant dense<0.000000e+00> : vector<32x256xf32>
    %167 = tpu.matmul %165, %166, %cst_67 {dimension_numbers = #tpu.dot_dimension_numbers<[1], [0], [0], [1], [0, 0, 1, 1], [], []>} : vector<32x256xf32>, vector<256x256xf32>, vector<32x256xf32> -> vector<32x256xf32>
    %168 = arith.addf %141, %167 : vector<32x256xf32>
    %169 = tpu.iota {dimensions = array<i32: 0>} : vector<32x64xi32>
    %170 = tpu.iota {dimensions = array<i32: 1>} : vector<32x64xi32>
    %c4_i32_68 = arith.constant 4 : i32
    %171 = vector.broadcast %c4_i32_68 : i32 to vector<32x64xi32>
    %172 = arith.shrsi %169, %171 : vector<32x64xi32>
    %c15_i32_69 = arith.constant 15 : i32
    %173 = vector.broadcast %c15_i32_69 : i32 to vector<32x64xi32>
    %174 = arith.andi %169, %173 : vector<32x64xi32>
    %c2_i32_70 = arith.constant 2 : i32
    %175 = vector.broadcast %c2_i32_70 : i32 to vector<32x64xi32>
    %176 = arith.muli %175, %174 : vector<32x64xi32>
    %c1_i32_71 = arith.constant 1 : i32
    %177 = vector.broadcast %c1_i32_71 : i32 to vector<32x64xi32>
    %178 = arith.addi %176, %177 : vector<32x64xi32>
    %c32_i32_72 = arith.constant 32 : i32
    %179 = vector.broadcast %c32_i32_72 : i32 to vector<32x64xi32>
    %180 = arith.muli %172, %179 : vector<32x64xi32>
    %181 = arith.addi %180, %178 : vector<32x64xi32>
    %182 = arith.cmpi eq, %170, %181 : vector<32x64xi32>
    %c0_i32_73 = arith.constant 0 : i32
    %183 = vector.broadcast %c0_i32_73 : i32 to vector<32x64xi32>
    %184 = arith.cmpi sge, %178, %183 : vector<32x64xi32>
    %185 = arith.andi %182, %184 : vector<32x64xi1>
    %c32_i32_74 = arith.constant 32 : i32
    %186 = vector.broadcast %c32_i32_74 : i32 to vector<32x64xi32>
    %187 = arith.cmpi slt, %178, %186 : vector<32x64xi32>
    %188 = arith.andi %185, %187 : vector<32x64xi1>
    %cst_75 = arith.constant 1.000000e+00 : f32
    %cst_76 = arith.constant 0.000000e+00 : f32
    %189 = vector.broadcast %cst_75 : f32 to vector<32x64xf32>
    %190 = vector.broadcast %cst_76 : f32 to vector<32x64xf32>
    %191 = arith.select %188, %189, %190 : vector<32x64xi1>, vector<32x64xf32>
    %cst_77 = arith.constant dense<0.000000e+00> : vector<32x256xf32>
    %192 = tpu.matmul %191, %115, %cst_77 {dimension_numbers = #tpu.dot_dimension_numbers<[1], [0], [0], [1], [0, 0, 1, 1], [], []>} : vector<32x64xf32>, vector<64x256xf32>, vector<32x256xf32> -> vector<32x256xf32>
    %c512 = arith.constant 512 : index
    %c0_78 = arith.constant 0 : index
    %193 = vector.load %arg4[%c512, %c0_78] : memref<1024x256xf32, #tpu.memory_space<vmem>>, vector<256x256xf32>
    %cst_79 = arith.constant dense<0.000000e+00> : vector<32x256xf32>
    %194 = tpu.matmul %192, %193, %cst_79 {dimension_numbers = #tpu.dot_dimension_numbers<[1], [0], [0], [1], [0, 0, 1, 1], [], []>} : vector<32x256xf32>, vector<256x256xf32>, vector<32x256xf32> -> vector<32x256xf32>
    %195 = arith.addf %168, %194 : vector<32x256xf32>
    %196 = tpu.iota {dimensions = array<i32: 0>} : vector<32x64xi32>
    %197 = tpu.iota {dimensions = array<i32: 1>} : vector<32x64xi32>
    %c4_i32_80 = arith.constant 4 : i32
    %198 = vector.broadcast %c4_i32_80 : i32 to vector<32x64xi32>
    %199 = arith.shrsi %196, %198 : vector<32x64xi32>
    %c15_i32_81 = arith.constant 15 : i32
    %200 = vector.broadcast %c15_i32_81 : i32 to vector<32x64xi32>
    %201 = arith.andi %196, %200 : vector<32x64xi32>
    %c2_i32_82 = arith.constant 2 : i32
    %202 = vector.broadcast %c2_i32_82 : i32 to vector<32x64xi32>
    %203 = arith.muli %202, %201 : vector<32x64xi32>
    %c2_i32_83 = arith.constant 2 : i32
    %204 = vector.broadcast %c2_i32_83 : i32 to vector<32x64xi32>
    %205 = arith.addi %203, %204 : vector<32x64xi32>
    %c32_i32_84 = arith.constant 32 : i32
    %206 = vector.broadcast %c32_i32_84 : i32 to vector<32x64xi32>
    %207 = arith.muli %199, %206 : vector<32x64xi32>
    %208 = arith.addi %207, %205 : vector<32x64xi32>
    %209 = arith.cmpi eq, %197, %208 : vector<32x64xi32>
    %c0_i32_85 = arith.constant 0 : i32
    %210 = vector.broadcast %c0_i32_85 : i32 to vector<32x64xi32>
    %211 = arith.cmpi sge, %205, %210 : vector<32x64xi32>
    %212 = arith.andi %209, %211 : vector<32x64xi1>
    %c32_i32_86 = arith.constant 32 : i32
    %213 = vector.broadcast %c32_i32_86 : i32 to vector<32x64xi32>
    %214 = arith.cmpi slt, %205, %213 : vector<32x64xi32>
    %215 = arith.andi %212, %214 : vector<32x64xi1>
    %cst_87 = arith.constant 1.000000e+00 : f32
    %cst_88 = arith.constant 0.000000e+00 : f32
    %216 = vector.broadcast %cst_87 : f32 to vector<32x64xf32>
    %217 = vector.broadcast %cst_88 : f32 to vector<32x64xf32>
    %218 = arith.select %215, %216, %217 : vector<32x64xi1>, vector<32x64xf32>
    %cst_89 = arith.constant dense<0.000000e+00> : vector<32x256xf32>
    %219 = tpu.matmul %218, %115, %cst_89 {dimension_numbers = #tpu.dot_dimension_numbers<[1], [0], [0], [1], [0, 0, 1, 1], [], []>} : vector<32x64xf32>, vector<64x256xf32>, vector<32x256xf32> -> vector<32x256xf32>
    %c768 = arith.constant 768 : index
    %c0_90 = arith.constant 0 : index
    %220 = vector.load %arg4[%c768, %c0_90] : memref<1024x256xf32, #tpu.memory_space<vmem>>, vector<256x256xf32>
    %cst_91 = arith.constant dense<0.000000e+00> : vector<32x256xf32>
    %221 = tpu.matmul %219, %220, %cst_91 {dimension_numbers = #tpu.dot_dimension_numbers<[1], [0], [0], [1], [0, 0, 1, 1], [], []>} : vector<32x256xf32>, vector<256x256xf32>, vector<32x256xf32> -> vector<32x256xf32>
    %222 = arith.addf %195, %221 : vector<32x256xf32>
    %223 = tpu.iota {dimensions = array<i32: 0>} : vector<256x16xi32>
    %224 = tpu.iota {dimensions = array<i32: 1>} : vector<256x16xi32>
    %c15_i32_92 = arith.constant 15 : i32
    %225 = vector.broadcast %c15_i32_92 : i32 to vector<256x16xi32>
    %226 = arith.andi %223, %225 : vector<256x16xi32>
    %227 = arith.cmpi eq, %226, %224 : vector<256x16xi32>
    %cst_93 = arith.constant 1.000000e+00 : f32
    %cst_94 = arith.constant 0.000000e+00 : f32
    %228 = vector.broadcast %cst_93 : f32 to vector<256x16xf32>
    %229 = vector.broadcast %cst_94 : f32 to vector<256x16xf32>
    %230 = arith.select %227, %228, %229 : vector<256x16xi1>, vector<256x16xf32>
    %231 = tpu.iota {dimensions = array<i32: 0>} : vector<16x256xi32>
    %232 = tpu.iota {dimensions = array<i32: 1>} : vector<16x256xi32>
    %c15_i32_95 = arith.constant 15 : i32
    %233 = vector.broadcast %c15_i32_95 : i32 to vector<16x256xi32>
    %234 = arith.andi %232, %233 : vector<16x256xi32>
    %235 = arith.cmpi eq, %234, %231 : vector<16x256xi32>
    %cst_96 = arith.constant 1.000000e+00 : f32
    %cst_97 = arith.constant 0.000000e+00 : f32
    %236 = vector.broadcast %cst_96 : f32 to vector<16x256xf32>
    %237 = vector.broadcast %cst_97 : f32 to vector<16x256xf32>
    %238 = arith.select %235, %236, %237 : vector<16x256xi1>, vector<16x256xf32>
    %c0_98 = arith.constant 0 : index
    %c0_99 = arith.constant 0 : index
    %239 = vector.load %arg5[%c0_98, %c0_99] : memref<2x16xf32, #tpu.memory_space<vmem>>, vector<2x16xf32>
    %240 = vector.extract_strided_slice %239 {offsets = [0, 0], sizes = [1, 16], strides = [1, 1]} : vector<2x16xf32> to vector<1x16xf32>
    %241 = vector.extract_strided_slice %239 {offsets = [1, 0], sizes = [1, 16], strides = [1, 1]} : vector<2x16xf32> to vector<1x16xf32>
    %cst_100 = arith.constant dense<0.000000e+00> : vector<256xf32>
    %242 = vector.multi_reduction <add>, %222, %cst_100 [0] : vector<32x256xf32> to vector<256xf32>
    %243 = vector.shape_cast %242 : vector<256xf32> to vector<1x256xf32>
    %cst_101 = arith.constant dense<0.000000e+00> : vector<1x16xf32>
    %244 = tpu.matmul %243, %230, %cst_101 {dimension_numbers = #tpu.dot_dimension_numbers<[1], [0], [0], [1], [0, 0, 1, 1], [], []>} : vector<1x256xf32>, vector<256x16xf32>, vector<1x16xf32> -> vector<1x16xf32>
    %cst_102 = arith.constant 0.001953125 : f32
    %245 = vector.broadcast %cst_102 : f32 to vector<1x16xf32>
    %246 = arith.mulf %244, %245 : vector<1x16xf32>
    %cst_103 = arith.constant dense<0.000000e+00> : vector<1x256xf32>
    %247 = tpu.matmul %246, %238, %cst_103 {dimension_numbers = #tpu.dot_dimension_numbers<[1], [0], [0], [1], [0, 0, 1, 1], [], []>} : vector<1x16xf32>, vector<16x256xf32>, vector<1x256xf32> -> vector<1x256xf32>
    %248 = vector.broadcast %247 : vector<1x256xf32> to vector<32x256xf32>
    %249 = arith.subf %222, %248 : vector<32x256xf32>
    %250 = arith.mulf %249, %249 : vector<32x256xf32>
    %cst_104 = arith.constant dense<0.000000e+00> : vector<256xf32>
    %251 = vector.multi_reduction <add>, %250, %cst_104 [0] : vector<32x256xf32> to vector<256xf32>
    %252 = vector.shape_cast %251 : vector<256xf32> to vector<1x256xf32>
    %cst_105 = arith.constant dense<0.000000e+00> : vector<1x16xf32>
    %253 = tpu.matmul %252, %230, %cst_105 {dimension_numbers = #tpu.dot_dimension_numbers<[1], [0], [0], [1], [0, 0, 1, 1], [], []>} : vector<1x256xf32>, vector<256x16xf32>, vector<1x16xf32> -> vector<1x16xf32>
    %cst_106 = arith.constant 0.001953125 : f32
    %254 = vector.broadcast %cst_106 : f32 to vector<1x16xf32>
    %255 = arith.mulf %253, %254 : vector<1x16xf32>
    %cst_107 = arith.constant 9.99999974E-6 : f32
    %256 = vector.broadcast %cst_107 : f32 to vector<1x16xf32>
    %257 = arith.addf %255, %256 : vector<1x16xf32>
    %258 = math.rsqrt %257 : vector<1x16xf32>
    %259 = arith.mulf %240, %258 : vector<1x16xf32>
    %cst_108 = arith.constant dense<0.000000e+00> : vector<1x256xf32>
    %260 = tpu.matmul %259, %238, %cst_108 {dimension_numbers = #tpu.dot_dimension_numbers<[1], [0], [0], [1], [0, 0, 1, 1], [], []>} : vector<1x16xf32>, vector<16x256xf32>, vector<1x256xf32> -> vector<1x256xf32>
    %261 = vector.broadcast %260 : vector<1x256xf32> to vector<32x256xf32>
    %262 = arith.mulf %249, %261 : vector<32x256xf32>
    %cst_109 = arith.constant dense<0.000000e+00> : vector<1x256xf32>
    %263 = tpu.matmul %241, %238, %cst_109 {dimension_numbers = #tpu.dot_dimension_numbers<[1], [0], [0], [1], [0, 0, 1, 1], [], []>} : vector<1x16xf32>, vector<16x256xf32>, vector<1x256xf32> -> vector<1x256xf32>
    %264 = vector.broadcast %263 : vector<1x256xf32> to vector<32x256xf32>
    %265 = arith.addf %262, %264 : vector<32x256xf32>
    %cst_110 = arith.constant 0.000000e+00 : f32
    %266 = vector.broadcast %cst_110 : f32 to vector<32x256xf32>
    %267 = arith.cmpf ogt, %265, %266 : vector<32x256xf32>
    %cst_111 = arith.constant 2.000000e-01 : f32
    %268 = vector.broadcast %cst_111 : f32 to vector<32x256xf32>
    %269 = arith.mulf %268, %265 : vector<32x256xf32>
    %270 = arith.select %267, %265, %269 : vector<32x256xi1>, vector<32x256xf32>
    %271 = tpu.iota {dimensions = array<i32: 0>} : vector<16x32xi32>
    %272 = tpu.iota {dimensions = array<i32: 1>} : vector<16x32xi32>
    %c3_i32 = arith.constant 3 : i32
    %273 = vector.broadcast %c3_i32 : i32 to vector<16x32xi32>
    %274 = arith.shrsi %271, %273 : vector<16x32xi32>
    %c7_i32 = arith.constant 7 : i32
    %275 = vector.broadcast %c7_i32 : i32 to vector<16x32xi32>
    %276 = arith.andi %271, %275 : vector<16x32xi32>
    %c2_i32_112 = arith.constant 2 : i32
    %277 = vector.broadcast %c2_i32_112 : i32 to vector<16x32xi32>
    %278 = arith.muli %277, %276 : vector<16x32xi32>
    %c-1_i32_113 = arith.constant -1 : i32
    %279 = vector.broadcast %c-1_i32_113 : i32 to vector<16x32xi32>
    %280 = arith.addi %278, %279 : vector<16x32xi32>
    %c16_i32 = arith.constant 16 : i32
    %281 = vector.broadcast %c16_i32 : i32 to vector<16x32xi32>
    %282 = arith.muli %274, %281 : vector<16x32xi32>
    %283 = arith.addi %282, %280 : vector<16x32xi32>
    %284 = arith.cmpi eq, %272, %283 : vector<16x32xi32>
    %c0_i32_114 = arith.constant 0 : i32
    %285 = vector.broadcast %c0_i32_114 : i32 to vector<16x32xi32>
    %286 = arith.cmpi sge, %280, %285 : vector<16x32xi32>
    %287 = arith.andi %284, %286 : vector<16x32xi1>
    %c16_i32_115 = arith.constant 16 : i32
    %288 = vector.broadcast %c16_i32_115 : i32 to vector<16x32xi32>
    %289 = arith.cmpi slt, %280, %288 : vector<16x32xi32>
    %290 = arith.andi %287, %289 : vector<16x32xi1>
    %cst_116 = arith.constant 1.000000e+00 : f32
    %cst_117 = arith.constant 0.000000e+00 : f32
    %291 = vector.broadcast %cst_116 : f32 to vector<16x32xf32>
    %292 = vector.broadcast %cst_117 : f32 to vector<16x32xf32>
    %293 = arith.select %290, %291, %292 : vector<16x32xi1>, vector<16x32xf32>
    %cst_118 = arith.constant dense<0.000000e+00> : vector<16x256xf32>
    %294 = tpu.matmul %293, %270, %cst_118 {dimension_numbers = #tpu.dot_dimension_numbers<[1], [0], [0], [1], [0, 0, 1, 1], [], []>} : vector<16x32xf32>, vector<32x256xf32>, vector<16x256xf32> -> vector<16x256xf32>
    %c0_119 = arith.constant 0 : index
    %c0_120 = arith.constant 0 : index
    %295 = vector.load %arg6[%c0_119, %c0_120] : memref<1024x256xf32, #tpu.memory_space<vmem>>, vector<256x256xf32>
    %cst_121 = arith.constant dense<0.000000e+00> : vector<16x256xf32>
    %296 = tpu.matmul %294, %295, %cst_121 {dimension_numbers = #tpu.dot_dimension_numbers<[1], [0], [0], [1], [0, 0, 1, 1], [], []>} : vector<16x256xf32>, vector<256x256xf32>, vector<16x256xf32> -> vector<16x256xf32>
    %297 = tpu.iota {dimensions = array<i32: 0>} : vector<16x32xi32>
    %298 = tpu.iota {dimensions = array<i32: 1>} : vector<16x32xi32>
    %c3_i32_122 = arith.constant 3 : i32
    %299 = vector.broadcast %c3_i32_122 : i32 to vector<16x32xi32>
    %300 = arith.shrsi %297, %299 : vector<16x32xi32>
    %c7_i32_123 = arith.constant 7 : i32
    %301 = vector.broadcast %c7_i32_123 : i32 to vector<16x32xi32>
    %302 = arith.andi %297, %301 : vector<16x32xi32>
    %c2_i32_124 = arith.constant 2 : i32
    %303 = vector.broadcast %c2_i32_124 : i32 to vector<16x32xi32>
    %304 = arith.muli %303, %302 : vector<16x32xi32>
    %c0_i32_125 = arith.constant 0 : i32
    %305 = vector.broadcast %c0_i32_125 : i32 to vector<16x32xi32>
    %306 = arith.addi %304, %305 : vector<16x32xi32>
    %c16_i32_126 = arith.constant 16 : i32
    %307 = vector.broadcast %c16_i32_126 : i32 to vector<16x32xi32>
    %308 = arith.muli %300, %307 : vector<16x32xi32>
    %309 = arith.addi %308, %306 : vector<16x32xi32>
    %310 = arith.cmpi eq, %298, %309 : vector<16x32xi32>
    %c0_i32_127 = arith.constant 0 : i32
    %311 = vector.broadcast %c0_i32_127 : i32 to vector<16x32xi32>
    %312 = arith.cmpi sge, %306, %311 : vector<16x32xi32>
    %313 = arith.andi %310, %312 : vector<16x32xi1>
    %c16_i32_128 = arith.constant 16 : i32
    %314 = vector.broadcast %c16_i32_128 : i32 to vector<16x32xi32>
    %315 = arith.cmpi slt, %306, %314 : vector<16x32xi32>
    %316 = arith.andi %313, %315 : vector<16x32xi1>
    %cst_129 = arith.constant 1.000000e+00 : f32
    %cst_130 = arith.constant 0.000000e+00 : f32
    %317 = vector.broadcast %cst_129 : f32 to vector<16x32xf32>
    %318 = vector.broadcast %cst_130 : f32 to vector<16x32xf32>
    %319 = arith.select %316, %317, %318 : vector<16x32xi1>, vector<16x32xf32>
    %cst_131 = arith.constant dense<0.000000e+00> : vector<16x256xf32>
    %320 = tpu.matmul %319, %270, %cst_131 {dimension_numbers = #tpu.dot_dimension_numbers<[1], [0], [0], [1], [0, 0, 1, 1], [], []>} : vector<16x32xf32>, vector<32x256xf32>, vector<16x256xf32> -> vector<16x256xf32>
    %c256_132 = arith.constant 256 : index
    %c0_133 = arith.constant 0 : index
    %321 = vector.load %arg6[%c256_132, %c0_133] : memref<1024x256xf32, #tpu.memory_space<vmem>>, vector<256x256xf32>
    %cst_134 = arith.constant dense<0.000000e+00> : vector<16x256xf32>
    %322 = tpu.matmul %320, %321, %cst_134 {dimension_numbers = #tpu.dot_dimension_numbers<[1], [0], [0], [1], [0, 0, 1, 1], [], []>} : vector<16x256xf32>, vector<256x256xf32>, vector<16x256xf32> -> vector<16x256xf32>
    %323 = arith.addf %296, %322 : vector<16x256xf32>
    %324 = tpu.iota {dimensions = array<i32: 0>} : vector<16x32xi32>
    %325 = tpu.iota {dimensions = array<i32: 1>} : vector<16x32xi32>
    %c3_i32_135 = arith.constant 3 : i32
    %326 = vector.broadcast %c3_i32_135 : i32 to vector<16x32xi32>
    %327 = arith.shrsi %324, %326 : vector<16x32xi32>
    %c7_i32_136 = arith.constant 7 : i32
    %328 = vector.broadcast %c7_i32_136 : i32 to vector<16x32xi32>
    %329 = arith.andi %324, %328 : vector<16x32xi32>
    %c2_i32_137 = arith.constant 2 : i32
    %330 = vector.broadcast %c2_i32_137 : i32 to vector<16x32xi32>
    %331 = arith.muli %330, %329 : vector<16x32xi32>
    %c1_i32_138 = arith.constant 1 : i32
    %332 = vector.broadcast %c1_i32_138 : i32 to vector<16x32xi32>
    %333 = arith.addi %331, %332 : vector<16x32xi32>
    %c16_i32_139 = arith.constant 16 : i32
    %334 = vector.broadcast %c16_i32_139 : i32 to vector<16x32xi32>
    %335 = arith.muli %327, %334 : vector<16x32xi32>
    %336 = arith.addi %335, %333 : vector<16x32xi32>
    %337 = arith.cmpi eq, %325, %336 : vector<16x32xi32>
    %c0_i32_140 = arith.constant 0 : i32
    %338 = vector.broadcast %c0_i32_140 : i32 to vector<16x32xi32>
    %339 = arith.cmpi sge, %333, %338 : vector<16x32xi32>
    %340 = arith.andi %337, %339 : vector<16x32xi1>
    %c16_i32_141 = arith.constant 16 : i32
    %341 = vector.broadcast %c16_i32_141 : i32 to vector<16x32xi32>
    %342 = arith.cmpi slt, %333, %341 : vector<16x32xi32>
    %343 = arith.andi %340, %342 : vector<16x32xi1>
    %cst_142 = arith.constant 1.000000e+00 : f32
    %cst_143 = arith.constant 0.000000e+00 : f32
    %344 = vector.broadcast %cst_142 : f32 to vector<16x32xf32>
    %345 = vector.broadcast %cst_143 : f32 to vector<16x32xf32>
    %346 = arith.select %343, %344, %345 : vector<16x32xi1>, vector<16x32xf32>
    %cst_144 = arith.constant dense<0.000000e+00> : vector<16x256xf32>
    %347 = tpu.matmul %346, %270, %cst_144 {dimension_numbers = #tpu.dot_dimension_numbers<[1], [0], [0], [1], [0, 0, 1, 1], [], []>} : vector<16x32xf32>, vector<32x256xf32>, vector<16x256xf32> -> vector<16x256xf32>
    %c512_145 = arith.constant 512 : index
    %c0_146 = arith.constant 0 : index
    %348 = vector.load %arg6[%c512_145, %c0_146] : memref<1024x256xf32, #tpu.memory_space<vmem>>, vector<256x256xf32>
    %cst_147 = arith.constant dense<0.000000e+00> : vector<16x256xf32>
    %349 = tpu.matmul %347, %348, %cst_147 {dimension_numbers = #tpu.dot_dimension_numbers<[1], [0], [0], [1], [0, 0, 1, 1], [], []>} : vector<16x256xf32>, vector<256x256xf32>, vector<16x256xf32> -> vector<16x256xf32>
    %350 = arith.addf %323, %349 : vector<16x256xf32>
    %351 = tpu.iota {dimensions = array<i32: 0>} : vector<16x32xi32>
    %352 = tpu.iota {dimensions = array<i32: 1>} : vector<16x32xi32>
    %c3_i32_148 = arith.constant 3 : i32
    %353 = vector.broadcast %c3_i32_148 : i32 to vector<16x32xi32>
    %354 = arith.shrsi %351, %353 : vector<16x32xi32>
    %c7_i32_149 = arith.constant 7 : i32
    %355 = vector.broadcast %c7_i32_149 : i32 to vector<16x32xi32>
    %356 = arith.andi %351, %355 : vector<16x32xi32>
    %c2_i32_150 = arith.constant 2 : i32
    %357 = vector.broadcast %c2_i32_150 : i32 to vector<16x32xi32>
    %358 = arith.muli %357, %356 : vector<16x32xi32>
    %c2_i32_151 = arith.constant 2 : i32
    %359 = vector.broadcast %c2_i32_151 : i32 to vector<16x32xi32>
    %360 = arith.addi %358, %359 : vector<16x32xi32>
    %c16_i32_152 = arith.constant 16 : i32
    %361 = vector.broadcast %c16_i32_152 : i32 to vector<16x32xi32>
    %362 = arith.muli %354, %361 : vector<16x32xi32>
    %363 = arith.addi %362, %360 : vector<16x32xi32>
    %364 = arith.cmpi eq, %352, %363 : vector<16x32xi32>
    %c0_i32_153 = arith.constant 0 : i32
    %365 = vector.broadcast %c0_i32_153 : i32 to vector<16x32xi32>
    %366 = arith.cmpi sge, %360, %365 : vector<16x32xi32>
    %367 = arith.andi %364, %366 : vector<16x32xi1>
    %c16_i32_154 = arith.constant 16 : i32
    %368 = vector.broadcast %c16_i32_154 : i32 to vector<16x32xi32>
    %369 = arith.cmpi slt, %360, %368 : vector<16x32xi32>
    %370 = arith.andi %367, %369 : vector<16x32xi1>
    %cst_155 = arith.constant 1.000000e+00 : f32
    %cst_156 = arith.constant 0.000000e+00 : f32
    %371 = vector.broadcast %cst_155 : f32 to vector<16x32xf32>
    %372 = vector.broadcast %cst_156 : f32 to vector<16x32xf32>
    %373 = arith.select %370, %371, %372 : vector<16x32xi1>, vector<16x32xf32>
    %cst_157 = arith.constant dense<0.000000e+00> : vector<16x256xf32>
    %374 = tpu.matmul %373, %270, %cst_157 {dimension_numbers = #tpu.dot_dimension_numbers<[1], [0], [0], [1], [0, 0, 1, 1], [], []>} : vector<16x32xf32>, vector<32x256xf32>, vector<16x256xf32> -> vector<16x256xf32>
    %c768_158 = arith.constant 768 : index
    %c0_159 = arith.constant 0 : index
    %375 = vector.load %arg6[%c768_158, %c0_159] : memref<1024x256xf32, #tpu.memory_space<vmem>>, vector<256x256xf32>
    %cst_160 = arith.constant dense<0.000000e+00> : vector<16x256xf32>
    %376 = tpu.matmul %374, %375, %cst_160 {dimension_numbers = #tpu.dot_dimension_numbers<[1], [0], [0], [1], [0, 0, 1, 1], [], []>} : vector<16x256xf32>, vector<256x256xf32>, vector<16x256xf32> -> vector<16x256xf32>
    %377 = arith.addf %350, %376 : vector<16x256xf32>
    %378 = tpu.iota {dimensions = array<i32: 0>} : vector<256x32xi32>
    %379 = tpu.iota {dimensions = array<i32: 1>} : vector<256x32xi32>
    %c31_i32_161 = arith.constant 31 : i32
    %380 = vector.broadcast %c31_i32_161 : i32 to vector<256x32xi32>
    %381 = arith.andi %378, %380 : vector<256x32xi32>
    %382 = arith.cmpi eq, %381, %379 : vector<256x32xi32>
    %cst_162 = arith.constant 1.000000e+00 : f32
    %cst_163 = arith.constant 0.000000e+00 : f32
    %383 = vector.broadcast %cst_162 : f32 to vector<256x32xf32>
    %384 = vector.broadcast %cst_163 : f32 to vector<256x32xf32>
    %385 = arith.select %382, %383, %384 : vector<256x32xi1>, vector<256x32xf32>
    %386 = tpu.iota {dimensions = array<i32: 0>} : vector<32x256xi32>
    %387 = tpu.iota {dimensions = array<i32: 1>} : vector<32x256xi32>
    %c31_i32_164 = arith.constant 31 : i32
    %388 = vector.broadcast %c31_i32_164 : i32 to vector<32x256xi32>
    %389 = arith.andi %387, %388 : vector<32x256xi32>
    %390 = arith.cmpi eq, %389, %386 : vector<32x256xi32>
    %cst_165 = arith.constant 1.000000e+00 : f32
    %cst_166 = arith.constant 0.000000e+00 : f32
    %391 = vector.broadcast %cst_165 : f32 to vector<32x256xf32>
    %392 = vector.broadcast %cst_166 : f32 to vector<32x256xf32>
    %393 = arith.select %390, %391, %392 : vector<32x256xi1>, vector<32x256xf32>
    %c0_167 = arith.constant 0 : index
    %c0_168 = arith.constant 0 : index
    %394 = vector.load %arg7[%c0_167, %c0_168] : memref<2x32xf32, #tpu.memory_space<vmem>>, vector<2x32xf32>
    %395 = vector.extract_strided_slice %394 {offsets = [0, 0], sizes = [1, 32], strides = [1, 1]} : vector<2x32xf32> to vector<1x32xf32>
    %396 = vector.extract_strided_slice %394 {offsets = [1, 0], sizes = [1, 32], strides = [1, 1]} : vector<2x32xf32> to vector<1x32xf32>
    %cst_169 = arith.constant dense<0.000000e+00> : vector<256xf32>
    %397 = vector.multi_reduction <add>, %377, %cst_169 [0] : vector<16x256xf32> to vector<256xf32>
    %398 = vector.shape_cast %397 : vector<256xf32> to vector<1x256xf32>
    %cst_170 = arith.constant dense<0.000000e+00> : vector<1x32xf32>
    %399 = tpu.matmul %398, %385, %cst_170 {dimension_numbers = #tpu.dot_dimension_numbers<[1], [0], [0], [1], [0, 0, 1, 1], [], []>} : vector<1x256xf32>, vector<256x32xf32>, vector<1x32xf32> -> vector<1x32xf32>
    %cst_171 = arith.constant 7.812500e-03 : f32
    %400 = vector.broadcast %cst_171 : f32 to vector<1x32xf32>
    %401 = arith.mulf %399, %400 : vector<1x32xf32>
    %cst_172 = arith.constant dense<0.000000e+00> : vector<1x256xf32>
    %402 = tpu.matmul %401, %393, %cst_172 {dimension_numbers = #tpu.dot_dimension_numbers<[1], [0], [0], [1], [0, 0, 1, 1], [], []>} : vector<1x32xf32>, vector<32x256xf32>, vector<1x256xf32> -> vector<1x256xf32>
    %403 = vector.broadcast %402 : vector<1x256xf32> to vector<16x256xf32>
    %404 = arith.subf %377, %403 : vector<16x256xf32>
    %405 = arith.mulf %404, %404 : vector<16x256xf32>
    %cst_173 = arith.constant dense<0.000000e+00> : vector<256xf32>
    %406 = vector.multi_reduction <add>, %405, %cst_173 [0] : vector<16x256xf32> to vector<256xf32>
    %407 = vector.shape_cast %406 : vector<256xf32> to vector<1x256xf32>
    %cst_174 = arith.constant dense<0.000000e+00> : vector<1x32xf32>
    %408 = tpu.matmul %407, %385, %cst_174 {dimension_numbers = #tpu.dot_dimension_numbers<[1], [0], [0], [1], [0, 0, 1, 1], [], []>} : vector<1x256xf32>, vector<256x32xf32>, vector<1x32xf32> -> vector<1x32xf32>
    %cst_175 = arith.constant 7.812500e-03 : f32
    %409 = vector.broadcast %cst_175 : f32 to vector<1x32xf32>
    %410 = arith.mulf %408, %409 : vector<1x32xf32>
    %cst_176 = arith.constant 9.99999974E-6 : f32
    %411 = vector.broadcast %cst_176 : f32 to vector<1x32xf32>
    %412 = arith.addf %410, %411 : vector<1x32xf32>
    %413 = math.rsqrt %412 : vector<1x32xf32>
    %414 = arith.mulf %395, %413 : vector<1x32xf32>
    %cst_177 = arith.constant dense<0.000000e+00> : vector<1x256xf32>
    %415 = tpu.matmul %414, %393, %cst_177 {dimension_numbers = #tpu.dot_dimension_numbers<[1], [0], [0], [1], [0, 0, 1, 1], [], []>} : vector<1x32xf32>, vector<32x256xf32>, vector<1x256xf32> -> vector<1x256xf32>
    %416 = vector.broadcast %415 : vector<1x256xf32> to vector<16x256xf32>
    %417 = arith.mulf %404, %416 : vector<16x256xf32>
    %cst_178 = arith.constant dense<0.000000e+00> : vector<1x256xf32>
    %418 = tpu.matmul %396, %393, %cst_178 {dimension_numbers = #tpu.dot_dimension_numbers<[1], [0], [0], [1], [0, 0, 1, 1], [], []>} : vector<1x32xf32>, vector<32x256xf32>, vector<1x256xf32> -> vector<1x256xf32>
    %419 = vector.broadcast %418 : vector<1x256xf32> to vector<16x256xf32>
    %420 = arith.addf %417, %419 : vector<16x256xf32>
    %cst_179 = arith.constant 0.000000e+00 : f32
    %421 = vector.broadcast %cst_179 : f32 to vector<16x256xf32>
    %422 = arith.cmpf ogt, %420, %421 : vector<16x256xf32>
    %cst_180 = arith.constant 2.000000e-01 : f32
    %423 = vector.broadcast %cst_180 : f32 to vector<16x256xf32>
    %424 = arith.mulf %423, %420 : vector<16x256xf32>
    %425 = arith.select %422, %420, %424 : vector<16x256xi1>, vector<16x256xf32>
    %426 = tpu.iota {dimensions = array<i32: 0>} : vector<8x16xi32>
    %427 = tpu.iota {dimensions = array<i32: 1>} : vector<8x16xi32>
    %c2_i32_181 = arith.constant 2 : i32
    %428 = vector.broadcast %c2_i32_181 : i32 to vector<8x16xi32>
    %429 = arith.shrsi %426, %428 : vector<8x16xi32>
    %c3_i32_182 = arith.constant 3 : i32
    %430 = vector.broadcast %c3_i32_182 : i32 to vector<8x16xi32>
    %431 = arith.andi %426, %430 : vector<8x16xi32>
    %c2_i32_183 = arith.constant 2 : i32
    %432 = vector.broadcast %c2_i32_183 : i32 to vector<8x16xi32>
    %433 = arith.muli %432, %431 : vector<8x16xi32>
    %c-1_i32_184 = arith.constant -1 : i32
    %434 = vector.broadcast %c-1_i32_184 : i32 to vector<8x16xi32>
    %435 = arith.addi %433, %434 : vector<8x16xi32>
    %c8_i32 = arith.constant 8 : i32
    %436 = vector.broadcast %c8_i32 : i32 to vector<8x16xi32>
    %437 = arith.muli %429, %436 : vector<8x16xi32>
    %438 = arith.addi %437, %435 : vector<8x16xi32>
    %439 = arith.cmpi eq, %427, %438 : vector<8x16xi32>
    %c0_i32_185 = arith.constant 0 : i32
    %440 = vector.broadcast %c0_i32_185 : i32 to vector<8x16xi32>
    %441 = arith.cmpi sge, %435, %440 : vector<8x16xi32>
    %442 = arith.andi %439, %441 : vector<8x16xi1>
    %c8_i32_186 = arith.constant 8 : i32
    %443 = vector.broadcast %c8_i32_186 : i32 to vector<8x16xi32>
    %444 = arith.cmpi slt, %435, %443 : vector<8x16xi32>
    %445 = arith.andi %442, %444 : vector<8x16xi1>
    %cst_187 = arith.constant 1.000000e+00 : f32
    %cst_188 = arith.constant 0.000000e+00 : f32
    %446 = vector.broadcast %cst_187 : f32 to vector<8x16xf32>
    %447 = vector.broadcast %cst_188 : f32 to vector<8x16xf32>
    %448 = arith.select %445, %446, %447 : vector<8x16xi1>, vector<8x16xf32>
    %cst_189 = arith.constant dense<0.000000e+00> : vector<8x256xf32>
    %449 = tpu.matmul %448, %425, %cst_189 {dimension_numbers = #tpu.dot_dimension_numbers<[1], [0], [0], [1], [0, 0, 1, 1], [], []>} : vector<8x16xf32>, vector<16x256xf32>, vector<8x256xf32> -> vector<8x256xf32>
    %c0_190 = arith.constant 0 : index
    %c0_191 = arith.constant 0 : index
    %450 = vector.load %arg8[%c0_190, %c0_191] : memref<1024x256xf32, #tpu.memory_space<vmem>>, vector<256x256xf32>
    %cst_192 = arith.constant dense<0.000000e+00> : vector<8x256xf32>
    %451 = tpu.matmul %449, %450, %cst_192 {dimension_numbers = #tpu.dot_dimension_numbers<[1], [0], [0], [1], [0, 0, 1, 1], [], []>} : vector<8x256xf32>, vector<256x256xf32>, vector<8x256xf32> -> vector<8x256xf32>
    %452 = tpu.iota {dimensions = array<i32: 0>} : vector<8x16xi32>
    %453 = tpu.iota {dimensions = array<i32: 1>} : vector<8x16xi32>
    %c2_i32_193 = arith.constant 2 : i32
    %454 = vector.broadcast %c2_i32_193 : i32 to vector<8x16xi32>
    %455 = arith.shrsi %452, %454 : vector<8x16xi32>
    %c3_i32_194 = arith.constant 3 : i32
    %456 = vector.broadcast %c3_i32_194 : i32 to vector<8x16xi32>
    %457 = arith.andi %452, %456 : vector<8x16xi32>
    %c2_i32_195 = arith.constant 2 : i32
    %458 = vector.broadcast %c2_i32_195 : i32 to vector<8x16xi32>
    %459 = arith.muli %458, %457 : vector<8x16xi32>
    %c0_i32_196 = arith.constant 0 : i32
    %460 = vector.broadcast %c0_i32_196 : i32 to vector<8x16xi32>
    %461 = arith.addi %459, %460 : vector<8x16xi32>
    %c8_i32_197 = arith.constant 8 : i32
    %462 = vector.broadcast %c8_i32_197 : i32 to vector<8x16xi32>
    %463 = arith.muli %455, %462 : vector<8x16xi32>
    %464 = arith.addi %463, %461 : vector<8x16xi32>
    %465 = arith.cmpi eq, %453, %464 : vector<8x16xi32>
    %c0_i32_198 = arith.constant 0 : i32
    %466 = vector.broadcast %c0_i32_198 : i32 to vector<8x16xi32>
    %467 = arith.cmpi sge, %461, %466 : vector<8x16xi32>
    %468 = arith.andi %465, %467 : vector<8x16xi1>
    %c8_i32_199 = arith.constant 8 : i32
    %469 = vector.broadcast %c8_i32_199 : i32 to vector<8x16xi32>
    %470 = arith.cmpi slt, %461, %469 : vector<8x16xi32>
    %471 = arith.andi %468, %470 : vector<8x16xi1>
    %cst_200 = arith.constant 1.000000e+00 : f32
    %cst_201 = arith.constant 0.000000e+00 : f32
    %472 = vector.broadcast %cst_200 : f32 to vector<8x16xf32>
    %473 = vector.broadcast %cst_201 : f32 to vector<8x16xf32>
    %474 = arith.select %471, %472, %473 : vector<8x16xi1>, vector<8x16xf32>
    %cst_202 = arith.constant dense<0.000000e+00> : vector<8x256xf32>
    %475 = tpu.matmul %474, %425, %cst_202 {dimension_numbers = #tpu.dot_dimension_numbers<[1], [0], [0], [1], [0, 0, 1, 1], [], []>} : vector<8x16xf32>, vector<16x256xf32>, vector<8x256xf32> -> vector<8x256xf32>
    %c256_203 = arith.constant 256 : index
    %c0_204 = arith.constant 0 : index
    %476 = vector.load %arg8[%c256_203, %c0_204] : memref<1024x256xf32, #tpu.memory_space<vmem>>, vector<256x256xf32>
    %cst_205 = arith.constant dense<0.000000e+00> : vector<8x256xf32>
    %477 = tpu.matmul %475, %476, %cst_205 {dimension_numbers = #tpu.dot_dimension_numbers<[1], [0], [0], [1], [0, 0, 1, 1], [], []>} : vector<8x256xf32>, vector<256x256xf32>, vector<8x256xf32> -> vector<8x256xf32>
    %478 = arith.addf %451, %477 : vector<8x256xf32>
    %479 = tpu.iota {dimensions = array<i32: 0>} : vector<8x16xi32>
    %480 = tpu.iota {dimensions = array<i32: 1>} : vector<8x16xi32>
    %c2_i32_206 = arith.constant 2 : i32
    %481 = vector.broadcast %c2_i32_206 : i32 to vector<8x16xi32>
    %482 = arith.shrsi %479, %481 : vector<8x16xi32>
    %c3_i32_207 = arith.constant 3 : i32
    %483 = vector.broadcast %c3_i32_207 : i32 to vector<8x16xi32>
    %484 = arith.andi %479, %483 : vector<8x16xi32>
    %c2_i32_208 = arith.constant 2 : i32
    %485 = vector.broadcast %c2_i32_208 : i32 to vector<8x16xi32>
    %486 = arith.muli %485, %484 : vector<8x16xi32>
    %c1_i32_209 = arith.constant 1 : i32
    %487 = vector.broadcast %c1_i32_209 : i32 to vector<8x16xi32>
    %488 = arith.addi %486, %487 : vector<8x16xi32>
    %c8_i32_210 = arith.constant 8 : i32
    %489 = vector.broadcast %c8_i32_210 : i32 to vector<8x16xi32>
    %490 = arith.muli %482, %489 : vector<8x16xi32>
    %491 = arith.addi %490, %488 : vector<8x16xi32>
    %492 = arith.cmpi eq, %480, %491 : vector<8x16xi32>
    %c0_i32_211 = arith.constant 0 : i32
    %493 = vector.broadcast %c0_i32_211 : i32 to vector<8x16xi32>
    %494 = arith.cmpi sge, %488, %493 : vector<8x16xi32>
    %495 = arith.andi %492, %494 : vector<8x16xi1>
    %c8_i32_212 = arith.constant 8 : i32
    %496 = vector.broadcast %c8_i32_212 : i32 to vector<8x16xi32>
    %497 = arith.cmpi slt, %488, %496 : vector<8x16xi32>
    %498 = arith.andi %495, %497 : vector<8x16xi1>
    %cst_213 = arith.constant 1.000000e+00 : f32
    %cst_214 = arith.constant 0.000000e+00 : f32
    %499 = vector.broadcast %cst_213 : f32 to vector<8x16xf32>
    %500 = vector.broadcast %cst_214 : f32 to vector<8x16xf32>
    %501 = arith.select %498, %499, %500 : vector<8x16xi1>, vector<8x16xf32>
    %cst_215 = arith.constant dense<0.000000e+00> : vector<8x256xf32>
    %502 = tpu.matmul %501, %425, %cst_215 {dimension_numbers = #tpu.dot_dimension_numbers<[1], [0], [0], [1], [0, 0, 1, 1], [], []>} : vector<8x16xf32>, vector<16x256xf32>, vector<8x256xf32> -> vector<8x256xf32>
    %c512_216 = arith.constant 512 : index
    %c0_217 = arith.constant 0 : index
    %503 = vector.load %arg8[%c512_216, %c0_217] : memref<1024x256xf32, #tpu.memory_space<vmem>>, vector<256x256xf32>
    %cst_218 = arith.constant dense<0.000000e+00> : vector<8x256xf32>
    %504 = tpu.matmul %502, %503, %cst_218 {dimension_numbers = #tpu.dot_dimension_numbers<[1], [0], [0], [1], [0, 0, 1, 1], [], []>} : vector<8x256xf32>, vector<256x256xf32>, vector<8x256xf32> -> vector<8x256xf32>
    %505 = arith.addf %478, %504 : vector<8x256xf32>
    %506 = tpu.iota {dimensions = array<i32: 0>} : vector<8x16xi32>
    %507 = tpu.iota {dimensions = array<i32: 1>} : vector<8x16xi32>
    %c2_i32_219 = arith.constant 2 : i32
    %508 = vector.broadcast %c2_i32_219 : i32 to vector<8x16xi32>
    %509 = arith.shrsi %506, %508 : vector<8x16xi32>
    %c3_i32_220 = arith.constant 3 : i32
    %510 = vector.broadcast %c3_i32_220 : i32 to vector<8x16xi32>
    %511 = arith.andi %506, %510 : vector<8x16xi32>
    %c2_i32_221 = arith.constant 2 : i32
    %512 = vector.broadcast %c2_i32_221 : i32 to vector<8x16xi32>
    %513 = arith.muli %512, %511 : vector<8x16xi32>
    %c2_i32_222 = arith.constant 2 : i32
    %514 = vector.broadcast %c2_i32_222 : i32 to vector<8x16xi32>
    %515 = arith.addi %513, %514 : vector<8x16xi32>
    %c8_i32_223 = arith.constant 8 : i32
    %516 = vector.broadcast %c8_i32_223 : i32 to vector<8x16xi32>
    %517 = arith.muli %509, %516 : vector<8x16xi32>
    %518 = arith.addi %517, %515 : vector<8x16xi32>
    %519 = arith.cmpi eq, %507, %518 : vector<8x16xi32>
    %c0_i32_224 = arith.constant 0 : i32
    %520 = vector.broadcast %c0_i32_224 : i32 to vector<8x16xi32>
    %521 = arith.cmpi sge, %515, %520 : vector<8x16xi32>
    %522 = arith.andi %519, %521 : vector<8x16xi1>
    %c8_i32_225 = arith.constant 8 : i32
    %523 = vector.broadcast %c8_i32_225 : i32 to vector<8x16xi32>
    %524 = arith.cmpi slt, %515, %523 : vector<8x16xi32>
    %525 = arith.andi %522, %524 : vector<8x16xi1>
    %cst_226 = arith.constant 1.000000e+00 : f32
    %cst_227 = arith.constant 0.000000e+00 : f32
    %526 = vector.broadcast %cst_226 : f32 to vector<8x16xf32>
    %527 = vector.broadcast %cst_227 : f32 to vector<8x16xf32>
    %528 = arith.select %525, %526, %527 : vector<8x16xi1>, vector<8x16xf32>
    %cst_228 = arith.constant dense<0.000000e+00> : vector<8x256xf32>
    %529 = tpu.matmul %528, %425, %cst_228 {dimension_numbers = #tpu.dot_dimension_numbers<[1], [0], [0], [1], [0, 0, 1, 1], [], []>} : vector<8x16xf32>, vector<16x256xf32>, vector<8x256xf32> -> vector<8x256xf32>
    %c768_229 = arith.constant 768 : index
    %c0_230 = arith.constant 0 : index
    %530 = vector.load %arg8[%c768_229, %c0_230] : memref<1024x256xf32, #tpu.memory_space<vmem>>, vector<256x256xf32>
    %cst_231 = arith.constant dense<0.000000e+00> : vector<8x256xf32>
    %531 = tpu.matmul %529, %530, %cst_231 {dimension_numbers = #tpu.dot_dimension_numbers<[1], [0], [0], [1], [0, 0, 1, 1], [], []>} : vector<8x256xf32>, vector<256x256xf32>, vector<8x256xf32> -> vector<8x256xf32>
    %532 = arith.addf %505, %531 : vector<8x256xf32>
    %533 = tpu.iota {dimensions = array<i32: 0>} : vector<256x64xi32>
    %534 = tpu.iota {dimensions = array<i32: 1>} : vector<256x64xi32>
    %c63_i32 = arith.constant 63 : i32
    %535 = vector.broadcast %c63_i32 : i32 to vector<256x64xi32>
    %536 = arith.andi %533, %535 : vector<256x64xi32>
    %537 = arith.cmpi eq, %536, %534 : vector<256x64xi32>
    %cst_232 = arith.constant 1.000000e+00 : f32
    %cst_233 = arith.constant 0.000000e+00 : f32
    %538 = vector.broadcast %cst_232 : f32 to vector<256x64xf32>
    %539 = vector.broadcast %cst_233 : f32 to vector<256x64xf32>
    %540 = arith.select %537, %538, %539 : vector<256x64xi1>, vector<256x64xf32>
    %541 = tpu.iota {dimensions = array<i32: 0>} : vector<64x256xi32>
    %542 = tpu.iota {dimensions = array<i32: 1>} : vector<64x256xi32>
    %c63_i32_234 = arith.constant 63 : i32
    %543 = vector.broadcast %c63_i32_234 : i32 to vector<64x256xi32>
    %544 = arith.andi %542, %543 : vector<64x256xi32>
    %545 = arith.cmpi eq, %544, %541 : vector<64x256xi32>
    %cst_235 = arith.constant 1.000000e+00 : f32
    %cst_236 = arith.constant 0.000000e+00 : f32
    %546 = vector.broadcast %cst_235 : f32 to vector<64x256xf32>
    %547 = vector.broadcast %cst_236 : f32 to vector<64x256xf32>
    %548 = arith.select %545, %546, %547 : vector<64x256xi1>, vector<64x256xf32>
    %c0_237 = arith.constant 0 : index
    %c0_238 = arith.constant 0 : index
    %549 = vector.load %arg9[%c0_237, %c0_238] : memref<2x64xf32, #tpu.memory_space<vmem>>, vector<2x64xf32>
    %550 = vector.extract_strided_slice %549 {offsets = [0, 0], sizes = [1, 64], strides = [1, 1]} : vector<2x64xf32> to vector<1x64xf32>
    %551 = vector.extract_strided_slice %549 {offsets = [1, 0], sizes = [1, 64], strides = [1, 1]} : vector<2x64xf32> to vector<1x64xf32>
    %cst_239 = arith.constant dense<0.000000e+00> : vector<256xf32>
    %552 = vector.multi_reduction <add>, %532, %cst_239 [0] : vector<8x256xf32> to vector<256xf32>
    %553 = vector.shape_cast %552 : vector<256xf32> to vector<1x256xf32>
    %cst_240 = arith.constant dense<0.000000e+00> : vector<1x64xf32>
    %554 = tpu.matmul %553, %540, %cst_240 {dimension_numbers = #tpu.dot_dimension_numbers<[1], [0], [0], [1], [0, 0, 1, 1], [], []>} : vector<1x256xf32>, vector<256x64xf32>, vector<1x64xf32> -> vector<1x64xf32>
    %cst_241 = arith.constant 3.125000e-02 : f32
    %555 = vector.broadcast %cst_241 : f32 to vector<1x64xf32>
    %556 = arith.mulf %554, %555 : vector<1x64xf32>
    %cst_242 = arith.constant dense<0.000000e+00> : vector<1x256xf32>
    %557 = tpu.matmul %556, %548, %cst_242 {dimension_numbers = #tpu.dot_dimension_numbers<[1], [0], [0], [1], [0, 0, 1, 1], [], []>} : vector<1x64xf32>, vector<64x256xf32>, vector<1x256xf32> -> vector<1x256xf32>
    %558 = vector.broadcast %557 : vector<1x256xf32> to vector<8x256xf32>
    %559 = arith.subf %532, %558 : vector<8x256xf32>
    %560 = arith.mulf %559, %559 : vector<8x256xf32>
    %cst_243 = arith.constant dense<0.000000e+00> : vector<256xf32>
    %561 = vector.multi_reduction <add>, %560, %cst_243 [0] : vector<8x256xf32> to vector<256xf32>
    %562 = vector.shape_cast %561 : vector<256xf32> to vector<1x256xf32>
    %cst_244 = arith.constant dense<0.000000e+00> : vector<1x64xf32>
    %563 = tpu.matmul %562, %540, %cst_244 {dimension_numbers = #tpu.dot_dimension_numbers<[1], [0], [0], [1], [0, 0, 1, 1], [], []>} : vector<1x256xf32>, vector<256x64xf32>, vector<1x64xf32> -> vector<1x64xf32>
    %cst_245 = arith.constant 3.125000e-02 : f32
    %564 = vector.broadcast %cst_245 : f32 to vector<1x64xf32>
    %565 = arith.mulf %563, %564 : vector<1x64xf32>
    %cst_246 = arith.constant 9.99999974E-6 : f32
    %566 = vector.broadcast %cst_246 : f32 to vector<1x64xf32>
    %567 = arith.addf %565, %566 : vector<1x64xf32>
    %568 = math.rsqrt %567 : vector<1x64xf32>
    %569 = arith.mulf %550, %568 : vector<1x64xf32>
    %cst_247 = arith.constant dense<0.000000e+00> : vector<1x256xf32>
    %570 = tpu.matmul %569, %548, %cst_247 {dimension_numbers = #tpu.dot_dimension_numbers<[1], [0], [0], [1], [0, 0, 1, 1], [], []>} : vector<1x64xf32>, vector<64x256xf32>, vector<1x256xf32> -> vector<1x256xf32>
    %571 = vector.broadcast %570 : vector<1x256xf32> to vector<8x256xf32>
    %572 = arith.mulf %559, %571 : vector<8x256xf32>
    %cst_248 = arith.constant dense<0.000000e+00> : vector<1x256xf32>
    %573 = tpu.matmul %551, %548, %cst_248 {dimension_numbers = #tpu.dot_dimension_numbers<[1], [0], [0], [1], [0, 0, 1, 1], [], []>} : vector<1x64xf32>, vector<64x256xf32>, vector<1x256xf32> -> vector<1x256xf32>
    %574 = vector.broadcast %573 : vector<1x256xf32> to vector<8x256xf32>
    %575 = arith.addf %572, %574 : vector<8x256xf32>
    %cst_249 = arith.constant 0.000000e+00 : f32
    %576 = vector.broadcast %cst_249 : f32 to vector<8x256xf32>
    %577 = arith.cmpf ogt, %575, %576 : vector<8x256xf32>
    %cst_250 = arith.constant 2.000000e-01 : f32
    %578 = vector.broadcast %cst_250 : f32 to vector<8x256xf32>
    %579 = arith.mulf %578, %575 : vector<8x256xf32>
    %580 = arith.select %577, %575, %579 : vector<8x256xi1>, vector<8x256xf32>
    %581 = tpu.iota {dimensions = array<i32: 0>} : vector<2x8xi32>
    %582 = tpu.iota {dimensions = array<i32: 1>} : vector<2x8xi32>
    %c0_i32_251 = arith.constant 0 : i32
    %583 = vector.broadcast %c0_i32_251 : i32 to vector<2x8xi32>
    %584 = arith.shrsi %581, %583 : vector<2x8xi32>
    %c0_i32_252 = arith.constant 0 : i32
    %585 = vector.broadcast %c0_i32_252 : i32 to vector<2x8xi32>
    %586 = arith.andi %581, %585 : vector<2x8xi32>
    %c1_i32_253 = arith.constant 1 : i32
    %587 = vector.broadcast %c1_i32_253 : i32 to vector<2x8xi32>
    %588 = arith.muli %587, %586 : vector<2x8xi32>
    %c0_i32_254 = arith.constant 0 : i32
    %589 = vector.broadcast %c0_i32_254 : i32 to vector<2x8xi32>
    %590 = arith.addi %588, %589 : vector<2x8xi32>
    %c4_i32_255 = arith.constant 4 : i32
    %591 = vector.broadcast %c4_i32_255 : i32 to vector<2x8xi32>
    %592 = arith.muli %584, %591 : vector<2x8xi32>
    %593 = arith.addi %592, %590 : vector<2x8xi32>
    %594 = arith.cmpi eq, %582, %593 : vector<2x8xi32>
    %c0_i32_256 = arith.constant 0 : i32
    %595 = vector.broadcast %c0_i32_256 : i32 to vector<2x8xi32>
    %596 = arith.cmpi sge, %590, %595 : vector<2x8xi32>
    %597 = arith.andi %594, %596 : vector<2x8xi1>
    %c4_i32_257 = arith.constant 4 : i32
    %598 = vector.broadcast %c4_i32_257 : i32 to vector<2x8xi32>
    %599 = arith.cmpi slt, %590, %598 : vector<2x8xi32>
    %600 = arith.andi %597, %599 : vector<2x8xi1>
    %cst_258 = arith.constant 1.000000e+00 : f32
    %cst_259 = arith.constant 0.000000e+00 : f32
    %601 = vector.broadcast %cst_258 : f32 to vector<2x8xf32>
    %602 = vector.broadcast %cst_259 : f32 to vector<2x8xf32>
    %603 = arith.select %600, %601, %602 : vector<2x8xi1>, vector<2x8xf32>
    %cst_260 = arith.constant dense<0.000000e+00> : vector<2x256xf32>
    %604 = tpu.matmul %603, %580, %cst_260 {dimension_numbers = #tpu.dot_dimension_numbers<[1], [0], [0], [1], [0, 0, 1, 1], [], []>} : vector<2x8xf32>, vector<8x256xf32>, vector<2x256xf32> -> vector<2x256xf32>
    %c0_261 = arith.constant 0 : index
    %c0_262 = arith.constant 0 : index
    %605 = vector.load %arg10[%c0_261, %c0_262] : memref<1024x16xf32, #tpu.memory_space<vmem>>, vector<256x16xf32>
    %cst_263 = arith.constant dense<0.000000e+00> : vector<2x16xf32>
    %606 = tpu.matmul %604, %605, %cst_263 {dimension_numbers = #tpu.dot_dimension_numbers<[1], [0], [0], [1], [0, 0, 1, 1], [], []>} : vector<2x256xf32>, vector<256x16xf32>, vector<2x16xf32> -> vector<2x16xf32>
    %607 = tpu.iota {dimensions = array<i32: 0>} : vector<2x8xi32>
    %608 = tpu.iota {dimensions = array<i32: 1>} : vector<2x8xi32>
    %c0_i32_264 = arith.constant 0 : i32
    %609 = vector.broadcast %c0_i32_264 : i32 to vector<2x8xi32>
    %610 = arith.shrsi %607, %609 : vector<2x8xi32>
    %c0_i32_265 = arith.constant 0 : i32
    %611 = vector.broadcast %c0_i32_265 : i32 to vector<2x8xi32>
    %612 = arith.andi %607, %611 : vector<2x8xi32>
    %c1_i32_266 = arith.constant 1 : i32
    %613 = vector.broadcast %c1_i32_266 : i32 to vector<2x8xi32>
    %614 = arith.muli %613, %612 : vector<2x8xi32>
    %c1_i32_267 = arith.constant 1 : i32
    %615 = vector.broadcast %c1_i32_267 : i32 to vector<2x8xi32>
    %616 = arith.addi %614, %615 : vector<2x8xi32>
    %c4_i32_268 = arith.constant 4 : i32
    %617 = vector.broadcast %c4_i32_268 : i32 to vector<2x8xi32>
    %618 = arith.muli %610, %617 : vector<2x8xi32>
    %619 = arith.addi %618, %616 : vector<2x8xi32>
    %620 = arith.cmpi eq, %608, %619 : vector<2x8xi32>
    %c0_i32_269 = arith.constant 0 : i32
    %621 = vector.broadcast %c0_i32_269 : i32 to vector<2x8xi32>
    %622 = arith.cmpi sge, %616, %621 : vector<2x8xi32>
    %623 = arith.andi %620, %622 : vector<2x8xi1>
    %c4_i32_270 = arith.constant 4 : i32
    %624 = vector.broadcast %c4_i32_270 : i32 to vector<2x8xi32>
    %625 = arith.cmpi slt, %616, %624 : vector<2x8xi32>
    %626 = arith.andi %623, %625 : vector<2x8xi1>
    %cst_271 = arith.constant 1.000000e+00 : f32
    %cst_272 = arith.constant 0.000000e+00 : f32
    %627 = vector.broadcast %cst_271 : f32 to vector<2x8xf32>
    %628 = vector.broadcast %cst_272 : f32 to vector<2x8xf32>
    %629 = arith.select %626, %627, %628 : vector<2x8xi1>, vector<2x8xf32>
    %cst_273 = arith.constant dense<0.000000e+00> : vector<2x256xf32>
    %630 = tpu.matmul %629, %580, %cst_273 {dimension_numbers = #tpu.dot_dimension_numbers<[1], [0], [0], [1], [0, 0, 1, 1], [], []>} : vector<2x8xf32>, vector<8x256xf32>, vector<2x256xf32> -> vector<2x256xf32>
    %c256_274 = arith.constant 256 : index
    %c0_275 = arith.constant 0 : index
    %631 = vector.load %arg10[%c256_274, %c0_275] : memref<1024x16xf32, #tpu.memory_space<vmem>>, vector<256x16xf32>
    %cst_276 = arith.constant dense<0.000000e+00> : vector<2x16xf32>
    %632 = tpu.matmul %630, %631, %cst_276 {dimension_numbers = #tpu.dot_dimension_numbers<[1], [0], [0], [1], [0, 0, 1, 1], [], []>} : vector<2x256xf32>, vector<256x16xf32>, vector<2x16xf32> -> vector<2x16xf32>
    %633 = arith.addf %606, %632 : vector<2x16xf32>
    %634 = tpu.iota {dimensions = array<i32: 0>} : vector<2x8xi32>
    %635 = tpu.iota {dimensions = array<i32: 1>} : vector<2x8xi32>
    %c0_i32_277 = arith.constant 0 : i32
    %636 = vector.broadcast %c0_i32_277 : i32 to vector<2x8xi32>
    %637 = arith.shrsi %634, %636 : vector<2x8xi32>
    %c0_i32_278 = arith.constant 0 : i32
    %638 = vector.broadcast %c0_i32_278 : i32 to vector<2x8xi32>
    %639 = arith.andi %634, %638 : vector<2x8xi32>
    %c1_i32_279 = arith.constant 1 : i32
    %640 = vector.broadcast %c1_i32_279 : i32 to vector<2x8xi32>
    %641 = arith.muli %640, %639 : vector<2x8xi32>
    %c2_i32_280 = arith.constant 2 : i32
    %642 = vector.broadcast %c2_i32_280 : i32 to vector<2x8xi32>
    %643 = arith.addi %641, %642 : vector<2x8xi32>
    %c4_i32_281 = arith.constant 4 : i32
    %644 = vector.broadcast %c4_i32_281 : i32 to vector<2x8xi32>
    %645 = arith.muli %637, %644 : vector<2x8xi32>
    %646 = arith.addi %645, %643 : vector<2x8xi32>
    %647 = arith.cmpi eq, %635, %646 : vector<2x8xi32>
    %c0_i32_282 = arith.constant 0 : i32
    %648 = vector.broadcast %c0_i32_282 : i32 to vector<2x8xi32>
    %649 = arith.cmpi sge, %643, %648 : vector<2x8xi32>
    %650 = arith.andi %647, %649 : vector<2x8xi1>
    %c4_i32_283 = arith.constant 4 : i32
    %651 = vector.broadcast %c4_i32_283 : i32 to vector<2x8xi32>
    %652 = arith.cmpi slt, %643, %651 : vector<2x8xi32>
    %653 = arith.andi %650, %652 : vector<2x8xi1>
    %cst_284 = arith.constant 1.000000e+00 : f32
    %cst_285 = arith.constant 0.000000e+00 : f32
    %654 = vector.broadcast %cst_284 : f32 to vector<2x8xf32>
    %655 = vector.broadcast %cst_285 : f32 to vector<2x8xf32>
    %656 = arith.select %653, %654, %655 : vector<2x8xi1>, vector<2x8xf32>
    %cst_286 = arith.constant dense<0.000000e+00> : vector<2x256xf32>
    %657 = tpu.matmul %656, %580, %cst_286 {dimension_numbers = #tpu.dot_dimension_numbers<[1], [0], [0], [1], [0, 0, 1, 1], [], []>} : vector<2x8xf32>, vector<8x256xf32>, vector<2x256xf32> -> vector<2x256xf32>
    %c512_287 = arith.constant 512 : index
    %c0_288 = arith.constant 0 : index
    %658 = vector.load %arg10[%c512_287, %c0_288] : memref<1024x16xf32, #tpu.memory_space<vmem>>, vector<256x16xf32>
    %cst_289 = arith.constant dense<0.000000e+00> : vector<2x16xf32>
    %659 = tpu.matmul %657, %658, %cst_289 {dimension_numbers = #tpu.dot_dimension_numbers<[1], [0], [0], [1], [0, 0, 1, 1], [], []>} : vector<2x256xf32>, vector<256x16xf32>, vector<2x16xf32> -> vector<2x16xf32>
    %660 = arith.addf %633, %659 : vector<2x16xf32>
    %661 = tpu.iota {dimensions = array<i32: 0>} : vector<2x8xi32>
    %662 = tpu.iota {dimensions = array<i32: 1>} : vector<2x8xi32>
    %c0_i32_290 = arith.constant 0 : i32
    %663 = vector.broadcast %c0_i32_290 : i32 to vector<2x8xi32>
    %664 = arith.shrsi %661, %663 : vector<2x8xi32>
    %c0_i32_291 = arith.constant 0 : i32
    %665 = vector.broadcast %c0_i32_291 : i32 to vector<2x8xi32>
    %666 = arith.andi %661, %665 : vector<2x8xi32>
    %c1_i32_292 = arith.constant 1 : i32
    %667 = vector.broadcast %c1_i32_292 : i32 to vector<2x8xi32>
    %668 = arith.muli %667, %666 : vector<2x8xi32>
    %c3_i32_293 = arith.constant 3 : i32
    %669 = vector.broadcast %c3_i32_293 : i32 to vector<2x8xi32>
    %670 = arith.addi %668, %669 : vector<2x8xi32>
    %c4_i32_294 = arith.constant 4 : i32
    %671 = vector.broadcast %c4_i32_294 : i32 to vector<2x8xi32>
    %672 = arith.muli %664, %671 : vector<2x8xi32>
    %673 = arith.addi %672, %670 : vector<2x8xi32>
    %674 = arith.cmpi eq, %662, %673 : vector<2x8xi32>
    %c0_i32_295 = arith.constant 0 : i32
    %675 = vector.broadcast %c0_i32_295 : i32 to vector<2x8xi32>
    %676 = arith.cmpi sge, %670, %675 : vector<2x8xi32>
    %677 = arith.andi %674, %676 : vector<2x8xi1>
    %c4_i32_296 = arith.constant 4 : i32
    %678 = vector.broadcast %c4_i32_296 : i32 to vector<2x8xi32>
    %679 = arith.cmpi slt, %670, %678 : vector<2x8xi32>
    %680 = arith.andi %677, %679 : vector<2x8xi1>
    %cst_297 = arith.constant 1.000000e+00 : f32
    %cst_298 = arith.constant 0.000000e+00 : f32
    %681 = vector.broadcast %cst_297 : f32 to vector<2x8xf32>
    %682 = vector.broadcast %cst_298 : f32 to vector<2x8xf32>
    %683 = arith.select %680, %681, %682 : vector<2x8xi1>, vector<2x8xf32>
    %cst_299 = arith.constant dense<0.000000e+00> : vector<2x256xf32>
    %684 = tpu.matmul %683, %580, %cst_299 {dimension_numbers = #tpu.dot_dimension_numbers<[1], [0], [0], [1], [0, 0, 1, 1], [], []>} : vector<2x8xf32>, vector<8x256xf32>, vector<2x256xf32> -> vector<2x256xf32>
    %c768_300 = arith.constant 768 : index
    %c0_301 = arith.constant 0 : index
    %685 = vector.load %arg10[%c768_300, %c0_301] : memref<1024x16xf32, #tpu.memory_space<vmem>>, vector<256x16xf32>
    %cst_302 = arith.constant dense<0.000000e+00> : vector<2x16xf32>
    %686 = tpu.matmul %684, %685, %cst_302 {dimension_numbers = #tpu.dot_dimension_numbers<[1], [0], [0], [1], [0, 0, 1, 1], [], []>} : vector<2x256xf32>, vector<256x16xf32>, vector<2x16xf32> -> vector<2x16xf32>
    %687 = arith.addf %660, %686 : vector<2x16xf32>
    %c0_303 = arith.constant 0 : index
    %c0_304 = arith.constant 0 : index
    %688 = vector.load %arg11[%c0_303, %c0_304] : memref<1x16xf32, #tpu.memory_space<vmem>>, vector<1x16xf32>
    %689 = vector.broadcast %688 : vector<1x16xf32> to vector<2x16xf32>
    %690 = arith.addf %687, %689 : vector<2x16xf32>
    %691 = math.tanh %690 : vector<2x16xf32>
    %c0_305 = arith.constant 0 : index
    %c0_306 = arith.constant 0 : index
    %692 = vector.load %arg12[%c0_305, %c0_306] : memref<2x16xf32, #tpu.memory_space<vmem>>, vector<2x16xf32>
    tpu.vector_store %arg12[%c0_305, %c0_306], %691 {strides = array<i32>} : memref<2x16xf32, #tpu.memory_space<vmem>>, vector<2x16xf32>,
    return
  }
  func.func @transform_0(%arg0: i32) -> (i32, i32) {
    %c0_i32 = arith.constant 0 : i32
    %c0_i32_0 = arith.constant 0 : i32
    %c0_i32_1 = arith.constant 0 : i32
    return %c0_i32, %c0_i32_0 : i32, i32
  }
  func.func @transform_1(%arg0: i32) -> (i32, i32) {
    %c0_i32 = arith.constant 0 : i32
    %c0_i32_0 = arith.constant 0 : i32
    %c0_i32_1 = arith.constant 0 : i32
    return %c0_i32, %c0_i32_0 : i32, i32
  }
  func.func @transform_2(%arg0: i32) -> (i32, i32) {
    %c0_i32 = arith.constant 0 : i32
    %c0_i32_0 = arith.constant 0 : i32
    %c0_i32_1 = arith.constant 0 : i32
    return %c0_i32, %c0_i32_0 : i32, i32
  }
  func.func @transform_3(%arg0: i32) -> (i32, i32) {
    %c0_i32 = arith.constant 0 : i32
    %c0_i32_0 = arith.constant 0 : i32
    %c0_i32_1 = arith.constant 0 : i32
    return %c0_i32, %c0_i32_0 : i32, i32
  }
  func.func @transform_4(%arg0: i32) -> (i32, i32) {
    %c0_i32 = arith.constant 0 : i32
    %c0_i32_0 = arith.constant 0 : i32
    %c0_i32_1 = arith.constant 0 : i32
    return %c0_i32, %c0_i32_0 : i32, i32
  }
  func.func @transform_5(%arg0: i32) -> (i32, i32) {
    %c0_i32 = arith.constant 0 : i32
    %c0_i32_0 = arith.constant 0 : i32
    %c0_i32_1 = arith.constant 0 : i32
    return %c0_i32, %c0_i32_0 : i32, i32
  }
  func.func @transform_6(%arg0: i32) -> (i32, i32) {
    %c0_i32 = arith.constant 0 : i32
    %c0_i32_0 = arith.constant 0 : i32
    %c0_i32_1 = arith.constant 0 : i32
    return %c0_i32, %c0_i32_0 : i32, i32
  }
  func.func @transform_7(%arg0: i32) -> (i32, i32) {
    %c0_i32 = arith.constant 0 : i32
    %c0_i32_0 = arith.constant 0 : i32
    %c0_i32_1 = arith.constant 0 : i32
    return %c0_i32, %c0_i32_0 : i32, i32
  }
  func.func @transform_8(%arg0: i32) -> (i32, i32) {
    %c0_i32 = arith.constant 0 : i32
    %c0_i32_0 = arith.constant 0 : i32
    %c0_i32_1 = arith.constant 0 : i32
    return %c0_i32, %c0_i32_0 : i32, i32
  }
  func.func @transform_9(%arg0: i32) -> (i32, i32) {
    %c0_i32 = arith.constant 0 : i32
    %c0_i32_0 = arith.constant 0 : i32
    %c0_i32_1 = arith.constant 0 : i32
    return %c0_i32, %c0_i32_0 : i32, i32
  }
  func.func @transform_10(%arg0: i32) -> (i32, i32) {
    %c0_i32 = arith.constant 0 : i32
    %c0_i32_0 = arith.constant 0 : i32
    %c0_i32_1 = arith.constant 0 : i32
    return %c0_i32, %c0_i32_0 : i32, i32
  }
  func.func @transform_11(%arg0: i32) -> (i32, i32) {
    %c0_i32 = arith.constant 0 : i32
    %c0_i32_0 = arith.constant 0 : i32
    %c0_i32_1 = arith.constant 0 : i32
    return %c0_i32, %c0_i32_0 : i32, i32
  }
}

</mosaic_0001>

<llo_original>
// kernel: encoder_forward.1
$region0: #{encoder_forward.1}
  #allocation0 [shape = 'u32[]', space=smem, size = 0x4, offset = 0x4, fixed_abs, tag = 'smem constant byte address 0x4 - core index']
  #allocation1 [shape = 'u32[144,128]{1,0:T(1,128)}', space=vmem, size = 0x12000, scoped, tag = 'internal scratch']
  %s0 = inlined_call_operand.vmem [shape: f32[128,192], index: 0, kind: input, shape index: {}]
  %s1 = inlined_call_operand.hbm [shape: f32[768,256], index: 1, kind: input, shape index: {}]
  %s2 = inlined_call_operand.vmem [shape: f32[1,256], index: 2, kind: input, shape index: {}]
  %s3 = inlined_call_operand.vmem [shape: f32[1024,256], index: 3, kind: input, shape index: {}]
  %s4 = inlined_call_operand.vmem [shape: f32[2,16], index: 4, kind: input, shape index: {}]
  %s5 = inlined_call_operand.hbm [shape: f32[1024,256], index: 5, kind: input, shape index: {}]
  %s6 = inlined_call_operand.vmem [shape: f32[2,32], index: 6, kind: input, shape index: {}]
  %s7 = inlined_call_operand.hbm [shape: f32[1024,256], index: 7, kind: input, shape index: {}]
  %s8 = inlined_call_operand.vmem [shape: f32[2,64], index: 8, kind: input, shape index: {}]
  %s9 = inlined_call_operand.vmem [shape: f32[1024,16], index: 9, kind: input, shape index: {}]
  %s10 = inlined_call_operand.vmem [shape: f32[1,16], index: 10, kind: input, shape index: {}]
  %s11 = inlined_call_operand.hbm [shape: f32[2,16], index: 11, kind: output, shape index: {}]
  %s12 = sld [smem:[#allocation0]]
  $region66: #{encoder_forward.1} parent=0
    _
  %s14 = ssub.s32 1, %s12
  %s15 = scalar_select 0, %s14, %s12
  $region1: #{encoder_forward.1} parent=0
    #allocation2 [shape = 'u8[786432]{0}', space=vmem, size = 0xc0000, scoped, tag = 'input window, operand 1, single buffered']
    #allocation3 [shape = 's32[1]{0}', space=sflag, size = 0x4, scoped, tag = 'scoped memory for encoder_forward.1']
    #allocation4 [shape = 's32[1]{0}', space=sflag, size = 0x4, scoped, tag = 'scoped memory for encoder_forward.1']
    #allocation5 [shape = 'u8[1048576]{0}', space=vmem, size = 0x100000, scoped, tag = 'input window, operand 5, single buffered']
    #allocation6 [shape = 's32[1]{0}', space=sflag, size = 0x4, scoped, tag = 'scoped memory for encoder_forward.1']
    #allocation7 [shape = 'u8[1048576]{0}', space=vmem, size = 0x100000, scoped, tag = 'input window, operand 7, single buffered']
    #allocation8 [shape = 'u8[1024]{0}', space=vmem, size = 0x400, scoped, tag = 'output window, operand 0, single buffered']
    %16 = vsyncpa [#allocation3], 0
    %17 = vsyncpa [#allocation6], 0
    %18 = vsyncpa [#allocation4], 0
    // Predicated region
    $region2: #{encoder_forward.1} parent=1 // pred_check
      _
    $region3: #{encoder_forward.1} parent=1 // pred_check_branch
      %20 = sbr.rel (0) target = $region5
    $region4: #{encoder_forward.1} parent=1 // pred_region
      _
    $region5: #{encoder_forward.1} parent=1 // pred_fallthru
      _
    // Predicated region
    $region6: #{encoder_forward.1} parent=1 // pred_check
      _
    $region7: #{encoder_forward.1} parent=1 // pred_check_branch
      %22 = sbr.rel (0) target = $region9
    $region8: #{encoder_forward.1} parent=1 // pred_region
      %s24 = ssub.s32 24576, 24576
      %25 = vsyncadd [#allocation3], %s24
      %s26 = sshll.u32 [#allocation2], 4
      %s27 = int_to_ptr.vmem [resolvable:$true] %s26
      %32 = dma.hbm_to_vmem [thread:$0]  %s1, 24576, %s27, [#allocation3], 256, 256, 16
    $region9: #{encoder_forward.1} parent=1 // pred_fallthru
      _
    // Predicated region
    $region10: #{encoder_forward.1} parent=1 // pred_check
      _
    $region11: #{encoder_forward.1} parent=1 // pred_check_branch
      %34 = sbr.rel (0) target = $region13
    $region12: #{encoder_forward.1} parent=1 // pred_region
      _
    $region13: #{encoder_forward.1} parent=1 // pred_fallthru
      _
    // Predicated region
    $region14: #{encoder_forward.1} parent=1 // pred_check
      _
    $region15: #{encoder_forward.1} parent=1 // pred_check_branch
      %36 = sbr.rel (0) target = $region17
    $region16: #{encoder_forward.1} parent=1 // pred_region
      _
    $region17: #{encoder_forward.1} parent=1 // pred_fallthru
      _
    // Predicated region
    $region18: #{encoder_forward.1} parent=1 // pred_check
      _
    $region19: #{encoder_forward.1} parent=1 // pred_check_branch
      %38 = sbr.rel (0) target = $region21
    $region20: #{encoder_forward.1} parent=1 // pred_region
      _
    $region21: #{encoder_forward.1} parent=1 // pred_fallthru
      _
    // Predicated region
    $region22: #{encoder_forward.1} parent=1 // pred_check
      _
    $region23: #{encoder_forward.1} parent=1 // pred_check_branch
      %40 = sbr.rel (0) target = $region25
    $region24: #{encoder_forward.1} parent=1 // pred_region
      %s42 = ssub.s32 32768, 32768
      %43 = vsyncadd [#allocation6], %s42
      %s44 = sshll.u32 [#allocation5], 4
      %s45 = int_to_ptr.vmem [resolvable:$true] %s44
      %50 = dma.hbm_to_vmem [thread:$0]  %s5, 32768, %s45, [#allocation6], 256, 256, 16
    $region25: #{encoder_forward.1} parent=1 // pred_fallthru
      _
    // Predicated region
    $region26: #{encoder_forward.1} parent=1 // pred_check
      _
    $region27: #{encoder_forward.1} parent=1 // pred_check_branch
      %52 = sbr.rel (0) target = $region29
    $region28: #{encoder_forward.1} parent=1 // pred_region
      _
    $region29: #{encoder_forward.1} parent=1 // pred_fallthru
      _
    // Predicated region
    $region30: #{encoder_forward.1} parent=1 // pred_check
      _
    $region31: #{encoder_forward.1} parent=1 // pred_check_branch
      %54 = sbr.rel (0) target = $region33
    $region32: #{encoder_forward.1} parent=1 // pred_region
      %s56 = ssub.s32 32768, 32768
      %57 = vsyncadd [#allocation6], %s56
      %s58 = sshll.u32 [#allocation7], 4
      %s59 = int_to_ptr.vmem [resolvable:$true] %s58
      %64 = dma.hbm_to_vmem [thread:$0]  %s7, 32768, %s59, [#allocation6], 256, 256, 16
    $region33: #{encoder_forward.1} parent=1 // pred_fallthru
      _
    // Predicated region
    $region34: #{encoder_forward.1} parent=1 // pred_check
      _
    $region35: #{encoder_forward.1} parent=1 // pred_check_branch
      %66 = sbr.rel (0) target = $region37
    $region36: #{encoder_forward.1} parent=1 // pred_region
      _
    $region37: #{encoder_forward.1} parent=1 // pred_fallthru
      _
    // Predicated region
    $region38: #{encoder_forward.1} parent=1 // pred_check
      _
    $region39: #{encoder_forward.1} parent=1 // pred_check_branch
      %68 = sbr.rel (0) target = $region41
    $region40: #{encoder_forward.1} parent=1 // pred_region
      _
    $region41: #{encoder_forward.1} parent=1 // pred_fallthru
      _
    // Predicated region
    $region42: #{encoder_forward.1} parent=1 // pred_check
      _
    $region43: #{encoder_forward.1} parent=1 // pred_check_branch
      %70 = sbr.rel (0) target = $region45
    $region44: #{encoder_forward.1} parent=1 // pred_region
      _
    $region45: #{encoder_forward.1} parent=1 // pred_fallthru
      _
    // Predicated region
    $region46: #{encoder_forward.1} parent=1 // pred_check
      _
    $region47: #{encoder_forward.1} parent=1 // pred_check_branch
      %72 = sbr.rel (0) target = $region49
    $region48: #{encoder_forward.1} parent=1 // pred_region
      %73 = dma.done [#allocation3], 24576
    $region49: #{encoder_forward.1} parent=1 // pred_fallthru
      _
    // Predicated region
    $region50: #{encoder_forward.1} parent=1 // pred_check
      _
    $region51: #{encoder_forward.1} parent=1 // pred_check_branch
      %75 = sbr.rel (0) target = $region53
    $region52: #{encoder_forward.1} parent=1 // pred_region
      %76 = dma.done [#allocation6], 32768
    $region53: #{encoder_forward.1} parent=1 // pred_fallthru
      _
    // Predicated region
    $region54: #{encoder_forward.1} parent=1 // pred_check
      _
    $region55: #{encoder_forward.1} parent=1 // pred_check_branch
      %78 = sbr.rel (0) target = $region57
    $region56: #{encoder_forward.1} parent=1 // pred_region
      %79 = dma.done [#allocation6], 32768
    $region57: #{encoder_forward.1} parent=1 // pred_fallthru
      _
    %v80 = vld [vmem:[%s0] sm:$0xff]
    %v81 = vld [vmem:[%s0 + $0x8] sm:$0xff]
    %v82 = vld [vmem:[%s0 + $0x10] sm:$0xff]
    %v83 = vld [vmem:[%s0 + $0x18] sm:$0xff]
    %v84 = vld [vmem:[%s0 + $0x20] sm:$0xff]
    %v85 = vld [vmem:[%s0 + $0x28] sm:$0xff]
    %v86 = vld [vmem:[%s0 + $0x30] sm:$0xff]
    %v87 = vld [vmem:[%s0 + $0x38] sm:$0xff]
    %v88 = vld [vmem:[%s0 + $0x40] sm:$0xff]
    %v89 = vld [vmem:[%s0 + $0x48] sm:$0xff]
    %v90 = vld [vmem:[%s0 + $0x50] sm:$0xff]
    %v91 = vld [vmem:[%s0 + $0x58] sm:$0xff]
    %v92 = vld [vmem:[%s0 + $0x60] sm:$0xff]
    %v93 = vld [vmem:[%s0 + $0x68] sm:$0xff]
    %v94 = vld [vmem:[%s0 + $0x70] sm:$0xff]
    %v95 = vld [vmem:[%s0 + $0x78] sm:$0xff]
    %v96 = vld [vmem:[%s0 + $0x80] sm:$0xff]
    %v97 = vld [vmem:[%s0 + $0x88] sm:$0xff]
    %v98 = vld [vmem:[%s0 + $0x90] sm:$0xff]
    %v99 = vld [vmem:[%s0 + $0x98] sm:$0xff]
    %v100 = vld [vmem:[%s0 + $0xa0] sm:$0xff]
    %v101 = vld [vmem:[%s0 + $0xa8] sm:$0xff]
    %v102 = vld [vmem:[%s0 + $0xb0] sm:$0xff]
    %v103 = vld [vmem:[%s0 + $0xb8] sm:$0xff]
    %v104 = vld [vmem:[%s0 + $0xc0] sm:$0xff]
    %v105 = vld [vmem:[%s0 + $0xc8] sm:$0xff]
    %v106 = vld [vmem:[%s0 + $0xd0] sm:$0xff]
    %v107 = vld [vmem:[%s0 + $0xd8] sm:$0xff]
    %v108 = vld [vmem:[%s0 + $0xe0] sm:$0xff]
    %v109 = vld [vmem:[%s0 + $0xe8] sm:$0xff]
    %v110 = vld [vmem:[%s0 + $0xf0] sm:$0xff]
    %v111 = vld [vmem:[%s0 + $0xf8] sm:$0xff]
    %v112 = vlaneseq
    %v113 = vshrl.u32 %v112, 7
    %v114 = vadd.s32 %v113, 8
    %v115 = vadd.s32 %v113, 16
    %v116 = vadd.s32 %v113, 24
    %v117 = vadd.s32 %v113, 32
    %v118 = vadd.s32 %v113, 40
    %v119 = vadd.s32 %v113, 48
    %v120 = vadd.s32 %v113, 56
    %v121 = vlaneseq
    %v122 = vand.u32 %v121, 127
    %v123 = vshra.s32 %v113, 5
    %v124 = vshra.s32 %v114, 5
    %v125 = vshra.s32 %v115, 5
    %v126 = vshra.s32 %v116, 5
    %v127 = vshra.s32 %v117, 5
    %v128 = vshra.s32 %v118, 5
    %v129 = vshra.s32 %v119, 5
    %v130 = vshra.s32 %v120, 5
    %v131 = vand.u32 %v113, 31
    %v132 = vand.u32 %v114, 31
    %v133 = vand.u32 %v115, 31
    %v134 = vand.u32 %v116, 31
    %v135 = vand.u32 %v117, 31
    %v136 = vand.u32 %v118, 31
    %v137 = vand.u32 %v119, 31
    %v138 = vand.u32 %v120, 31
    %v139 = vmul.u32 %v131, 2
    %v140 = vmul.u32 %v132, 2
    %v141 = vmul.u32 %v133, 2
    %v142 = vmul.u32 %v134, 2
    %v143 = vmul.u32 %v135, 2
    %v144 = vmul.u32 %v136, 2
    %v145 = vmul.u32 %v137, 2
    %v146 = vmul.u32 %v138, 2
    %v147 = vadd.s32 %v139, 4294967295
    %v148 = vadd.s32 %v140, 4294967295
    %v149 = vadd.s32 %v141, 4294967295
    %v150 = vadd.s32 %v142, 4294967295
    %v151 = vadd.s32 %v143, 4294967295
    %v152 = vadd.s32 %v144, 4294967295
    %v153 = vadd.s32 %v145, 4294967295
    %v154 = vadd.s32 %v146, 4294967295
    %v155 = vmul.u32 %v123, 64
    %v156 = vmul.u32 %v124, 64
    %v157 = vmul.u32 %v125, 64
    %v158 = vmul.u32 %v126, 64
    %v159 = vmul.u32 %v127, 64
    %v160 = vmul.u32 %v128, 64
    %v161 = vmul.u32 %v129, 64
    %v162 = vmul.u32 %v130, 64
    %v163 = vadd.s32 %v155, %v147
    %v164 = vadd.s32 %v156, %v148
    %v165 = vadd.s32 %v157, %v149
    %v166 = vadd.s32 %v158, %v150
    %v167 = vadd.s32 %v159, %v151
    %v168 = vadd.s32 %v160, %v152
    %v169 = vadd.s32 %v161, %v153
    %v170 = vadd.s32 %v162, %v154
    %vm171 = vcmp.eq.s32.totalorder %v122, %v163
    %vm172 = vcmp.eq.s32.totalorder %v122, %v164
    %vm173 = vcmp.eq.s32.totalorder %v122, %v165
    %vm174 = vcmp.eq.s32.totalorder %v122, %v166
    %vm175 = vcmp.eq.s32.totalorder %v122, %v167
    %vm176 = vcmp.eq.s32.totalorder %v122, %v168
    %vm177 = vcmp.eq.s32.totalorder %v122, %v169
    %vm178 = vcmp.eq.s32.totalorder %v122, %v170
    %vm179 = vcmp.ge.s32.totalorder %v147, 0
    %vm180 = vcmp.ge.s32.totalorder %v148, 0
    %vm181 = vcmp.ge.s32.totalorder %v149, 0
    %vm182 = vcmp.ge.s32.totalorder %v150, 0
    %vm183 = vcmp.ge.s32.totalorder %v151, 0
    %vm184 = vcmp.ge.s32.totalorder %v152, 0
    %vm185 = vcmp.ge.s32.totalorder %v153, 0
    %vm186 = vcmp.ge.s32.totalorder %v154, 0
    %vm187 = vmand %vm171, %vm179
    %vm188 = vmand %vm172, %vm180
    %vm189 = vmand %vm173, %vm181
    %vm190 = vmand %vm174, %vm182
    %vm191 = vmand %vm175, %vm183
    %vm192 = vmand %vm176, %vm184
    %vm193 = vmand %vm177, %vm185
    %vm194 = vmand %vm178, %vm186
    %vm195 = vcmp.lt.s32.totalorder %v147, 64
    %vm196 = vcmp.lt.s32.totalorder %v148, 64
    %vm197 = vcmp.lt.s32.totalorder %v149, 64
    %vm198 = vcmp.lt.s32.totalorder %v150, 64
    %vm199 = vcmp.lt.s32.totalorder %v151, 64
    %vm200 = vcmp.lt.s32.totalorder %v152, 64
    %vm201 = vcmp.lt.s32.totalorder %v153, 64
    %vm202 = vcmp.lt.s32.totalorder %v154, 64
    %vm203 = vmand %vm187, %vm195
    %vm204 = vmand %vm188, %vm196
    %vm205 = vmand %vm189, %vm197
    %vm206 = vmand %vm190, %vm198
    %vm207 = vmand %vm191, %vm199
    %vm208 = vmand %vm192, %vm200
    %vm209 = vmand %vm193, %vm201
    %vm210 = vmand %vm194, %vm202
    %v211 = vsel %vm203, 1.0, 0.0
    %v212 = vsel %vm204, 1.0, 0.0
    %v213 = vsel %vm205, 1.0, 0.0
    %v214 = vsel %vm206, 1.0, 0.0
    %v215 = vsel %vm207, 1.0, 0.0
    %v216 = vsel %vm208, 1.0, 0.0
    %v217 = vsel %vm209, 1.0, 0.0
    %v218 = vsel %vm210, 1.0, 0.0
    %219 = vmatprep.subr.mxu0 %v81
    %220 = vmatpush1.msra.mxu0 %v80
    %221 = vmatprep.subr.mxu0 %v83
    %222 = vmatpush1.msra.mxu0 %v82
    %223 = vmatprep.subr.mxu0 %v85
    %224 = vmatpush1.msra.mxu0 %v84
    %225 = vmatprep.subr.mxu0 %v87
    %226 = vmatpush1.msra.mxu0 %v86
    %227 = vmatprep.subr.mxu0 %v89
    %228 = vmatpush1.msra.mxu0 %v88
    %229 = vmatprep.subr.mxu0 %v91
    %230 = vmatpush1.msra.mxu0 %v90
    %231 = vmatprep.subr.mxu0 %v93
    %232 = vmatpush1.msra.mxu0 %v92
    %233 = vmatprep.subr.mxu0 %v95
    %234 = vmatpush1.msra.mxu0 %v94
    %235 = vmatprep.subr.mxu0 %v97
    %236 = vmatpush1.msra.mxu0 %v96
    %237 = vmatprep.subr.mxu0 %v99
    %238 = vmatpush1.msra.mxu0 %v98
    %239 = vmatprep.subr.mxu0 %v101
    %240 = vmatpush1.msra.mxu0 %v100
    %241 = vmatprep.subr.mxu0 %v103
    %242 = vmatpush1.msra.mxu0 %v102
    %243 = vmatprep.subr.mxu0 %v105
    %244 = vmatpush1.msra.mxu0 %v104
    %245 = vmatprep.subr.mxu0 %v107
    %246 = vmatpush1.msra.mxu0 %v106
    %247 = vmatprep.subr.mxu0 %v109
    %248 = vmatpush1.msra.mxu0 %v108
    %249 = vmatprep.subr.mxu0 %v111
    %250 = vmatpush1.msra.mxu0 %v110
    %251 = vmatprep.subr.mxu0 0.0
    %252 = vmatpush1.msra.mxu0 0.0
    %253 = vmatprep.subr.mxu0 0.0
    %254 = vmatpush1.msra.mxu0 0.0
    %255 = vmatprep.subr.mxu0 0.0
    %256 = vmatpush1.msra.mxu0 0.0
    %257 = vmatprep.subr.mxu0 0.0
    %258 = vmatpush1.msra.mxu0 0.0
    %259 = vmatprep.subr.mxu0 0.0
    %260 = vmatpush1.msra.mxu0 0.0
    %261 = vmatprep.subr.mxu0 0.0
    %262 = vmatpush1.msra.mxu0 0.0
    %263 = vmatprep.subr.mxu0 0.0
    %264 = vmatpush1.msra.mxu0 0.0
    %265 = vmatprep.subr.mxu0 0.0
    %266 = vmatpush1.msra.mxu0 0.0
    %267 = vmatprep.subr.mxu0 0.0
    %268 = vmatpush1.msra.mxu0 0.0
    %269 = vmatprep.subr.mxu0 0.0
    %270 = vmatpush1.msra.mxu0 0.0
    %271 = vmatprep.subr.mxu0 0.0
    %272 = vmatpush1.msra.mxu0 0.0
    %273 = vmatprep.subr.mxu0 0.0
    %274 = vmatpush1.msra.mxu0 0.0
    %275 = vmatprep.subr.mxu0 0.0
    %276 = vmatpush1.msra.mxu0 0.0
    %277 = vmatprep.subr.mxu0 0.0
    %278 = vmatpush1.msra.mxu0 0.0
    %279 = vmatprep.subr.mxu0 0.0
    %280 = vmatpush1.msra.mxu0 0.0
    %281 = vmatprep.subr.mxu0 0.0
    %282 = vmatpush1.msra.mxu0 0.0
    %283 = vmatprep.mubr.f32.mxu0 0.0
    %284 = vmatmul.mubr.f32.gmra.mrb[0].mxu0 %v211
    %v285 = vpop.f32.mrb[0].mxu0
    %v286 = vadd.f32 0.0, %v285
    %v287 = vpop.f32.mrb[0].mxu0
    %v288 = vadd.f32 0.0, %v287
    %289 = vmatprep.mubr.f32.mxu0 0.0
    %290 = vmatmul.mubr.f32.gmra.mrb[0].mxu0 %v212
    %v291 = vpop.f32.mrb[0].mxu0
    %v292 = vadd.f32 0.0, %v291
    %v293 = vpop.f32.mrb[0].mxu0
    %v294 = vadd.f32 0.0, %v293
    %295 = vmatprep.mubr.f32.mxu0 0.0
    %296 = vmatmul.mubr.f32.gmra.mrb[0].mxu0 %v213
    %v297 = vpop.f32.mrb[0].mxu0
    %v298 = vadd.f32 0.0, %v297
    %v299 = vpop.f32.mrb[0].mxu0
    %v300 = vadd.f32 0.0, %v299
    %301 = vmatprep.mubr.f32.mxu0 0.0
    %302 = vmatmul.mubr.f32.gmra.mrb[0].mxu0 %v214
    %v303 = vpop.f32.mrb[0].mxu0
    %v304 = vadd.f32 0.0, %v303
    %v305 = vpop.f32.mrb[0].mxu0
    %v306 = vadd.f32 0.0, %v305
    %307 = vmatprep.mubr.f32.mxu0 0.0
    %308 = vmatmul.mubr.f32.gmra.mrb[0].mxu0 %v215
    %v309 = vpop.f32.mrb[0].mxu0
    %v310 = vadd.f32 0.0, %v309
    %v311 = vpop.f32.mrb[0].mxu0
    %v312 = vadd.f32 0.0, %v311
    %313 = vmatprep.mubr.f32.mxu0 0.0
    %314 = vmatmul.mubr.f32.gmra.mrb[0].mxu0 %v216
    %v315 = vpop.f32.mrb[0].mxu0
    %v316 = vadd.f32 0.0, %v315
    %v317 = vpop.f32.mrb[0].mxu0
    %v318 = vadd.f32 0.0, %v317
    %319 = vmatprep.mubr.f32.mxu0 0.0
    %320 = vmatmul.mubr.f32.gmra.mrb[0].mxu0 %v217
    %v321 = vpop.f32.mrb[0].mxu0
    %v322 = vadd.f32 0.0, %v321
    %v323 = vpop.f32.mrb[0].mxu0
    %v324 = vadd.f32 0.0, %v323
    %325 = vmatprep.mubr.f32.mxu0 0.0
    %326 = vmatmul.mubr.f32.gmra.mrb[0].mxu0 %v218
    %v327 = vpop.f32.mrb[0].mxu0
    %v328 = vadd.f32 0.0, %v327
    %v329 = vpop.f32.mrb[0].mxu0
    %v330 = vadd.f32 0.0, %v329
    %331 = vdwg.mxu0
    %v332 = vld [vmem:[#allocation2] sm:$0xff]
    %v333 = vld [vmem:[#allocation2 + $0x8] sm:$0xff]
    %v334 = vld [vmem:[#allocation2 + $0x10] sm:$0xff]
    %v335 = vld [vmem:[#allocation2 + $0x18] sm:$0xff]
    %v336 = vld [vmem:[#allocation2 + $0x20] sm:$0xff]
    %v337 = vld [vmem:[#allocation2 + $0x28] sm:$0xff]
    %v338 = vld [vmem:[#allocation2 + $0x30] sm:$0xff]
    %v339 = vld [vmem:[#allocation2 + $0x38] sm:$0xff]
    %v340 = vld [vmem:[#allocation2 + $0x40] sm:$0xff]
    %v341 = vld [vmem:[#allocation2 + $0x48] sm:$0xff]
    %v342 = vld [vmem:[#allocation2 + $0x50] sm:$0xff]
    %v343 = vld [vmem:[#allocation2 + $0x58] sm:$0xff]
    %v344 = vld [vmem:[#allocation2 + $0x60] sm:$0xff]
    %v345 = vld [vmem:[#allocation2 + $0x68] sm:$0xff]
    %v346 = vld [vmem:[#allocation2 + $0x70] sm:$0xff]
    %v347 = vld [vmem:[#allocation2 + $0x78] sm:$0xff]
    %v348 = vld [vmem:[#allocation2 + $0x80] sm:$0xff]
    %v349 = vld [vmem:[#allocation2 + $0x88] sm:$0xff]
    %v350 = vld [vmem:[#allocation2 + $0x90] sm:$0xff]
    %v351 = vld [vmem:[#allocation2 + $0x98] sm:$0xff]
    %v352 = vld [vmem:[#allocation2 + $0xa0] sm:$0xff]
    %v353 = vld [vmem:[#allocation2 + $0xa8] sm:$0xff]
    %v354 = vld [vmem:[#allocation2 + $0xb0] sm:$0xff]
    %v355 = vld [vmem:[#allocation2 + $0xb8] sm:$0xff]
    %v356 = vld [vmem:[#allocation2 + $0xc0] sm:$0xff]
    %v357 = vld [vmem:[#allocation2 + $0xc8] sm:$0xff]
    %v358 = vld [vmem:[#allocation2 + $0xd0] sm:$0xff]
    %v359 = vld [vmem:[#allocation2 + $0xd8] sm:$0xff]
    %v360 = vld [vmem:[#allocation2 + $0xe0] sm:$0xff]
    %v361 = vld [vmem:[#allocation2 + $0xe8] sm:$0xff]
    %v362 = vld [vmem:[#allocation2 + $0xf0] sm:$0xff]
    %v363 = vld [vmem:[#allocation2 + $0xf8] sm:$0xff]
    %v364 = vld [vmem:[#allocation2 + $0x100] sm:$0xff]
    %v365 = vld [vmem:[#allocation2 + $0x108] sm:$0xff]
    %v366 = vld [vmem:[#allocation2 + $0x110] sm:$0xff]
    %v367 = vld [vmem:[#allocation2 + $0x118] sm:$0xff]
    %v368 = vld [vmem:[#allocation2 + $0x120] sm:$0xff]
    %v369 = vld [vmem:[#allocation2 + $0x128] sm:$0xff]
    %v370 = vld [vmem:[#allocation2 + $0x130] sm:$0xff]
    %v371 = vld [vmem:[#allocation2 + $0x138] sm:$0xff]
    %v372 = vld [vmem:[#allocation2 + $0x140] sm:$0xff]
    %v373 = vld [vmem:[#allocation2 + $0x148] sm:$0xff]
    %v374 = vld [vmem:[#allocation2 + $0x150] sm:$0xff]
    %v375 = vld [vmem:[#allocation2 + $0x158] sm:$0xff]
    %v376 = vld [vmem:[#allocation2 + $0x160] sm:$0xff]
    %v377 = vld [vmem:[#allocation2 + $0x168] sm:$0xff]
    %v378 = vld [vmem:[#allocation2 + $0x170] sm:$0xff]
    %v379 = vld [vmem:[#allocation2 + $0x178] sm:$0xff]
    %v380 = vadd.s32 %v155, %v139
    %v381 = vadd.s32 %v156, %v140
    %v382 = vadd.s32 %v157, %v141
    %v383 = vadd.s32 %v158, %v142
    %v384 = vadd.s32 %v159, %v143
    %v385 = vadd.s32 %v160, %v144
    %v386 = vadd.s32 %v161, %v145
    %v387 = vadd.s32 %v162, %v146
    %vm388 = vcmp.eq.s32.totalorder %v122, %v380
    %vm389 = vcmp.eq.s32.totalorder %v122, %v381
    %vm390 = vcmp.eq.s32.totalorder %v122, %v382
    %vm391 = vcmp.eq.s32.totalorder %v122, %v383
    %vm392 = vcmp.eq.s32.totalorder %v122, %v384
    %vm393 = vcmp.eq.s32.totalorder %v122, %v385
    %vm394 = vcmp.eq.s32.totalorder %v122, %v386
    %vm395 = vcmp.eq.s32.totalorder %v122, %v387
    %vm396 = vcmp.ge.s32.totalorder %v139, 0
    %vm397 = vcmp.ge.s32.totalorder %v140, 0
    %vm398 = vcmp.ge.s32.totalorder %v141, 0
    %vm399 = vcmp.ge.s32.totalorder %v142, 0
    %vm400 = vcmp.ge.s32.totalorder %v143, 0
    %vm401 = vcmp.ge.s32.totalorder %v144, 0
    %vm402 = vcmp.ge.s32.totalorder %v145, 0
    %vm403 = vcmp.ge.s32.totalorder %v146, 0
    %vm404 = vmand %vm388, %vm396
    %vm405 = vmand %vm389, %vm397
    %vm406 = vmand %vm390, %vm398
    %vm407 = vmand %vm391, %vm399
    %vm408 = vmand %vm392, %vm400
    %vm409 = vmand %vm393, %vm401
    %vm410 = vmand %vm394, %vm402
    %vm411 = vmand %vm395, %vm403
    %vm412 = vcmp.lt.s32.totalorder %v139, 64
    %vm413 = vcmp.lt.s32.totalorder %v140, 64
    %vm414 = vcmp.lt.s32.totalorder %v141, 64
    %vm415 = vcmp.lt.s32.totalorder %v142, 64
    %vm416 = vcmp.lt.s32.totalorder %v143, 64
    %vm417 = vcmp.lt.s32.totalorder %v144, 64
    %vm418 = vcmp.lt.s32.totalorder %v145, 64
    %vm419 = vcmp.lt.s32.totalorder %v146, 64
    %vm420 = vmand %vm404, %vm412
    %vm421 = vmand %vm405, %vm413
    %vm422 = vmand %vm406, %vm414
    %vm423 = vmand %vm407, %vm415
    %vm424 = vmand %vm408, %vm416
    %vm425 = vmand %vm409, %vm417
    %vm426 = vmand %vm410, %vm418
    %vm427 = vmand %vm411, %vm419
    %v428 = vsel %vm420, 1.0, 0.0
    %v429 = vsel %vm421, 1.0, 0.0
    %v430 = vsel %vm422, 1.0, 0.0
    %v431 = vsel %vm423, 1.0, 0.0
    %v432 = vsel %vm424, 1.0, 0.0
    %v433 = vsel %vm425, 1.0, 0.0
    %v434 = vsel %vm426, 1.0, 0.0
    %v435 = vsel %vm427, 1.0, 0.0
    %436 = vmatprep.subr.mxu0 %v81
    %437 = vmatpush1.msra.mxu0 %v80
    %438 = vmatprep.subr.mxu0 %v83
    %439 = vmatpush1.msra.mxu0 %v82
    %440 = vmatprep.subr.mxu0 %v85
    %441 = vmatpush1.msra.mxu0 %v84
    %442 = vmatprep.subr.mxu0 %v87
    %443 = vmatpush1.msra.mxu0 %v86
    %444 = vmatprep.subr.mxu0 %v89
    %445 = vmatpush1.msra.mxu0 %v88
    %446 = vmatprep.subr.mxu0 %v91
    %447 = vmatpush1.msra.mxu0 %v90
    %448 = vmatprep.subr.mxu0 %v93
    %449 = vmatpush1.msra.mxu0 %v92
    %450 = vmatprep.subr.mxu0 %v95
    %451 = vmatpush1.msra.mxu0 %v94
    %452 = vmatprep.subr.mxu0 %v97
    %453 = vmatpush1.msra.mxu0 %v96
    %454 = vmatprep.subr.mxu0 %v99
    %455 = vmatpush1.msra.mxu0 %v98
    %456 = vmatprep.subr.mxu0 %v101
    %457 = vmatpush1.msra.mxu0 %v100
    %458 = vmatprep.subr.mxu0 %v103
    %459 = vmatpush1.msra.mxu0 %v102
    %460 = vmatprep.subr.mxu0 %v105
    %461 = vmatpush1.msra.mxu0 %v104
    %462 = vmatprep.subr.mxu0 %v107
    %463 = vmatpush1.msra.mxu0 %v106
    %464 = vmatprep.subr.mxu0 %v109
    %465 = vmatpush1.msra.mxu0 %v108
    %466 = vmatprep.subr.mxu0 %v111
    %467 = vmatpush1.msra.mxu0 %v110
    %468 = vmatprep.subr.mxu0 0.0
    %469 = vmatpush1.msra.mxu0 0.0
    %470 = vmatprep.subr.mxu0 0.0
    %471 = vmatpush1.msra.mxu0 0.0
    %472 = vmatprep.subr.mxu0 0.0
    %473 = vmatpush1.msra.mxu0 0.0
    %474 = vmatprep.subr.mxu0 0.0
    %475 = vmatpush1.msra.mxu0 0.0
    %476 = vmatprep.subr.mxu0 0.0
    %477 = vmatpush1.msra.mxu0 0.0
    %478 = vmatprep.subr.mxu0 0.0
    %479 = vmatpush1.msra.mxu0 0.0
    %480 = vmatprep.subr.mxu0 0.0
    %481 = vmatpush1.msra.mxu0 0.0
    %482 = vmatprep.subr.mxu0 0.0
    %483 = vmatpush1.msra.mxu0 0.0
    %484 = vmatprep.subr.mxu0 0.0
    %485 = vmatpush1.msra.mxu0 0.0
    %486 = vmatprep.subr.mxu0 0.0
    %487 = vmatpush1.msra.mxu0 0.0
    %488 = vmatprep.subr.mxu0 0.0
    %489 = vmatpush1.msra.mxu0 0.0
    %490 = vmatprep.subr.mxu0 0.0
    %491 = vmatpush1.msra.mxu0 0.0
    %492 = vmatprep.subr.mxu0 0.0
    %493 = vmatpush1.msra.mxu0 0.0
    %494 = vmatprep.subr.mxu0 0.0
    %495 = vmatpush1.msra.mxu0 0.0
    %496 = vmatprep.subr.mxu0 0.0
    %497 = vmatpush1.msra.mxu0 0.0
    %498 = vmatprep.subr.mxu0 0.0
    %499 = vmatpush1.msra.mxu0 0.0
    %500 = vmatprep.mubr.f32.mxu0 0.0
    %501 = vmatmul.mubr.f32.gmra.mrb[0].mxu0 %v428
    %v502 = vpop.f32.mrb[0].mxu0
    %v503 = vadd.f32 0.0, %v502
    %v504 = vpop.f32.mrb[0].mxu0
    %v505 = vadd.f32 0.0, %v504
    %506 = vmatprep.mubr.f32.mxu0 0.0
    %507 = vmatmul.mubr.f32.gmra.mrb[0].mxu0 %v429
    %v508 = vpop.f32.mrb[0].mxu0
    %v509 = vadd.f32 0.0, %v508
    %v510 = vpop.f32.mrb[0].mxu0
    %v511 = vadd.f32 0.0, %v510
    %512 = vmatprep.mubr.f32.mxu0 0.0
    %513 = vmatmul.mubr.f32.gmra.mrb[0].mxu0 %v430
    %v514 = vpop.f32.mrb[0].mxu0
    %v515 = vadd.f32 0.0, %v514
    %v516 = vpop.f32.mrb[0].mxu0
    %v517 = vadd.f32 0.0, %v516
    %518 = vmatprep.mubr.f32.mxu0 0.0
    %519 = vmatmul.mubr.f32.gmra.mrb[0].mxu0 %v431
    %v520 = vpop.f32.mrb[0].mxu0
    %v521 = vadd.f32 0.0, %v520
    %v522 = vpop.f32.mrb[0].mxu0
    %v523 = vadd.f32 0.0, %v522
    %524 = vmatprep.mubr.f32.mxu0 0.0
    %525 = vmatmul.mubr.f32.gmra.mrb[0].mxu0 %v432
    %v526 = vpop.f32.mrb[0].mxu0
    %v527 = vadd.f32 0.0, %v526
    %v528 = vpop.f32.mrb[0].mxu0
    %v529 = vadd.f32 0.0, %v528
    %530 = vmatprep.mubr.f32.mxu0 0.0
    %531 = vmatmul.mubr.f32.gmra.mrb[0].mxu0 %v433
    %v532 = vpop.f32.mrb[0].mxu0
    %v533 = vadd.f32 0.0, %v532
    %v534 = vpop.f32.mrb[0].mxu0
    %v535 = vadd.f32 0.0, %v534
    %536 = vmatprep.mubr.f32.mxu0 0.0
    %537 = vmatmul.mubr.f32.gmra.mrb[0].mxu0 %v434
    %v538 = vpop.f32.mrb[0].mxu0
    %v539 = vadd.f32 0.0, %v538
    %v540 = vpop.f32.mrb[0].mxu0
    %v541 = vadd.f32 0.0, %v540
    %542 = vmatprep.mubr.f32.mxu0 0.0
    %543 = vmatmul.mubr.f32.gmra.mrb[0].mxu0 %v435
    %v544 = vpop.f32.mrb[0].mxu0
    %v545 = vadd.f32 0.0, %v544
    %v546 = vpop.f32.mrb[0].mxu0
    %v547 = vadd.f32 0.0, %v546
    %548 = vdwg.mxu0
    %v549 = vld [vmem:[#allocation2 + $0x180] sm:$0xff]
    %v550 = vld [vmem:[#allocation2 + $0x188] sm:$0xff]
    %v551 = vld [vmem:[#allocation2 + $0x190] sm:$0xff]
    %v552 = vld [vmem:[#allocation2 + $0x198] sm:$0xff]
    %v553 = vld [vmem:[#allocation2 + $0x1a0] sm:$0xff]
    %v554 = vld [vmem:[#allocation2 + $0x1a8] sm:$0xff]
    %v555 = vld [vmem:[#allocation2 + $0x1b0] sm:$0xff]
    %v556 = vld [vmem:[#allocation2 + $0x1b8] sm:$0xff]
    %v557 = vld [vmem:[#allocation2 + $0x1c0] sm:$0xff]
    %v558 = vld [vmem:[#allocation2 + $0x1c8] sm:$0xff]
    %v559 = vld [vmem:[#allocation2 + $0x1d0] sm:$0xff]
    %v560 = vld [vmem:[#allocation2 + $0x1d8] sm:$0xff]
    %v561 = vld [vmem:[#allocation2 + $0x1e0] sm:$0xff]
    %v562 = vld [vmem:[#allocation2 + $0x1e8] sm:$0xff]
    %v563 = vld [vmem:[#allocation2 + $0x1f0] sm:$0xff]
    %v564 = vld [vmem:[#allocation2 + $0x1f8] sm:$0xff]
    %v565 = vld [vmem:[#allocation2 + $0x200] sm:$0xff]
    %v566 = vld [vmem:[#allocation2 + $0x208] sm:$0xff]
    %v567 = vld [vmem:[#allocation2 + $0x210] sm:$0xff]
    %v568 = vld [vmem:[#allocation2 + $0x218] sm:$0xff]
    %v569 = vld [vmem:[#allocation2 + $0x220] sm:$0xff]
    %v570 = vld [vmem:[#allocation2 + $0x228] sm:$0xff]
    %v571 = vld [vmem:[#allocation2 + $0x230] sm:$0xff]
    %v572 = vld [vmem:[#allocation2 + $0x238] sm:$0xff]
    %v573 = vld [vmem:[#allocation2 + $0x240] sm:$0xff]
    %v574 = vld [vmem:[#allocation2 + $0x248] sm:$0xff]
    %v575 = vld [vmem:[#allocation2 + $0x250] sm:$0xff]
    %v576 = vld [vmem:[#allocation2 + $0x258] sm:$0xff]
    %v577 = vld [vmem:[#allocation2 + $0x260] sm:$0xff]
    %v578 = vld [vmem:[#allocation2 + $0x268] sm:$0xff]
    %v579 = vld [vmem:[#allocation2 + $0x270] sm:$0xff]
    %v580 = vld [vmem:[#allocation2 + $0x278] sm:$0xff]
    %v581 = vld [vmem:[#allocation2 + $0x280] sm:$0xff]
    %v582 = vld [vmem:[#allocation2 + $0x288] sm:$0xff]
    %v583 = vld [vmem:[#allocation2 + $0x290] sm:$0xff]
    %v584 = vld [vmem:[#allocation2 + $0x298] sm:$0xff]
    %v585 = vld [vmem:[#allocation2 + $0x2a0] sm:$0xff]
    %v586 = vld [vmem:[#allocation2 + $0x2a8] sm:$0xff]
    %v587 = vld [vmem:[#allocation2 + $0x2b0] sm:$0xff]
    %v588 = vld [vmem:[#allocation2 + $0x2b8] sm:$0xff]
    %v589 = vld [vmem:[#allocation2 + $0x2c0] sm:$0xff]
    %v590 = vld [vmem:[#allocation2 + $0x2c8] sm:$0xff]
    %v591 = vld [vmem:[#allocation2 + $0x2d0] sm:$0xff]
    %v592 = vld [vmem:[#allocation2 + $0x2d8] sm:$0xff]
    %v593 = vld [vmem:[#allocation2 + $0x2e0] sm:$0xff]
    %v594 = vld [vmem:[#allocation2 + $0x2e8] sm:$0xff]
    %v595 = vld [vmem:[#allocation2 + $0x2f0] sm:$0xff]
    %v596 = vld [vmem:[#allocation2 + $0x2f8] sm:$0xff]
    %vm597 = vcmask 523264
    %v599 = vsel %vm597, %v505, 0
    %v602 = vsel %vm597, %v511, 0
    %v605 = vsel %vm597, %v517, 0
    %v608 = vsel %vm597, %v523, 0
    %v611 = vsel %vm597, %v529, 0
    %v614 = vsel %vm597, %v535, 0
    %v617 = vsel %vm597, %v541, 0
    %v620 = vsel %vm597, %v547, 0
    %622 = vmatprep.subr.mxu0 %v550
    %623 = vmatpush1.msra.mxu0 %v549
    %624 = vmatprep.subr.mxu0 %v552
    %625 = vmatpush1.msra.mxu0 %v551
    %626 = vmatprep.subr.mxu0 %v554
    %627 = vmatpush1.msra.mxu0 %v553
    %628 = vmatprep.subr.mxu0 %v556
    %629 = vmatpush1.msra.mxu0 %v555
    %630 = vmatprep.subr.mxu0 %v558
    %631 = vmatpush1.msra.mxu0 %v557
    %632 = vmatprep.subr.mxu0 %v560
    %633 = vmatpush1.msra.mxu0 %v559
    %634 = vmatprep.subr.mxu0 %v562
    %635 = vmatpush1.msra.mxu0 %v561
    %636 = vmatprep.subr.mxu0 %v564
    %637 = vmatpush1.msra.mxu0 %v563
    %638 = vmatprep.subr.mxu0 %v566
    %639 = vmatpush1.msra.mxu0 %v565
    %640 = vmatprep.subr.mxu0 %v568
    %641 = vmatpush1.msra.mxu0 %v567
    %642 = vmatprep.subr.mxu0 %v570
    %643 = vmatpush1.msra.mxu0 %v569
    %644 = vmatprep.subr.mxu0 %v572
    %645 = vmatpush1.msra.mxu0 %v571
    %646 = vmatprep.subr.mxu0 %v574
    %647 = vmatpush1.msra.mxu0 %v573
    %648 = vmatprep.subr.mxu0 %v576
    %649 = vmatpush1.msra.mxu0 %v575
    %650 = vmatprep.subr.mxu0 %v578
    %651 = vmatpush1.msra.mxu0 %v577
    %652 = vmatprep.subr.mxu0 %v580
    %653 = vmatpush1.msra.mxu0 %v579
    %654 = vmatprep.subr.mxu0 %v582
    %655 = vmatpush1.msra.mxu0 %v581
    %656 = vmatprep.subr.mxu0 %v584
    %657 = vmatpush1.msra.mxu0 %v583
    %658 = vmatprep.subr.mxu0 %v586
    %659 = vmatpush1.msra.mxu0 %v585
    %660 = vmatprep.subr.mxu0 %v588
    %661 = vmatpush1.msra.mxu0 %v587
    %662 = vmatprep.subr.mxu0 %v590
    %663 = vmatpush1.msra.mxu0 %v589
    %664 = vmatprep.subr.mxu0 %v592
    %665 = vmatpush1.msra.mxu0 %v591
    %666 = vmatprep.subr.mxu0 %v594
    %667 = vmatpush1.msra.mxu0 %v593
    %668 = vmatprep.subr.mxu0 %v596
    %669 = vmatpush1.msra.mxu0 %v595
    %670 = vmatprep.subr.mxu0 0.0
    %671 = vmatpush1.msra.mxu0 0.0
    %672 = vmatprep.subr.mxu0 0.0
    %673 = vmatpush1.msra.mxu0 0.0
    %674 = vmatprep.subr.mxu0 0.0
    %675 = vmatpush1.msra.mxu0 0.0
    %676 = vmatprep.subr.mxu0 0.0
    %677 = vmatpush1.msra.mxu0 0.0
    %678 = vmatprep.subr.mxu0 0.0
    %679 = vmatpush1.msra.mxu0 0.0
    %680 = vmatprep.subr.mxu0 0.0
    %681 = vmatpush1.msra.mxu0 0.0
    %682 = vmatprep.subr.mxu0 0.0
    %683 = vmatpush1.msra.mxu0 0.0
    %684 = vmatprep.subr.mxu0 0.0
    %685 = vmatpush1.msra.mxu0 0.0
    %686 = vmatprep.mubr.f32.mxu0 %v599
    %687 = vmatmul.mubr.f32.gmra.mrb[0].mxu0 %v503
    %v688 = vpop.f32.mrb[0].mxu0
    %v689 = vadd.f32 0.0, %v688
    %v690 = vpop.f32.mrb[0].mxu0
    %v691 = vadd.f32 0.0, %v690
    %692 = vmatprep.mubr.f32.mxu0 %v602
    %693 = vmatmul.mubr.f32.gmra.mrb[0].mxu0 %v509
    %v694 = vpop.f32.mrb[0].mxu0
    %v695 = vadd.f32 0.0, %v694
    %v696 = vpop.f32.mrb[0].mxu0
    %v697 = vadd.f32 0.0, %v696
    %698 = vmatprep.mubr.f32.mxu0 %v605
    %699 = vmatmul.mubr.f32.gmra.mrb[0].mxu0 %v515
    %v700 = vpop.f32.mrb[0].mxu0
    %v701 = vadd.f32 0.0, %v700
    %v702 = vpop.f32.mrb[0].mxu0
    %v703 = vadd.f32 0.0, %v702
    %704 = vmatprep.mubr.f32.mxu0 %v608
    %705 = vmatmul.mubr.f32.gmra.mrb[0].mxu0 %v521
    %v706 = vpop.f32.mrb[0].mxu0
    %v707 = vadd.f32 0.0, %v706
    %v708 = vpop.f32.mrb[0].mxu0
    %v709 = vadd.f32 0.0, %v708
    %710 = vmatprep.mubr.f32.mxu0 %v611
    %711 = vmatmul.mubr.f32.gmra.mrb[0].mxu0 %v527
    %v712 = vpop.f32.mrb[0].mxu0
    %v713 = vadd.f32 0.0, %v712
    %v714 = vpop.f32.mrb[0].mxu0
    %v715 = vadd.f32 0.0, %v714
    %716 = vmatprep.mubr.f32.mxu0 %v614
    %717 = vmatmul.mubr.f32.gmra.mrb[0].mxu0 %v533
    %v718 = vpop.f32.mrb[0].mxu0
    %v719 = vadd.f32 0.0, %v718
    %v720 = vpop.f32.mrb[0].mxu0
    %v721 = vadd.f32 0.0, %v720
    %722 = vmatprep.mubr.f32.mxu0 %v617
    %723 = vmatmul.mubr.f32.gmra.mrb[0].mxu0 %v539
    %v724 = vpop.f32.mrb[0].mxu0
    %v725 = vadd.f32 0.0, %v724
    %v726 = vpop.f32.mrb[0].mxu0
    %v727 = vadd.f32 0.0, %v726
    %728 = vmatprep.mubr.f32.mxu0 %v620
    %729 = vmatmul.mubr.f32.gmra.mrb[0].mxu0 %v545
    %v730 = vpop.f32.mrb[0].mxu0
    %v731 = vadd.f32 0.0, %v730
    %v732 = vpop.f32.mrb[0].mxu0
    %v733 = vadd.f32 0.0, %v732
    %734 = vdwg.mxu0
    %v736 = vsel %vm597, %v288, 0
    %v739 = vsel %vm597, %v294, 0
    %v742 = vsel %vm597, %v300, 0
    %v745 = vsel %vm597, %v306, 0
    %v748 = vsel %vm597, %v312, 0
    %v751 = vsel %vm597, %v318, 0
    %v754 = vsel %vm597, %v324, 0
    %v757 = vsel %vm597, %v330, 0
    %759 = vmatprep.subr.mxu0 %v333
    %760 = vmatpush1.msra.mxu0 %v332
    %761 = vmatprep.subr.mxu0 %v335
    %762 = vmatpush1.msra.mxu0 %v334
    %763 = vmatprep.subr.mxu0 %v337
    %764 = vmatpush1.msra.mxu0 %v336
    %765 = vmatprep.subr.mxu0 %v339
    %766 = vmatpush1.msra.mxu0 %v338
    %767 = vmatprep.subr.mxu0 %v341
    %768 = vmatpush1.msra.mxu0 %v340
    %769 = vmatprep.subr.mxu0 %v343
    %770 = vmatpush1.msra.mxu0 %v342
    %771 = vmatprep.subr.mxu0 %v345
    %772 = vmatpush1.msra.mxu0 %v344
    %773 = vmatprep.subr.mxu0 %v347
    %774 = vmatpush1.msra.mxu0 %v346
    %775 = vmatprep.subr.mxu0 %v349
    %776 = vmatpush1.msra.mxu0 %v348
    %777 = vmatprep.subr.mxu0 %v351
    %778 = vmatpush1.msra.mxu0 %v350
    %779 = vmatprep.subr.mxu0 %v353
    %780 = vmatpush1.msra.mxu0 %v352
    %781 = vmatprep.subr.mxu0 %v355
    %782 = vmatpush1.msra.mxu0 %v354
    %783 = vmatprep.subr.mxu0 %v357
    %784 = vmatpush1.msra.mxu0 %v356
    %785 = vmatprep.subr.mxu0 %v359
    %786 = vmatpush1.msra.mxu0 %v358
    %787 = vmatprep.subr.mxu0 %v361
    %788 = vmatpush1.msra.mxu0 %v360
    %789 = vmatprep.subr.mxu0 %v363
    %790 = vmatpush1.msra.mxu0 %v362
    %791 = vmatprep.subr.mxu0 %v365
    %792 = vmatpush1.msra.mxu0 %v364
    %793 = vmatprep.subr.mxu0 %v367
    %794 = vmatpush1.msra.mxu0 %v366
    %795 = vmatprep.subr.mxu0 %v369
    %796 = vmatpush1.msra.mxu0 %v368
    %797 = vmatprep.subr.mxu0 %v371
    %798 = vmatpush1.msra.mxu0 %v370
    %799 = vmatprep.subr.mxu0 %v373
    %800 = vmatpush1.msra.mxu0 %v372
    %801 = vmatprep.subr.mxu0 %v375
    %802 = vmatpush1.msra.mxu0 %v374
    %803 = vmatprep.subr.mxu0 %v377
    %804 = vmatpush1.msra.mxu0 %v376
    %805 = vmatprep.subr.mxu0 %v379
    %806 = vmatpush1.msra.mxu0 %v378
    %807 = vmatprep.subr.mxu0 0.0
    %808 = vmatpush1.msra.mxu0 0.0
    %809 = vmatprep.subr.mxu0 0.0
    %810 = vmatpush1.msra.mxu0 0.0
    %811 = vmatprep.subr.mxu0 0.0
    %812 = vmatpush1.msra.mxu0 0.0
    %813 = vmatprep.subr.mxu0 0.0
    %814 = vmatpush1.msra.mxu0 0.0
    %815 = vmatprep.subr.mxu0 0.0
    %816 = vmatpush1.msra.mxu0 0.0
    %817 = vmatprep.subr.mxu0 0.0
    %818 = vmatpush1.msra.mxu0 0.0
    %819 = vmatprep.subr.mxu0 0.0
    %820 = vmatpush1.msra.mxu0 0.0
    %821 = vmatprep.subr.mxu0 0.0
    %822 = vmatpush1.msra.mxu0 0.0
    %823 = vmatprep.mubr.f32.mxu0 %v736
    %824 = vmatmul.mubr.f32.gmra.mrb[0].mxu0 %v286
    %v825 = vpop.f32.mrb[0].mxu0
    %v826 = vadd.f32 %v689, %v825
    %v827 = vpop.f32.mrb[0].mxu0
    %v828 = vadd.f32 %v691, %v827
    %829 = vmatprep.mubr.f32.mxu0 %v739
    %830 = vmatmul.mubr.f32.gmra.mrb[0].mxu0 %v292
    %v831 = vpop.f32.mrb[0].mxu0
    %v832 = vadd.f32 %v695, %v831
    %v833 = vpop.f32.mrb[0].mxu0
    %v834 = vadd.f32 %v697, %v833
    %835 = vmatprep.mubr.f32.mxu0 %v742
    %836 = vmatmul.mubr.f32.gmra.mrb[0].mxu0 %v298
    %v837 = vpop.f32.mrb[0].mxu0
    %v838 = vadd.f32 %v701, %v837
    %v839 = vpop.f32.mrb[0].mxu0
    %v840 = vadd.f32 %v703, %v839
    %841 = vmatprep.mubr.f32.mxu0 %v745
    %842 = vmatmul.mubr.f32.gmra.mrb[0].mxu0 %v304
    %v843 = vpop.f32.mrb[0].mxu0
    %v844 = vadd.f32 %v707, %v843
    %v845 = vpop.f32.mrb[0].mxu0
    %v846 = vadd.f32 %v709, %v845
    %847 = vmatprep.mubr.f32.mxu0 %v748
    %848 = vmatmul.mubr.f32.gmra.mrb[0].mxu0 %v310
    %v849 = vpop.f32.mrb[0].mxu0
    %v850 = vadd.f32 %v713, %v849
    %v851 = vpop.f32.mrb[0].mxu0
    %v852 = vadd.f32 %v715, %v851
    %853 = vmatprep.mubr.f32.mxu0 %v751
    %854 = vmatmul.mubr.f32.gmra.mrb[0].mxu0 %v316
    %v855 = vpop.f32.mrb[0].mxu0
    %v856 = vadd.f32 %v719, %v855
    %v857 = vpop.f32.mrb[0].mxu0
    %v858 = vadd.f32 %v721, %v857
    %859 = vmatprep.mubr.f32.mxu0 %v754
    %860 = vmatmul.mubr.f32.gmra.mrb[0].mxu0 %v322
    %v861 = vpop.f32.mrb[0].mxu0
    %v862 = vadd.f32 %v725, %v861
    %v863 = vpop.f32.mrb[0].mxu0
    %v864 = vadd.f32 %v727, %v863
    %865 = vmatprep.mubr.f32.mxu0 %v757
    %866 = vmatmul.mubr.f32.gmra.mrb[0].mxu0 %v328
    %v867 = vpop.f32.mrb[0].mxu0
    %v868 = vadd.f32 %v731, %v867
    %v869 = vpop.f32.mrb[0].mxu0
    %v870 = vadd.f32 %v733, %v869
    %871 = vdwg.mxu0
    %v872 = vadd.s32 %v139, 1
    %v873 = vadd.s32 %v140, 1
    %v874 = vadd.s32 %v141, 1
    %v875 = vadd.s32 %v142, 1
    %v876 = vadd.s32 %v143, 1
    %v877 = vadd.s32 %v144, 1
    %v878 = vadd.s32 %v145, 1
    %v879 = vadd.s32 %v146, 1
    %v880 = vadd.s32 %v155, %v872
    %v881 = vadd.s32 %v156, %v873
    %v882 = vadd.s32 %v157, %v874
    %v883 = vadd.s32 %v158, %v875
    %v884 = vadd.s32 %v159, %v876
    %v885 = vadd.s32 %v160, %v877
    %v886 = vadd.s32 %v161, %v878
    %v887 = vadd.s32 %v162, %v879
    %vm888 = vcmp.eq.s32.totalorder %v122, %v880
    %vm889 = vcmp.eq.s32.totalorder %v122, %v881
    %vm890 = vcmp.eq.s32.totalorder %v122, %v882
    %vm891 = vcmp.eq.s32.totalorder %v122, %v883
    %vm892 = vcmp.eq.s32.totalorder %v122, %v884
    %vm893 = vcmp.eq.s32.totalorder %v122, %v885
    %vm894 = vcmp.eq.s32.totalorder %v122, %v886
    %vm895 = vcmp.eq.s32.totalorder %v122, %v887
    %vm896 = vcmp.ge.s32.totalorder %v872, 0
    %vm897 = vcmp.ge.s32.totalorder %v873, 0
    %vm898 = vcmp.ge.s32.totalorder %v874, 0
    %vm899 = vcmp.ge.s32.totalorder %v875, 0
    %vm900 = vcmp.ge.s32.totalorder %v876, 0
    %vm901 = vcmp.ge.s32.totalorder %v877, 0
    %vm902 = vcmp.ge.s32.totalorder %v878, 0
    %vm903 = vcmp.ge.s32.totalorder %v879, 0
    %vm904 = vmand %vm888, %vm896
    %vm905 = vmand %vm889, %vm897
    %vm906 = vmand %vm890, %vm898
    %vm907 = vmand %vm891, %vm899
    %vm908 = vmand %vm892, %vm900
    %vm909 = vmand %vm893, %vm901
    %vm910 = vmand %vm894, %vm902
    %vm911 = vmand %vm895, %vm903
    %vm912 = vcmp.lt.s32.totalorder %v872, 64
    %vm913 = vcmp.lt.s32.totalorder %v873, 64
    %vm914 = vcmp.lt.s32.totalorder %v874, 64
    %vm915 = vcmp.lt.s32.totalorder %v875, 64
    %vm916 = vcmp.lt.s32.totalorder %v876, 64
    %vm917 = vcmp.lt.s32.totalorder %v877, 64
    %vm918 = vcmp.lt.s32.totalorder %v878, 64
    %vm919 = vcmp.lt.s32.totalorder %v879, 64
    %vm920 = vmand %vm904, %vm912
    %vm921 = vmand %vm905, %vm913
    %vm922 = vmand %vm906, %vm914
    %vm923 = vmand %vm907, %vm915
    %vm924 = vmand %vm908, %vm916
    %vm925 = vmand %vm909, %vm917
    %vm926 = vmand %vm910, %vm918
    %vm927 = vmand %vm911, %vm919
    %v928 = vsel %vm920, 1.0, 0.0
    %v929 = vsel %vm921, 1.0, 0.0
    %v930 = vsel %vm922, 1.0, 0.0
    %v931 = vsel %vm923, 1.0, 0.0
    %v932 = vsel %vm924, 1.0, 0.0
    %v933 = vsel %vm925, 1.0, 0.0
    %v934 = vsel %vm926, 1.0, 0.0
    %v935 = vsel %vm927, 1.0, 0.0
    %936 = vmatprep.subr.mxu0 %v81
    %937 = vmatpush1.msra.mxu0 %v80
    %938 = vmatprep.subr.mxu0 %v83
    %939 = vmatpush1.msra.mxu0 %v82
    %940 = vmatprep.subr.mxu0 %v85
    %941 = vmatpush1.msra.mxu0 %v84
    %942 = vmatprep.subr.mxu0 %v87
    %943 = vmatpush1.msra.mxu0 %v86
    %944 = vmatprep.subr.mxu0 %v89
    %945 = vmatpush1.msra.mxu0 %v88
    %946 = vmatprep.subr.mxu0 %v91
    %947 = vmatpush1.msra.mxu0 %v90
    %948 = vmatprep.subr.mxu0 %v93
    %949 = vmatpush1.msra.mxu0 %v92
    %950 = vmatprep.subr.mxu0 %v95
    %951 = vmatpush1.msra.mxu0 %v94
    %952 = vmatprep.subr.mxu0 %v97
    %953 = vmatpush1.msra.mxu0 %v96
    %954 = vmatprep.subr.mxu0 %v99
    %955 = vmatpush1.msra.mxu0 %v98
    %956 = vmatprep.subr.mxu0 %v101
    %957 = vmatpush1.msra.mxu0 %v100
    %958 = vmatprep.subr.mxu0 %v103
    %959 = vmatpush1.msra.mxu0 %v102
    %960 = vmatprep.subr.mxu0 %v105
    %961 = vmatpush1.msra.mxu0 %v104
    %962 = vmatprep.subr.mxu0 %v107
    %963 = vmatpush1.msra.mxu0 %v106
    %964 = vmatprep.subr.mxu0 %v109
    %965 = vmatpush1.msra.mxu0 %v108
    %966 = vmatprep.subr.mxu0 %v111
    %967 = vmatpush1.msra.mxu0 %v110
    %968 = vmatprep.subr.mxu0 0.0
    %969 = vmatpush1.msra.mxu0 0.0
    %970 = vmatprep.subr.mxu0 0.0
    %971 = vmatpush1.msra.mxu0 0.0
    %972 = vmatprep.subr.mxu0 0.0
    %973 = vmatpush1.msra.mxu0 0.0
    %974 = vmatprep.subr.mxu0 0.0
    %975 = vmatpush1.msra.mxu0 0.0
    %976 = vmatprep.subr.mxu0 0.0
    %977 = vmatpush1.msra.mxu0 0.0
    %978 = vmatprep.subr.mxu0 0.0
    %979 = vmatpush1.msra.mxu0 0.0
    %980 = vmatprep.subr.mxu0 0.0
    %981 = vmatpush1.msra.mxu0 0.0
    %982 = vmatprep.subr.mxu0 0.0
    %983 = vmatpush1.msra.mxu0 0.0
    %984 = vmatprep.subr.mxu0 0.0
    %985 = vmatpush1.msra.mxu0 0.0
    %986 = vmatprep.subr.mxu0 0.0
    %987 = vmatpush1.msra.mxu0 0.0
    %988 = vmatprep.subr.mxu0 0.0
    %989 = vmatpush1.msra.mxu0 0.0
    %990 = vmatprep.subr.mxu0 0.0
    %991 = vmatpush1.msra.mxu0 0.0
    %992 = vmatprep.subr.mxu0 0.0
    %993 = vmatpush1.msra.mxu0 0.0
    %994 = vmatprep.subr.mxu0 0.0
    %995 = vmatpush1.msra.mxu0 0.0
    %996 = vmatprep.subr.mxu0 0.0
    %997 = vmatpush1.msra.mxu0 0.0
    %998 = vmatprep.subr.mxu0 0.0
    %999 = vmatpush1.msra.mxu0 0.0
    %1000 = vmatprep.mubr.f32.mxu0 0.0
    %1001 = vmatmul.mubr.f32.gmra.mrb[0].mxu0 %v928
    %v1002 = vpop.f32.mrb[0].mxu0
    %v1003 = vadd.f32 0.0, %v1002
    %v1004 = vpop.f32.mrb[0].mxu0
    %v1005 = vadd.f32 0.0, %v1004
    %1006 = vmatprep.mubr.f32.mxu0 0.0
    %1007 = vmatmul.mubr.f32.gmra.mrb[0].mxu0 %v929
    %v1008 = vpop.f32.mrb[0].mxu0
    %v1009 = vadd.f32 0.0, %v1008
    %v1010 = vpop.f32.mrb[0].mxu0
    %v1011 = vadd.f32 0.0, %v1010
    %1012 = vmatprep.mubr.f32.mxu0 0.0
    %1013 = vmatmul.mubr.f32.gmra.mrb[0].mxu0 %v930
    %v1014 = vpop.f32.mrb[0].mxu0
    %v1015 = vadd.f32 0.0, %v1014
    %v1016 = vpop.f32.mrb[0].mxu0
    %v1017 = vadd.f32 0.0, %v1016
    %1018 = vmatprep.mubr.f32.mxu0 0.0
    %1019 = vmatmul.mubr.f32.gmra.mrb[0].mxu0 %v931
    %v1020 = vpop.f32.mrb[0].mxu0
    %v1021 = vadd.f32 0.0, %v1020
    %v1022 = vpop.f32.mrb[0].mxu0
    %v1023 = vadd.f32 0.0, %v1022
    %1024 = vmatprep.mubr.f32.mxu0 0.0
    %1025 = vmatmul.mubr.f32.gmra.mrb[0].mxu0 %v932
    %v1026 = vpop.f32.mrb[0].mxu0
    %v1027 = vadd.f32 0.0, %v1026
    %v1028 = vpop.f32.mrb[0].mxu0
    %v1029 = vadd.f32 0.0, %v1028
    %1030 = vmatprep.mubr.f32.mxu0 0.0
    %1031 = vmatmul.mubr.f32.gmra.mrb[0].mxu0 %v933
    %v1032 = vpop.f32.mrb[0].mxu0
    %v1033 = vadd.f32 0.0, %v1032
    %v1034 = vpop.f32.mrb[0].mxu0
    %v1035 = vadd.f32 0.0, %v1034
    %1036 = vmatprep.mubr.f32.mxu0 0.0
    %1037 = vmatmul.mubr.f32.gmra.mrb[0].mxu0 %v934
    %v1038 = vpop.f32.mrb[0].mxu0
    %v1039 = vadd.f32 0.0, %v1038
    %v1040 = vpop.f32.mrb[0].mxu0
    %v1041 = vadd.f32 0.0, %v1040
    %1042 = vmatprep.mubr.f32.mxu0 0.0
    %1043 = vmatmul.mubr.f32.gmra.mrb[0].mxu0 %v935
    %v1044 = vpop.f32.mrb[0].mxu0
    %v1045 = vadd.f32 0.0, %v1044
    %v1046 = vpop.f32.mrb[0].mxu0
    %v1047 = vadd.f32 0.0, %v1046
    %1048 = vdwg.mxu0
    %v1049 = vld [vmem:[#allocation2 + $0x300] sm:$0xff]
    %v1050 = vld [vmem:[#allocation2 + $0x308] sm:$0xff]
    %v1051 = vld [vmem:[#allocation2 + $0x310] sm:$0xff]
    %v1052 = vld [vmem:[#allocation2 + $0x318] sm:$0xff]
    %v1053 = vld [vmem:[#allocation2 + $0x320] sm:$0xff]
    %v1054 = vld [vmem:[#allocation2 + $0x328] sm:$0xff]
    %v1055 = vld [vmem:[#allocation2 + $0x330] sm:$0xff]
    %v1056 = vld [vmem:[#allocation2 + $0x338] sm:$0xff]
    %v1057 = vld [vmem:[#allocation2 + $0x340] sm:$0xff]
    %v1058 = vld [vmem:[#allocation2 + $0x348] sm:$0xff]
    %v1059 = vld [vmem:[#allocation2 + $0x350] sm:$0xff]
    %v1060 = vld [vmem:[#allocation2 + $0x358] sm:$0xff]
    %v1061 = vld [vmem:[#allocation2 + $0x360] sm:$0xff]
    %v1062 = vld [vmem:[#allocation2 + $0x368] sm:$0xff]
    %v1063 = vld [vmem:[#allocation2 + $0x370] sm:$0xff]
    %v1064 = vld [vmem:[#allocation2 + $0x378] sm:$0xff]
    %v1065 = vld [vmem:[#allocation2 + $0x380] sm:$0xff]
    %v1066 = vld [vmem:[#allocation2 + $0x388] sm:$0xff]
    %v1067 = vld [vmem:[#allocation2 + $0x390] sm:$0xff]
    %v1068 = vld [vmem:[#allocation2 + $0x398] sm:$0xff]
    %v1069 = vld [vmem:[#allocation2 + $0x3a0] sm:$0xff]
    %v1070 = vld [vmem:[#allocation2 + $0x3a8] sm:$0xff]
    %v1071 = vld [vmem:[#allocation2 + $0x3b0] sm:$0xff]
    %v1072 = vld [vmem:[#allocation2 + $0x3b8] sm:$0xff]
    %v1073 = vld [vmem:[#allocation2 + $0x3c0] sm:$0xff]
    %v1074 = vld [vmem:[#allocation2 + $0x3c8] sm:$0xff]
    %v1075 = vld [vmem:[#allocation2 + $0x3d0] sm:$0xff]
    %v1076 = vld [vmem:[#allocation2 + $0x3d8] sm:$0xff]
    %v1077 = vld [vmem:[#allocation2 + $0x3e0] sm:$0xff]
    %v1078 = vld [vmem:[#allocation2 + $0x3e8] sm:$0xff]
    %v1079 = vld [vmem:[#allocation2 + $0x3f0] sm:$0xff]
    %v1080 = vld [vmem:[#allocation2 + $0x3f8] sm:$0xff]
    %v1081 = vld [vmem:[#allocation2 + $0x400] sm:$0xff]
    %v1082 = vld [vmem:[#allocation2 + $0x408] sm:$0xff]
    %v1083 = vld [vmem:[#allocation2 + $0x410] sm:$0xff]
    %v1084 = vld [vmem:[#allocation2 + $0x418] sm:$0xff]
    %v1085 = vld [vmem:[#allocation2 + $0x420] sm:$0xff]
    %v1086 = vld [vmem:[#allocation2 + $0x428] sm:$0xff]
    %v1087 = vld [vmem:[#allocation2 + $0x430] sm:$0xff]
    %v1088 = vld [vmem:[#allocation2 + $0x438] sm:$0xff]
    %v1089 = vld [vmem:[#allocation2 + $0x440] sm:$0xff]
    %v1090 = vld [vmem:[#allocation2 + $0x448] sm:$0xff]
    %v1091 = vld [vmem:[#allocation2 + $0x450] sm:$0xff]
    %v1092 = vld [vmem:[#allocation2 + $0x458] sm:$0xff]
    %v1093 = vld [vmem:[#allocation2 + $0x460] sm:$0xff]
    %v1094 = vld [vmem:[#allocation2 + $0x468] sm:$0xff]
    %v1095 = vld [vmem:[#allocation2 + $0x470] sm:$0xff]
    %v1096 = vld [vmem:[#allocation2 + $0x478] sm:$0xff]
    %v1098 = vsel %vm597, %v1005, 0
    %v1101 = vsel %vm597, %v1011, 0
    %v1104 = vsel %vm597, %v1017, 0
    %v1107 = vsel %vm597, %v1023, 0
    %v1110 = vsel %vm597, %v1029, 0
    %v1113 = vsel %vm597, %v1035, 0
    %v1116 = vsel %vm597, %v1041, 0
    %v1119 = vsel %vm597, %v1047, 0
    %1121 = vmatprep.subr.mxu0 %v1050
    %1122 = vmatpush1.msra.mxu0 %v1049
    %1123 = vmatprep.subr.mxu0 %v1052
    %1124 = vmatpush1.msra.mxu0 %v1051
    %1125 = vmatprep.subr.mxu0 %v1054
    %1126 = vmatpush1.msra.mxu0 %v1053
    %1127 = vmatprep.subr.mxu0 %v1056
    %1128 = vmatpush1.msra.mxu0 %v1055
    %1129 = vmatprep.subr.mxu0 %v1058
    %1130 = vmatpush1.msra.mxu0 %v1057
    %1131 = vmatprep.subr.mxu0 %v1060
    %1132 = vmatpush1.msra.mxu0 %v1059
    %1133 = vmatprep.subr.mxu0 %v1062
    %1134 = vmatpush1.msra.mxu0 %v1061
    %1135 = vmatprep.subr.mxu0 %v1064
    %1136 = vmatpush1.msra.mxu0 %v1063
    %1137 = vmatprep.subr.mxu0 %v1066
    %1138 = vmatpush1.msra.mxu0 %v1065
    %1139 = vmatprep.subr.mxu0 %v1068
    %1140 = vmatpush1.msra.mxu0 %v1067
    %1141 = vmatprep.subr.mxu0 %v1070
    %1142 = vmatpush1.msra.mxu0 %v1069
    %1143 = vmatprep.subr.mxu0 %v1072
    %1144 = vmatpush1.msra.mxu0 %v1071
    %1145 = vmatprep.subr.mxu0 %v1074
    %1146 = vmatpush1.msra.mxu0 %v1073
    %1147 = vmatprep.subr.mxu0 %v1076
    %1148 = vmatpush1.msra.mxu0 %v1075
    %1149 = vmatprep.subr.mxu0 %v1078
    %1150 = vmatpush1.msra.mxu0 %v1077
    %1151 = vmatprep.subr.mxu0 %v1080
    %1152 = vmatpush1.msra.mxu0 %v1079
    %1153 = vmatprep.subr.mxu0 %v1082
    %1154 = vmatpush1.msra.mxu0 %v1081
    %1155 = vmatprep.subr.mxu0 %v1084
    %1156 = vmatpush1.msra.mxu0 %v1083
    %1157 = vmatprep.subr.mxu0 %v1086
    %1158 = vmatpush1.msra.mxu0 %v1085
    %1159 = vmatprep.subr.mxu0 %v1088
    %1160 = vmatpush1.msra.mxu0 %v1087
    %1161 = vmatprep.subr.mxu0 %v1090
    %1162 = vmatpush1.msra.mxu0 %v1089
    %1163 = vmatprep.subr.mxu0 %v1092
    %1164 = vmatpush1.msra.mxu0 %v1091
    %1165 = vmatprep.subr.mxu0 %v1094
    %1166 = vmatpush1.msra.mxu0 %v1093
    %1167 = vmatprep.subr.mxu0 %v1096
    %1168 = vmatpush1.msra.mxu0 %v1095
    %1169 = vmatprep.subr.mxu0 0.0
    %1170 = vmatpush1.msra.mxu0 0.0
    %1171 = vmatprep.subr.mxu0 0.0
    %1172 = vmatpush1.msra.mxu0 0.0
    %1173 = vmatprep.subr.mxu0 0.0
    %1174 = vmatpush1.msra.mxu0 0.0
    %1175 = vmatprep.subr.mxu0 0.0
    %1176 = vmatpush1.msra.mxu0 0.0
    %1177 = vmatprep.subr.mxu0 0.0
    %1178 = vmatpush1.msra.mxu0 0.0
    %1179 = vmatprep.subr.mxu0 0.0
    %1180 = vmatpush1.msra.mxu0 0.0
    %1181 = vmatprep.subr.mxu0 0.0
    %1182 = vmatpush1.msra.mxu0 0.0
    %1183 = vmatprep.subr.mxu0 0.0
    %1184 = vmatpush1.msra.mxu0 0.0
    %1185 = vmatprep.mubr.f32.mxu0 %v1098
    %1186 = vmatmul.mubr.f32.gmra.mrb[0].mxu0 %v1003
    %v1187 = vpop.f32.mrb[0].mxu0
    %v1188 = vadd.f32 0.0, %v1187
    %v1189 = vpop.f32.mrb[0].mxu0
    %v1190 = vadd.f32 0.0, %v1189
    %1191 = vmatprep.mubr.f32.mxu0 %v1101
    %1192 = vmatmul.mubr.f32.gmra.mrb[0].mxu0 %v1009
    %v1193 = vpop.f32.mrb[0].mxu0
    %v1194 = vadd.f32 0.0, %v1193
    %v1195 = vpop.f32.mrb[0].mxu0
    %v1196 = vadd.f32 0.0, %v1195
    %1197 = vmatprep.mubr.f32.mxu0 %v1104
    %1198 = vmatmul.mubr.f32.gmra.mrb[0].mxu0 %v1015
    %v1199 = vpop.f32.mrb[0].mxu0
    %v1200 = vadd.f32 0.0, %v1199
    %v1201 = vpop.f32.mrb[0].mxu0
    %v1202 = vadd.f32 0.0, %v1201
    %1203 = vmatprep.mubr.f32.mxu0 %v1107
    %1204 = vmatmul.mubr.f32.gmra.mrb[0].mxu0 %v1021
    %v1205 = vpop.f32.mrb[0].mxu0
    %v1206 = vadd.f32 0.0, %v1205
    %v1207 = vpop.f32.mrb[0].mxu0
    %v1208 = vadd.f32 0.0, %v1207
    %1209 = vmatprep.mubr.f32.mxu0 %v1110
    %1210 = vmatmul.mubr.f32.gmra.mrb[0].mxu0 %v1027
    %v1211 = vpop.f32.mrb[0].mxu0
    %v1212 = vadd.f32 0.0, %v1211
    %v1213 = vpop.f32.mrb[0].mxu0
    %v1214 = vadd.f32 0.0, %v1213
    %1215 = vmatprep.mubr.f32.mxu0 %v1113
    %1216 = vmatmul.mubr.f32.gmra.mrb[0].mxu0 %v1033
    %v1217 = vpop.f32.mrb[0].mxu0
    %v1218 = vadd.f32 0.0, %v1217
    %v1219 = vpop.f32.mrb[0].mxu0
    %v1220 = vadd.f32 0.0, %v1219
    %1221 = vmatprep.mubr.f32.mxu0 %v1116
    %1222 = vmatmul.mubr.f32.gmra.mrb[0].mxu0 %v1039
    %v1223 = vpop.f32.mrb[0].mxu0
    %v1224 = vadd.f32 0.0, %v1223
    %v1225 = vpop.f32.mrb[0].mxu0
    %v1226 = vadd.f32 0.0, %v1225
    %1227 = vmatprep.mubr.f32.mxu0 %v1119
    %1228 = vmatmul.mubr.f32.gmra.mrb[0].mxu0 %v1045
    %v1229 = vpop.f32.mrb[0].mxu0
    %v1230 = vadd.f32 0.0, %v1229
    %v1231 = vpop.f32.mrb[0].mxu0
    %v1232 = vadd.f32 0.0, %v1231
    %1233 = vdwg.mxu0
    %v1234 = vadd.f32 %v826, %v1188
    %v1235 = vadd.f32 %v828, %v1190
    %v1236 = vadd.f32 %v832, %v1194
    %v1237 = vadd.f32 %v834, %v1196
    %v1238 = vadd.f32 %v838, %v1200
    %v1239 = vadd.f32 %v840, %v1202
    %v1240 = vadd.f32 %v844, %v1206
    %v1241 = vadd.f32 %v846, %v1208
    %v1242 = vadd.f32 %v850, %v1212
    %v1243 = vadd.f32 %v852, %v1214
    %v1244 = vadd.f32 %v856, %v1218
    %v1245 = vadd.f32 %v858, %v1220
    %v1246 = vadd.f32 %v862, %v1224
    %v1247 = vadd.f32 %v864, %v1226
    %v1248 = vadd.f32 %v868, %v1230
    %v1249 = vadd.f32 %v870, %v1232
    %v1250 = vadd.s32 %v139, 2
    %v1251 = vadd.s32 %v140, 2
    %v1252 = vadd.s32 %v141, 2
    %v1253 = vadd.s32 %v142, 2
    %v1254 = vadd.s32 %v143, 2
    %v1255 = vadd.s32 %v144, 2
    %v1256 = vadd.s32 %v145, 2
    %v1257 = vadd.s32 %v146, 2
    %v1258 = vadd.s32 %v155, %v1250
    %v1259 = vadd.s32 %v156, %v1251
    %v1260 = vadd.s32 %v157, %v1252
    %v1261 = vadd.s32 %v158, %v1253
    %v1262 = vadd.s32 %v159, %v1254
    %v1263 = vadd.s32 %v160, %v1255
    %v1264 = vadd.s32 %v161, %v1256
    %v1265 = vadd.s32 %v162, %v1257
    %vm1266 = vcmp.eq.s32.totalorder %v122, %v1258
    %vm1267 = vcmp.eq.s32.totalorder %v122, %v1259
    %vm1268 = vcmp.eq.s32.totalorder %v122, %v1260
    %vm1269 = vcmp.eq.s32.totalorder %v122, %v1261
    %vm1270 = vcmp.eq.s32.totalorder %v122, %v1262
    %vm1271 = vcmp.eq.s32.totalorder %v122, %v1263
    %vm1272 = vcmp.eq.s32.totalorder %v122, %v1264
    %vm1273 = vcmp.eq.s32.totalorder %v122, %v1265
    %vm1274 = vcmp.ge.s32.totalorder %v1250, 0
    %vm1275 = vcmp.ge.s32.totalorder %v1251, 0
    %vm1276 = vcmp.ge.s32.totalorder %v1252, 0
    %vm1277 = vcmp.ge.s32.totalorder %v1253, 0
    %vm1278 = vcmp.ge.s32.totalorder %v1254, 0
    %vm1279 = vcmp.ge.s32.totalorder %v1255, 0
    %vm1280 = vcmp.ge.s32.totalorder %v1256, 0
    %vm1281 = vcmp.ge.s32.totalorder %v1257, 0
    %vm1282 = vmand %vm1266, %vm1274
    %vm1283 = vmand %vm1267, %vm1275
    %vm1284 = vmand %vm1268, %vm1276
    %vm1285 = vmand %vm1269, %vm1277
    %vm1286 = vmand %vm1270, %vm1278
    %vm1287 = vmand %vm1271, %vm1279
    %vm1288 = vmand %vm1272, %vm1280
    %vm1289 = vmand %vm1273, %vm1281
    %vm1290 = vcmp.lt.s32.totalorder %v1250, 64
    %vm1291 = vcmp.lt.s32.totalorder %v1251, 64
    %vm1292 = vcmp.lt.s32.totalorder %v1252, 64
    %vm1293 = vcmp.lt.s32.totalorder %v1253, 64
    %vm1294 = vcmp.lt.s32.totalorder %v1254, 64
    %vm1295 = vcmp.lt.s32.totalorder %v1255, 64
    %vm1296 = vcmp.lt.s32.totalorder %v1256, 64
    %vm1297 = vcmp.lt.s32.totalorder %v1257, 64
    %vm1298 = vmand %vm1282, %vm1290
    %vm1299 = vmand %vm1283, %vm1291
    %vm1300 = vmand %vm1284, %vm1292
    %vm1301 = vmand %vm1285, %vm1293
    %vm1302 = vmand %vm1286, %vm1294
    %vm1303 = vmand %vm1287, %vm1295
    %vm1304 = vmand %vm1288, %vm1296
    %vm1305 = vmand %vm1289, %vm1297
    %v1306 = vsel %vm1298, 1.0, 0.0
    %v1307 = vsel %vm1299, 1.0, 0.0
    %v1308 = vsel %vm1300, 1.0, 0.0
    %v1309 = vsel %vm1301, 1.0, 0.0
    %v1310 = vsel %vm1302, 1.0, 0.0
    %v1311 = vsel %vm1303, 1.0, 0.0
    %v1312 = vsel %vm1304, 1.0, 0.0
    %v1313 = vsel %vm1305, 1.0, 0.0
    %1314 = vmatprep.subr.mxu0 %v81
    %1315 = vmatpush1.msra.mxu0 %v80
    %1316 = vmatprep.subr.mxu0 %v83
    %1317 = vmatpush1.msra.mxu0 %v82
    %1318 = vmatprep.subr.mxu0 %v85
    %1319 = vmatpush1.msra.mxu0 %v84
    %1320 = vmatprep.subr.mxu0 %v87
    %1321 = vmatpush1.msra.mxu0 %v86
    %1322 = vmatprep.subr.mxu0 %v89
    %1323 = vmatpush1.msra.mxu0 %v88
    %1324 = vmatprep.subr.mxu0 %v91
    %1325 = vmatpush1.msra.mxu0 %v90
    %1326 = vmatprep.subr.mxu0 %v93
    %1327 = vmatpush1.msra.mxu0 %v92
    %1328 = vmatprep.subr.mxu0 %v95
    %1329 = vmatpush1.msra.mxu0 %v94
    %1330 = vmatprep.subr.mxu0 %v97
    %1331 = vmatpush1.msra.mxu0 %v96
    %1332 = vmatprep.subr.mxu0 %v99
    %1333 = vmatpush1.msra.mxu0 %v98
    %1334 = vmatprep.subr.mxu0 %v101
    %1335 = vmatpush1.msra.mxu0 %v100
    %1336 = vmatprep.subr.mxu0 %v103
    %1337 = vmatpush1.msra.mxu0 %v102
    %1338 = vmatprep.subr.mxu0 %v105
    %1339 = vmatpush1.msra.mxu0 %v104
    %1340 = vmatprep.subr.mxu0 %v107
    %1341 = vmatpush1.msra.mxu0 %v106
    %1342 = vmatprep.subr.mxu0 %v109
    %1343 = vmatpush1.msra.mxu0 %v108
    %1344 = vmatprep.subr.mxu0 %v111
    %1345 = vmatpush1.msra.mxu0 %v110
    %1346 = vmatprep.subr.mxu0 0.0
    %1347 = vmatpush1.msra.mxu0 0.0
    %1348 = vmatprep.subr.mxu0 0.0
    %1349 = vmatpush1.msra.mxu0 0.0
    %1350 = vmatprep.subr.mxu0 0.0
    %1351 = vmatpush1.msra.mxu0 0.0
    %1352 = vmatprep.subr.mxu0 0.0
    %1353 = vmatpush1.msra.mxu0 0.0
    %1354 = vmatprep.subr.mxu0 0.0
    %1355 = vmatpush1.msra.mxu0 0.0
    %1356 = vmatprep.subr.mxu0 0.0
    %1357 = vmatpush1.msra.mxu0 0.0
    %1358 = vmatprep.subr.mxu0 0.0
    %1359 = vmatpush1.msra.mxu0 0.0
    %1360 = vmatprep.subr.mxu0 0.0
    %1361 = vmatpush1.msra.mxu0 0.0
    %1362 = vmatprep.subr.mxu0 0.0
    %1363 = vmatpush1.msra.mxu0 0.0
    %1364 = vmatprep.subr.mxu0 0.0
    %1365 = vmatpush1.msra.mxu0 0.0
    %1366 = vmatprep.subr.mxu0 0.0
    %1367 = vmatpush1.msra.mxu0 0.0
    %1368 = vmatprep.subr.mxu0 0.0
    %1369 = vmatpush1.msra.mxu0 0.0
    %1370 = vmatprep.subr.mxu0 0.0
    %1371 = vmatpush1.msra.mxu0 0.0
    %1372 = vmatprep.subr.mxu0 0.0
    %1373 = vmatpush1.msra.mxu0 0.0
    %1374 = vmatprep.subr.mxu0 0.0
    %1375 = vmatpush1.msra.mxu0 0.0
    %1376 = vmatprep.subr.mxu0 0.0
    %1377 = vmatpush1.msra.mxu0 0.0
    %1378 = vmatprep.mubr.f32.mxu0 0.0
    %1379 = vmatmul.mubr.f32.gmra.mrb[0].mxu0 %v1306
    %v1380 = vpop.f32.mrb[0].mxu0
    %v1381 = vadd.f32 0.0, %v1380
    %v1382 = vpop.f32.mrb[0].mxu0
    %v1383 = vadd.f32 0.0, %v1382
    %1384 = vmatprep.mubr.f32.mxu0 0.0
    %1385 = vmatmul.mubr.f32.gmra.mrb[0].mxu0 %v1307
    %v1386 = vpop.f32.mrb[0].mxu0
    %v1387 = vadd.f32 0.0, %v1386
    %v1388 = vpop.f32.mrb[0].mxu0
    %v1389 = vadd.f32 0.0, %v1388
    %1390 = vmatprep.mubr.f32.mxu0 0.0
    %1391 = vmatmul.mubr.f32.gmra.mrb[0].mxu0 %v1308
    %v1392 = vpop.f32.mrb[0].mxu0
    %v1393 = vadd.f32 0.0, %v1392
    %v1394 = vpop.f32.mrb[0].mxu0
    %v1395 = vadd.f32 0.0, %v1394
    %1396 = vmatprep.mubr.f32.mxu0 0.0
    %1397 = vmatmul.mubr.f32.gmra.mrb[0].mxu0 %v1309
    %v1398 = vpop.f32.mrb[0].mxu0
    %v1399 = vadd.f32 0.0, %v1398
    %v1400 = vpop.f32.mrb[0].mxu0
    %v1401 = vadd.f32 0.0, %v1400
    %1402 = vmatprep.mubr.f32.mxu0 0.0
    %1403 = vmatmul.mubr.f32.gmra.mrb[0].mxu0 %v1310
    %v1404 = vpop.f32.mrb[0].mxu0
    %v1405 = vadd.f32 0.0, %v1404
    %v1406 = vpop.f32.mrb[0].mxu0
    %v1407 = vadd.f32 0.0, %v1406
    %1408 = vmatprep.mubr.f32.mxu0 0.0
    %1409 = vmatmul.mubr.f32.gmra.mrb[0].mxu0 %v1311
    %v1410 = vpop.f32.mrb[0].mxu0
    %v1411 = vadd.f32 0.0, %v1410
    %v1412 = vpop.f32.mrb[0].mxu0
    %v1413 = vadd.f32 0.0, %v1412
    %1414 = vmatprep.mubr.f32.mxu0 0.0
    %1415 = vmatmul.mubr.f32.gmra.mrb[0].mxu0 %v1312
    %v1416 = vpop.f32.mrb[0].mxu0
    %v1417 = vadd.f32 0.0, %v1416
    %v1418 = vpop.f32.mrb[0].mxu0
    %v1419 = vadd.f32 0.0, %v1418
    %1420 = vmatprep.mubr.f32.mxu0 0.0
    %1421 = vmatmul.mubr.f32.gmra.mrb[0].mxu0 %v1313
    %v1422 = vpop.f32.mrb[0].mxu0
    %v1423 = vadd.f32 0.0, %v1422
    %v1424 = vpop.f32.mrb[0].mxu0
    %v1425 = vadd.f32 0.0, %v1424
    %1426 = vdwg.mxu0
    %v1427 = vld [vmem:[#allocation2 + $0x480] sm:$0xff]
    %v1428 = vld [vmem:[#allocation2 + $0x488] sm:$0xff]
    %v1429 = vld [vmem:[#allocation2 + $0x490] sm:$0xff]
    %v1430 = vld [vmem:[#allocation2 + $0x498] sm:$0xff]
    %v1431 = vld [vmem:[#allocation2 + $0x4a0] sm:$0xff]
    %v1432 = vld [vmem:[#allocation2 + $0x4a8] sm:$0xff]
    %v1433 = vld [vmem:[#allocation2 + $0x4b0] sm:$0xff]
    %v1434 = vld [vmem:[#allocation2 + $0x4b8] sm:$0xff]
    %v1435 = vld [vmem:[#allocation2 + $0x4c0] sm:$0xff]
    %v1436 = vld [vmem:[#allocation2 + $0x4c8] sm:$0xff]
    %v1437 = vld [vmem:[#allocation2 + $0x4d0] sm:$0xff]
    %v1438 = vld [vmem:[#allocation2 + $0x4d8] sm:$0xff]
    %v1439 = vld [vmem:[#allocation2 + $0x4e0] sm:$0xff]
    %v1440 = vld [vmem:[#allocation2 + $0x4e8] sm:$0xff]
    %v1441 = vld [vmem:[#allocation2 + $0x4f0] sm:$0xff]
    %v1442 = vld [vmem:[#allocation2 + $0x4f8] sm:$0xff]
    %v1443 = vld [vmem:[#allocation2 + $0x500] sm:$0xff]
    %v1444 = vld [vmem:[#allocation2 + $0x508] sm:$0xff]
    %v1445 = vld [vmem:[#allocation2 + $0x510] sm:$0xff]
    %v1446 = vld [vmem:[#allocation2 + $0x518] sm:$0xff]
    %v1447 = vld [vmem:[#allocation2 + $0x520] sm:$0xff]
    %v1448 = vld [vmem:[#allocation2 + $0x528] sm:$0xff]
    %v1449 = vld [vmem:[#allocation2 + $0x530] sm:$0xff]
    %v1450 = vld [vmem:[#allocation2 + $0x538] sm:$0xff]
    %v1451 = vld [vmem:[#allocation2 + $0x540] sm:$0xff]
    %v1452 = vld [vmem:[#allocation2 + $0x548] sm:$0xff]
    %v1453 = vld [vmem:[#allocation2 + $0x550] sm:$0xff]
    %v1454 = vld [vmem:[#allocation2 + $0x558] sm:$0xff]
    %v1455 = vld [vmem:[#allocation2 + $0x560] sm:$0xff]
    %v1456 = vld [vmem:[#allocation2 + $0x568] sm:$0xff]
    %v1457 = vld [vmem:[#allocation2 + $0x570] sm:$0xff]
    %v1458 = vld [vmem:[#allocation2 + $0x578] sm:$0xff]
    %v1459 = vld [vmem:[#allocation2 + $0x580] sm:$0xff]
    %v1460 = vld [vmem:[#allocation2 + $0x588] sm:$0xff]
    %v1461 = vld [vmem:[#allocation2 + $0x590] sm:$0xff]
    %v1462 = vld [vmem:[#allocation2 + $0x598] sm:$0xff]
    %v1463 = vld [vmem:[#allocation2 + $0x5a0] sm:$0xff]
    %v1464 = vld [vmem:[#allocation2 + $0x5a8] sm:$0xff]
    %v1465 = vld [vmem:[#allocation2 + $0x5b0] sm:$0xff]
    %v1466 = vld [vmem:[#allocation2 + $0x5b8] sm:$0xff]
    %v1467 = vld [vmem:[#allocation2 + $0x5c0] sm:$0xff]
    %v1468 = vld [vmem:[#allocation2 + $0x5c8] sm:$0xff]
    %v1469 = vld [vmem:[#allocation2 + $0x5d0] sm:$0xff]
    %v1470 = vld [vmem:[#allocation2 + $0x5d8] sm:$0xff]
    %v1471 = vld [vmem:[#allocation2 + $0x5e0] sm:$0xff]
    %v1472 = vld [vmem:[#allocation2 + $0x5e8] sm:$0xff]
    %v1473 = vld [vmem:[#allocation2 + $0x5f0] sm:$0xff]
    %v1474 = vld [vmem:[#allocation2 + $0x5f8] sm:$0xff]
    %v1476 = vsel %vm597, %v1383, 0
    %v1479 = vsel %vm597, %v1389, 0
    %v1482 = vsel %vm597, %v1395, 0
    %v1485 = vsel %vm597, %v1401, 0
    %v1488 = vsel %vm597, %v1407, 0
    %v1491 = vsel %vm597, %v1413, 0
    %v1494 = vsel %vm597, %v1419, 0
    %v1497 = vsel %vm597, %v1425, 0
    %1499 = vmatprep.subr.mxu0 %v1428
    %1500 = vmatpush1.msra.mxu0 %v1427
    %1501 = vmatprep.subr.mxu0 %v1430
    %1502 = vmatpush1.msra.mxu0 %v1429
    %1503 = vmatprep.subr.mxu0 %v1432
    %1504 = vmatpush1.msra.mxu0 %v1431
    %1505 = vmatprep.subr.mxu0 %v1434
    %1506 = vmatpush1.msra.mxu0 %v1433
    %1507 = vmatprep.subr.mxu0 %v1436
    %1508 = vmatpush1.msra.mxu0 %v1435
    %1509 = vmatprep.subr.mxu0 %v1438
    %1510 = vmatpush1.msra.mxu0 %v1437
    %1511 = vmatprep.subr.mxu0 %v1440
    %1512 = vmatpush1.msra.mxu0 %v1439
    %1513 = vmatprep.subr.mxu0 %v1442
    %1514 = vmatpush1.msra.mxu0 %v1441
    %1515 = vmatprep.subr.mxu0 %v1444
    %1516 = vmatpush1.msra.mxu0 %v1443
    %1517 = vmatprep.subr.mxu0 %v1446
    %1518 = vmatpush1.msra.mxu0 %v1445
    %1519 = vmatprep.subr.mxu0 %v1448
    %1520 = vmatpush1.msra.mxu0 %v1447
    %1521 = vmatprep.subr.mxu0 %v1450
    %1522 = vmatpush1.msra.mxu0 %v1449
    %1523 = vmatprep.subr.mxu0 %v1452
    %1524 = vmatpush1.msra.mxu0 %v1451
    %1525 = vmatprep.subr.mxu0 %v1454
    %1526 = vmatpush1.msra.mxu0 %v1453
    %1527 = vmatprep.subr.mxu0 %v1456
    %1528 = vmatpush1.msra.mxu0 %v1455
    %1529 = vmatprep.subr.mxu0 %v1458
    %1530 = vmatpush1.msra.mxu0 %v1457
    %1531 = vmatprep.subr.mxu0 %v1460
    %1532 = vmatpush1.msra.mxu0 %v1459
    %1533 = vmatprep.subr.mxu0 %v1462
    %1534 = vmatpush1.msra.mxu0 %v1461
    %1535 = vmatprep.subr.mxu0 %v1464
    %1536 = vmatpush1.msra.mxu0 %v1463
    %1537 = vmatprep.subr.mxu0 %v1466
    %1538 = vmatpush1.msra.mxu0 %v1465
    %1539 = vmatprep.subr.mxu0 %v1468
    %1540 = vmatpush1.msra.mxu0 %v1467
    %1541 = vmatprep.subr.mxu0 %v1470
    %1542 = vmatpush1.msra.mxu0 %v1469
    %1543 = vmatprep.subr.mxu0 %v1472
    %1544 = vmatpush1.msra.mxu0 %v1471
    %1545 = vmatprep.subr.mxu0 %v1474
    %1546 = vmatpush1.msra.mxu0 %v1473
    %1547 = vmatprep.subr.mxu0 0.0
    %1548 = vmatpush1.msra.mxu0 0.0
    %1549 = vmatprep.subr.mxu0 0.0
    %1550 = vmatpush1.msra.mxu0 0.0
    %1551 = vmatprep.subr.mxu0 0.0
    %1552 = vmatpush1.msra.mxu0 0.0
    %1553 = vmatprep.subr.mxu0 0.0
    %1554 = vmatpush1.msra.mxu0 0.0
    %1555 = vmatprep.subr.mxu0 0.0
    %1556 = vmatpush1.msra.mxu0 0.0
    %1557 = vmatprep.subr.mxu0 0.0
    %1558 = vmatpush1.msra.mxu0 0.0
    %1559 = vmatprep.subr.mxu0 0.0
    %1560 = vmatpush1.msra.mxu0 0.0
    %1561 = vmatprep.subr.mxu0 0.0
    %1562 = vmatpush1.msra.mxu0 0.0
    %1563 = vmatprep.mubr.f32.mxu0 %v1476
    %1564 = vmatmul.mubr.f32.gmra.mrb[0].mxu0 %v1381
    %v1565 = vpop.f32.mrb[0].mxu0
    %v1566 = vadd.f32 0.0, %v1565
    %v1567 = vpop.f32.mrb[0].mxu0
    %v1568 = vadd.f32 0.0, %v1567
    %1569 = vmatprep.mubr.f32.mxu0 %v1479
    %1570 = vmatmul.mubr.f32.gmra.mrb[0].mxu0 %v1387
    %v1571 = vpop.f32.mrb[0].mxu0
    %v1572 = vadd.f32 0.0, %v1571
    %v1573 = vpop.f32.mrb[0].mxu0
    %v1574 = vadd.f32 0.0, %v1573
    %1575 = vmatprep.mubr.f32.mxu0 %v1482
    %1576 = vmatmul.mubr.f32.gmra.mrb[0].mxu0 %v1393
    %v1577 = vpop.f32.mrb[0].mxu0
    %v1578 = vadd.f32 0.0, %v1577
    %v1579 = vpop.f32.mrb[0].mxu0
    %v1580 = vadd.f32 0.0, %v1579
    %1581 = vmatprep.mubr.f32.mxu0 %v1485
    %1582 = vmatmul.mubr.f32.gmra.mrb[0].mxu0 %v1399
    %v1583 = vpop.f32.mrb[0].mxu0
    %v1584 = vadd.f32 0.0, %v1583
    %v1585 = vpop.f32.mrb[0].mxu0
    %v1586 = vadd.f32 0.0, %v1585
    %1587 = vmatprep.mubr.f32.mxu0 %v1488
    %1588 = vmatmul.mubr.f32.gmra.mrb[0].mxu0 %v1405
    %v1589 = vpop.f32.mrb[0].mxu0
    %v1590 = vadd.f32 0.0, %v1589
    %v1591 = vpop.f32.mrb[0].mxu0
    %v1592 = vadd.f32 0.0, %v1591
    %1593 = vmatprep.mubr.f32.mxu0 %v1491
    %1594 = vmatmul.mubr.f32.gmra.mrb[0].mxu0 %v1411
    %v1595 = vpop.f32.mrb[0].mxu0
    %v1596 = vadd.f32 0.0, %v1595
    %v1597 = vpop.f32.mrb[0].mxu0
    %v1598 = vadd.f32 0.0, %v1597
    %1599 = vmatprep.mubr.f32.mxu0 %v1494
    %1600 = vmatmul.mubr.f32.gmra.mrb[0].mxu0 %v1417
    %v1601 = vpop.f32.mrb[0].mxu0
    %v1602 = vadd.f32 0.0, %v1601
    %v1603 = vpop.f32.mrb[0].mxu0
    %v1604 = vadd.f32 0.0, %v1603
    %1605 = vmatprep.mubr.f32.mxu0 %v1497
    %1606 = vmatmul.mubr.f32.gmra.mrb[0].mxu0 %v1423
    %v1607 = vpop.f32.mrb[0].mxu0
    %v1608 = vadd.f32 0.0, %v1607
    %v1609 = vpop.f32.mrb[0].mxu0
    %v1610 = vadd.f32 0.0, %v1609
    %1611 = vdwg.mxu0
    %v1612 = vadd.f32 %v1234, %v1566
    %v1613 = vadd.f32 %v1235, %v1568
    %v1614 = vadd.f32 %v1236, %v1572
    %v1615 = vadd.f32 %v1237, %v1574
    %v1616 = vadd.f32 %v1238, %v1578
    %v1617 = vadd.f32 %v1239, %v1580
    %v1618 = vadd.f32 %v1240, %v1584
    %v1619 = vadd.f32 %v1241, %v1586
    %v1620 = vadd.f32 %v1242, %v1590
    %v1621 = vadd.f32 %v1243, %v1592
    %v1622 = vadd.f32 %v1244, %v1596
    %v1623 = vadd.f32 %v1245, %v1598
    %v1624 = vadd.f32 %v1246, %v1602
    %v1625 = vadd.f32 %v1247, %v1604
    %v1626 = vadd.f32 %v1248, %v1608
    %v1627 = vadd.f32 %v1249, %v1610
    %v1628 = vld [vmem:[%s2] sm:$0x3]
    %v1630 = vlaneseq
    %v1631 = vshrl.u32 %v1630, 7
    %v1632 = vsub.s32 0, %v1631
    %v1633 = vrot.slane %v1628, %v1632
    %v1634 = vlaneseq
    %v1635 = vshrl.u32 %v1634, 7
    %v1636 = vsub.s32 1, %v1635
    %v1637 = vrot.slane %v1628, %v1636
    %v1640 = vadd.f32 %v1612, %v1633
    %v1641 = vadd.f32 %v1613, %v1637
    %v1642 = vadd.f32 %v1614, %v1633
    %v1643 = vadd.f32 %v1615, %v1637
    %v1644 = vadd.f32 %v1616, %v1633
    %v1645 = vadd.f32 %v1617, %v1637
    %v1646 = vadd.f32 %v1618, %v1633
    %v1647 = vadd.f32 %v1619, %v1637
    %v1648 = vadd.f32 %v1620, %v1633
    %v1649 = vadd.f32 %v1621, %v1637
    %v1650 = vadd.f32 %v1622, %v1633
    %v1651 = vadd.f32 %v1623, %v1637
    %v1652 = vadd.f32 %v1624, %v1633
    %v1653 = vadd.f32 %v1625, %v1637
    %v1654 = vadd.f32 %v1626, %v1633
    %v1655 = vadd.f32 %v1627, %v1637
    %vm1656 = vcmp.gt.f32.partialorder %v1640, 0.0
    %vm1657 = vcmp.gt.f32.partialorder %v1641, 0.0
    %vm1658 = vcmp.gt.f32.partialorder %v1642, 0.0
    %vm1659 = vcmp.gt.f32.partialorder %v1643, 0.0
    %vm1660 = vcmp.gt.f32.partialorder %v1644, 0.0
    %vm1661 = vcmp.gt.f32.partialorder %v1645, 0.0
    %vm1662 = vcmp.gt.f32.partialorder %v1646, 0.0
    %vm1663 = vcmp.gt.f32.partialorder %v1647, 0.0
    %vm1664 = vcmp.gt.f32.partialorder %v1648, 0.0
    %vm1665 = vcmp.gt.f32.partialorder %v1649, 0.0
    %vm1666 = vcmp.gt.f32.partialorder %v1650, 0.0
    %vm1667 = vcmp.gt.f32.partialorder %v1651, 0.0
    %vm1668 = vcmp.gt.f32.partialorder %v1652, 0.0
    %vm1669 = vcmp.gt.f32.partialorder %v1653, 0.0
    %vm1670 = vcmp.gt.f32.partialorder %v1654, 0.0
    %vm1671 = vcmp.gt.f32.partialorder %v1655, 0.0
    %v1672 = vmul.f32 %v1640, 0.2
    %v1673 = vmul.f32 %v1641, 0.2
    %v1674 = vmul.f32 %v1642, 0.2
    %v1675 = vmul.f32 %v1643, 0.2
    %v1676 = vmul.f32 %v1644, 0.2
    %v1677 = vmul.f32 %v1645, 0.2
    %v1678 = vmul.f32 %v1646, 0.2
    %v1679 = vmul.f32 %v1647, 0.2
    %v1680 = vmul.f32 %v1648, 0.2
    %v1681 = vmul.f32 %v1649, 0.2
    %v1682 = vmul.f32 %v1650, 0.2
    %v1683 = vmul.f32 %v1651, 0.2
    %v1684 = vmul.f32 %v1652, 0.2
    %v1685 = vmul.f32 %v1653, 0.2
    %v1686 = vmul.f32 %v1654, 0.2
    %v1687 = vmul.f32 %v1655, 0.2
    %v1688 = vsel %vm1656, %v1640, %v1672
    %v1689 = vsel %vm1657, %v1641, %v1673
    %v1690 = vsel %vm1658, %v1642, %v1674
    %v1691 = vsel %vm1659, %v1643, %v1675
    %v1692 = vsel %vm1660, %v1644, %v1676
    %v1693 = vsel %vm1661, %v1645, %v1677
    %v1694 = vsel %vm1662, %v1646, %v1678
    %v1695 = vsel %vm1663, %v1647, %v1679
    %v1696 = vsel %vm1664, %v1648, %v1680
    %v1697 = vsel %vm1665, %v1649, %v1681
    %v1698 = vsel %vm1666, %v1650, %v1682
    %v1699 = vsel %vm1667, %v1651, %v1683
    %v1700 = vsel %vm1668, %v1652, %v1684
    %v1701 = vsel %vm1669, %v1653, %v1685
    %v1702 = vsel %vm1670, %v1654, %v1686
    %v1703 = vsel %vm1671, %v1655, %v1687
    %v1704 = vshra.s32 %v113, 4
    %v1705 = vshra.s32 %v114, 4
    %v1706 = vshra.s32 %v115, 4
    %v1707 = vshra.s32 %v116, 4
    %v1708 = vand.u32 %v113, 15
    %v1709 = vand.u32 %v114, 15
    %v1710 = vand.u32 %v115, 15
    %v1711 = vand.u32 %v116, 15
    %v1712 = vmul.u32 %v1708, 2
    %v1713 = vmul.u32 %v1709, 2
    %v1714 = vmul.u32 %v1710, 2
    %v1715 = vmul.u32 %v1711, 2
    %v1716 = vadd.s32 %v1712, 4294967295
    %v1717 = vadd.s32 %v1713, 4294967295
    %v1718 = vadd.s32 %v1714, 4294967295
    %v1719 = vadd.s32 %v1715, 4294967295
    %v1720 = vmul.u32 %v1704, 32
    %v1721 = vmul.u32 %v1705, 32
    %v1722 = vmul.u32 %v1706, 32
    %v1723 = vmul.u32 %v1707, 32
    %v1724 = vadd.s32 %v1720, %v1716
    %v1725 = vadd.s32 %v1721, %v1717
    %v1726 = vadd.s32 %v1722, %v1718
    %v1727 = vadd.s32 %v1723, %v1719
    %vm1728 = vcmp.eq.s32.totalorder %v122, %v1724
    %vm1729 = vcmp.eq.s32.totalorder %v122, %v1725
    %vm1730 = vcmp.eq.s32.totalorder %v122, %v1726
    %vm1731 = vcmp.eq.s32.totalorder %v122, %v1727
    %vm1732 = vcmp.ge.s32.totalorder %v1716, 0
    %vm1733 = vcmp.ge.s32.totalorder %v1717, 0
    %vm1734 = vcmp.ge.s32.totalorder %v1718, 0
    %vm1735 = vcmp.ge.s32.totalorder %v1719, 0
    %vm1736 = vmand %vm1728, %vm1732
    %vm1737 = vmand %vm1729, %vm1733
    %vm1738 = vmand %vm1730, %vm1734
    %vm1739 = vmand %vm1731, %vm1735
    %vm1740 = vcmp.lt.s32.totalorder %v1716, 32
    %vm1741 = vcmp.lt.s32.totalorder %v1717, 32
    %vm1742 = vcmp.lt.s32.totalorder %v1718, 32
    %vm1743 = vcmp.lt.s32.totalorder %v1719, 32
    %vm1744 = vmand %vm1736, %vm1740
    %vm1745 = vmand %vm1737, %vm1741
    %vm1746 = vmand %vm1738, %vm1742
    %vm1747 = vmand %vm1739, %vm1743
    %v1748 = vsel %vm1744, 1.0, 0.0
    %v1749 = vsel %vm1745, 1.0, 0.0
    %v1750 = vsel %vm1746, 1.0, 0.0
    %v1751 = vsel %vm1747, 1.0, 0.0
    %v1753 = vsel %vm597, %v1748, 0
    %v1756 = vsel %vm597, %v1749, 0
    %v1759 = vsel %vm597, %v1750, 0
    %v1762 = vsel %vm597, %v1751, 0
    %1764 = vmatprep.subr.mxu0 %v1689
    %1765 = vmatpush1.msra.mxu0 %v1688
    %1766 = vmatprep.subr.mxu0 %v1691
    %1767 = vmatpush1.msra.mxu0 %v1690
    %1768 = vmatprep.subr.mxu0 %v1693
    %1769 = vmatpush1.msra.mxu0 %v1692
    %1770 = vmatprep.subr.mxu0 %v1695
    %1771 = vmatpush1.msra.mxu0 %v1694
    %1772 = vmatprep.subr.mxu0 %v1697
    %1773 = vmatpush1.msra.mxu0 %v1696
    %1774 = vmatprep.subr.mxu0 %v1699
    %1775 = vmatpush1.msra.mxu0 %v1698
    %1776 = vmatprep.subr.mxu0 %v1701
    %1777 = vmatpush1.msra.mxu0 %v1700
    %1778 = vmatprep.subr.mxu0 %v1703
    %1779 = vmatpush1.msra.mxu0 %v1702
    %1780 = vmatprep.subr.mxu0 0.0
    %1781 = vmatpush1.msra.mxu0 0.0
    %1782 = vmatprep.subr.mxu0 0.0
    %1783 = vmatpush1.msra.mxu0 0.0
    %1784 = vmatprep.subr.mxu0 0.0
    %1785 = vmatpush1.msra.mxu0 0.0
    %1786 = vmatprep.subr.mxu0 0.0
    %1787 = vmatpush1.msra.mxu0 0.0
    %1788 = vmatprep.subr.mxu0 0.0
    %1789 = vmatpush1.msra.mxu0 0.0
    %1790 = vmatprep.subr.mxu0 0.0
    %1791 = vmatpush1.msra.mxu0 0.0
    %1792 = vmatprep.subr.mxu0 0.0
    %1793 = vmatpush1.msra.mxu0 0.0
    %1794 = vmatprep.subr.mxu0 0.0
    %1795 = vmatpush1.msra.mxu0 0.0
    %1796 = vmatprep.subr.mxu0 0.0
    %1797 = vmatpush1.msra.mxu0 0.0
    %1798 = vmatprep.subr.mxu0 0.0
    %1799 = vmatpush1.msra.mxu0 0.0
    %1800 = vmatprep.subr.mxu0 0.0
    %1801 = vmatpush1.msra.mxu0 0.0
    %1802 = vmatprep.subr.mxu0 0.0
    %1803 = vmatpush1.msra.mxu0 0.0
    %1804 = vmatprep.subr.mxu0 0.0
    %1805 = vmatpush1.msra.mxu0 0.0
    %1806 = vmatprep.subr.mxu0 0.0
    %1807 = vmatpush1.msra.mxu0 0.0
    %1808 = vmatprep.subr.mxu0 0.0
    %1809 = vmatpush1.msra.mxu0 0.0
    %1810 = vmatprep.subr.mxu0 0.0
    %1811 = vmatpush1.msra.mxu0 0.0
    %1812 = vmatprep.subr.mxu0 0.0
    %1813 = vmatpush1.msra.mxu0 0.0
    %1814 = vmatprep.subr.mxu0 0.0
    %1815 = vmatpush1.msra.mxu0 0.0
    %1816 = vmatprep.subr.mxu0 0.0
    %1817 = vmatpush1.msra.mxu0 0.0
    %1818 = vmatprep.subr.mxu0 0.0
    %1819 = vmatpush1.msra.mxu0 0.0
    %1820 = vmatprep.subr.mxu0 0.0
    %1821 = vmatpush1.msra.mxu0 0.0
    %1822 = vmatprep.subr.mxu0 0.0
    %1823 = vmatpush1.msra.mxu0 0.0
    %1824 = vmatprep.subr.mxu0 0.0
    %1825 = vmatpush1.msra.mxu0 0.0
    %1826 = vmatprep.subr.mxu0 0.0
    %1827 = vmatpush1.msra.mxu0 0.0
    %1828 = vmatprep.mubr.f32.mxu0 0.0
    %1829 = vmatmul.mubr.f32.gmra.mrb[0].mxu0 %v1753
    %v1830 = vpop.f32.mrb[0].mxu0
    %v1831 = vadd.f32 0.0, %v1830
    %v1832 = vpop.f32.mrb[0].mxu0
    %v1833 = vadd.f32 0.0, %v1832
    %1834 = vmatprep.mubr.f32.mxu0 0.0
    %1835 = vmatmul.mubr.f32.gmra.mrb[0].mxu0 %v1756
    %v1836 = vpop.f32.mrb[0].mxu0
    %v1837 = vadd.f32 0.0, %v1836
    %v1838 = vpop.f32.mrb[0].mxu0
    %v1839 = vadd.f32 0.0, %v1838
    %1840 = vmatprep.mubr.f32.mxu0 0.0
    %1841 = vmatmul.mubr.f32.gmra.mrb[0].mxu0 %v1759
    %v1842 = vpop.f32.mrb[0].mxu0
    %v1843 = vadd.f32 0.0, %v1842
    %v1844 = vpop.f32.mrb[0].mxu0
    %v1845 = vadd.f32 0.0, %v1844
    %1846 = vmatprep.mubr.f32.mxu0 0.0
    %1847 = vmatmul.mubr.f32.gmra.mrb[0].mxu0 %v1762
    %v1848 = vpop.f32.mrb[0].mxu0
    %v1849 = vadd.f32 0.0, %v1848
    %v1850 = vpop.f32.mrb[0].mxu0
    %v1851 = vadd.f32 0.0, %v1850
    %1852 = vdwg.mxu0
    %v1853 = vld [vmem:[%s3] sm:$0xff]
    %v1854 = vld [vmem:[%s3 + $0x8] sm:$0xff]
    %v1855 = vld [vmem:[%s3 + $0x10] sm:$0xff]
    %v1856 = vld [vmem:[%s3 + $0x18] sm:$0xff]
    %v1857 = vld [vmem:[%s3 + $0x20] sm:$0xff]
    %v1858 = vld [vmem:[%s3 + $0x28] sm:$0xff]
    %v1859 = vld [vmem:[%s3 + $0x30] sm:$0xff]
    %v1860 = vld [vmem:[%s3 + $0x38] sm:$0xff]
    %v1861 = vld [vmem:[%s3 + $0x40] sm:$0xff]
    %v1862 = vld [vmem:[%s3 + $0x48] sm:$0xff]
    %v1863 = vld [vmem:[%s3 + $0x50] sm:$0xff]
    %v1864 = vld [vmem:[%s3 + $0x58] sm:$0xff]
    %v1865 = vld [vmem:[%s3 + $0x60] sm:$0xff]
    %v1866 = vld [vmem:[%s3 + $0x68] sm:$0xff]
    %v1867 = vld [vmem:[%s3 + $0x70] sm:$0xff]
    %v1868 = vld [vmem:[%s3 + $0x78] sm:$0xff]
    %v1869 = vld [vmem:[%s3 + $0x80] sm:$0xff]
    %v1870 = vld [vmem:[%s3 + $0x88] sm:$0xff]
    %v1871 = vld [vmem:[%s3 + $0x90] sm:$0xff]
    %v1872 = vld [vmem:[%s3 + $0x98] sm:$0xff]
    %v1873 = vld [vmem:[%s3 + $0xa0] sm:$0xff]
    %v1874 = vld [vmem:[%s3 + $0xa8] sm:$0xff]
    %v1875 = vld [vmem:[%s3 + $0xb0] sm:$0xff]
    %v1876 = vld [vmem:[%s3 + $0xb8] sm:$0xff]
    %v1877 = vld [vmem:[%s3 + $0xc0] sm:$0xff]
    %v1878 = vld [vmem:[%s3 + $0xc8] sm:$0xff]
    %v1879 = vld [vmem:[%s3 + $0xd0] sm:$0xff]
    %v1880 = vld [vmem:[%s3 + $0xd8] sm:$0xff]
    %v1881 = vld [vmem:[%s3 + $0xe0] sm:$0xff]
    %v1882 = vld [vmem:[%s3 + $0xe8] sm:$0xff]
    %v1883 = vld [vmem:[%s3 + $0xf0] sm:$0xff]
    %v1884 = vld [vmem:[%s3 + $0xf8] sm:$0xff]
    %v1885 = vld [vmem:[%s3 + $0x100] sm:$0xff]
    %v1886 = vld [vmem:[%s3 + $0x108] sm:$0xff]
    %v1887 = vld [vmem:[%s3 + $0x110] sm:$0xff]
    %v1888 = vld [vmem:[%s3 + $0x118] sm:$0xff]
    %v1889 = vld [vmem:[%s3 + $0x120] sm:$0xff]
    %v1890 = vld [vmem:[%s3 + $0x128] sm:$0xff]
    %v1891 = vld [vmem:[%s3 + $0x130] sm:$0xff]
    %v1892 = vld [vmem:[%s3 + $0x138] sm:$0xff]
    %v1893 = vld [vmem:[%s3 + $0x140] sm:$0xff]
    %v1894 = vld [vmem:[%s3 + $0x148] sm:$0xff]
    %v1895 = vld [vmem:[%s3 + $0x150] sm:$0xff]
    %v1896 = vld [vmem:[%s3 + $0x158] sm:$0xff]
    %v1897 = vld [vmem:[%s3 + $0x160] sm:$0xff]
    %v1898 = vld [vmem:[%s3 + $0x168] sm:$0xff]
    %v1899 = vld [vmem:[%s3 + $0x170] sm:$0xff]
    %v1900 = vld [vmem:[%s3 + $0x178] sm:$0xff]
    %v1901 = vld [vmem:[%s3 + $0x180] sm:$0xff]
    %v1902 = vld [vmem:[%s3 + $0x188] sm:$0xff]
    %v1903 = vld [vmem:[%s3 + $0x190] sm:$0xff]
    %v1904 = vld [vmem:[%s3 + $0x198] sm:$0xff]
    %v1905 = vld [vmem:[%s3 + $0x1a0] sm:$0xff]
    %v1906 = vld [vmem:[%s3 + $0x1a8] sm:$0xff]
    %v1907 = vld [vmem:[%s3 + $0x1b0] sm:$0xff]
    %v1908 = vld [vmem:[%s3 + $0x1b8] sm:$0xff]
    %v1909 = vld [vmem:[%s3 + $0x1c0] sm:$0xff]
    %v1910 = vld [vmem:[%s3 + $0x1c8] sm:$0xff]
    %v1911 = vld [vmem:[%s3 + $0x1d0] sm:$0xff]
    %v1912 = vld [vmem:[%s3 + $0x1d8] sm:$0xff]
    %v1913 = vld [vmem:[%s3 + $0x1e0] sm:$0xff]
    %v1914 = vld [vmem:[%s3 + $0x1e8] sm:$0xff]
    %v1915 = vld [vmem:[%s3 + $0x1f0] sm:$0xff]
    %v1916 = vld [vmem:[%s3 + $0x1f8] sm:$0xff]
    %v1917 = vadd.s32 %v1720, %v1712
    %v1918 = vadd.s32 %v1721, %v1713
    %v1919 = vadd.s32 %v1722, %v1714
    %v1920 = vadd.s32 %v1723, %v1715
    %vm1921 = vcmp.eq.s32.totalorder %v122, %v1917
    %vm1922 = vcmp.eq.s32.totalorder %v122, %v1918
    %vm1923 = vcmp.eq.s32.totalorder %v122, %v1919
    %vm1924 = vcmp.eq.s32.totalorder %v122, %v1920
    %vm1925 = vcmp.ge.s32.totalorder %v1712, 0
    %vm1926 = vcmp.ge.s32.totalorder %v1713, 0
    %vm1927 = vcmp.ge.s32.totalorder %v1714, 0
    %vm1928 = vcmp.ge.s32.totalorder %v1715, 0
    %vm1929 = vmand %vm1921, %vm1925
    %vm1930 = vmand %vm1922, %vm1926
    %vm1931 = vmand %vm1923, %vm1927
    %vm1932 = vmand %vm1924, %vm1928
    %vm1933 = vcmp.lt.s32.totalorder %v1712, 32
    %vm1934 = vcmp.lt.s32.totalorder %v1713, 32
    %vm1935 = vcmp.lt.s32.totalorder %v1714, 32
    %vm1936 = vcmp.lt.s32.totalorder %v1715, 32
    %vm1937 = vmand %vm1929, %vm1933
    %vm1938 = vmand %vm1930, %vm1934
    %vm1939 = vmand %vm1931, %vm1935
    %vm1940 = vmand %vm1932, %vm1936
    %v1941 = vsel %vm1937, 1.0, 0.0
    %v1942 = vsel %vm1938, 1.0, 0.0
    %v1943 = vsel %vm1939, 1.0, 0.0
    %v1944 = vsel %vm1940, 1.0, 0.0
    %v1946 = vsel %vm597, %v1941, 0
    %v1949 = vsel %vm597, %v1942, 0
    %v1952 = vsel %vm597, %v1943, 0
    %v1955 = vsel %vm597, %v1944, 0
    %1957 = vmatprep.subr.mxu0 %v1689
    %1958 = vmatpush1.msra.mxu0 %v1688
    %1959 = vmatprep.subr.mxu0 %v1691
    %1960 = vmatpush1.msra.mxu0 %v1690
    %1961 = vmatprep.subr.mxu0 %v1693
    %1962 = vmatpush1.msra.mxu0 %v1692
    %1963 = vmatprep.subr.mxu0 %v1695
    %1964 = vmatpush1.msra.mxu0 %v1694
    %1965 = vmatprep.subr.mxu0 %v1697
    %1966 = vmatpush1.msra.mxu0 %v1696
    %1967 = vmatprep.subr.mxu0 %v1699
    %1968 = vmatpush1.msra.mxu0 %v1698
    %1969 = vmatprep.subr.mxu0 %v1701
    %1970 = vmatpush1.msra.mxu0 %v1700
    %1971 = vmatprep.subr.mxu0 %v1703
    %1972 = vmatpush1.msra.mxu0 %v1702
    %1973 = vmatprep.subr.mxu0 0.0
    %1974 = vmatpush1.msra.mxu0 0.0
    %1975 = vmatprep.subr.mxu0 0.0
    %1976 = vmatpush1.msra.mxu0 0.0
    %1977 = vmatprep.subr.mxu0 0.0
    %1978 = vmatpush1.msra.mxu0 0.0
    %1979 = vmatprep.subr.mxu0 0.0
    %1980 = vmatpush1.msra.mxu0 0.0
    %1981 = vmatprep.subr.mxu0 0.0
    %1982 = vmatpush1.msra.mxu0 0.0
    %1983 = vmatprep.subr.mxu0 0.0
    %1984 = vmatpush1.msra.mxu0 0.0
    %1985 = vmatprep.subr.mxu0 0.0
    %1986 = vmatpush1.msra.mxu0 0.0
    %1987 = vmatprep.subr.mxu0 0.0
    %1988 = vmatpush1.msra.mxu0 0.0
    %1989 = vmatprep.subr.mxu0 0.0
    %1990 = vmatpush1.msra.mxu0 0.0
    %1991 = vmatprep.subr.mxu0 0.0
    %1992 = vmatpush1.msra.mxu0 0.0
    %1993 = vmatprep.subr.mxu0 0.0
    %1994 = vmatpush1.msra.mxu0 0.0
    %1995 = vmatprep.subr.mxu0 0.0
    %1996 = vmatpush1.msra.mxu0 0.0
    %1997 = vmatprep.subr.mxu0 0.0
    %1998 = vmatpush1.msra.mxu0 0.0
    %1999 = vmatprep.subr.mxu0 0.0
    %2000 = vmatpush1.msra.mxu0 0.0
    %2001 = vmatprep.subr.mxu0 0.0
    %2002 = vmatpush1.msra.mxu0 0.0
    %2003 = vmatprep.subr.mxu0 0.0
    %2004 = vmatpush1.msra.mxu0 0.0
    %2005 = vmatprep.subr.mxu0 0.0
    %2006 = vmatpush1.msra.mxu0 0.0
    %2007 = vmatprep.subr.mxu0 0.0
    %2008 = vmatpush1.msra.mxu0 0.0
    %2009 = vmatprep.subr.mxu0 0.0
    %2010 = vmatpush1.msra.mxu0 0.0
    %2011 = vmatprep.subr.mxu0 0.0
    %2012 = vmatpush1.msra.mxu0 0.0
    %2013 = vmatprep.subr.mxu0 0.0
    %2014 = vmatpush1.msra.mxu0 0.0
    %2015 = vmatprep.subr.mxu0 0.0
    %2016 = vmatpush1.msra.mxu0 0.0
    %2017 = vmatprep.subr.mxu0 0.0
    %2018 = vmatpush1.msra.mxu0 0.0
    %2019 = vmatprep.subr.mxu0 0.0
    %2020 = vmatpush1.msra.mxu0 0.0
    %2021 = vmatprep.mubr.f32.mxu0 0.0
    %2022 = vmatmul.mubr.f32.gmra.mrb[0].mxu0 %v1946
    %v2023 = vpop.f32.mrb[0].mxu0
    %v2024 = vadd.f32 0.0, %v2023
    %v2025 = vpop.f32.mrb[0].mxu0
    %v2026 = vadd.f32 0.0, %v2025
    %2027 = vmatprep.mubr.f32.mxu0 0.0
    %2028 = vmatmul.mubr.f32.gmra.mrb[0].mxu0 %v1949
    %v2029 = vpop.f32.mrb[0].mxu0
    %v2030 = vadd.f32 0.0, %v2029
    %v2031 = vpop.f32.mrb[0].mxu0
    %v2032 = vadd.f32 0.0, %v2031
    %2033 = vmatprep.mubr.f32.mxu0 0.0
    %2034 = vmatmul.mubr.f32.gmra.mrb[0].mxu0 %v1952
    %v2035 = vpop.f32.mrb[0].mxu0
    %v2036 = vadd.f32 0.0, %v2035
    %v2037 = vpop.f32.mrb[0].mxu0
    %v2038 = vadd.f32 0.0, %v2037
    %2039 = vmatprep.mubr.f32.mxu0 0.0
    %2040 = vmatmul.mubr.f32.gmra.mrb[0].mxu0 %v1955
    %v2041 = vpop.f32.mrb[0].mxu0
    %v2042 = vadd.f32 0.0, %v2041
    %v2043 = vpop.f32.mrb[0].mxu0
    %v2044 = vadd.f32 0.0, %v2043
    %2045 = vdwg.mxu0
    %v2046 = vld [vmem:[%s3 + $0x200] sm:$0xff]
    %v2047 = vld [vmem:[%s3 + $0x208] sm:$0xff]
    %v2048 = vld [vmem:[%s3 + $0x210] sm:$0xff]
    %v2049 = vld [vmem:[%s3 + $0x218] sm:$0xff]
    %v2050 = vld [vmem:[%s3 + $0x220] sm:$0xff]
    %v2051 = vld [vmem:[%s3 + $0x228] sm:$0xff]
    %v2052 = vld [vmem:[%s3 + $0x230] sm:$0xff]
    %v2053 = vld [vmem:[%s3 + $0x238] sm:$0xff]
    %v2054 = vld [vmem:[%s3 + $0x240] sm:$0xff]
    %v2055 = vld [vmem:[%s3 + $0x248] sm:$0xff]
    %v2056 = vld [vmem:[%s3 + $0x250] sm:$0xff]
    %v2057 = vld [vmem:[%s3 + $0x258] sm:$0xff]
    %v2058 = vld [vmem:[%s3 + $0x260] sm:$0xff]
    %v2059 = vld [vmem:[%s3 + $0x268] sm:$0xff]
    %v2060 = vld [vmem:[%s3 + $0x270] sm:$0xff]
    %v2061 = vld [vmem:[%s3 + $0x278] sm:$0xff]
    %v2062 = vld [vmem:[%s3 + $0x280] sm:$0xff]
    %v2063 = vld [vmem:[%s3 + $0x288] sm:$0xff]
    %v2064 = vld [vmem:[%s3 + $0x290] sm:$0xff]
    %v2065 = vld [vmem:[%s3 + $0x298] sm:$0xff]
    %v2066 = vld [vmem:[%s3 + $0x2a0] sm:$0xff]
    %v2067 = vld [vmem:[%s3 + $0x2a8] sm:$0xff]
    %v2068 = vld [vmem:[%s3 + $0x2b0] sm:$0xff]
    %v2069 = vld [vmem:[%s3 + $0x2b8] sm:$0xff]
    %v2070 = vld [vmem:[%s3 + $0x2c0] sm:$0xff]
    %v2071 = vld [vmem:[%s3 + $0x2c8] sm:$0xff]
    %v2072 = vld [vmem:[%s3 + $0x2d0] sm:$0xff]
    %v2073 = vld [vmem:[%s3 + $0x2d8] sm:$0xff]
    %v2074 = vld [vmem:[%s3 + $0x2e0] sm:$0xff]
    %v2075 = vld [vmem:[%s3 + $0x2e8] sm:$0xff]
    %v2076 = vld [vmem:[%s3 + $0x2f0] sm:$0xff]
    %v2077 = vld [vmem:[%s3 + $0x2f8] sm:$0xff]
    %v2078 = vld [vmem:[%s3 + $0x300] sm:$0xff]
    %v2079 = vld [vmem:[%s3 + $0x308] sm:$0xff]
    %v2080 = vld [vmem:[%s3 + $0x310] sm:$0xff]
    %v2081 = vld [vmem:[%s3 + $0x318] sm:$0xff]
    %v2082 = vld [vmem:[%s3 + $0x320] sm:$0xff]
    %v2083 = vld [vmem:[%s3 + $0x328] sm:$0xff]
    %v2084 = vld [vmem:[%s3 + $0x330] sm:$0xff]
    %v2085 = vld [vmem:[%s3 + $0x338] sm:$0xff]
    %v2086 = vld [vmem:[%s3 + $0x340] sm:$0xff]
    %v2087 = vld [vmem:[%s3 + $0x348] sm:$0xff]
    %v2088 = vld [vmem:[%s3 + $0x350] sm:$0xff]
    %v2089 = vld [vmem:[%s3 + $0x358] sm:$0xff]
    %v2090 = vld [vmem:[%s3 + $0x360] sm:$0xff]
    %v2091 = vld [vmem:[%s3 + $0x368] sm:$0xff]
    %v2092 = vld [vmem:[%s3 + $0x370] sm:$0xff]
    %v2093 = vld [vmem:[%s3 + $0x378] sm:$0xff]
    %v2094 = vld [vmem:[%s3 + $0x380] sm:$0xff]
    %v2095 = vld [vmem:[%s3 + $0x388] sm:$0xff]
    %v2096 = vld [vmem:[%s3 + $0x390] sm:$0xff]
    %v2097 = vld [vmem:[%s3 + $0x398] sm:$0xff]
    %v2098 = vld [vmem:[%s3 + $0x3a0] sm:$0xff]
    %v2099 = vld [vmem:[%s3 + $0x3a8] sm:$0xff]
    %v2100 = vld [vmem:[%s3 + $0x3b0] sm:$0xff]
    %v2101 = vld [vmem:[%s3 + $0x3b8] sm:$0xff]
    %v2102 = vld [vmem:[%s3 + $0x3c0] sm:$0xff]
    %v2103 = vld [vmem:[%s3 + $0x3c8] sm:$0xff]
    %v2104 = vld [vmem:[%s3 + $0x3d0] sm:$0xff]
    %v2105 = vld [vmem:[%s3 + $0x3d8] sm:$0xff]
    %v2106 = vld [vmem:[%s3 + $0x3e0] sm:$0xff]
    %v2107 = vld [vmem:[%s3 + $0x3e8] sm:$0xff]
    %v2108 = vld [vmem:[%s3 + $0x3f0] sm:$0xff]
    %v2109 = vld [vmem:[%s3 + $0x3f8] sm:$0xff]
    %2110 = vmatprep.subr.mxu0 %v2047
    %2111 = vmatpush1.msra.mxu0 %v2046
    %2112 = vmatprep.subr.mxu0 %v2049
    %2113 = vmatpush1.msra.mxu0 %v2048
    %2114 = vmatprep.subr.mxu0 %v2051
    %2115 = vmatpush1.msra.mxu0 %v2050
    %2116 = vmatprep.subr.mxu0 %v2053
    %2117 = vmatpush1.msra.mxu0 %v2052
    %2118 = vmatprep.subr.mxu0 %v2055
    %2119 = vmatpush1.msra.mxu0 %v2054
    %2120 = vmatprep.subr.mxu0 %v2057
    %2121 = vmatpush1.msra.mxu0 %v2056
    %2122 = vmatprep.subr.mxu0 %v2059
    %2123 = vmatpush1.msra.mxu0 %v2058
    %2124 = vmatprep.subr.mxu0 %v2061
    %2125 = vmatpush1.msra.mxu0 %v2060
    %2126 = vmatprep.subr.mxu0 %v2063
    %2127 = vmatpush1.msra.mxu0 %v2062
    %2128 = vmatprep.subr.mxu0 %v2065
    %2129 = vmatpush1.msra.mxu0 %v2064
    %2130 = vmatprep.subr.mxu0 %v2067
    %2131 = vmatpush1.msra.mxu0 %v2066
    %2132 = vmatprep.subr.mxu0 %v2069
    %2133 = vmatpush1.msra.mxu0 %v2068
    %2134 = vmatprep.subr.mxu0 %v2071
    %2135 = vmatpush1.msra.mxu0 %v2070
    %2136 = vmatprep.subr.mxu0 %v2073
    %2137 = vmatpush1.msra.mxu0 %v2072
    %2138 = vmatprep.subr.mxu0 %v2075
    %2139 = vmatpush1.msra.mxu0 %v2074
    %2140 = vmatprep.subr.mxu0 %v2077
    %2141 = vmatpush1.msra.mxu0 %v2076
    %2142 = vmatprep.subr.mxu0 %v2079
    %2143 = vmatpush1.msra.mxu0 %v2078
    %2144 = vmatprep.subr.mxu0 %v2081
    %2145 = vmatpush1.msra.mxu0 %v2080
    %2146 = vmatprep.subr.mxu0 %v2083
    %2147 = vmatpush1.msra.mxu0 %v2082
    %2148 = vmatprep.subr.mxu0 %v2085
    %2149 = vmatpush1.msra.mxu0 %v2084
    %2150 = vmatprep.subr.mxu0 %v2087
    %2151 = vmatpush1.msra.mxu0 %v2086
    %2152 = vmatprep.subr.mxu0 %v2089
    %2153 = vmatpush1.msra.mxu0 %v2088
    %2154 = vmatprep.subr.mxu0 %v2091
    %2155 = vmatpush1.msra.mxu0 %v2090
    %2156 = vmatprep.subr.mxu0 %v2093
    %2157 = vmatpush1.msra.mxu0 %v2092
    %2158 = vmatprep.subr.mxu0 %v2095
    %2159 = vmatpush1.msra.mxu0 %v2094
    %2160 = vmatprep.subr.mxu0 %v2097
    %2161 = vmatpush1.msra.mxu0 %v2096
    %2162 = vmatprep.subr.mxu0 %v2099
    %2163 = vmatpush1.msra.mxu0 %v2098
    %2164 = vmatprep.subr.mxu0 %v2101
    %2165 = vmatpush1.msra.mxu0 %v2100
    %2166 = vmatprep.subr.mxu0 %v2103
    %2167 = vmatpush1.msra.mxu0 %v2102
    %2168 = vmatprep.subr.mxu0 %v2105
    %2169 = vmatpush1.msra.mxu0 %v2104
    %2170 = vmatprep.subr.mxu0 %v2107
    %2171 = vmatpush1.msra.mxu0 %v2106
    %2172 = vmatprep.subr.mxu0 %v2109
    %2173 = vmatpush1.msra.mxu0 %v2108
    %2174 = vmatprep.mubr.f32.mxu0 %v2026
    %2175 = vmatmul.mubr.f32.gmra.mrb[0].mxu0 %v2024
    %v2176 = vpop.f32.mrb[0].mxu0
    %v2177 = vadd.f32 0.0, %v2176
    %v2178 = vpop.f32.mrb[0].mxu0
    %v2179 = vadd.f32 0.0, %v2178
    %2180 = vmatprep.mubr.f32.mxu0 %v2032
    %2181 = vmatmul.mubr.f32.gmra.mrb[0].mxu0 %v2030
    %v2182 = vpop.f32.mrb[0].mxu0
    %v2183 = vadd.f32 0.0, %v2182
    %v2184 = vpop.f32.mrb[0].mxu0
    %v2185 = vadd.f32 0.0, %v2184
    %2186 = vmatprep.mubr.f32.mxu0 %v2038
    %2187 = vmatmul.mubr.f32.gmra.mrb[0].mxu0 %v2036
    %v2188 = vpop.f32.mrb[0].mxu0
    %v2189 = vadd.f32 0.0, %v2188
    %v2190 = vpop.f32.mrb[0].mxu0
    %v2191 = vadd.f32 0.0, %v2190
    %2192 = vmatprep.mubr.f32.mxu0 %v2044
    %2193 = vmatmul.mubr.f32.gmra.mrb[0].mxu0 %v2042
    %v2194 = vpop.f32.mrb[0].mxu0
    %v2195 = vadd.f32 0.0, %v2194
    %v2196 = vpop.f32.mrb[0].mxu0
    %v2197 = vadd.f32 0.0, %v2196
    %2198 = vdwg.mxu0
    %2199 = vmatprep.subr.mxu0 %v1854
    %2200 = vmatpush1.msra.mxu0 %v1853
    %2201 = vmatprep.subr.mxu0 %v1856
    %2202 = vmatpush1.msra.mxu0 %v1855
    %2203 = vmatprep.subr.mxu0 %v1858
    %2204 = vmatpush1.msra.mxu0 %v1857
    %2205 = vmatprep.subr.mxu0 %v1860
    %2206 = vmatpush1.msra.mxu0 %v1859
    %2207 = vmatprep.subr.mxu0 %v1862
    %2208 = vmatpush1.msra.mxu0 %v1861
    %2209 = vmatprep.subr.mxu0 %v1864
    %2210 = vmatpush1.msra.mxu0 %v1863
    %2211 = vmatprep.subr.mxu0 %v1866
    %2212 = vmatpush1.msra.mxu0 %v1865
    %2213 = vmatprep.subr.mxu0 %v1868
    %2214 = vmatpush1.msra.mxu0 %v1867
    %2215 = vmatprep.subr.mxu0 %v1870
    %2216 = vmatpush1.msra.mxu0 %v1869
    %2217 = vmatprep.subr.mxu0 %v1872
    %2218 = vmatpush1.msra.mxu0 %v1871
    %2219 = vmatprep.subr.mxu0 %v1874
    %2220 = vmatpush1.msra.mxu0 %v1873
    %2221 = vmatprep.subr.mxu0 %v1876
    %2222 = vmatpush1.msra.mxu0 %v1875
    %2223 = vmatprep.subr.mxu0 %v1878
    %2224 = vmatpush1.msra.mxu0 %v1877
    %2225 = vmatprep.subr.mxu0 %v1880
    %2226 = vmatpush1.msra.mxu0 %v1879
    %2227 = vmatprep.subr.mxu0 %v1882
    %2228 = vmatpush1.msra.mxu0 %v1881
    %2229 = vmatprep.subr.mxu0 %v1884
    %2230 = vmatpush1.msra.mxu0 %v1883
    %2231 = vmatprep.subr.mxu0 %v1886
    %2232 = vmatpush1.msra.mxu0 %v1885
    %2233 = vmatprep.subr.mxu0 %v1888
    %2234 = vmatpush1.msra.mxu0 %v1887
    %2235 = vmatprep.subr.mxu0 %v1890
    %2236 = vmatpush1.msra.mxu0 %v1889
    %2237 = vmatprep.subr.mxu0 %v1892
    %2238 = vmatpush1.msra.mxu0 %v1891
    %2239 = vmatprep.subr.mxu0 %v1894
    %2240 = vmatpush1.msra.mxu0 %v1893
    %2241 = vmatprep.subr.mxu0 %v1896
    %2242 = vmatpush1.msra.mxu0 %v1895
    %2243 = vmatprep.subr.mxu0 %v1898
    %2244 = vmatpush1.msra.mxu0 %v1897
    %2245 = vmatprep.subr.mxu0 %v1900
    %2246 = vmatpush1.msra.mxu0 %v1899
    %2247 = vmatprep.subr.mxu0 %v1902
    %2248 = vmatpush1.msra.mxu0 %v1901
    %2249 = vmatprep.subr.mxu0 %v1904
    %2250 = vmatpush1.msra.mxu0 %v1903
    %2251 = vmatprep.subr.mxu0 %v1906
    %2252 = vmatpush1.msra.mxu0 %v1905
    %2253 = vmatprep.subr.mxu0 %v1908
    %2254 = vmatpush1.msra.mxu0 %v1907
    %2255 = vmatprep.subr.mxu0 %v1910
    %2256 = vmatpush1.msra.mxu0 %v1909
    %2257 = vmatprep.subr.mxu0 %v1912
    %2258 = vmatpush1.msra.mxu0 %v1911
    %2259 = vmatprep.subr.mxu0 %v1914
    %2260 = vmatpush1.msra.mxu0 %v1913
    %2261 = vmatprep.subr.mxu0 %v1916
    %2262 = vmatpush1.msra.mxu0 %v1915
    %2263 = vmatprep.mubr.f32.mxu0 %v1833
    %2264 = vmatmul.mubr.f32.gmra.mrb[0].mxu0 %v1831
    %v2265 = vpop.f32.mrb[0].mxu0
    %v2266 = vadd.f32 %v2177, %v2265
    %v2267 = vpop.f32.mrb[0].mxu0
    %v2268 = vadd.f32 %v2179, %v2267
    %2269 = vmatprep.mubr.f32.mxu0 %v1839
    %2270 = vmatmul.mubr.f32.gmra.mrb[0].mxu0 %v1837
    %v2271 = vpop.f32.mrb[0].mxu0
    %v2272 = vadd.f32 %v2183, %v2271
    %v2273 = vpop.f32.mrb[0].mxu0
    %v2274 = vadd.f32 %v2185, %v2273
    %2275 = vmatprep.mubr.f32.mxu0 %v1845
    %2276 = vmatmul.mubr.f32.gmra.mrb[0].mxu0 %v1843
    %v2277 = vpop.f32.mrb[0].mxu0
    %v2278 = vadd.f32 %v2189, %v2277
    %v2279 = vpop.f32.mrb[0].mxu0
    %v2280 = vadd.f32 %v2191, %v2279
    %2281 = vmatprep.mubr.f32.mxu0 %v1851
    %2282 = vmatmul.mubr.f32.gmra.mrb[0].mxu0 %v1849
    %v2283 = vpop.f32.mrb[0].mxu0
    %v2284 = vadd.f32 %v2195, %v2283
    %v2285 = vpop.f32.mrb[0].mxu0
    %v2286 = vadd.f32 %v2197, %v2285
    %2287 = vdwg.mxu0
    %v2288 = vadd.s32 %v1712, 1
    %v2289 = vadd.s32 %v1713, 1
    %v2290 = vadd.s32 %v1714, 1
    %v2291 = vadd.s32 %v1715, 1
    %v2292 = vadd.s32 %v1720, %v2288
    %v2293 = vadd.s32 %v1721, %v2289
    %v2294 = vadd.s32 %v1722, %v2290
    %v2295 = vadd.s32 %v1723, %v2291
    %vm2296 = vcmp.eq.s32.totalorder %v122, %v2292
    %vm2297 = vcmp.eq.s32.totalorder %v122, %v2293
    %vm2298 = vcmp.eq.s32.totalorder %v122, %v2294
    %vm2299 = vcmp.eq.s32.totalorder %v122, %v2295
    %vm2300 = vcmp.ge.s32.totalorder %v2288, 0
    %vm2301 = vcmp.ge.s32.totalorder %v2289, 0
    %vm2302 = vcmp.ge.s32.totalorder %v2290, 0
    %vm2303 = vcmp.ge.s32.totalorder %v2291, 0
    %vm2304 = vmand %vm2296, %vm2300
    %vm2305 = vmand %vm2297, %vm2301
    %vm2306 = vmand %vm2298, %vm2302
    %vm2307 = vmand %vm2299, %vm2303
    %vm2308 = vcmp.lt.s32.totalorder %v2288, 32
    %vm2309 = vcmp.lt.s32.totalorder %v2289, 32
    %vm2310 = vcmp.lt.s32.totalorder %v2290, 32
    %vm2311 = vcmp.lt.s32.totalorder %v2291, 32
    %vm2312 = vmand %vm2304, %vm2308
    %vm2313 = vmand %vm2305, %vm2309
    %vm2314 = vmand %vm2306, %vm2310
    %vm2315 = vmand %vm2307, %vm2311
    %v2316 = vsel %vm2312, 1.0, 0.0
    %v2317 = vsel %vm2313, 1.0, 0.0
    %v2318 = vsel %vm2314, 1.0, 0.0
    %v2319 = vsel %vm2315, 1.0, 0.0
    %v2321 = vsel %vm597, %v2316, 0
    %v2324 = vsel %vm597, %v2317, 0
    %v2327 = vsel %vm597, %v2318, 0
    %v2330 = vsel %vm597, %v2319, 0
    %2332 = vmatprep.subr.mxu0 %v1689
    %2333 = vmatpush1.msra.mxu0 %v1688
    %2334 = vmatprep.subr.mxu0 %v1691
    %2335 = vmatpush1.msra.mxu0 %v1690
    %2336 = vmatprep.subr.mxu0 %v1693
    %2337 = vmatpush1.msra.mxu0 %v1692
    %2338 = vmatprep.subr.mxu0 %v1695
    %2339 = vmatpush1.msra.mxu0 %v1694
    %2340 = vmatprep.subr.mxu0 %v1697
    %2341 = vmatpush1.msra.mxu0 %v1696
    %2342 = vmatprep.subr.mxu0 %v1699
    %2343 = vmatpush1.msra.mxu0 %v1698
    %2344 = vmatprep.subr.mxu0 %v1701
    %2345 = vmatpush1.msra.mxu0 %v1700
    %2346 = vmatprep.subr.mxu0 %v1703
    %2347 = vmatpush1.msra.mxu0 %v1702
    %2348 = vmatprep.subr.mxu0 0.0
    %2349 = vmatpush1.msra.mxu0 0.0
    %2350 = vmatprep.subr.mxu0 0.0
    %2351 = vmatpush1.msra.mxu0 0.0
    %2352 = vmatprep.subr.mxu0 0.0
    %2353 = vmatpush1.msra.mxu0 0.0
    %2354 = vmatprep.subr.mxu0 0.0
    %2355 = vmatpush1.msra.mxu0 0.0
    %2356 = vmatprep.subr.mxu0 0.0
    %2357 = vmatpush1.msra.mxu0 0.0
    %2358 = vmatprep.subr.mxu0 0.0
    %2359 = vmatpush1.msra.mxu0 0.0
    %2360 = vmatprep.subr.mxu0 0.0
    %2361 = vmatpush1.msra.mxu0 0.0
    %2362 = vmatprep.subr.mxu0 0.0
    %2363 = vmatpush1.msra.mxu0 0.0
    %2364 = vmatprep.subr.mxu0 0.0
    %2365 = vmatpush1.msra.mxu0 0.0
    %2366 = vmatprep.subr.mxu0 0.0
    %2367 = vmatpush1.msra.mxu0 0.0
    %2368 = vmatprep.subr.mxu0 0.0
    %2369 = vmatpush1.msra.mxu0 0.0
    %2370 = vmatprep.subr.mxu0 0.0
    %2371 = vmatpush1.msra.mxu0 0.0
    %2372 = vmatprep.subr.mxu0 0.0
    %2373 = vmatpush1.msra.mxu0 0.0
    %2374 = vmatprep.subr.mxu0 0.0
    %2375 = vmatpush1.msra.mxu0 0.0
    %2376 = vmatprep.subr.mxu0 0.0
    %2377 = vmatpush1.msra.mxu0 0.0
    %2378 = vmatprep.subr.mxu0 0.0
    %2379 = vmatpush1.msra.mxu0 0.0
    %2380 = vmatprep.subr.mxu0 0.0
    %2381 = vmatpush1.msra.mxu0 0.0
    %2382 = vmatprep.subr.mxu0 0.0
    %2383 = vmatpush1.msra.mxu0 0.0
    %2384 = vmatprep.subr.mxu0 0.0
    %2385 = vmatpush1.msra.mxu0 0.0
    %2386 = vmatprep.subr.mxu0 0.0
    %2387 = vmatpush1.msra.mxu0 0.0
    %2388 = vmatprep.subr.mxu0 0.0
    %2389 = vmatpush1.msra.mxu0 0.0
    %2390 = vmatprep.subr.mxu0 0.0
    %2391 = vmatpush1.msra.mxu0 0.0
    %2392 = vmatprep.subr.mxu0 0.0
    %2393 = vmatpush1.msra.mxu0 0.0
    %2394 = vmatprep.subr.mxu0 0.0
    %2395 = vmatpush1.msra.mxu0 0.0
    %2396 = vmatprep.mubr.f32.mxu0 0.0
    %2397 = vmatmul.mubr.f32.gmra.mrb[0].mxu0 %v2321
    %v2398 = vpop.f32.mrb[0].mxu0
    %v2399 = vadd.f32 0.0, %v2398
    %v2400 = vpop.f32.mrb[0].mxu0
    %v2401 = vadd.f32 0.0, %v2400
    %2402 = vmatprep.mubr.f32.mxu0 0.0
    %2403 = vmatmul.mubr.f32.gmra.mrb[0].mxu0 %v2324
    %v2404 = vpop.f32.mrb[0].mxu0
    %v2405 = vadd.f32 0.0, %v2404
    %v2406 = vpop.f32.mrb[0].mxu0
    %v2407 = vadd.f32 0.0, %v2406
    %2408 = vmatprep.mubr.f32.mxu0 0.0
    %2409 = vmatmul.mubr.f32.gmra.mrb[0].mxu0 %v2327
    %v2410 = vpop.f32.mrb[0].mxu0
    %v2411 = vadd.f32 0.0, %v2410
    %v2412 = vpop.f32.mrb[0].mxu0
    %v2413 = vadd.f32 0.0, %v2412
    %2414 = vmatprep.mubr.f32.mxu0 0.0
    %2415 = vmatmul.mubr.f32.gmra.mrb[0].mxu0 %v2330
    %v2416 = vpop.f32.mrb[0].mxu0
    %v2417 = vadd.f32 0.0, %v2416
    %v2418 = vpop.f32.mrb[0].mxu0
    %v2419 = vadd.f32 0.0, %v2418
    %2420 = vdwg.mxu0
    %v2421 = vld [vmem:[%s3 + $0x400] sm:$0xff]
    %v2422 = vld [vmem:[%s3 + $0x408] sm:$0xff]
    %v2423 = vld [vmem:[%s3 + $0x410] sm:$0xff]
    %v2424 = vld [vmem:[%s3 + $0x418] sm:$0xff]
    %v2425 = vld [vmem:[%s3 + $0x420] sm:$0xff]
    %v2426 = vld [vmem:[%s3 + $0x428] sm:$0xff]
    %v2427 = vld [vmem:[%s3 + $0x430] sm:$0xff]
    %v2428 = vld [vmem:[%s3 + $0x438] sm:$0xff]
    %v2429 = vld [vmem:[%s3 + $0x440] sm:$0xff]
    %v2430 = vld [vmem:[%s3 + $0x448] sm:$0xff]
    %v2431 = vld [vmem:[%s3 + $0x450] sm:$0xff]
    %v2432 = vld [vmem:[%s3 + $0x458] sm:$0xff]
    %v2433 = vld [vmem:[%s3 + $0x460] sm:$0xff]
    %v2434 = vld [vmem:[%s3 + $0x468] sm:$0xff]
    %v2435 = vld [vmem:[%s3 + $0x470] sm:$0xff]
    %v2436 = vld [vmem:[%s3 + $0x478] sm:$0xff]
    %v2437 = vld [vmem:[%s3 + $0x480] sm:$0xff]
    %v2438 = vld [vmem:[%s3 + $0x488] sm:$0xff]
    %v2439 = vld [vmem:[%s3 + $0x490] sm:$0xff]
    %v2440 = vld [vmem:[%s3 + $0x498] sm:$0xff]
    %v2441 = vld [vmem:[%s3 + $0x4a0] sm:$0xff]
    %v2442 = vld [vmem:[%s3 + $0x4a8] sm:$0xff]
    %v2443 = vld [vmem:[%s3 + $0x4b0] sm:$0xff]
    %v2444 = vld [vmem:[%s3 + $0x4b8] sm:$0xff]
    %v2445 = vld [vmem:[%s3 + $0x4c0] sm:$0xff]
    %v2446 = vld [vmem:[%s3 + $0x4c8] sm:$0xff]
    %v2447 = vld [vmem:[%s3 + $0x4d0] sm:$0xff]
    %v2448 = vld [vmem:[%s3 + $0x4d8] sm:$0xff]
    %v2449 = vld [vmem:[%s3 + $0x4e0] sm:$0xff]
    %v2450 = vld [vmem:[%s3 + $0x4e8] sm:$0xff]
    %v2451 = vld [vmem:[%s3 + $0x4f0] sm:$0xff]
    %v2452 = vld [vmem:[%s3 + $0x4f8] sm:$0xff]
    %v2453 = vld [vmem:[%s3 + $0x500] sm:$0xff]
    %v2454 = vld [vmem:[%s3 + $0x508] sm:$0xff]
    %v2455 = vld [vmem:[%s3 + $0x510] sm:$0xff]
    %v2456 = vld [vmem:[%s3 + $0x518] sm:$0xff]
    %v2457 = vld [vmem:[%s3 + $0x520] sm:$0xff]
    %v2458 = vld [vmem:[%s3 + $0x528] sm:$0xff]
    %v2459 = vld [vmem:[%s3 + $0x530] sm:$0xff]
    %v2460 = vld [vmem:[%s3 + $0x538] sm:$0xff]
    %v2461 = vld [vmem:[%s3 + $0x540] sm:$0xff]
    %v2462 = vld [vmem:[%s3 + $0x548] sm:$0xff]
    %v2463 = vld [vmem:[%s3 + $0x550] sm:$0xff]
    %v2464 = vld [vmem:[%s3 + $0x558] sm:$0xff]
    %v2465 = vld [vmem:[%s3 + $0x560] sm:$0xff]
    %v2466 = vld [vmem:[%s3 + $0x568] sm:$0xff]
    %v2467 = vld [vmem:[%s3 + $0x570] sm:$0xff]
    %v2468 = vld [vmem:[%s3 + $0x578] sm:$0xff]
    %v2469 = vld [vmem:[%s3 + $0x580] sm:$0xff]
    %v2470 = vld [vmem:[%s3 + $0x588] sm:$0xff]
    %v2471 = vld [vmem:[%s3 + $0x590] sm:$0xff]
    %v2472 = vld [vmem:[%s3 + $0x598] sm:$0xff]
    %v2473 = vld [vmem:[%s3 + $0x5a0] sm:$0xff]
    %v2474 = vld [vmem:[%s3 + $0x5a8] sm:$0xff]
    %v2475 = vld [vmem:[%s3 + $0x5b0] sm:$0xff]
    %v2476 = vld [vmem:[%s3 + $0x5b8] sm:$0xff]
    %v2477 = vld [vmem:[%s3 + $0x5c0] sm:$0xff]
    %v2478 = vld [vmem:[%s3 + $0x5c8] sm:$0xff]
    %v2479 = vld [vmem:[%s3 + $0x5d0] sm:$0xff]
    %v2480 = vld [vmem:[%s3 + $0x5d8] sm:$0xff]
    %v2481 = vld [vmem:[%s3 + $0x5e0] sm:$0xff]
    %v2482 = vld [vmem:[%s3 + $0x5e8] sm:$0xff]
    %v2483 = vld [vmem:[%s3 + $0x5f0] sm:$0xff]
    %v2484 = vld [vmem:[%s3 + $0x5f8] sm:$0xff]
    %2485 = vmatprep.subr.mxu0 %v2422
    %2486 = vmatpush1.msra.mxu0 %v2421
    %2487 = vmatprep.subr.mxu0 %v2424
    %2488 = vmatpush1.msra.mxu0 %v2423
    %2489 = vmatprep.subr.mxu0 %v2426
    %2490 = vmatpush1.msra.mxu0 %v2425
    %2491 = vmatprep.subr.mxu0 %v2428
    %2492 = vmatpush1.msra.mxu0 %v2427
    %2493 = vmatprep.subr.mxu0 %v2430
    %2494 = vmatpush1.msra.mxu0 %v2429
    %2495 = vmatprep.subr.mxu0 %v2432
    %2496 = vmatpush1.msra.mxu0 %v2431
    %2497 = vmatprep.subr.mxu0 %v2434
    %2498 = vmatpush1.msra.mxu0 %v2433
    %2499 = vmatprep.subr.mxu0 %v2436
    %2500 = vmatpush1.msra.mxu0 %v2435
    %2501 = vmatprep.subr.mxu0 %v2438
    %2502 = vmatpush1.msra.mxu0 %v2437
    %2503 = vmatprep.subr.mxu0 %v2440
    %2504 = vmatpush1.msra.mxu0 %v2439
    %2505 = vmatprep.subr.mxu0 %v2442
    %2506 = vmatpush1.msra.mxu0 %v2441
    %2507 = vmatprep.subr.mxu0 %v2444
    %2508 = vmatpush1.msra.mxu0 %v2443
    %2509 = vmatprep.subr.mxu0 %v2446
    %2510 = vmatpush1.msra.mxu0 %v2445
    %2511 = vmatprep.subr.mxu0 %v2448
    %2512 = vmatpush1.msra.mxu0 %v2447
    %2513 = vmatprep.subr.mxu0 %v2450
    %2514 = vmatpush1.msra.mxu0 %v2449
    %2515 = vmatprep.subr.mxu0 %v2452
    %2516 = vmatpush1.msra.mxu0 %v2451
    %2517 = vmatprep.subr.mxu0 %v2454
    %2518 = vmatpush1.msra.mxu0 %v2453
    %2519 = vmatprep.subr.mxu0 %v2456
    %2520 = vmatpush1.msra.mxu0 %v2455
    %2521 = vmatprep.subr.mxu0 %v2458
    %2522 = vmatpush1.msra.mxu0 %v2457
    %2523 = vmatprep.subr.mxu0 %v2460
    %2524 = vmatpush1.msra.mxu0 %v2459
    %2525 = vmatprep.subr.mxu0 %v2462
    %2526 = vmatpush1.msra.mxu0 %v2461
    %2527 = vmatprep.subr.mxu0 %v2464
    %2528 = vmatpush1.msra.mxu0 %v2463
    %2529 = vmatprep.subr.mxu0 %v2466
    %2530 = vmatpush1.msra.mxu0 %v2465
    %2531 = vmatprep.subr.mxu0 %v2468
    %2532 = vmatpush1.msra.mxu0 %v2467
    %2533 = vmatprep.subr.mxu0 %v2470
    %2534 = vmatpush1.msra.mxu0 %v2469
    %2535 = vmatprep.subr.mxu0 %v2472
    %2536 = vmatpush1.msra.mxu0 %v2471
    %2537 = vmatprep.subr.mxu0 %v2474
    %2538 = vmatpush1.msra.mxu0 %v2473
    %2539 = vmatprep.subr.mxu0 %v2476
    %2540 = vmatpush1.msra.mxu0 %v2475
    %2541 = vmatprep.subr.mxu0 %v2478
    %2542 = vmatpush1.msra.mxu0 %v2477
    %2543 = vmatprep.subr.mxu0 %v2480
    %2544 = vmatpush1.msra.mxu0 %v2479
    %2545 = vmatprep.subr.mxu0 %v2482
    %2546 = vmatpush1.msra.mxu0 %v2481
    %2547 = vmatprep.subr.mxu0 %v2484
    %2548 = vmatpush1.msra.mxu0 %v2483
    %2549 = vmatprep.mubr.f32.mxu0 %v2401
    %2550 = vmatmul.mubr.f32.gmra.mrb[0].mxu0 %v2399
    %v2551 = vpop.f32.mrb[0].mxu0
    %v2552 = vadd.f32 0.0, %v2551
    %v2553 = vpop.f32.mrb[0].mxu0
    %v2554 = vadd.f32 0.0, %v2553
    %2555 = vmatprep.mubr.f32.mxu0 %v2407
    %2556 = vmatmul.mubr.f32.gmra.mrb[0].mxu0 %v2405
    %v2557 = vpop.f32.mrb[0].mxu0
    %v2558 = vadd.f32 0.0, %v2557
    %v2559 = vpop.f32.mrb[0].mxu0
    %v2560 = vadd.f32 0.0, %v2559
    %2561 = vmatprep.mubr.f32.mxu0 %v2413
    %2562 = vmatmul.mubr.f32.gmra.mrb[0].mxu0 %v2411
    %v2563 = vpop.f32.mrb[0].mxu0
    %v2564 = vadd.f32 0.0, %v2563
    %v2565 = vpop.f32.mrb[0].mxu0
    %v2566 = vadd.f32 0.0, %v2565
    %2567 = vmatprep.mubr.f32.mxu0 %v2419
    %2568 = vmatmul.mubr.f32.gmra.mrb[0].mxu0 %v2417
    %v2569 = vpop.f32.mrb[0].mxu0
    %v2570 = vadd.f32 0.0, %v2569
    %v2571 = vpop.f32.mrb[0].mxu0
    %v2572 = vadd.f32 0.0, %v2571
    %2573 = vdwg.mxu0
    %v2574 = vadd.f32 %v2266, %v2552
    %v2575 = vadd.f32 %v2268, %v2554
    %v2576 = vadd.f32 %v2272, %v2558
    %v2577 = vadd.f32 %v2274, %v2560
    %v2578 = vadd.f32 %v2278, %v2564
    %v2579 = vadd.f32 %v2280, %v2566
    %v2580 = vadd.f32 %v2284, %v2570
    %v2581 = vadd.f32 %v2286, %v2572
    %v2582 = vadd.s32 %v1712, 2
    %v2583 = vadd.s32 %v1713, 2
    %v2584 = vadd.s32 %v1714, 2
    %v2585 = vadd.s32 %v1715, 2
    %v2586 = vadd.s32 %v1720, %v2582
    %v2587 = vadd.s32 %v1721, %v2583
    %v2588 = vadd.s32 %v1722, %v2584
    %v2589 = vadd.s32 %v1723, %v2585
    %vm2590 = vcmp.eq.s32.totalorder %v122, %v2586
    %vm2591 = vcmp.eq.s32.totalorder %v122, %v2587
    %vm2592 = vcmp.eq.s32.totalorder %v122, %v2588
    %vm2593 = vcmp.eq.s32.totalorder %v122, %v2589
    %vm2594 = vcmp.ge.s32.totalorder %v2582, 0
    %vm2595 = vcmp.ge.s32.totalorder %v2583, 0
    %vm2596 = vcmp.ge.s32.totalorder %v2584, 0
    %vm2597 = vcmp.ge.s32.totalorder %v2585, 0
    %vm2598 = vmand %vm2590, %vm2594
    %vm2599 = vmand %vm2591, %vm2595
    %vm2600 = vmand %vm2592, %vm2596
    %vm2601 = vmand %vm2593, %vm2597
    %vm2602 = vcmp.lt.s32.totalorder %v2582, 32
    %vm2603 = vcmp.lt.s32.totalorder %v2583, 32
    %vm2604 = vcmp.lt.s32.totalorder %v2584, 32
    %vm2605 = vcmp.lt.s32.totalorder %v2585, 32
    %vm2606 = vmand %vm2598, %vm2602
    %vm2607 = vmand %vm2599, %vm2603
    %vm2608 = vmand %vm2600, %vm2604
    %vm2609 = vmand %vm2601, %vm2605
    %v2610 = vsel %vm2606, 1.0, 0.0
    %v2611 = vsel %vm2607, 1.0, 0.0
    %v2612 = vsel %vm2608, 1.0, 0.0
    %v2613 = vsel %vm2609, 1.0, 0.0
    %v2615 = vsel %vm597, %v2610, 0
    %v2618 = vsel %vm597, %v2611, 0
    %v2621 = vsel %vm597, %v2612, 0
    %v2624 = vsel %vm597, %v2613, 0
    %2626 = vmatprep.subr.mxu0 %v1689
    %2627 = vmatpush1.msra.mxu0 %v1688
    %2628 = vmatprep.subr.mxu0 %v1691
    %2629 = vmatpush1.msra.mxu0 %v1690
    %2630 = vmatprep.subr.mxu0 %v1693
    %2631 = vmatpush1.msra.mxu0 %v1692
    %2632 = vmatprep.subr.mxu0 %v1695
    %2633 = vmatpush1.msra.mxu0 %v1694
    %2634 = vmatprep.subr.mxu0 %v1697
    %2635 = vmatpush1.msra.mxu0 %v1696
    %2636 = vmatprep.subr.mxu0 %v1699
    %2637 = vmatpush1.msra.mxu0 %v1698
    %2638 = vmatprep.subr.mxu0 %v1701
    %2639 = vmatpush1.msra.mxu0 %v1700
    %2640 = vmatprep.subr.mxu0 %v1703
    %2641 = vmatpush1.msra.mxu0 %v1702
    %2642 = vmatprep.subr.mxu0 0.0
    %2643 = vmatpush1.msra.mxu0 0.0
    %2644 = vmatprep.subr.mxu0 0.0
    %2645 = vmatpush1.msra.mxu0 0.0
    %2646 = vmatprep.subr.mxu0 0.0
    %2647 = vmatpush1.msra.mxu0 0.0
    %2648 = vmatprep.subr.mxu0 0.0
    %2649 = vmatpush1.msra.mxu0 0.0
    %2650 = vmatprep.subr.mxu0 0.0
    %2651 = vmatpush1.msra.mxu0 0.0
    %2652 = vmatprep.subr.mxu0 0.0
    %2653 = vmatpush1.msra.mxu0 0.0
    %2654 = vmatprep.subr.mxu0 0.0
    %2655 = vmatpush1.msra.mxu0 0.0
    %2656 = vmatprep.subr.mxu0 0.0
    %2657 = vmatpush1.msra.mxu0 0.0
    %2658 = vmatprep.subr.mxu0 0.0
    %2659 = vmatpush1.msra.mxu0 0.0
    %2660 = vmatprep.subr.mxu0 0.0
    %2661 = vmatpush1.msra.mxu0 0.0
    %2662 = vmatprep.subr.mxu0 0.0
    %2663 = vmatpush1.msra.mxu0 0.0
    %2664 = vmatprep.subr.mxu0 0.0
    %2665 = vmatpush1.msra.mxu0 0.0
    %2666 = vmatprep.subr.mxu0 0.0
    %2667 = vmatpush1.msra.mxu0 0.0
    %2668 = vmatprep.subr.mxu0 0.0
    %2669 = vmatpush1.msra.mxu0 0.0
    %2670 = vmatprep.subr.mxu0 0.0
    %2671 = vmatpush1.msra.mxu0 0.0
    %2672 = vmatprep.subr.mxu0 0.0
    %2673 = vmatpush1.msra.mxu0 0.0
    %2674 = vmatprep.subr.mxu0 0.0
    %2675 = vmatpush1.msra.mxu0 0.0
    %2676 = vmatprep.subr.mxu0 0.0
    %2677 = vmatpush1.msra.mxu0 0.0
    %2678 = vmatprep.subr.mxu0 0.0
    %2679 = vmatpush1.msra.mxu0 0.0
    %2680 = vmatprep.subr.mxu0 0.0
    %2681 = vmatpush1.msra.mxu0 0.0
    %2682 = vmatprep.subr.mxu0 0.0
    %2683 = vmatpush1.msra.mxu0 0.0
    %2684 = vmatprep.subr.mxu0 0.0
    %2685 = vmatpush1.msra.mxu0 0.0
    %2686 = vmatprep.subr.mxu0 0.0
    %2687 = vmatpush1.msra.mxu0 0.0
    %2688 = vmatprep.subr.mxu0 0.0
    %2689 = vmatpush1.msra.mxu0 0.0
    %2690 = vmatprep.mubr.f32.mxu0 0.0
    %2691 = vmatmul.mubr.f32.gmra.mrb[0].mxu0 %v2615
    %v2692 = vpop.f32.mrb[0].mxu0
    %v2693 = vadd.f32 0.0, %v2692
    %v2694 = vpop.f32.mrb[0].mxu0
    %v2695 = vadd.f32 0.0, %v2694
    %2696 = vmatprep.mubr.f32.mxu0 0.0
    %2697 = vmatmul.mubr.f32.gmra.mrb[0].mxu0 %v2618
    %v2698 = vpop.f32.mrb[0].mxu0
    %v2699 = vadd.f32 0.0, %v2698
    %v2700 = vpop.f32.mrb[0].mxu0
    %v2701 = vadd.f32 0.0, %v2700
    %2702 = vmatprep.mubr.f32.mxu0 0.0
    %2703 = vmatmul.mubr.f32.gmra.mrb[0].mxu0 %v2621
    %v2704 = vpop.f32.mrb[0].mxu0
    %v2705 = vadd.f32 0.0, %v2704
    %v2706 = vpop.f32.mrb[0].mxu0
    %v2707 = vadd.f32 0.0, %v2706
    %2708 = vmatprep.mubr.f32.mxu0 0.0
    %2709 = vmatmul.mubr.f32.gmra.mrb[0].mxu0 %v2624
    %v2710 = vpop.f32.mrb[0].mxu0
    %v2711 = vadd.f32 0.0, %v2710
    %v2712 = vpop.f32.mrb[0].mxu0
    %v2713 = vadd.f32 0.0, %v2712
    %2714 = vdwg.mxu0
    %v2715 = vld [vmem:[%s3 + $0x600] sm:$0xff]
    %v2716 = vld [vmem:[%s3 + $0x608] sm:$0xff]
    %v2717 = vld [vmem:[%s3 + $0x610] sm:$0xff]
    %v2718 = vld [vmem:[%s3 + $0x618] sm:$0xff]
    %v2719 = vld [vmem:[%s3 + $0x620] sm:$0xff]
    %v2720 = vld [vmem:[%s3 + $0x628] sm:$0xff]
    %v2721 = vld [vmem:[%s3 + $0x630] sm:$0xff]
    %v2722 = vld [vmem:[%s3 + $0x638] sm:$0xff]
    %v2723 = vld [vmem:[%s3 + $0x640] sm:$0xff]
    %v2724 = vld [vmem:[%s3 + $0x648] sm:$0xff]
    %v2725 = vld [vmem:[%s3 + $0x650] sm:$0xff]
    %v2726 = vld [vmem:[%s3 + $0x658] sm:$0xff]
    %v2727 = vld [vmem:[%s3 + $0x660] sm:$0xff]
    %v2728 = vld [vmem:[%s3 + $0x668] sm:$0xff]
    %v2729 = vld [vmem:[%s3 + $0x670] sm:$0xff]
    %v2730 = vld [vmem:[%s3 + $0x678] sm:$0xff]
    %v2731 = vld [vmem:[%s3 + $0x680] sm:$0xff]
    %v2732 = vld [vmem:[%s3 + $0x688] sm:$0xff]
    %v2733 = vld [vmem:[%s3 + $0x690] sm:$0xff]
    %v2734 = vld [vmem:[%s3 + $0x698] sm:$0xff]
    %v2735 = vld [vmem:[%s3 + $0x6a0] sm:$0xff]
    %v2736 = vld [vmem:[%s3 + $0x6a8] sm:$0xff]
    %v2737 = vld [vmem:[%s3 + $0x6b0] sm:$0xff]
    %v2738 = vld [vmem:[%s3 + $0x6b8] sm:$0xff]
    %v2739 = vld [vmem:[%s3 + $0x6c0] sm:$0xff]
    %v2740 = vld [vmem:[%s3 + $0x6c8] sm:$0xff]
    %v2741 = vld [vmem:[%s3 + $0x6d0] sm:$0xff]
    %v2742 = vld [vmem:[%s3 + $0x6d8] sm:$0xff]
    %v2743 = vld [vmem:[%s3 + $0x6e0] sm:$0xff]
    %v2744 = vld [vmem:[%s3 + $0x6e8] sm:$0xff]
    %v2745 = vld [vmem:[%s3 + $0x6f0] sm:$0xff]
    %v2746 = vld [vmem:[%s3 + $0x6f8] sm:$0xff]
    %v2747 = vld [vmem:[%s3 + $0x700] sm:$0xff]
    %v2748 = vld [vmem:[%s3 + $0x708] sm:$0xff]
    %v2749 = vld [vmem:[%s3 + $0x710] sm:$0xff]
    %v2750 = vld [vmem:[%s3 + $0x718] sm:$0xff]
    %v2751 = vld [vmem:[%s3 + $0x720] sm:$0xff]
    %v2752 = vld [vmem:[%s3 + $0x728] sm:$0xff]
    %v2753 = vld [vmem:[%s3 + $0x730] sm:$0xff]
    %v2754 = vld [vmem:[%s3 + $0x738] sm:$0xff]
    %v2755 = vld [vmem:[%s3 + $0x740] sm:$0xff]
    %v2756 = vld [vmem:[%s3 + $0x748] sm:$0xff]
    %v2757 = vld [vmem:[%s3 + $0x750] sm:$0xff]
    %v2758 = vld [vmem:[%s3 + $0x758] sm:$0xff]
    %v2759 = vld [vmem:[%s3 + $0x760] sm:$0xff]
    %v2760 = vld [vmem:[%s3 + $0x768] sm:$0xff]
    %v2761 = vld [vmem:[%s3 + $0x770] sm:$0xff]
    %v2762 = vld [vmem:[%s3 + $0x778] sm:$0xff]
    %v2763 = vld [vmem:[%s3 + $0x780] sm:$0xff]
    %v2764 = vld [vmem:[%s3 + $0x788] sm:$0xff]
    %v2765 = vld [vmem:[%s3 + $0x790] sm:$0xff]
    %v2766 = vld [vmem:[%s3 + $0x798] sm:$0xff]
    %v2767 = vld [vmem:[%s3 + $0x7a0] sm:$0xff]
    %v2768 = vld [vmem:[%s3 + $0x7a8] sm:$0xff]
    %v2769 = vld [vmem:[%s3 + $0x7b0] sm:$0xff]
    %v2770 = vld [vmem:[%s3 + $0x7b8] sm:$0xff]
    %v2771 = vld [vmem:[%s3 + $0x7c0] sm:$0xff]
    %v2772 = vld [vmem:[%s3 + $0x7c8] sm:$0xff]
    %v2773 = vld [vmem:[%s3 + $0x7d0] sm:$0xff]
    %v2774 = vld [vmem:[%s3 + $0x7d8] sm:$0xff]
    %v2775 = vld [vmem:[%s3 + $0x7e0] sm:$0xff]
    %v2776 = vld [vmem:[%s3 + $0x7e8] sm:$0xff]
    %v2777 = vld [vmem:[%s3 + $0x7f0] sm:$0xff]
    %v2778 = vld [vmem:[%s3 + $0x7f8] sm:$0xff]
    %2779 = vmatprep.subr.mxu0 %v2716
    %2780 = vmatpush1.msra.mxu0 %v2715
    %2781 = vmatprep.subr.mxu0 %v2718
    %2782 = vmatpush1.msra.mxu0 %v2717
    %2783 = vmatprep.subr.mxu0 %v2720
    %2784 = vmatpush1.msra.mxu0 %v2719
    %2785 = vmatprep.subr.mxu0 %v2722
    %2786 = vmatpush1.msra.mxu0 %v2721
    %2787 = vmatprep.subr.mxu0 %v2724
    %2788 = vmatpush1.msra.mxu0 %v2723
    %2789 = vmatprep.subr.mxu0 %v2726
    %2790 = vmatpush1.msra.mxu0 %v2725
    %2791 = vmatprep.subr.mxu0 %v2728
    %2792 = vmatpush1.msra.mxu0 %v2727
    %2793 = vmatprep.subr.mxu0 %v2730
    %2794 = vmatpush1.msra.mxu0 %v2729
    %2795 = vmatprep.subr.mxu0 %v2732
    %2796 = vmatpush1.msra.mxu0 %v2731
    %2797 = vmatprep.subr.mxu0 %v2734
    %2798 = vmatpush1.msra.mxu0 %v2733
    %2799 = vmatprep.subr.mxu0 %v2736
    %2800 = vmatpush1.msra.mxu0 %v2735
    %2801 = vmatprep.subr.mxu0 %v2738
    %2802 = vmatpush1.msra.mxu0 %v2737
    %2803 = vmatprep.subr.mxu0 %v2740
    %2804 = vmatpush1.msra.mxu0 %v2739
    %2805 = vmatprep.subr.mxu0 %v2742
    %2806 = vmatpush1.msra.mxu0 %v2741
    %2807 = vmatprep.subr.mxu0 %v2744
    %2808 = vmatpush1.msra.mxu0 %v2743
    %2809 = vmatprep.subr.mxu0 %v2746
    %2810 = vmatpush1.msra.mxu0 %v2745
    %2811 = vmatprep.subr.mxu0 %v2748
    %2812 = vmatpush1.msra.mxu0 %v2747
    %2813 = vmatprep.subr.mxu0 %v2750
    %2814 = vmatpush1.msra.mxu0 %v2749
    %2815 = vmatprep.subr.mxu0 %v2752
    %2816 = vmatpush1.msra.mxu0 %v2751
    %2817 = vmatprep.subr.mxu0 %v2754
    %2818 = vmatpush1.msra.mxu0 %v2753
    %2819 = vmatprep.subr.mxu0 %v2756
    %2820 = vmatpush1.msra.mxu0 %v2755
    %2821 = vmatprep.subr.mxu0 %v2758
    %2822 = vmatpush1.msra.mxu0 %v2757
    %2823 = vmatprep.subr.mxu0 %v2760
    %2824 = vmatpush1.msra.mxu0 %v2759
    %2825 = vmatprep.subr.mxu0 %v2762
    %2826 = vmatpush1.msra.mxu0 %v2761
    %2827 = vmatprep.subr.mxu0 %v2764
    %2828 = vmatpush1.msra.mxu0 %v2763
    %2829 = vmatprep.subr.mxu0 %v2766
    %2830 = vmatpush1.msra.mxu0 %v2765
    %2831 = vmatprep.subr.mxu0 %v2768
    %2832 = vmatpush1.msra.mxu0 %v2767
    %2833 = vmatprep.subr.mxu0 %v2770
    %2834 = vmatpush1.msra.mxu0 %v2769
    %2835 = vmatprep.subr.mxu0 %v2772
    %2836 = vmatpush1.msra.mxu0 %v2771
    %2837 = vmatprep.subr.mxu0 %v2774
    %2838 = vmatpush1.msra.mxu0 %v2773
    %2839 = vmatprep.subr.mxu0 %v2776
    %2840 = vmatpush1.msra.mxu0 %v2775
    %2841 = vmatprep.subr.mxu0 %v2778
    %2842 = vmatpush1.msra.mxu0 %v2777
    %2843 = vmatprep.mubr.f32.mxu0 %v2695
    %2844 = vmatmul.mubr.f32.gmra.mrb[0].mxu0 %v2693
    %v2845 = vpop.f32.mrb[0].mxu0
    %v2846 = vadd.f32 0.0, %v2845
    %v2847 = vpop.f32.mrb[0].mxu0
    %v2848 = vadd.f32 0.0, %v2847
    %2849 = vmatprep.mubr.f32.mxu0 %v2701
    %2850 = vmatmul.mubr.f32.gmra.mrb[0].mxu0 %v2699
    %v2851 = vpop.f32.mrb[0].mxu0
    %v2852 = vadd.f32 0.0, %v2851
    %v2853 = vpop.f32.mrb[0].mxu0
    %v2854 = vadd.f32 0.0, %v2853
    %2855 = vmatprep.mubr.f32.mxu0 %v2707
    %2856 = vmatmul.mubr.f32.gmra.mrb[0].mxu0 %v2705
    %v2857 = vpop.f32.mrb[0].mxu0
    %v2858 = vadd.f32 0.0, %v2857
    %v2859 = vpop.f32.mrb[0].mxu0
    %v2860 = vadd.f32 0.0, %v2859
    %2861 = vmatprep.mubr.f32.mxu0 %v2713
    %2862 = vmatmul.mubr.f32.gmra.mrb[0].mxu0 %v2711
    %v2863 = vpop.f32.mrb[0].mxu0
    %v2864 = vadd.f32 0.0, %v2863
    %v2865 = vpop.f32.mrb[0].mxu0
    %v2866 = vadd.f32 0.0, %v2865
    %2867 = vdwg.mxu0
    %v2868 = vadd.f32 %v2574, %v2846
    %v2869 = vadd.f32 %v2575, %v2848
    %v2870 = vadd.f32 %v2576, %v2852
    %v2871 = vadd.f32 %v2577, %v2854
    %v2872 = vadd.f32 %v2578, %v2858
    %v2873 = vadd.f32 %v2579, %v2860
    %v2874 = vadd.f32 %v2580, %v2864
    %v2875 = vadd.f32 %v2581, %v2866
    %v2876 = vadd.s32 %v113, 64
    %v2877 = vadd.s32 %v113, 72
    %v2878 = vadd.s32 %v113, 80
    %v2879 = vadd.s32 %v113, 88
    %v2880 = vadd.s32 %v113, 96
    %v2881 = vadd.s32 %v113, 104
    %v2882 = vadd.s32 %v113, 112
    %v2883 = vadd.s32 %v113, 120
    %v2884 = vadd.s32 %v113, 128
    %v2885 = vadd.s32 %v113, 136
    %v2886 = vadd.s32 %v113, 144
    %v2887 = vadd.s32 %v113, 152
    %v2888 = vadd.s32 %v113, 160
    %v2889 = vadd.s32 %v113, 168
    %v2890 = vadd.s32 %v113, 176
    %v2891 = vadd.s32 %v113, 184
    %v2892 = vadd.s32 %v113, 192
    %v2893 = vadd.s32 %v113, 200
    %v2894 = vadd.s32 %v113, 208
    %v2895 = vadd.s32 %v113, 216
    %v2896 = vadd.s32 %v113, 224
    %v2897 = vadd.s32 %v113, 232
    %v2898 = vadd.s32 %v113, 240
    %v2899 = vadd.s32 %v113, 248
    %v2900 = vand.u32 %v117, 15
    %v2901 = vand.u32 %v118, 15
    %v2902 = vand.u32 %v119, 15
    %v2903 = vand.u32 %v120, 15
    %v2904 = vand.u32 %v2876, 15
    %v2905 = vand.u32 %v2877, 15
    %v2906 = vand.u32 %v2878, 15
    %v2907 = vand.u32 %v2879, 15
    %v2908 = vand.u32 %v2880, 15
    %v2909 = vand.u32 %v2881, 15
    %v2910 = vand.u32 %v2882, 15
    %v2911 = vand.u32 %v2883, 15
    %v2912 = vand.u32 %v2884, 15
    %v2913 = vand.u32 %v2885, 15
    %v2914 = vand.u32 %v2886, 15
    %v2915 = vand.u32 %v2887, 15
    %v2916 = vand.u32 %v2888, 15
    %v2917 = vand.u32 %v2889, 15
    %v2918 = vand.u32 %v2890, 15
    %v2919 = vand.u32 %v2891, 15
    %v2920 = vand.u32 %v2892, 15
    %v2921 = vand.u32 %v2893, 15
    %v2922 = vand.u32 %v2894, 15
    %v2923 = vand.u32 %v2895, 15
    %v2924 = vand.u32 %v2896, 15
    %v2925 = vand.u32 %v2897, 15
    %v2926 = vand.u32 %v2898, 15
    %v2927 = vand.u32 %v2899, 15
    %vm2928 = vcmp.eq.s32.totalorder %v1708, %v122
    %vm2929 = vcmp.eq.s32.totalorder %v1709, %v122
    %vm2930 = vcmp.eq.s32.totalorder %v1710, %v122
    %vm2931 = vcmp.eq.s32.totalorder %v1711, %v122
    %vm2932 = vcmp.eq.s32.totalorder %v2900, %v122
    %vm2933 = vcmp.eq.s32.totalorder %v2901, %v122
    %vm2934 = vcmp.eq.s32.totalorder %v2902, %v122
    %vm2935 = vcmp.eq.s32.totalorder %v2903, %v122
    %vm2936 = vcmp.eq.s32.totalorder %v2904, %v122
    %vm2937 = vcmp.eq.s32.totalorder %v2905, %v122
    %vm2938 = vcmp.eq.s32.totalorder %v2906, %v122
    %vm2939 = vcmp.eq.s32.totalorder %v2907, %v122
    %vm2940 = vcmp.eq.s32.totalorder %v2908, %v122
    %vm2941 = vcmp.eq.s32.totalorder %v2909, %v122
    %vm2942 = vcmp.eq.s32.totalorder %v2910, %v122
    %vm2943 = vcmp.eq.s32.totalorder %v2911, %v122
    %vm2944 = vcmp.eq.s32.totalorder %v2912, %v122
    %vm2945 = vcmp.eq.s32.totalorder %v2913, %v122
    %vm2946 = vcmp.eq.s32.totalorder %v2914, %v122
    %vm2947 = vcmp.eq.s32.totalorder %v2915, %v122
    %vm2948 = vcmp.eq.s32.totalorder %v2916, %v122
    %vm2949 = vcmp.eq.s32.totalorder %v2917, %v122
    %vm2950 = vcmp.eq.s32.totalorder %v2918, %v122
    %vm2951 = vcmp.eq.s32.totalorder %v2919, %v122
    %vm2952 = vcmp.eq.s32.totalorder %v2920, %v122
    %vm2953 = vcmp.eq.s32.totalorder %v2921, %v122
    %vm2954 = vcmp.eq.s32.totalorder %v2922, %v122
    %vm2955 = vcmp.eq.s32.totalorder %v2923, %v122
    %vm2956 = vcmp.eq.s32.totalorder %v2924, %v122
    %vm2957 = vcmp.eq.s32.totalorder %v2925, %v122
    %vm2958 = vcmp.eq.s32.totalorder %v2926, %v122
    %vm2959 = vcmp.eq.s32.totalorder %v2927, %v122
    %v2960 = vsel %vm2928, 1.0, 0.0
    %v2961 = vsel %vm2929, 1.0, 0.0
    %v2962 = vsel %vm2930, 1.0, 0.0
    %v2963 = vsel %vm2931, 1.0, 0.0
    %v2964 = vsel %vm2932, 1.0, 0.0
    %v2965 = vsel %vm2933, 1.0, 0.0
    %v2966 = vsel %vm2934, 1.0, 0.0
    %v2967 = vsel %vm2935, 1.0, 0.0
    %v2968 = vsel %vm2936, 1.0, 0.0
    %v2969 = vsel %vm2937, 1.0, 0.0
    %v2970 = vsel %vm2938, 1.0, 0.0
    %v2971 = vsel %vm2939, 1.0, 0.0
    %v2972 = vsel %vm2940, 1.0, 0.0
    %v2973 = vsel %vm2941, 1.0, 0.0
    %v2974 = vsel %vm2942, 1.0, 0.0
    %v2975 = vsel %vm2943, 1.0, 0.0
    %v2976 = vsel %vm2944, 1.0, 0.0
    %v2977 = vsel %vm2945, 1.0, 0.0
    %v2978 = vsel %vm2946, 1.0, 0.0
    %v2979 = vsel %vm2947, 1.0, 0.0
    %v2980 = vsel %vm2948, 1.0, 0.0
    %v2981 = vsel %vm2949, 1.0, 0.0
    %v2982 = vsel %vm2950, 1.0, 0.0
    %v2983 = vsel %vm2951, 1.0, 0.0
    %v2984 = vsel %vm2952, 1.0, 0.0
    %v2985 = vsel %vm2953, 1.0, 0.0
    %v2986 = vsel %vm2954, 1.0, 0.0
    %v2987 = vsel %vm2955, 1.0, 0.0
    %v2988 = vsel %vm2956, 1.0, 0.0
    %v2989 = vsel %vm2957, 1.0, 0.0
    %v2990 = vsel %vm2958, 1.0, 0.0
    %v2991 = vsel %vm2959, 1.0, 0.0
    %v2992 = vadd.s32 %v122, 128
    %v2993 = vand.u32 %v122, 15
    %v2994 = vand.u32 %v2992, 15
    %vm2995 = vcmp.eq.s32.totalorder %v2993, %v113
    %vm2996 = vcmp.eq.s32.totalorder %v2994, %v113
    %vm2997 = vcmp.eq.s32.totalorder %v2993, %v114
    %vm2998 = vcmp.eq.s32.totalorder %v2994, %v114
    %v2999 = vsel %vm2995, 1.0, 0.0
    %v3000 = vsel %vm2996, 1.0, 0.0
    %v3001 = vsel %vm2997, 1.0, 0.0
    %v3002 = vsel %vm2998, 1.0, 0.0
    %v3003 = vld [vmem:[%s4] sm:$0x3]
    %v3004 = vadd.f32 %v2868, %v2870
    %v3005 = vadd.f32 %v3004, %v2872
    %v3006 = vadd.f32 %v3005, %v2874
    %v3007 = vrot.slane %v3006, 4
    %v3008 = vadd.f32 %v3006, %v3007
    %v3009 = vrot.slane %v3008, 2
    %v3010 = vadd.f32 %v3008, %v3009
    %v3011 = vrot.slane %v3010, 1
    %v3012 = vadd.f32 %v3010, %v3011
    %v3013 = vadd.f32 %v2869, %v2871
    %v3014 = vadd.f32 %v3013, %v2873
    %v3015 = vadd.f32 %v3014, %v2875
    %v3016 = vrot.slane %v3015, 4
    %v3017 = vadd.f32 %v3015, %v3016
    %v3018 = vrot.slane %v3017, 2
    %v3019 = vadd.f32 %v3017, %v3018
    %v3020 = vrot.slane %v3019, 1
    %v3021 = vadd.f32 %v3019, %v3020
    %3022 = vmatprep.subr.mxu0 0.0
    %3023 = vmatpush1.msra.mxu0 %v2960
    %3024 = vmatprep.subr.mxu0 0.0
    %3025 = vmatpush1.msra.mxu0 %v2961
    %3026 = vmatprep.subr.mxu0 0.0
    %3027 = vmatpush1.msra.mxu0 %v2962
    %3028 = vmatprep.subr.mxu0 0.0
    %3029 = vmatpush1.msra.mxu0 %v2963
    %3030 = vmatprep.subr.mxu0 0.0
    %3031 = vmatpush1.msra.mxu0 %v2964
    %3032 = vmatprep.subr.mxu0 0.0
    %3033 = vmatpush1.msra.mxu0 %v2965
    %3034 = vmatprep.subr.mxu0 0.0
    %3035 = vmatpush1.msra.mxu0 %v2966
    %3036 = vmatprep.subr.mxu0 0.0
    %3037 = vmatpush1.msra.mxu0 %v2967
    %3038 = vmatprep.subr.mxu0 0.0
    %3039 = vmatpush1.msra.mxu0 %v2968
    %3040 = vmatprep.subr.mxu0 0.0
    %3041 = vmatpush1.msra.mxu0 %v2969
    %3042 = vmatprep.subr.mxu0 0.0
    %3043 = vmatpush1.msra.mxu0 %v2970
    %3044 = vmatprep.subr.mxu0 0.0
    %3045 = vmatpush1.msra.mxu0 %v2971
    %3046 = vmatprep.subr.mxu0 0.0
    %3047 = vmatpush1.msra.mxu0 %v2972
    %3048 = vmatprep.subr.mxu0 0.0
    %3049 = vmatpush1.msra.mxu0 %v2973
    %3050 = vmatprep.subr.mxu0 0.0
    %3051 = vmatpush1.msra.mxu0 %v2974
    %3052 = vmatprep.subr.mxu0 0.0
    %3053 = vmatpush1.msra.mxu0 %v2975
    %3054 = vmatprep.subr.mxu0 0.0
    %3055 = vmatpush1.msra.mxu0 %v2976
    %3056 = vmatprep.subr.mxu0 0.0
    %3057 = vmatpush1.msra.mxu0 %v2977
    %3058 = vmatprep.subr.mxu0 0.0
    %3059 = vmatpush1.msra.mxu0 %v2978
    %3060 = vmatprep.subr.mxu0 0.0
    %3061 = vmatpush1.msra.mxu0 %v2979
    %3062 = vmatprep.subr.mxu0 0.0
    %3063 = vmatpush1.msra.mxu0 %v2980
    %3064 = vmatprep.subr.mxu0 0.0
    %3065 = vmatpush1.msra.mxu0 %v2981
    %3066 = vmatprep.subr.mxu0 0.0
    %3067 = vmatpush1.msra.mxu0 %v2982
    %3068 = vmatprep.subr.mxu0 0.0
    %3069 = vmatpush1.msra.mxu0 %v2983
    %3070 = vmatprep.subr.mxu0 0.0
    %3071 = vmatpush1.msra.mxu0 %v2984
    %3072 = vmatprep.subr.mxu0 0.0
    %3073 = vmatpush1.msra.mxu0 %v2985
    %3074 = vmatprep.subr.mxu0 0.0
    %3075 = vmatpush1.msra.mxu0 %v2986
    %3076 = vmatprep.subr.mxu0 0.0
    %3077 = vmatpush1.msra.mxu0 %v2987
    %3078 = vmatprep.subr.mxu0 0.0
    %3079 = vmatpush1.msra.mxu0 %v2988
    %3080 = vmatprep.subr.mxu0 0.0
    %3081 = vmatpush1.msra.mxu0 %v2989
    %3082 = vmatprep.subr.mxu0 0.0
    %3083 = vmatpush1.msra.mxu0 %v2990
    %3084 = vmatprep.subr.mxu0 0.0
    %3085 = vmatpush1.msra.mxu0 %v2991
    %3086 = vmatprep.mubr.f32.mxu0 %v3021
    %3087 = vmatmul.mubr.f32.gmra.mrb[0].mxu0 %v3012
    %v3088 = vpop.f32.mrb[0].mxu0
    %v3089 = vadd.f32 0.0, %v3088
    %v3090 = vpop.f32.mrb[0].mxu0
    %3091 = vdwg.mxu0
    %v3092 = vmul.f32 %v3089, 0.001953125
    %vm3093 = vcmask 130048
    %v3095 = vsel %vm3093, %v3092, 0
    %3097 = vmatprep.subr.mxu0 %v3000
    %3098 = vmatpush1.msra.mxu0 %v2999
    %3099 = vmatprep.subr.mxu0 %v3002
    %3100 = vmatpush1.msra.mxu0 %v3001
    %3101 = vmatprep.subr.mxu0 0.0
    %3102 = vmatpush1.msra.mxu0 0.0
    %3103 = vmatprep.subr.mxu0 0.0
    %3104 = vmatpush1.msra.mxu0 0.0
    %3105 = vmatprep.subr.mxu0 0.0
    %3106 = vmatpush1.msra.mxu0 0.0
    %3107 = vmatprep.subr.mxu0 0.0
    %3108 = vmatpush1.msra.mxu0 0.0
    %3109 = vmatprep.subr.mxu0 0.0
    %3110 = vmatpush1.msra.mxu0 0.0
    %3111 = vmatprep.subr.mxu0 0.0
    %3112 = vmatpush1.msra.mxu0 0.0
    %3113 = vmatprep.subr.mxu0 0.0
    %3114 = vmatpush1.msra.mxu0 0.0
    %3115 = vmatprep.subr.mxu0 0.0
    %3116 = vmatpush1.msra.mxu0 0.0
    %3117 = vmatprep.subr.mxu0 0.0
    %3118 = vmatpush1.msra.mxu0 0.0
    %3119 = vmatprep.subr.mxu0 0.0
    %3120 = vmatpush1.msra.mxu0 0.0
    %3121 = vmatprep.subr.mxu0 0.0
    %3122 = vmatpush1.msra.mxu0 0.0
    %3123 = vmatprep.subr.mxu0 0.0
    %3124 = vmatpush1.msra.mxu0 0.0
    %3125 = vmatprep.subr.mxu0 0.0
    %3126 = vmatpush1.msra.mxu0 0.0
    %3127 = vmatprep.subr.mxu0 0.0
    %3128 = vmatpush1.msra.mxu0 0.0
    %3129 = vmatprep.subr.mxu0 0.0
    %3130 = vmatpush1.msra.mxu0 0.0
    %3131 = vmatprep.subr.mxu0 0.0
    %3132 = vmatpush1.msra.mxu0 0.0
    %3133 = vmatprep.subr.mxu0 0.0
    %3134 = vmatpush1.msra.mxu0 0.0
    %3135 = vmatprep.subr.mxu0 0.0
    %3136 = vmatpush1.msra.mxu0 0.0
    %3137 = vmatprep.subr.mxu0 0.0
    %3138 = vmatpush1.msra.mxu0 0.0
    %3139 = vmatprep.subr.mxu0 0.0
    %3140 = vmatpush1.msra.mxu0 0.0
    %3141 = vmatprep.subr.mxu0 0.0
    %3142 = vmatpush1.msra.mxu0 0.0
    %3143 = vmatprep.subr.mxu0 0.0
    %3144 = vmatpush1.msra.mxu0 0.0
    %3145 = vmatprep.subr.mxu0 0.0
    %3146 = vmatpush1.msra.mxu0 0.0
    %3147 = vmatprep.subr.mxu0 0.0
    %3148 = vmatpush1.msra.mxu0 0.0
    %3149 = vmatprep.subr.mxu0 0.0
    %3150 = vmatpush1.msra.mxu0 0.0
    %3151 = vmatprep.subr.mxu0 0.0
    %3152 = vmatpush1.msra.mxu0 0.0
    %3153 = vmatprep.subr.mxu0 0.0
    %3154 = vmatpush1.msra.mxu0 0.0
    %3155 = vmatprep.subr.mxu0 0.0
    %3156 = vmatpush1.msra.mxu0 0.0
    %3157 = vmatprep.subr.mxu0 0.0
    %3158 = vmatpush1.msra.mxu0 0.0
    %3159 = vmatprep.subr.mxu0 0.0
    %3160 = vmatpush1.msra.mxu0 0.0
    %3161 = vmatprep.mubr.f32.mxu0 0.0
    %3162 = vmatmul.mubr.f32.gmra.mrb[0].mxu0 %v3095
    %v3163 = vpop.f32.mrb[0].mxu0
    %v3164 = vadd.f32 0.0, %v3163
    %v3165 = vpop.f32.mrb[0].mxu0
    %v3166 = vadd.f32 0.0, %v3165
    %3167 = vdwg.mxu0
    %v3168 = vlaneseq
    %v3169 = vshrl.u32 %v3168, 7
    %v3170 = vsub.s32 0, %v3169
    %v3171 = vrot.slane %v3164, %v3170
    %v3172 = vlaneseq
    %v3173 = vshrl.u32 %v3172, 7
    %v3174 = vsub.s32 0, %v3173
    %v3175 = vrot.slane %v3166, %v3174
    %v3176 = vsub.f32 %v2868, %v3171
    %v3177 = vsub.f32 %v2869, %v3175
    %v3178 = vsub.f32 %v2870, %v3171
    %v3179 = vsub.f32 %v2871, %v3175
    %v3180 = vsub.f32 %v2872, %v3171
    %v3181 = vsub.f32 %v2873, %v3175
    %v3182 = vsub.f32 %v2874, %v3171
    %v3183 = vsub.f32 %v2875, %v3175
    %v3184 = vmul.f32 %v3176, %v3176
    %v3185 = vmul.f32 %v3177, %v3177
    %v3186 = vmul.f32 %v3178, %v3178
    %v3187 = vmul.f32 %v3179, %v3179
    %v3188 = vmul.f32 %v3180, %v3180
    %v3189 = vmul.f32 %v3181, %v3181
    %v3190 = vmul.f32 %v3182, %v3182
    %v3191 = vmul.f32 %v3183, %v3183
    %v3192 = vadd.f32 %v3184, %v3186
    %v3193 = vadd.f32 %v3192, %v3188
    %v3194 = vadd.f32 %v3193, %v3190
    %v3195 = vrot.slane %v3194, 4
    %v3196 = vadd.f32 %v3194, %v3195
    %v3197 = vrot.slane %v3196, 2
    %v3198 = vadd.f32 %v3196, %v3197
    %v3199 = vrot.slane %v3198, 1
    %v3200 = vadd.f32 %v3198, %v3199
    %v3201 = vadd.f32 %v3185, %v3187
    %v3202 = vadd.f32 %v3201, %v3189
    %v3203 = vadd.f32 %v3202, %v3191
    %v3204 = vrot.slane %v3203, 4
    %v3205 = vadd.f32 %v3203, %v3204
    %v3206 = vrot.slane %v3205, 2
    %v3207 = vadd.f32 %v3205, %v3206
    %v3208 = vrot.slane %v3207, 1
    %v3209 = vadd.f32 %v3207, %v3208
    %3210 = vmatprep.subr.mxu0 0.0
    %3211 = vmatpush1.msra.mxu0 %v2960
    %3212 = vmatprep.subr.mxu0 0.0
    %3213 = vmatpush1.msra.mxu0 %v2961
    %3214 = vmatprep.subr.mxu0 0.0
    %3215 = vmatpush1.msra.mxu0 %v2962
    %3216 = vmatprep.subr.mxu0 0.0
    %3217 = vmatpush1.msra.mxu0 %v2963
    %3218 = vmatprep.subr.mxu0 0.0
    %3219 = vmatpush1.msra.mxu0 %v2964
    %3220 = vmatprep.subr.mxu0 0.0
    %3221 = vmatpush1.msra.mxu0 %v2965
    %3222 = vmatprep.subr.mxu0 0.0
    %3223 = vmatpush1.msra.mxu0 %v2966
    %3224 = vmatprep.subr.mxu0 0.0
    %3225 = vmatpush1.msra.mxu0 %v2967
    %3226 = vmatprep.subr.mxu0 0.0
    %3227 = vmatpush1.msra.mxu0 %v2968
    %3228 = vmatprep.subr.mxu0 0.0
    %3229 = vmatpush1.msra.mxu0 %v2969
    %3230 = vmatprep.subr.mxu0 0.0
    %3231 = vmatpush1.msra.mxu0 %v2970
    %3232 = vmatprep.subr.mxu0 0.0
    %3233 = vmatpush1.msra.mxu0 %v2971
    %3234 = vmatprep.subr.mxu0 0.0
    %3235 = vmatpush1.msra.mxu0 %v2972
    %3236 = vmatprep.subr.mxu0 0.0
    %3237 = vmatpush1.msra.mxu0 %v2973
    %3238 = vmatprep.subr.mxu0 0.0
    %3239 = vmatpush1.msra.mxu0 %v2974
    %3240 = vmatprep.subr.mxu0 0.0
    %3241 = vmatpush1.msra.mxu0 %v2975
    %3242 = vmatprep.subr.mxu0 0.0
    %3243 = vmatpush1.msra.mxu0 %v2976
    %3244 = vmatprep.subr.mxu0 0.0
    %3245 = vmatpush1.msra.mxu0 %v2977
    %3246 = vmatprep.subr.mxu0 0.0
    %3247 = vmatpush1.msra.mxu0 %v2978
    %3248 = vmatprep.subr.mxu0 0.0
    %3249 = vmatpush1.msra.mxu0 %v2979
    %3250 = vmatprep.subr.mxu0 0.0
    %3251 = vmatpush1.msra.mxu0 %v2980
    %3252 = vmatprep.subr.mxu0 0.0
    %3253 = vmatpush1.msra.mxu0 %v2981
    %3254 = vmatprep.subr.mxu0 0.0
    %3255 = vmatpush1.msra.mxu0 %v2982
    %3256 = vmatprep.subr.mxu0 0.0
    %3257 = vmatpush1.msra.mxu0 %v2983
    %3258 = vmatprep.subr.mxu0 0.0
    %3259 = vmatpush1.msra.mxu0 %v2984
    %3260 = vmatprep.subr.mxu0 0.0
    %3261 = vmatpush1.msra.mxu0 %v2985
    %3262 = vmatprep.subr.mxu0 0.0
    %3263 = vmatpush1.msra.mxu0 %v2986
    %3264 = vmatprep.subr.mxu0 0.0
    %3265 = vmatpush1.msra.mxu0 %v2987
    %3266 = vmatprep.subr.mxu0 0.0
    %3267 = vmatpush1.msra.mxu0 %v2988
    %3268 = vmatprep.subr.mxu0 0.0
    %3269 = vmatpush1.msra.mxu0 %v2989
    %3270 = vmatprep.subr.mxu0 0.0
    %3271 = vmatpush1.msra.mxu0 %v2990
    %3272 = vmatprep.subr.mxu0 0.0
    %3273 = vmatpush1.msra.mxu0 %v2991
    %3274 = vmatprep.mubr.f32.mxu0 %v3209
    %3275 = vmatmul.mubr.f32.gmra.mrb[0].mxu0 %v3200
    %v3276 = vpop.f32.mrb[0].mxu0
    %v3277 = vadd.f32 0.0, %v3276
    %v3278 = vpop.f32.mrb[0].mxu0
    %3279 = vdwg.mxu0
    %v3280 = vmul.f32 %v3277, 0.001953125
    %v3281 = vadd.f32 %v3280, 1e-05
    %v3282 = vrsqrt.pop %v3281
    %v3283 = vmul.f32 %v3003, %v3282
    %v3285 = vsel %vm3093, %v3283, 0
    %3287 = vmatprep.subr.mxu0 %v3000
    %3288 = vmatpush1.msra.mxu0 %v2999
    %3289 = vmatprep.subr.mxu0 %v3002
    %3290 = vmatpush1.msra.mxu0 %v3001
    %3291 = vmatprep.subr.mxu0 0.0
    %3292 = vmatpush1.msra.mxu0 0.0
    %3293 = vmatprep.subr.mxu0 0.0
    %3294 = vmatpush1.msra.mxu0 0.0
    %3295 = vmatprep.subr.mxu0 0.0
    %3296 = vmatpush1.msra.mxu0 0.0
    %3297 = vmatprep.subr.mxu0 0.0
    %3298 = vmatpush1.msra.mxu0 0.0
    %3299 = vmatprep.subr.mxu0 0.0
    %3300 = vmatpush1.msra.mxu0 0.0
    %3301 = vmatprep.subr.mxu0 0.0
    %3302 = vmatpush1.msra.mxu0 0.0
    %3303 = vmatprep.subr.mxu0 0.0
    %3304 = vmatpush1.msra.mxu0 0.0
    %3305 = vmatprep.subr.mxu0 0.0
    %3306 = vmatpush1.msra.mxu0 0.0
    %3307 = vmatprep.subr.mxu0 0.0
    %3308 = vmatpush1.msra.mxu0 0.0
    %3309 = vmatprep.subr.mxu0 0.0
    %3310 = vmatpush1.msra.mxu0 0.0
    %3311 = vmatprep.subr.mxu0 0.0
    %3312 = vmatpush1.msra.mxu0 0.0
    %3313 = vmatprep.subr.mxu0 0.0
    %3314 = vmatpush1.msra.mxu0 0.0
    %3315 = vmatprep.subr.mxu0 0.0
    %3316 = vmatpush1.msra.mxu0 0.0
    %3317 = vmatprep.subr.mxu0 0.0
    %3318 = vmatpush1.msra.mxu0 0.0
    %3319 = vmatprep.subr.mxu0 0.0
    %3320 = vmatpush1.msra.mxu0 0.0
    %3321 = vmatprep.subr.mxu0 0.0
    %3322 = vmatpush1.msra.mxu0 0.0
    %3323 = vmatprep.subr.mxu0 0.0
    %3324 = vmatpush1.msra.mxu0 0.0
    %3325 = vmatprep.subr.mxu0 0.0
    %3326 = vmatpush1.msra.mxu0 0.0
    %3327 = vmatprep.subr.mxu0 0.0
    %3328 = vmatpush1.msra.mxu0 0.0
    %3329 = vmatprep.subr.mxu0 0.0
    %3330 = vmatpush1.msra.mxu0 0.0
    %3331 = vmatprep.subr.mxu0 0.0
    %3332 = vmatpush1.msra.mxu0 0.0
    %3333 = vmatprep.subr.mxu0 0.0
    %3334 = vmatpush1.msra.mxu0 0.0
    %3335 = vmatprep.subr.mxu0 0.0
    %3336 = vmatpush1.msra.mxu0 0.0
    %3337 = vmatprep.subr.mxu0 0.0
    %3338 = vmatpush1.msra.mxu0 0.0
    %3339 = vmatprep.subr.mxu0 0.0
    %3340 = vmatpush1.msra.mxu0 0.0
    %3341 = vmatprep.subr.mxu0 0.0
    %3342 = vmatpush1.msra.mxu0 0.0
    %3343 = vmatprep.subr.mxu0 0.0
    %3344 = vmatpush1.msra.mxu0 0.0
    %3345 = vmatprep.subr.mxu0 0.0
    %3346 = vmatpush1.msra.mxu0 0.0
    %3347 = vmatprep.subr.mxu0 0.0
    %3348 = vmatpush1.msra.mxu0 0.0
    %3349 = vmatprep.subr.mxu0 0.0
    %3350 = vmatpush1.msra.mxu0 0.0
    %3351 = vmatprep.mubr.f32.mxu0 0.0
    %3352 = vmatmul.mubr.f32.gmra.mrb[0].mxu0 %v3285
    %v3353 = vpop.f32.mrb[0].mxu0
    %v3354 = vadd.f32 0.0, %v3353
    %v3355 = vpop.f32.mrb[0].mxu0
    %v3356 = vadd.f32 0.0, %v3355
    %3357 = vdwg.mxu0
    %v3358 = vlaneseq
    %v3359 = vshrl.u32 %v3358, 7
    %v3360 = vsub.s32 0, %v3359
    %v3361 = vrot.slane %v3354, %v3360
    %v3362 = vlaneseq
    %v3363 = vshrl.u32 %v3362, 7
    %v3364 = vsub.s32 0, %v3363
    %v3365 = vrot.slane %v3356, %v3364
    %v3366 = vmul.f32 %v3176, %v3361
    %v3367 = vmul.f32 %v3177, %v3365
    %v3368 = vmul.f32 %v3178, %v3361
    %v3369 = vmul.f32 %v3179, %v3365
    %v3370 = vmul.f32 %v3180, %v3361
    %v3371 = vmul.f32 %v3181, %v3365
    %v3372 = vmul.f32 %v3182, %v3361
    %v3373 = vmul.f32 %v3183, %v3365
    %v3375 = vrot.slane %v3003, 1
    %v3376 = vsel %vm3093, %v3375, 0
    %3378 = vmatprep.subr.mxu0 %v3000
    %3379 = vmatpush1.msra.mxu0 %v2999
    %3380 = vmatprep.subr.mxu0 %v3002
    %3381 = vmatpush1.msra.mxu0 %v3001
    %3382 = vmatprep.subr.mxu0 0.0
    %3383 = vmatpush1.msra.mxu0 0.0
    %3384 = vmatprep.subr.mxu0 0.0
    %3385 = vmatpush1.msra.mxu0 0.0
    %3386 = vmatprep.subr.mxu0 0.0
    %3387 = vmatpush1.msra.mxu0 0.0
    %3388 = vmatprep.subr.mxu0 0.0
    %3389 = vmatpush1.msra.mxu0 0.0
    %3390 = vmatprep.subr.mxu0 0.0
    %3391 = vmatpush1.msra.mxu0 0.0
    %3392 = vmatprep.subr.mxu0 0.0
    %3393 = vmatpush1.msra.mxu0 0.0
    %3394 = vmatprep.subr.mxu0 0.0
    %3395 = vmatpush1.msra.mxu0 0.0
    %3396 = vmatprep.subr.mxu0 0.0
    %3397 = vmatpush1.msra.mxu0 0.0
    %3398 = vmatprep.subr.mxu0 0.0
    %3399 = vmatpush1.msra.mxu0 0.0
    %3400 = vmatprep.subr.mxu0 0.0
    %3401 = vmatpush1.msra.mxu0 0.0
    %3402 = vmatprep.subr.mxu0 0.0
    %3403 = vmatpush1.msra.mxu0 0.0
    %3404 = vmatprep.subr.mxu0 0.0
    %3405 = vmatpush1.msra.mxu0 0.0
    %3406 = vmatprep.subr.mxu0 0.0
    %3407 = vmatpush1.msra.mxu0 0.0
    %3408 = vmatprep.subr.mxu0 0.0
    %3409 = vmatpush1.msra.mxu0 0.0
    %3410 = vmatprep.subr.mxu0 0.0
    %3411 = vmatpush1.msra.mxu0 0.0
    %3412 = vmatprep.subr.mxu0 0.0
    %3413 = vmatpush1.msra.mxu0 0.0
    %3414 = vmatprep.subr.mxu0 0.0
    %3415 = vmatpush1.msra.mxu0 0.0
    %3416 = vmatprep.subr.mxu0 0.0
    %3417 = vmatpush1.msra.mxu0 0.0
    %3418 = vmatprep.subr.mxu0 0.0
    %3419 = vmatpush1.msra.mxu0 0.0
    %3420 = vmatprep.subr.mxu0 0.0
    %3421 = vmatpush1.msra.mxu0 0.0
    %3422 = vmatprep.subr.mxu0 0.0
    %3423 = vmatpush1.msra.mxu0 0.0
    %3424 = vmatprep.subr.mxu0 0.0
    %3425 = vmatpush1.msra.mxu0 0.0
    %3426 = vmatprep.subr.mxu0 0.0
    %3427 = vmatpush1.msra.mxu0 0.0
    %3428 = vmatprep.subr.mxu0 0.0
    %3429 = vmatpush1.msra.mxu0 0.0
    %3430 = vmatprep.subr.mxu0 0.0
    %3431 = vmatpush1.msra.mxu0 0.0
    %3432 = vmatprep.subr.mxu0 0.0
    %3433 = vmatpush1.msra.mxu0 0.0
    %3434 = vmatprep.subr.mxu0 0.0
    %3435 = vmatpush1.msra.mxu0 0.0
    %3436 = vmatprep.subr.mxu0 0.0
    %3437 = vmatpush1.msra.mxu0 0.0
    %3438 = vmatprep.subr.mxu0 0.0
    %3439 = vmatpush1.msra.mxu0 0.0
    %3440 = vmatprep.subr.mxu0 0.0
    %3441 = vmatpush1.msra.mxu0 0.0
    %3442 = vmatprep.mubr.f32.mxu0 0.0
    %3443 = vmatmul.mubr.f32.gmra.mrb[0].mxu0 %v3376
    %v3444 = vpop.f32.mrb[0].mxu0
    %v3445 = vadd.f32 0.0, %v3444
    %v3446 = vpop.f32.mrb[0].mxu0
    %v3447 = vadd.f32 0.0, %v3446
    %3448 = vdwg.mxu0
    %v3449 = vlaneseq
    %v3450 = vshrl.u32 %v3449, 7
    %v3451 = vsub.s32 0, %v3450
    %v3452 = vrot.slane %v3445, %v3451
    %v3453 = vlaneseq
    %v3454 = vshrl.u32 %v3453, 7
    %v3455 = vsub.s32 0, %v3454
    %v3456 = vrot.slane %v3447, %v3455
    %v3457 = vadd.f32 %v3366, %v3452
    %v3458 = vadd.f32 %v3367, %v3456
    %v3459 = vadd.f32 %v3368, %v3452
    %v3460 = vadd.f32 %v3369, %v3456
    %v3461 = vadd.f32 %v3370, %v3452
    %v3462 = vadd.f32 %v3371, %v3456
    %v3463 = vadd.f32 %v3372, %v3452
    %v3464 = vadd.f32 %v3373, %v3456
    %vm3465 = vcmp.gt.f32.partialorder %v3457, 0.0
    %vm3466 = vcmp.gt.f32.partialorder %v3458, 0.0
    %vm3467 = vcmp.gt.f32.partialorder %v3459, 0.0
    %vm3468 = vcmp.gt.f32.partialorder %v3460, 0.0
    %vm3469 = vcmp.gt.f32.partialorder %v3461, 0.0
    %vm3470 = vcmp.gt.f32.partialorder %v3462, 0.0
    %vm3471 = vcmp.gt.f32.partialorder %v3463, 0.0
    %vm3472 = vcmp.gt.f32.partialorder %v3464, 0.0
    %v3473 = vmul.f32 %v3457, 0.2
    %v3474 = vmul.f32 %v3458, 0.2
    %v3475 = vmul.f32 %v3459, 0.2
    %v3476 = vmul.f32 %v3460, 0.2
    %v3477 = vmul.f32 %v3461, 0.2
    %v3478 = vmul.f32 %v3462, 0.2
    %v3479 = vmul.f32 %v3463, 0.2
    %v3480 = vmul.f32 %v3464, 0.2
    %v3481 = vsel %vm3465, %v3457, %v3473
    %v3482 = vsel %vm3466, %v3458, %v3474
    %v3483 = vsel %vm3467, %v3459, %v3475
    %v3484 = vsel %vm3468, %v3460, %v3476
    %v3485 = vsel %vm3469, %v3461, %v3477
    %v3486 = vsel %vm3470, %v3462, %v3478
    %v3487 = vsel %vm3471, %v3463, %v3479
    %v3488 = vsel %vm3472, %v3464, %v3480
    %v3489 = vshra.s32 %v113, 3
    %v3490 = vshra.s32 %v114, 3
    %v3491 = vand.u32 %v113, 7
    %v3492 = vand.u32 %v114, 7
    %v3493 = vmul.u32 %v3491, 2
    %v3494 = vmul.u32 %v3492, 2
    %v3495 = vadd.s32 %v3493, 4294967295
    %v3496 = vadd.s32 %v3494, 4294967295
    %v3497 = vmul.u32 %v3489, 16
    %v3498 = vmul.u32 %v3490, 16
    %v3499 = vadd.s32 %v3497, %v3495
    %v3500 = vadd.s32 %v3498, %v3496
    %vm3501 = vcmp.eq.s32.totalorder %v122, %v3499
    %vm3502 = vcmp.eq.s32.totalorder %v122, %v3500
    %vm3503 = vcmp.ge.s32.totalorder %v3495, 0
    %vm3504 = vcmp.ge.s32.totalorder %v3496, 0
    %vm3505 = vmand %vm3501, %vm3503
    %vm3506 = vmand %vm3502, %vm3504
    %vm3507 = vcmp.lt.s32.totalorder %v3495, 16
    %vm3508 = vcmp.lt.s32.totalorder %v3496, 16
    %vm3509 = vmand %vm3505, %vm3507
    %vm3510 = vmand %vm3506, %vm3508
    %v3511 = vsel %vm3509, 1.0, 0.0
    %v3512 = vsel %vm3510, 1.0, 0.0
    %vm3513 = vcmask 261120
    %v3515 = vsel %vm3513, %v3511, 0
    %v3518 = vsel %vm3513, %v3512, 0
    %3520 = vmatprep.subr.mxu0 %v3482
    %3521 = vmatpush1.msra.mxu0 %v3481
    %3522 = vmatprep.subr.mxu0 %v3484
    %3523 = vmatpush1.msra.mxu0 %v3483
    %3524 = vmatprep.subr.mxu0 %v3486
    %3525 = vmatpush1.msra.mxu0 %v3485
    %3526 = vmatprep.subr.mxu0 %v3488
    %3527 = vmatpush1.msra.mxu0 %v3487
    %3528 = vmatprep.subr.mxu0 0.0
    %3529 = vmatpush1.msra.mxu0 0.0
    %3530 = vmatprep.subr.mxu0 0.0
    %3531 = vmatpush1.msra.mxu0 0.0
    %3532 = vmatprep.subr.mxu0 0.0
    %3533 = vmatpush1.msra.mxu0 0.0
    %3534 = vmatprep.subr.mxu0 0.0
    %3535 = vmatpush1.msra.mxu0 0.0
    %3536 = vmatprep.subr.mxu0 0.0
    %3537 = vmatpush1.msra.mxu0 0.0
    %3538 = vmatprep.subr.mxu0 0.0
    %3539 = vmatpush1.msra.mxu0 0.0
    %3540 = vmatprep.subr.mxu0 0.0
    %3541 = vmatpush1.msra.mxu0 0.0
    %3542 = vmatprep.subr.mxu0 0.0
    %3543 = vmatpush1.msra.mxu0 0.0
    %3544 = vmatprep.subr.mxu0 0.0
    %3545 = vmatpush1.msra.mxu0 0.0
    %3546 = vmatprep.subr.mxu0 0.0
    %3547 = vmatpush1.msra.mxu0 0.0
    %3548 = vmatprep.subr.mxu0 0.0
    %3549 = vmatpush1.msra.mxu0 0.0
    %3550 = vmatprep.subr.mxu0 0.0
    %3551 = vmatpush1.msra.mxu0 0.0
    %3552 = vmatprep.subr.mxu0 0.0
    %3553 = vmatpush1.msra.mxu0 0.0
    %3554 = vmatprep.subr.mxu0 0.0
    %3555 = vmatpush1.msra.mxu0 0.0
    %3556 = vmatprep.subr.mxu0 0.0
    %3557 = vmatpush1.msra.mxu0 0.0
    %3558 = vmatprep.subr.mxu0 0.0
    %3559 = vmatpush1.msra.mxu0 0.0
    %3560 = vmatprep.subr.mxu0 0.0
    %3561 = vmatpush1.msra.mxu0 0.0
    %3562 = vmatprep.subr.mxu0 0.0
    %3563 = vmatpush1.msra.mxu0 0.0
    %3564 = vmatprep.subr.mxu0 0.0
    %3565 = vmatpush1.msra.mxu0 0.0
    %3566 = vmatprep.subr.mxu0 0.0
    %3567 = vmatpush1.msra.mxu0 0.0
    %3568 = vmatprep.subr.mxu0 0.0
    %3569 = vmatpush1.msra.mxu0 0.0
    %3570 = vmatprep.subr.mxu0 0.0
    %3571 = vmatpush1.msra.mxu0 0.0
    %3572 = vmatprep.subr.mxu0 0.0
    %3573 = vmatpush1.msra.mxu0 0.0
    %3574 = vmatprep.subr.mxu0 0.0
    %3575 = vmatpush1.msra.mxu0 0.0
    %3576 = vmatprep.subr.mxu0 0.0
    %3577 = vmatpush1.msra.mxu0 0.0
    %3578 = vmatprep.subr.mxu0 0.0
    %3579 = vmatpush1.msra.mxu0 0.0
    %3580 = vmatprep.subr.mxu0 0.0
    %3581 = vmatpush1.msra.mxu0 0.0
    %3582 = vmatprep.subr.mxu0 0.0
    %3583 = vmatpush1.msra.mxu0 0.0
    %3584 = vmatprep.mubr.f32.mxu0 0.0
    %3585 = vmatmul.mubr.f32.gmra.mrb[0].mxu0 %v3515
    %v3586 = vpop.f32.mrb[0].mxu0
    %v3587 = vadd.f32 0.0, %v3586
    %v3588 = vpop.f32.mrb[0].mxu0
    %v3589 = vadd.f32 0.0, %v3588
    %3590 = vmatprep.mubr.f32.mxu0 0.0
    %3591 = vmatmul.mubr.f32.gmra.mrb[0].mxu0 %v3518
    %v3592 = vpop.f32.mrb[0].mxu0
    %v3593 = vadd.f32 0.0, %v3592
    %v3594 = vpop.f32.mrb[0].mxu0
    %v3595 = vadd.f32 0.0, %v3594
    %3596 = vdwg.mxu0
    %v3597 = vld [vmem:[#allocation5] sm:$0xff]
    %v3598 = vld [vmem:[#allocation5 + $0x8] sm:$0xff]
    %v3599 = vld [vmem:[#allocation5 + $0x10] sm:$0xff]
    %v3600 = vld [vmem:[#allocation5 + $0x18] sm:$0xff]
    %v3601 = vld [vmem:[#allocation5 + $0x20] sm:$0xff]
    %v3602 = vld [vmem:[#allocation5 + $0x28] sm:$0xff]
    %v3603 = vld [vmem:[#allocation5 + $0x30] sm:$0xff]
    %v3604 = vld [vmem:[#allocation5 + $0x38] sm:$0xff]
    %v3605 = vld [vmem:[#allocation5 + $0x40] sm:$0xff]
    %v3606 = vld [vmem:[#allocation5 + $0x48] sm:$0xff]
    %v3607 = vld [vmem:[#allocation5 + $0x50] sm:$0xff]
    %v3608 = vld [vmem:[#allocation5 + $0x58] sm:$0xff]
    %v3609 = vld [vmem:[#allocation5 + $0x60] sm:$0xff]
    %v3610 = vld [vmem:[#allocation5 + $0x68] sm:$0xff]
    %v3611 = vld [vmem:[#allocation5 + $0x70] sm:$0xff]
    %v3612 = vld [vmem:[#allocation5 + $0x78] sm:$0xff]
    %v3613 = vld [vmem:[#allocation5 + $0x80] sm:$0xff]
    %v3614 = vld [vmem:[#allocation5 + $0x88] sm:$0xff]
    %v3615 = vld [vmem:[#allocation5 + $0x90] sm:$0xff]
    %v3616 = vld [vmem:[#allocation5 + $0x98] sm:$0xff]
    %v3617 = vld [vmem:[#allocation5 + $0xa0] sm:$0xff]
    %v3618 = vld [vmem:[#allocation5 + $0xa8] sm:$0xff]
    %v3619 = vld [vmem:[#allocation5 + $0xb0] sm:$0xff]
    %v3620 = vld [vmem:[#allocation5 + $0xb8] sm:$0xff]
    %v3621 = vld [vmem:[#allocation5 + $0xc0] sm:$0xff]
    %v3622 = vld [vmem:[#allocation5 + $0xc8] sm:$0xff]
    %v3623 = vld [vmem:[#allocation5 + $0xd0] sm:$0xff]
    %v3624 = vld [vmem:[#allocation5 + $0xd8] sm:$0xff]
    %v3625 = vld [vmem:[#allocation5 + $0xe0] sm:$0xff]
    %v3626 = vld [vmem:[#allocation5 + $0xe8] sm:$0xff]
    %v3627 = vld [vmem:[#allocation5 + $0xf0] sm:$0xff]
    %v3628 = vld [vmem:[#allocation5 + $0xf8] sm:$0xff]
    %v3629 = vld [vmem:[#allocation5 + $0x100] sm:$0xff]
    %v3630 = vld [vmem:[#allocation5 + $0x108] sm:$0xff]
    %v3631 = vld [vmem:[#allocation5 + $0x110] sm:$0xff]
    %v3632 = vld [vmem:[#allocation5 + $0x118] sm:$0xff]
    %v3633 = vld [vmem:[#allocation5 + $0x120] sm:$0xff]
    %v3634 = vld [vmem:[#allocation5 + $0x128] sm:$0xff]
    %v3635 = vld [vmem:[#allocation5 + $0x130] sm:$0xff]
    %v3636 = vld [vmem:[#allocation5 + $0x138] sm:$0xff]
    %v3637 = vld [vmem:[#allocation5 + $0x140] sm:$0xff]
    %v3638 = vld [vmem:[#allocation5 + $0x148] sm:$0xff]
    %v3639 = vld [vmem:[#allocation5 + $0x150] sm:$0xff]
    %v3640 = vld [vmem:[#allocation5 + $0x158] sm:$0xff]
    %v3641 = vld [vmem:[#allocation5 + $0x160] sm:$0xff]
    %v3642 = vld [vmem:[#allocation5 + $0x168] sm:$0xff]
    %v3643 = vld [vmem:[#allocation5 + $0x170] sm:$0xff]
    %v3644 = vld [vmem:[#allocation5 + $0x178] sm:$0xff]
    %v3645 = vld [vmem:[#allocation5 + $0x180] sm:$0xff]
    %v3646 = vld [vmem:[#allocation5 + $0x188] sm:$0xff]
    %v3647 = vld [vmem:[#allocation5 + $0x190] sm:$0xff]
    %v3648 = vld [vmem:[#allocation5 + $0x198] sm:$0xff]
    %v3649 = vld [vmem:[#allocation5 + $0x1a0] sm:$0xff]
    %v3650 = vld [vmem:[#allocation5 + $0x1a8] sm:$0xff]
    %v3651 = vld [vmem:[#allocation5 + $0x1b0] sm:$0xff]
    %v3652 = vld [vmem:[#allocation5 + $0x1b8] sm:$0xff]
    %v3653 = vld [vmem:[#allocation5 + $0x1c0] sm:$0xff]
    %v3654 = vld [vmem:[#allocation5 + $0x1c8] sm:$0xff]
    %v3655 = vld [vmem:[#allocation5 + $0x1d0] sm:$0xff]
    %v3656 = vld [vmem:[#allocation5 + $0x1d8] sm:$0xff]
    %v3657 = vld [vmem:[#allocation5 + $0x1e0] sm:$0xff]
    %v3658 = vld [vmem:[#allocation5 + $0x1e8] sm:$0xff]
    %v3659 = vld [vmem:[#allocation5 + $0x1f0] sm:$0xff]
    %v3660 = vld [vmem:[#allocation5 + $0x1f8] sm:$0xff]
    %v3661 = vadd.s32 %v3497, %v3493
    %v3662 = vadd.s32 %v3498, %v3494
    %vm3663 = vcmp.eq.s32.totalorder %v122, %v3661
    %vm3664 = vcmp.eq.s32.totalorder %v122, %v3662
    %vm3665 = vcmp.ge.s32.totalorder %v3493, 0
    %vm3666 = vcmp.ge.s32.totalorder %v3494, 0
    %vm3667 = vmand %vm3663, %vm3665
    %vm3668 = vmand %vm3664, %vm3666
    %vm3669 = vcmp.lt.s32.totalorder %v3493, 16
    %vm3670 = vcmp.lt.s32.totalorder %v3494, 16
    %vm3671 = vmand %vm3667, %vm3669
    %vm3672 = vmand %vm3668, %vm3670
    %v3673 = vsel %vm3671, 1.0, 0.0
    %v3674 = vsel %vm3672, 1.0, 0.0
    %v3676 = vsel %vm3513, %v3673, 0
    %v3679 = vsel %vm3513, %v3674, 0
    %3681 = vmatprep.subr.mxu0 %v3482
    %3682 = vmatpush1.msra.mxu0 %v3481
    %3683 = vmatprep.subr.mxu0 %v3484
    %3684 = vmatpush1.msra.mxu0 %v3483
    %3685 = vmatprep.subr.mxu0 %v3486
    %3686 = vmatpush1.msra.mxu0 %v3485
    %3687 = vmatprep.subr.mxu0 %v3488
    %3688 = vmatpush1.msra.mxu0 %v3487
    %3689 = vmatprep.subr.mxu0 0.0
    %3690 = vmatpush1.msra.mxu0 0.0
    %3691 = vmatprep.subr.mxu0 0.0
    %3692 = vmatpush1.msra.mxu0 0.0
    %3693 = vmatprep.subr.mxu0 0.0
    %3694 = vmatpush1.msra.mxu0 0.0
    %3695 = vmatprep.subr.mxu0 0.0
    %3696 = vmatpush1.msra.mxu0 0.0
    %3697 = vmatprep.subr.mxu0 0.0
    %3698 = vmatpush1.msra.mxu0 0.0
    %3699 = vmatprep.subr.mxu0 0.0
    %3700 = vmatpush1.msra.mxu0 0.0
    %3701 = vmatprep.subr.mxu0 0.0
    %3702 = vmatpush1.msra.mxu0 0.0
    %3703 = vmatprep.subr.mxu0 0.0
    %3704 = vmatpush1.msra.mxu0 0.0
    %3705 = vmatprep.subr.mxu0 0.0
    %3706 = vmatpush1.msra.mxu0 0.0
    %3707 = vmatprep.subr.mxu0 0.0
    %3708 = vmatpush1.msra.mxu0 0.0
    %3709 = vmatprep.subr.mxu0 0.0
    %3710 = vmatpush1.msra.mxu0 0.0
    %3711 = vmatprep.subr.mxu0 0.0
    %3712 = vmatpush1.msra.mxu0 0.0
    %3713 = vmatprep.subr.mxu0 0.0
    %3714 = vmatpush1.msra.mxu0 0.0
    %3715 = vmatprep.subr.mxu0 0.0
    %3716 = vmatpush1.msra.mxu0 0.0
    %3717 = vmatprep.subr.mxu0 0.0
    %3718 = vmatpush1.msra.mxu0 0.0
    %3719 = vmatprep.subr.mxu0 0.0
    %3720 = vmatpush1.msra.mxu0 0.0
    %3721 = vmatprep.subr.mxu0 0.0
    %3722 = vmatpush1.msra.mxu0 0.0
    %3723 = vmatprep.subr.mxu0 0.0
    %3724 = vmatpush1.msra.mxu0 0.0
    %3725 = vmatprep.subr.mxu0 0.0
    %3726 = vmatpush1.msra.mxu0 0.0
    %3727 = vmatprep.subr.mxu0 0.0
    %3728 = vmatpush1.msra.mxu0 0.0
    %3729 = vmatprep.subr.mxu0 0.0
    %3730 = vmatpush1.msra.mxu0 0.0
    %3731 = vmatprep.subr.mxu0 0.0
    %3732 = vmatpush1.msra.mxu0 0.0
    %3733 = vmatprep.subr.mxu0 0.0
    %3734 = vmatpush1.msra.mxu0 0.0
    %3735 = vmatprep.subr.mxu0 0.0
    %3736 = vmatpush1.msra.mxu0 0.0
    %3737 = vmatprep.subr.mxu0 0.0
    %3738 = vmatpush1.msra.mxu0 0.0
    %3739 = vmatprep.subr.mxu0 0.0
    %3740 = vmatpush1.msra.mxu0 0.0
    %3741 = vmatprep.subr.mxu0 0.0
    %3742 = vmatpush1.msra.mxu0 0.0
    %3743 = vmatprep.subr.mxu0 0.0
    %3744 = vmatpush1.msra.mxu0 0.0
    %3745 = vmatprep.mubr.f32.mxu0 0.0
    %3746 = vmatmul.mubr.f32.gmra.mrb[0].mxu0 %v3676
    %v3747 = vpop.f32.mrb[0].mxu0
    %v3748 = vadd.f32 0.0, %v3747
    %v3749 = vpop.f32.mrb[0].mxu0
    %v3750 = vadd.f32 0.0, %v3749
    %3751 = vmatprep.mubr.f32.mxu0 0.0
    %3752 = vmatmul.mubr.f32.gmra.mrb[0].mxu0 %v3679
    %v3753 = vpop.f32.mrb[0].mxu0
    %v3754 = vadd.f32 0.0, %v3753
    %v3755 = vpop.f32.mrb[0].mxu0
    %v3756 = vadd.f32 0.0, %v3755
    %3757 = vdwg.mxu0
    %v3758 = vld [vmem:[#allocation5 + $0x200] sm:$0xff]
    %v3759 = vld [vmem:[#allocation5 + $0x208] sm:$0xff]
    %v3760 = vld [vmem:[#allocation5 + $0x210] sm:$0xff]
    %v3761 = vld [vmem:[#allocation5 + $0x218] sm:$0xff]
    %v3762 = vld [vmem:[#allocation5 + $0x220] sm:$0xff]
    %v3763 = vld [vmem:[#allocation5 + $0x228] sm:$0xff]
    %v3764 = vld [vmem:[#allocation5 + $0x230] sm:$0xff]
    %v3765 = vld [vmem:[#allocation5 + $0x238] sm:$0xff]
    %v3766 = vld [vmem:[#allocation5 + $0x240] sm:$0xff]
    %v3767 = vld [vmem:[#allocation5 + $0x248] sm:$0xff]
    %v3768 = vld [vmem:[#allocation5 + $0x250] sm:$0xff]
    %v3769 = vld [vmem:[#allocation5 + $0x258] sm:$0xff]
    %v3770 = vld [vmem:[#allocation5 + $0x260] sm:$0xff]
    %v3771 = vld [vmem:[#allocation5 + $0x268] sm:$0xff]
    %v3772 = vld [vmem:[#allocation5 + $0x270] sm:$0xff]
    %v3773 = vld [vmem:[#allocation5 + $0x278] sm:$0xff]
    %v3774 = vld [vmem:[#allocation5 + $0x280] sm:$0xff]
    %v3775 = vld [vmem:[#allocation5 + $0x288] sm:$0xff]
    %v3776 = vld [vmem:[#allocation5 + $0x290] sm:$0xff]
    %v3777 = vld [vmem:[#allocation5 + $0x298] sm:$0xff]
    %v3778 = vld [vmem:[#allocation5 + $0x2a0] sm:$0xff]
    %v3779 = vld [vmem:[#allocation5 + $0x2a8] sm:$0xff]
    %v3780 = vld [vmem:[#allocation5 + $0x2b0] sm:$0xff]
    %v3781 = vld [vmem:[#allocation5 + $0x2b8] sm:$0xff]
    %v3782 = vld [vmem:[#allocation5 + $0x2c0] sm:$0xff]
    %v3783 = vld [vmem:[#allocation5 + $0x2c8] sm:$0xff]
    %v3784 = vld [vmem:[#allocation5 + $0x2d0] sm:$0xff]
    %v3785 = vld [vmem:[#allocation5 + $0x2d8] sm:$0xff]
    %v3786 = vld [vmem:[#allocation5 + $0x2e0] sm:$0xff]
    %v3787 = vld [vmem:[#allocation5 + $0x2e8] sm:$0xff]
    %v3788 = vld [vmem:[#allocation5 + $0x2f0] sm:$0xff]
    %v3789 = vld [vmem:[#allocation5 + $0x2f8] sm:$0xff]
    %v3790 = vld [vmem:[#allocation5 + $0x300] sm:$0xff]
    %v3791 = vld [vmem:[#allocation5 + $0x308] sm:$0xff]
    %v3792 = vld [vmem:[#allocation5 + $0x310] sm:$0xff]
    %v3793 = vld [vmem:[#allocation5 + $0x318] sm:$0xff]
    %v3794 = vld [vmem:[#allocation5 + $0x320] sm:$0xff]
    %v3795 = vld [vmem:[#allocation5 + $0x328] sm:$0xff]
    %v3796 = vld [vmem:[#allocation5 + $0x330] sm:$0xff]
    %v3797 = vld [vmem:[#allocation5 + $0x338] sm:$0xff]
    %v3798 = vld [vmem:[#allocation5 + $0x340] sm:$0xff]
    %v3799 = vld [vmem:[#allocation5 + $0x348] sm:$0xff]
    %v3800 = vld [vmem:[#allocation5 + $0x350] sm:$0xff]
    %v3801 = vld [vmem:[#allocation5 + $0x358] sm:$0xff]
    %v3802 = vld [vmem:[#allocation5 + $0x360] sm:$0xff]
    %v3803 = vld [vmem:[#allocation5 + $0x368] sm:$0xff]
    %v3804 = vld [vmem:[#allocation5 + $0x370] sm:$0xff]
    %v3805 = vld [vmem:[#allocation5 + $0x378] sm:$0xff]
    %v3806 = vld [vmem:[#allocation5 + $0x380] sm:$0xff]
    %v3807 = vld [vmem:[#allocation5 + $0x388] sm:$0xff]
    %v3808 = vld [vmem:[#allocation5 + $0x390] sm:$0xff]
    %v3809 = vld [vmem:[#allocation5 + $0x398] sm:$0xff]
    %v3810 = vld [vmem:[#allocation5 + $0x3a0] sm:$0xff]
    %v3811 = vld [vmem:[#allocation5 + $0x3a8] sm:$0xff]
    %v3812 = vld [vmem:[#allocation5 + $0x3b0] sm:$0xff]
    %v3813 = vld [vmem:[#allocation5 + $0x3b8] sm:$0xff]
    %v3814 = vld [vmem:[#allocation5 + $0x3c0] sm:$0xff]
    %v3815 = vld [vmem:[#allocation5 + $0x3c8] sm:$0xff]
    %v3816 = vld [vmem:[#allocation5 + $0x3d0] sm:$0xff]
    %v3817 = vld [vmem:[#allocation5 + $0x3d8] sm:$0xff]
    %v3818 = vld [vmem:[#allocation5 + $0x3e0] sm:$0xff]
    %v3819 = vld [vmem:[#allocation5 + $0x3e8] sm:$0xff]
    %v3820 = vld [vmem:[#allocation5 + $0x3f0] sm:$0xff]
    %v3821 = vld [vmem:[#allocation5 + $0x3f8] sm:$0xff]
    %3822 = vmatprep.subr.mxu0 %v3759
    %3823 = vmatpush1.msra.mxu0 %v3758
    %3824 = vmatprep.subr.mxu0 %v3761
    %3825 = vmatpush1.msra.mxu0 %v3760
    %3826 = vmatprep.subr.mxu0 %v3763
    %3827 = vmatpush1.msra.mxu0 %v3762
    %3828 = vmatprep.subr.mxu0 %v3765
    %3829 = vmatpush1.msra.mxu0 %v3764
    %3830 = vmatprep.subr.mxu0 %v3767
    %3831 = vmatpush1.msra.mxu0 %v3766
    %3832 = vmatprep.subr.mxu0 %v3769
    %3833 = vmatpush1.msra.mxu0 %v3768
    %3834 = vmatprep.subr.mxu0 %v3771
    %3835 = vmatpush1.msra.mxu0 %v3770
    %3836 = vmatprep.subr.mxu0 %v3773
    %3837 = vmatpush1.msra.mxu0 %v3772
    %3838 = vmatprep.subr.mxu0 %v3775
    %3839 = vmatpush1.msra.mxu0 %v3774
    %3840 = vmatprep.subr.mxu0 %v3777
    %3841 = vmatpush1.msra.mxu0 %v3776
    %3842 = vmatprep.subr.mxu0 %v3779
    %3843 = vmatpush1.msra.mxu0 %v3778
    %3844 = vmatprep.subr.mxu0 %v3781
    %3845 = vmatpush1.msra.mxu0 %v3780
    %3846 = vmatprep.subr.mxu0 %v3783
    %3847 = vmatpush1.msra.mxu0 %v3782
    %3848 = vmatprep.subr.mxu0 %v3785
    %3849 = vmatpush1.msra.mxu0 %v3784
    %3850 = vmatprep.subr.mxu0 %v3787
    %3851 = vmatpush1.msra.mxu0 %v3786
    %3852 = vmatprep.subr.mxu0 %v3789
    %3853 = vmatpush1.msra.mxu0 %v3788
    %3854 = vmatprep.subr.mxu0 %v3791
    %3855 = vmatpush1.msra.mxu0 %v3790
    %3856 = vmatprep.subr.mxu0 %v3793
    %3857 = vmatpush1.msra.mxu0 %v3792
    %3858 = vmatprep.subr.mxu0 %v3795
    %3859 = vmatpush1.msra.mxu0 %v3794
    %3860 = vmatprep.subr.mxu0 %v3797
    %3861 = vmatpush1.msra.mxu0 %v3796
    %3862 = vmatprep.subr.mxu0 %v3799
    %3863 = vmatpush1.msra.mxu0 %v3798
    %3864 = vmatprep.subr.mxu0 %v3801
    %3865 = vmatpush1.msra.mxu0 %v3800
    %3866 = vmatprep.subr.mxu0 %v3803
    %3867 = vmatpush1.msra.mxu0 %v3802
    %3868 = vmatprep.subr.mxu0 %v3805
    %3869 = vmatpush1.msra.mxu0 %v3804
    %3870 = vmatprep.subr.mxu0 %v3807
    %3871 = vmatpush1.msra.mxu0 %v3806
    %3872 = vmatprep.subr.mxu0 %v3809
    %3873 = vmatpush1.msra.mxu0 %v3808
    %3874 = vmatprep.subr.mxu0 %v3811
    %3875 = vmatpush1.msra.mxu0 %v3810
    %3876 = vmatprep.subr.mxu0 %v3813
    %3877 = vmatpush1.msra.mxu0 %v3812
    %3878 = vmatprep.subr.mxu0 %v3815
    %3879 = vmatpush1.msra.mxu0 %v3814
    %3880 = vmatprep.subr.mxu0 %v3817
    %3881 = vmatpush1.msra.mxu0 %v3816
    %3882 = vmatprep.subr.mxu0 %v3819
    %3883 = vmatpush1.msra.mxu0 %v3818
    %3884 = vmatprep.subr.mxu0 %v3821
    %3885 = vmatpush1.msra.mxu0 %v3820
    %3886 = vmatprep.mubr.f32.mxu0 %v3750
    %3887 = vmatmul.mubr.f32.gmra.mrb[0].mxu0 %v3748
    %v3888 = vpop.f32.mrb[0].mxu0
    %v3889 = vadd.f32 0.0, %v3888
    %v3890 = vpop.f32.mrb[0].mxu0
    %v3891 = vadd.f32 0.0, %v3890
    %3892 = vmatprep.mubr.f32.mxu0 %v3756
    %3893 = vmatmul.mubr.f32.gmra.mrb[0].mxu0 %v3754
    %v3894 = vpop.f32.mrb[0].mxu0
    %v3895 = vadd.f32 0.0, %v3894
    %v3896 = vpop.f32.mrb[0].mxu0
    %v3897 = vadd.f32 0.0, %v3896
    %3898 = vdwg.mxu0
    %3899 = vmatprep.subr.mxu0 %v3598
    %3900 = vmatpush1.msra.mxu0 %v3597
    %3901 = vmatprep.subr.mxu0 %v3600
    %3902 = vmatpush1.msra.mxu0 %v3599
    %3903 = vmatprep.subr.mxu0 %v3602
    %3904 = vmatpush1.msra.mxu0 %v3601
    %3905 = vmatprep.subr.mxu0 %v3604
    %3906 = vmatpush1.msra.mxu0 %v3603
    %3907 = vmatprep.subr.mxu0 %v3606
    %3908 = vmatpush1.msra.mxu0 %v3605
    %3909 = vmatprep.subr.mxu0 %v3608
    %3910 = vmatpush1.msra.mxu0 %v3607
    %3911 = vmatprep.subr.mxu0 %v3610
    %3912 = vmatpush1.msra.mxu0 %v3609
    %3913 = vmatprep.subr.mxu0 %v3612
    %3914 = vmatpush1.msra.mxu0 %v3611
    %3915 = vmatprep.subr.mxu0 %v3614
    %3916 = vmatpush1.msra.mxu0 %v3613
    %3917 = vmatprep.subr.mxu0 %v3616
    %3918 = vmatpush1.msra.mxu0 %v3615
    %3919 = vmatprep.subr.mxu0 %v3618
    %3920 = vmatpush1.msra.mxu0 %v3617
    %3921 = vmatprep.subr.mxu0 %v3620
    %3922 = vmatpush1.msra.mxu0 %v3619
    %3923 = vmatprep.subr.mxu0 %v3622
    %3924 = vmatpush1.msra.mxu0 %v3621
    %3925 = vmatprep.subr.mxu0 %v3624
    %3926 = vmatpush1.msra.mxu0 %v3623
    %3927 = vmatprep.subr.mxu0 %v3626
    %3928 = vmatpush1.msra.mxu0 %v3625
    %3929 = vmatprep.subr.mxu0 %v3628
    %3930 = vmatpush1.msra.mxu0 %v3627
    %3931 = vmatprep.subr.mxu0 %v3630
    %3932 = vmatpush1.msra.mxu0 %v3629
    %3933 = vmatprep.subr.mxu0 %v3632
    %3934 = vmatpush1.msra.mxu0 %v3631
    %3935 = vmatprep.subr.mxu0 %v3634
    %3936 = vmatpush1.msra.mxu0 %v3633
    %3937 = vmatprep.subr.mxu0 %v3636
    %3938 = vmatpush1.msra.mxu0 %v3635
    %3939 = vmatprep.subr.mxu0 %v3638
    %3940 = vmatpush1.msra.mxu0 %v3637
    %3941 = vmatprep.subr.mxu0 %v3640
    %3942 = vmatpush1.msra.mxu0 %v3639
    %3943 = vmatprep.subr.mxu0 %v3642
    %3944 = vmatpush1.msra.mxu0 %v3641
    %3945 = vmatprep.subr.mxu0 %v3644
    %3946 = vmatpush1.msra.mxu0 %v3643
    %3947 = vmatprep.subr.mxu0 %v3646
    %3948 = vmatpush1.msra.mxu0 %v3645
    %3949 = vmatprep.subr.mxu0 %v3648
    %3950 = vmatpush1.msra.mxu0 %v3647
    %3951 = vmatprep.subr.mxu0 %v3650
    %3952 = vmatpush1.msra.mxu0 %v3649
    %3953 = vmatprep.subr.mxu0 %v3652
    %3954 = vmatpush1.msra.mxu0 %v3651
    %3955 = vmatprep.subr.mxu0 %v3654
    %3956 = vmatpush1.msra.mxu0 %v3653
    %3957 = vmatprep.subr.mxu0 %v3656
    %3958 = vmatpush1.msra.mxu0 %v3655
    %3959 = vmatprep.subr.mxu0 %v3658
    %3960 = vmatpush1.msra.mxu0 %v3657
    %3961 = vmatprep.subr.mxu0 %v3660
    %3962 = vmatpush1.msra.mxu0 %v3659
    %3963 = vmatprep.mubr.f32.mxu0 %v3589
    %3964 = vmatmul.mubr.f32.gmra.mrb[0].mxu0 %v3587
    %v3965 = vpop.f32.mrb[0].mxu0
    %v3966 = vadd.f32 %v3889, %v3965
    %v3967 = vpop.f32.mrb[0].mxu0
    %v3968 = vadd.f32 %v3891, %v3967
    %3969 = vmatprep.mubr.f32.mxu0 %v3595
    %3970 = vmatmul.mubr.f32.gmra.mrb[0].mxu0 %v3593
    %v3971 = vpop.f32.mrb[0].mxu0
    %v3972 = vadd.f32 %v3895, %v3971
    %v3973 = vpop.f32.mrb[0].mxu0
    %v3974 = vadd.f32 %v3897, %v3973
    %3975 = vdwg.mxu0
    %v3976 = vadd.s32 %v3493, 1
    %v3977 = vadd.s32 %v3494, 1
    %v3978 = vadd.s32 %v3497, %v3976
    %v3979 = vadd.s32 %v3498, %v3977
    %vm3980 = vcmp.eq.s32.totalorder %v122, %v3978
    %vm3981 = vcmp.eq.s32.totalorder %v122, %v3979
    %vm3982 = vcmp.ge.s32.totalorder %v3976, 0
    %vm3983 = vcmp.ge.s32.totalorder %v3977, 0
    %vm3984 = vmand %vm3980, %vm3982
    %vm3985 = vmand %vm3981, %vm3983
    %vm3986 = vcmp.lt.s32.totalorder %v3976, 16
    %vm3987 = vcmp.lt.s32.totalorder %v3977, 16
    %vm3988 = vmand %vm3984, %vm3986
    %vm3989 = vmand %vm3985, %vm3987
    %v3990 = vsel %vm3988, 1.0, 0.0
    %v3991 = vsel %vm3989, 1.0, 0.0
    %v3993 = vsel %vm3513, %v3990, 0
    %v3996 = vsel %vm3513, %v3991, 0
    %3998 = vmatprep.subr.mxu0 %v3482
    %3999 = vmatpush1.msra.mxu0 %v3481
    %4000 = vmatprep.subr.mxu0 %v3484
    %4001 = vmatpush1.msra.mxu0 %v3483
    %4002 = vmatprep.subr.mxu0 %v3486
    %4003 = vmatpush1.msra.mxu0 %v3485
    %4004 = vmatprep.subr.mxu0 %v3488
    %4005 = vmatpush1.msra.mxu0 %v3487
    %4006 = vmatprep.subr.mxu0 0.0
    %4007 = vmatpush1.msra.mxu0 0.0
    %4008 = vmatprep.subr.mxu0 0.0
    %4009 = vmatpush1.msra.mxu0 0.0
    %4010 = vmatprep.subr.mxu0 0.0
    %4011 = vmatpush1.msra.mxu0 0.0
    %4012 = vmatprep.subr.mxu0 0.0
    %4013 = vmatpush1.msra.mxu0 0.0
    %4014 = vmatprep.subr.mxu0 0.0
    %4015 = vmatpush1.msra.mxu0 0.0
    %4016 = vmatprep.subr.mxu0 0.0
    %4017 = vmatpush1.msra.mxu0 0.0
    %4018 = vmatprep.subr.mxu0 0.0
    %4019 = vmatpush1.msra.mxu0 0.0
    %4020 = vmatprep.subr.mxu0 0.0
    %4021 = vmatpush1.msra.mxu0 0.0
    %4022 = vmatprep.subr.mxu0 0.0
    %4023 = vmatpush1.msra.mxu0 0.0
    %4024 = vmatprep.subr.mxu0 0.0
    %4025 = vmatpush1.msra.mxu0 0.0
    %4026 = vmatprep.subr.mxu0 0.0
    %4027 = vmatpush1.msra.mxu0 0.0
    %4028 = vmatprep.subr.mxu0 0.0
    %4029 = vmatpush1.msra.mxu0 0.0
    %4030 = vmatprep.subr.mxu0 0.0
    %4031 = vmatpush1.msra.mxu0 0.0
    %4032 = vmatprep.subr.mxu0 0.0
    %4033 = vmatpush1.msra.mxu0 0.0
    %4034 = vmatprep.subr.mxu0 0.0
    %4035 = vmatpush1.msra.mxu0 0.0
    %4036 = vmatprep.subr.mxu0 0.0
    %4037 = vmatpush1.msra.mxu0 0.0
    %4038 = vmatprep.subr.mxu0 0.0
    %4039 = vmatpush1.msra.mxu0 0.0
    %4040 = vmatprep.subr.mxu0 0.0
    %4041 = vmatpush1.msra.mxu0 0.0
    %4042 = vmatprep.subr.mxu0 0.0
    %4043 = vmatpush1.msra.mxu0 0.0
    %4044 = vmatprep.subr.mxu0 0.0
    %4045 = vmatpush1.msra.mxu0 0.0
    %4046 = vmatprep.subr.mxu0 0.0
    %4047 = vmatpush1.msra.mxu0 0.0
    %4048 = vmatprep.subr.mxu0 0.0
    %4049 = vmatpush1.msra.mxu0 0.0
    %4050 = vmatprep.subr.mxu0 0.0
    %4051 = vmatpush1.msra.mxu0 0.0
    %4052 = vmatprep.subr.mxu0 0.0
    %4053 = vmatpush1.msra.mxu0 0.0
    %4054 = vmatprep.subr.mxu0 0.0
    %4055 = vmatpush1.msra.mxu0 0.0
    %4056 = vmatprep.subr.mxu0 0.0
    %4057 = vmatpush1.msra.mxu0 0.0
    %4058 = vmatprep.subr.mxu0 0.0
    %4059 = vmatpush1.msra.mxu0 0.0
    %4060 = vmatprep.subr.mxu0 0.0
    %4061 = vmatpush1.msra.mxu0 0.0
    %4062 = vmatprep.mubr.f32.mxu0 0.0
    %4063 = vmatmul.mubr.f32.gmra.mrb[0].mxu0 %v3993
    %v4064 = vpop.f32.mrb[0].mxu0
    %v4065 = vadd.f32 0.0, %v4064
    %v4066 = vpop.f32.mrb[0].mxu0
    %v4067 = vadd.f32 0.0, %v4066
    %4068 = vmatprep.mubr.f32.mxu0 0.0
    %4069 = vmatmul.mubr.f32.gmra.mrb[0].mxu0 %v3996
    %v4070 = vpop.f32.mrb[0].mxu0
    %v4071 = vadd.f32 0.0, %v4070
    %v4072 = vpop.f32.mrb[0].mxu0
    %v4073 = vadd.f32 0.0, %v4072
    %4074 = vdwg.mxu0
    %v4075 = vld [vmem:[#allocation5 + $0x400] sm:$0xff]
    %v4076 = vld [vmem:[#allocation5 + $0x408] sm:$0xff]
    %v4077 = vld [vmem:[#allocation5 + $0x410] sm:$0xff]
    %v4078 = vld [vmem:[#allocation5 + $0x418] sm:$0xff]
    %v4079 = vld [vmem:[#allocation5 + $0x420] sm:$0xff]
    %v4080 = vld [vmem:[#allocation5 + $0x428] sm:$0xff]
    %v4081 = vld [vmem:[#allocation5 + $0x430] sm:$0xff]
    %v4082 = vld [vmem:[#allocation5 + $0x438] sm:$0xff]
    %v4083 = vld [vmem:[#allocation5 + $0x440] sm:$0xff]
    %v4084 = vld [vmem:[#allocation5 + $0x448] sm:$0xff]
    %v4085 = vld [vmem:[#allocation5 + $0x450] sm:$0xff]
    %v4086 = vld [vmem:[#allocation5 + $0x458] sm:$0xff]
    %v4087 = vld [vmem:[#allocation5 + $0x460] sm:$0xff]
    %v4088 = vld [vmem:[#allocation5 + $0x468] sm:$0xff]
    %v4089 = vld [vmem:[#allocation5 + $0x470] sm:$0xff]
    %v4090 = vld [vmem:[#allocation5 + $0x478] sm:$0xff]
    %v4091 = vld [vmem:[#allocation5 + $0x480] sm:$0xff]
    %v4092 = vld [vmem:[#allocation5 + $0x488] sm:$0xff]
    %v4093 = vld [vmem:[#allocation5 + $0x490] sm:$0xff]
    %v4094 = vld [vmem:[#allocation5 + $0x498] sm:$0xff]
    %v4095 = vld [vmem:[#allocation5 + $0x4a0] sm:$0xff]
    %v4096 = vld [vmem:[#allocation5 + $0x4a8] sm:$0xff]
    %v4097 = vld [vmem:[#allocation5 + $0x4b0] sm:$0xff]
    %v4098 = vld [vmem:[#allocation5 + $0x4b8] sm:$0xff]
    %v4099 = vld [vmem:[#allocation5 + $0x4c0] sm:$0xff]
    %v4100 = vld [vmem:[#allocation5 + $0x4c8] sm:$0xff]
    %v4101 = vld [vmem:[#allocation5 + $0x4d0] sm:$0xff]
    %v4102 = vld [vmem:[#allocation5 + $0x4d8] sm:$0xff]
    %v4103 = vld [vmem:[#allocation5 + $0x4e0] sm:$0xff]
    %v4104 = vld [vmem:[#allocation5 + $0x4e8] sm:$0xff]
    %v4105 = vld [vmem:[#allocation5 + $0x4f0] sm:$0xff]
    %v4106 = vld [vmem:[#allocation5 + $0x4f8] sm:$0xff]
    %v4107 = vld [vmem:[#allocation5 + $0x500] sm:$0xff]
    %v4108 = vld [vmem:[#allocation5 + $0x508] sm:$0xff]
    %v4109 = vld [vmem:[#allocation5 + $0x510] sm:$0xff]
    %v4110 = vld [vmem:[#allocation5 + $0x518] sm:$0xff]
    %v4111 = vld [vmem:[#allocation5 + $0x520] sm:$0xff]
    %v4112 = vld [vmem:[#allocation5 + $0x528] sm:$0xff]
    %v4113 = vld [vmem:[#allocation5 + $0x530] sm:$0xff]
    %v4114 = vld [vmem:[#allocation5 + $0x538] sm:$0xff]
    %v4115 = vld [vmem:[#allocation5 + $0x540] sm:$0xff]
    %v4116 = vld [vmem:[#allocation5 + $0x548] sm:$0xff]
    %v4117 = vld [vmem:[#allocation5 + $0x550] sm:$0xff]
    %v4118 = vld [vmem:[#allocation5 + $0x558] sm:$0xff]
    %v4119 = vld [vmem:[#allocation5 + $0x560] sm:$0xff]
    %v4120 = vld [vmem:[#allocation5 + $0x568] sm:$0xff]
    %v4121 = vld [vmem:[#allocation5 + $0x570] sm:$0xff]
    %v4122 = vld [vmem:[#allocation5 + $0x578] sm:$0xff]
    %v4123 = vld [vmem:[#allocation5 + $0x580] sm:$0xff]
    %v4124 = vld [vmem:[#allocation5 + $0x588] sm:$0xff]
    %v4125 = vld [vmem:[#allocation5 + $0x590] sm:$0xff]
    %v4126 = vld [vmem:[#allocation5 + $0x598] sm:$0xff]
    %v4127 = vld [vmem:[#allocation5 + $0x5a0] sm:$0xff]
    %v4128 = vld [vmem:[#allocation5 + $0x5a8] sm:$0xff]
    %v4129 = vld [vmem:[#allocation5 + $0x5b0] sm:$0xff]
    %v4130 = vld [vmem:[#allocation5 + $0x5b8] sm:$0xff]
    %v4131 = vld [vmem:[#allocation5 + $0x5c0] sm:$0xff]
    %v4132 = vld [vmem:[#allocation5 + $0x5c8] sm:$0xff]
    %v4133 = vld [vmem:[#allocation5 + $0x5d0] sm:$0xff]
    %v4134 = vld [vmem:[#allocation5 + $0x5d8] sm:$0xff]
    %v4135 = vld [vmem:[#allocation5 + $0x5e0] sm:$0xff]
    %v4136 = vld [vmem:[#allocation5 + $0x5e8] sm:$0xff]
    %v4137 = vld [vmem:[#allocation5 + $0x5f0] sm:$0xff]
    %v4138 = vld [vmem:[#allocation5 + $0x5f8] sm:$0xff]
    %4139 = vmatprep.subr.mxu0 %v4076
    %4140 = vmatpush1.msra.mxu0 %v4075
    %4141 = vmatprep.subr.mxu0 %v4078
    %4142 = vmatpush1.msra.mxu0 %v4077
    %4143 = vmatprep.subr.mxu0 %v4080
    %4144 = vmatpush1.msra.mxu0 %v4079
    %4145 = vmatprep.subr.mxu0 %v4082
    %4146 = vmatpush1.msra.mxu0 %v4081
    %4147 = vmatprep.subr.mxu0 %v4084
    %4148 = vmatpush1.msra.mxu0 %v4083
    %4149 = vmatprep.subr.mxu0 %v4086
    %4150 = vmatpush1.msra.mxu0 %v4085
    %4151 = vmatprep.subr.mxu0 %v4088
    %4152 = vmatpush1.msra.mxu0 %v4087
    %4153 = vmatprep.subr.mxu0 %v4090
    %4154 = vmatpush1.msra.mxu0 %v4089
    %4155 = vmatprep.subr.mxu0 %v4092
    %4156 = vmatpush1.msra.mxu0 %v4091
    %4157 = vmatprep.subr.mxu0 %v4094
    %4158 = vmatpush1.msra.mxu0 %v4093
    %4159 = vmatprep.subr.mxu0 %v4096
    %4160 = vmatpush1.msra.mxu0 %v4095
    %4161 = vmatprep.subr.mxu0 %v4098
    %4162 = vmatpush1.msra.mxu0 %v4097
    %4163 = vmatprep.subr.mxu0 %v4100
    %4164 = vmatpush1.msra.mxu0 %v4099
    %4165 = vmatprep.subr.mxu0 %v4102
    %4166 = vmatpush1.msra.mxu0 %v4101
    %4167 = vmatprep.subr.mxu0 %v4104
    %4168 = vmatpush1.msra.mxu0 %v4103
    %4169 = vmatprep.subr.mxu0 %v4106
    %4170 = vmatpush1.msra.mxu0 %v4105
    %4171 = vmatprep.subr.mxu0 %v4108
    %4172 = vmatpush1.msra.mxu0 %v4107
    %4173 = vmatprep.subr.mxu0 %v4110
    %4174 = vmatpush1.msra.mxu0 %v4109
    %4175 = vmatprep.subr.mxu0 %v4112
    %4176 = vmatpush1.msra.mxu0 %v4111
    %4177 = vmatprep.subr.mxu0 %v4114
    %4178 = vmatpush1.msra.mxu0 %v4113
    %4179 = vmatprep.subr.mxu0 %v4116
    %4180 = vmatpush1.msra.mxu0 %v4115
    %4181 = vmatprep.subr.mxu0 %v4118
    %4182 = vmatpush1.msra.mxu0 %v4117
    %4183 = vmatprep.subr.mxu0 %v4120
    %4184 = vmatpush1.msra.mxu0 %v4119
    %4185 = vmatprep.subr.mxu0 %v4122
    %4186 = vmatpush1.msra.mxu0 %v4121
    %4187 = vmatprep.subr.mxu0 %v4124
    %4188 = vmatpush1.msra.mxu0 %v4123
    %4189 = vmatprep.subr.mxu0 %v4126
    %4190 = vmatpush1.msra.mxu0 %v4125
    %4191 = vmatprep.subr.mxu0 %v4128
    %4192 = vmatpush1.msra.mxu0 %v4127
    %4193 = vmatprep.subr.mxu0 %v4130
    %4194 = vmatpush1.msra.mxu0 %v4129
    %4195 = vmatprep.subr.mxu0 %v4132
    %4196 = vmatpush1.msra.mxu0 %v4131
    %4197 = vmatprep.subr.mxu0 %v4134
    %4198 = vmatpush1.msra.mxu0 %v4133
    %4199 = vmatprep.subr.mxu0 %v4136
    %4200 = vmatpush1.msra.mxu0 %v4135
    %4201 = vmatprep.subr.mxu0 %v4138
    %4202 = vmatpush1.msra.mxu0 %v4137
    %4203 = vmatprep.mubr.f32.mxu0 %v4067
    %4204 = vmatmul.mubr.f32.gmra.mrb[0].mxu0 %v4065
    %v4205 = vpop.f32.mrb[0].mxu0
    %v4206 = vadd.f32 0.0, %v4205
    %v4207 = vpop.f32.mrb[0].mxu0
    %v4208 = vadd.f32 0.0, %v4207
    %4209 = vmatprep.mubr.f32.mxu0 %v4073
    %4210 = vmatmul.mubr.f32.gmra.mrb[0].mxu0 %v4071
    %v4211 = vpop.f32.mrb[0].mxu0
    %v4212 = vadd.f32 0.0, %v4211
    %v4213 = vpop.f32.mrb[0].mxu0
    %v4214 = vadd.f32 0.0, %v4213
    %4215 = vdwg.mxu0
    %v4216 = vadd.f32 %v3966, %v4206
    %v4217 = vadd.f32 %v3968, %v4208
    %v4218 = vadd.f32 %v3972, %v4212
    %v4219 = vadd.f32 %v3974, %v4214
    %v4220 = vadd.s32 %v3493, 2
    %v4221 = vadd.s32 %v3494, 2
    %v4222 = vadd.s32 %v3497, %v4220
    %v4223 = vadd.s32 %v3498, %v4221
    %vm4224 = vcmp.eq.s32.totalorder %v122, %v4222
    %vm4225 = vcmp.eq.s32.totalorder %v122, %v4223
    %vm4226 = vcmp.ge.s32.totalorder %v4220, 0
    %vm4227 = vcmp.ge.s32.totalorder %v4221, 0
    %vm4228 = vmand %vm4224, %vm4226
    %vm4229 = vmand %vm4225, %vm4227
    %vm4230 = vcmp.lt.s32.totalorder %v4220, 16
    %vm4231 = vcmp.lt.s32.totalorder %v4221, 16
    %vm4232 = vmand %vm4228, %vm4230
    %vm4233 = vmand %vm4229, %vm4231
    %v4234 = vsel %vm4232, 1.0, 0.0
    %v4235 = vsel %vm4233, 1.0, 0.0
    %v4237 = vsel %vm3513, %v4234, 0
    %v4240 = vsel %vm3513, %v4235, 0
    %4242 = vmatprep.subr.mxu0 %v3482
    %4243 = vmatpush1.msra.mxu0 %v3481
    %4244 = vmatprep.subr.mxu0 %v3484
    %4245 = vmatpush1.msra.mxu0 %v3483
    %4246 = vmatprep.subr.mxu0 %v3486
    %4247 = vmatpush1.msra.mxu0 %v3485
    %4248 = vmatprep.subr.mxu0 %v3488
    %4249 = vmatpush1.msra.mxu0 %v3487
    %4250 = vmatprep.subr.mxu0 0.0
    %4251 = vmatpush1.msra.mxu0 0.0
    %4252 = vmatprep.subr.mxu0 0.0
    %4253 = vmatpush1.msra.mxu0 0.0
    %4254 = vmatprep.subr.mxu0 0.0
    %4255 = vmatpush1.msra.mxu0 0.0
    %4256 = vmatprep.subr.mxu0 0.0
    %4257 = vmatpush1.msra.mxu0 0.0
    %4258 = vmatprep.subr.mxu0 0.0
    %4259 = vmatpush1.msra.mxu0 0.0
    %4260 = vmatprep.subr.mxu0 0.0
    %4261 = vmatpush1.msra.mxu0 0.0
    %4262 = vmatprep.subr.mxu0 0.0
    %4263 = vmatpush1.msra.mxu0 0.0
    %4264 = vmatprep.subr.mxu0 0.0
    %4265 = vmatpush1.msra.mxu0 0.0
    %4266 = vmatprep.subr.mxu0 0.0
    %4267 = vmatpush1.msra.mxu0 0.0
    %4268 = vmatprep.subr.mxu0 0.0
    %4269 = vmatpush1.msra.mxu0 0.0
    %4270 = vmatprep.subr.mxu0 0.0
    %4271 = vmatpush1.msra.mxu0 0.0
    %4272 = vmatprep.subr.mxu0 0.0
    %4273 = vmatpush1.msra.mxu0 0.0
    %4274 = vmatprep.subr.mxu0 0.0
    %4275 = vmatpush1.msra.mxu0 0.0
    %4276 = vmatprep.subr.mxu0 0.0
    %4277 = vmatpush1.msra.mxu0 0.0
    %4278 = vmatprep.subr.mxu0 0.0
    %4279 = vmatpush1.msra.mxu0 0.0
    %4280 = vmatprep.subr.mxu0 0.0
    %4281 = vmatpush1.msra.mxu0 0.0
    %4282 = vmatprep.subr.mxu0 0.0
    %4283 = vmatpush1.msra.mxu0 0.0
    %4284 = vmatprep.subr.mxu0 0.0
    %4285 = vmatpush1.msra.mxu0 0.0
    %4286 = vmatprep.subr.mxu0 0.0
    %4287 = vmatpush1.msra.mxu0 0.0
    %4288 = vmatprep.subr.mxu0 0.0
    %4289 = vmatpush1.msra.mxu0 0.0
    %4290 = vmatprep.subr.mxu0 0.0
    %4291 = vmatpush1.msra.mxu0 0.0
    %4292 = vmatprep.subr.mxu0 0.0
    %4293 = vmatpush1.msra.mxu0 0.0
    %4294 = vmatprep.subr.mxu0 0.0
    %4295 = vmatpush1.msra.mxu0 0.0
    %4296 = vmatprep.subr.mxu0 0.0
    %4297 = vmatpush1.msra.mxu0 0.0
    %4298 = vmatprep.subr.mxu0 0.0
    %4299 = vmatpush1.msra.mxu0 0.0
    %4300 = vmatprep.subr.mxu0 0.0
    %4301 = vmatpush1.msra.mxu0 0.0
    %4302 = vmatprep.subr.mxu0 0.0
    %4303 = vmatpush1.msra.mxu0 0.0
    %4304 = vmatprep.subr.mxu0 0.0
    %4305 = vmatpush1.msra.mxu0 0.0
    %4306 = vmatprep.mubr.f32.mxu0 0.0
    %4307 = vmatmul.mubr.f32.gmra.mrb[0].mxu0 %v4237
    %v4308 = vpop.f32.mrb[0].mxu0
    %v4309 = vadd.f32 0.0, %v4308
    %v4310 = vpop.f32.mrb[0].mxu0
    %v4311 = vadd.f32 0.0, %v4310
    %4312 = vmatprep.mubr.f32.mxu0 0.0
    %4313 = vmatmul.mubr.f32.gmra.mrb[0].mxu0 %v4240
    %v4314 = vpop.f32.mrb[0].mxu0
    %v4315 = vadd.f32 0.0, %v4314
    %v4316 = vpop.f32.mrb[0].mxu0
    %v4317 = vadd.f32 0.0, %v4316
    %4318 = vdwg.mxu0
    %v4319 = vld [vmem:[#allocation5 + $0x600] sm:$0xff]
    %v4320 = vld [vmem:[#allocation5 + $0x608] sm:$0xff]
    %v4321 = vld [vmem:[#allocation5 + $0x610] sm:$0xff]
    %v4322 = vld [vmem:[#allocation5 + $0x618] sm:$0xff]
    %v4323 = vld [vmem:[#allocation5 + $0x620] sm:$0xff]
    %v4324 = vld [vmem:[#allocation5 + $0x628] sm:$0xff]
    %v4325 = vld [vmem:[#allocation5 + $0x630] sm:$0xff]
    %v4326 = vld [vmem:[#allocation5 + $0x638] sm:$0xff]
    %v4327 = vld [vmem:[#allocation5 + $0x640] sm:$0xff]
    %v4328 = vld [vmem:[#allocation5 + $0x648] sm:$0xff]
    %v4329 = vld [vmem:[#allocation5 + $0x650] sm:$0xff]
    %v4330 = vld [vmem:[#allocation5 + $0x658] sm:$0xff]
    %v4331 = vld [vmem:[#allocation5 + $0x660] sm:$0xff]
    %v4332 = vld [vmem:[#allocation5 + $0x668] sm:$0xff]
    %v4333 = vld [vmem:[#allocation5 + $0x670] sm:$0xff]
    %v4334 = vld [vmem:[#allocation5 + $0x678] sm:$0xff]
    %v4335 = vld [vmem:[#allocation5 + $0x680] sm:$0xff]
    %v4336 = vld [vmem:[#allocation5 + $0x688] sm:$0xff]
    %v4337 = vld [vmem:[#allocation5 + $0x690] sm:$0xff]
    %v4338 = vld [vmem:[#allocation5 + $0x698] sm:$0xff]
    %v4339 = vld [vmem:[#allocation5 + $0x6a0] sm:$0xff]
    %v4340 = vld [vmem:[#allocation5 + $0x6a8] sm:$0xff]
    %v4341 = vld [vmem:[#allocation5 + $0x6b0] sm:$0xff]
    %v4342 = vld [vmem:[#allocation5 + $0x6b8] sm:$0xff]
    %v4343 = vld [vmem:[#allocation5 + $0x6c0] sm:$0xff]
    %v4344 = vld [vmem:[#allocation5 + $0x6c8] sm:$0xff]
    %v4345 = vld [vmem:[#allocation5 + $0x6d0] sm:$0xff]
    %v4346 = vld [vmem:[#allocation5 + $0x6d8] sm:$0xff]
    %v4347 = vld [vmem:[#allocation5 + $0x6e0] sm:$0xff]
    %v4348 = vld [vmem:[#allocation5 + $0x6e8] sm:$0xff]
    %v4349 = vld [vmem:[#allocation5 + $0x6f0] sm:$0xff]
    %v4350 = vld [vmem:[#allocation5 + $0x6f8] sm:$0xff]
    %v4351 = vld [vmem:[#allocation5 + $0x700] sm:$0xff]
    %v4352 = vld [vmem:[#allocation5 + $0x708] sm:$0xff]
    %v4353 = vld [vmem:[#allocation5 + $0x710] sm:$0xff]
    %v4354 = vld [vmem:[#allocation5 + $0x718] sm:$0xff]
    %v4355 = vld [vmem:[#allocation5 + $0x720] sm:$0xff]
    %v4356 = vld [vmem:[#allocation5 + $0x728] sm:$0xff]
    %v4357 = vld [vmem:[#allocation5 + $0x730] sm:$0xff]
    %v4358 = vld [vmem:[#allocation5 + $0x738] sm:$0xff]
    %v4359 = vld [vmem:[#allocation5 + $0x740] sm:$0xff]
    %v4360 = vld [vmem:[#allocation5 + $0x748] sm:$0xff]
    %v4361 = vld [vmem:[#allocation5 + $0x750] sm:$0xff]
    %v4362 = vld [vmem:[#allocation5 + $0x758] sm:$0xff]
    %v4363 = vld [vmem:[#allocation5 + $0x760] sm:$0xff]
    %v4364 = vld [vmem:[#allocation5 + $0x768] sm:$0xff]
    %v4365 = vld [vmem:[#allocation5 + $0x770] sm:$0xff]
    %v4366 = vld [vmem:[#allocation5 + $0x778] sm:$0xff]
    %v4367 = vld [vmem:[#allocation5 + $0x780] sm:$0xff]
    %v4368 = vld [vmem:[#allocation5 + $0x788] sm:$0xff]
    %v4369 = vld [vmem:[#allocation5 + $0x790] sm:$0xff]
    %v4370 = vld [vmem:[#allocation5 + $0x798] sm:$0xff]
    %v4371 = vld [vmem:[#allocation5 + $0x7a0] sm:$0xff]
    %v4372 = vld [vmem:[#allocation5 + $0x7a8] sm:$0xff]
    %v4373 = vld [vmem:[#allocation5 + $0x7b0] sm:$0xff]
    %v4374 = vld [vmem:[#allocation5 + $0x7b8] sm:$0xff]
    %v4375 = vld [vmem:[#allocation5 + $0x7c0] sm:$0xff]
    %v4376 = vld [vmem:[#allocation5 + $0x7c8] sm:$0xff]
    %v4377 = vld [vmem:[#allocation5 + $0x7d0] sm:$0xff]
    %v4378 = vld [vmem:[#allocation5 + $0x7d8] sm:$0xff]
    %v4379 = vld [vmem:[#allocation5 + $0x7e0] sm:$0xff]
    %v4380 = vld [vmem:[#allocation5 + $0x7e8] sm:$0xff]
    %v4381 = vld [vmem:[#allocation5 + $0x7f0] sm:$0xff]
    %v4382 = vld [vmem:[#allocation5 + $0x7f8] sm:$0xff]
    %4383 = vmatprep.subr.mxu0 %v4320
    %4384 = vmatpush1.msra.mxu0 %v4319
    %4385 = vmatprep.subr.mxu0 %v4322
    %4386 = vmatpush1.msra.mxu0 %v4321
    %4387 = vmatprep.subr.mxu0 %v4324
    %4388 = vmatpush1.msra.mxu0 %v4323
    %4389 = vmatprep.subr.mxu0 %v4326
    %4390 = vmatpush1.msra.mxu0 %v4325
    %4391 = vmatprep.subr.mxu0 %v4328
    %4392 = vmatpush1.msra.mxu0 %v4327
    %4393 = vmatprep.subr.mxu0 %v4330
    %4394 = vmatpush1.msra.mxu0 %v4329
    %4395 = vmatprep.subr.mxu0 %v4332
    %4396 = vmatpush1.msra.mxu0 %v4331
    %4397 = vmatprep.subr.mxu0 %v4334
    %4398 = vmatpush1.msra.mxu0 %v4333
    %4399 = vmatprep.subr.mxu0 %v4336
    %4400 = vmatpush1.msra.mxu0 %v4335
    %4401 = vmatprep.subr.mxu0 %v4338
    %4402 = vmatpush1.msra.mxu0 %v4337
    %4403 = vmatprep.subr.mxu0 %v4340
    %4404 = vmatpush1.msra.mxu0 %v4339
    %4405 = vmatprep.subr.mxu0 %v4342
    %4406 = vmatpush1.msra.mxu0 %v4341
    %4407 = vmatprep.subr.mxu0 %v4344
    %4408 = vmatpush1.msra.mxu0 %v4343
    %4409 = vmatprep.subr.mxu0 %v4346
    %4410 = vmatpush1.msra.mxu0 %v4345
    %4411 = vmatprep.subr.mxu0 %v4348
    %4412 = vmatpush1.msra.mxu0 %v4347
    %4413 = vmatprep.subr.mxu0 %v4350
    %4414 = vmatpush1.msra.mxu0 %v4349
    %4415 = vmatprep.subr.mxu0 %v4352
    %4416 = vmatpush1.msra.mxu0 %v4351
    %4417 = vmatprep.subr.mxu0 %v4354
    %4418 = vmatpush1.msra.mxu0 %v4353
    %4419 = vmatprep.subr.mxu0 %v4356
    %4420 = vmatpush1.msra.mxu0 %v4355
    %4421 = vmatprep.subr.mxu0 %v4358
    %4422 = vmatpush1.msra.mxu0 %v4357
    %4423 = vmatprep.subr.mxu0 %v4360
    %4424 = vmatpush1.msra.mxu0 %v4359
    %4425 = vmatprep.subr.mxu0 %v4362
    %4426 = vmatpush1.msra.mxu0 %v4361
    %4427 = vmatprep.subr.mxu0 %v4364
    %4428 = vmatpush1.msra.mxu0 %v4363
    %4429 = vmatprep.subr.mxu0 %v4366
    %4430 = vmatpush1.msra.mxu0 %v4365
    %4431 = vmatprep.subr.mxu0 %v4368
    %4432 = vmatpush1.msra.mxu0 %v4367
    %4433 = vmatprep.subr.mxu0 %v4370
    %4434 = vmatpush1.msra.mxu0 %v4369
    %4435 = vmatprep.subr.mxu0 %v4372
    %4436 = vmatpush1.msra.mxu0 %v4371
    %4437 = vmatprep.subr.mxu0 %v4374
    %4438 = vmatpush1.msra.mxu0 %v4373
    %4439 = vmatprep.subr.mxu0 %v4376
    %4440 = vmatpush1.msra.mxu0 %v4375
    %4441 = vmatprep.subr.mxu0 %v4378
    %4442 = vmatpush1.msra.mxu0 %v4377
    %4443 = vmatprep.subr.mxu0 %v4380
    %4444 = vmatpush1.msra.mxu0 %v4379
    %4445 = vmatprep.subr.mxu0 %v4382
    %4446 = vmatpush1.msra.mxu0 %v4381
    %4447 = vmatprep.mubr.f32.mxu0 %v4311
    %4448 = vmatmul.mubr.f32.gmra.mrb[0].mxu0 %v4309
    %v4449 = vpop.f32.mrb[0].mxu0
    %v4450 = vadd.f32 0.0, %v4449
    %v4451 = vpop.f32.mrb[0].mxu0
    %v4452 = vadd.f32 0.0, %v4451
    %4453 = vmatprep.mubr.f32.mxu0 %v4317
    %4454 = vmatmul.mubr.f32.gmra.mrb[0].mxu0 %v4315
    %v4455 = vpop.f32.mrb[0].mxu0
    %v4456 = vadd.f32 0.0, %v4455
    %v4457 = vpop.f32.mrb[0].mxu0
    %v4458 = vadd.f32 0.0, %v4457
    %4459 = vdwg.mxu0
    %v4460 = vadd.f32 %v4216, %v4450
    %v4461 = vadd.f32 %v4217, %v4452
    %v4462 = vadd.f32 %v4218, %v4456
    %v4463 = vadd.f32 %v4219, %v4458
    %v4464 = vand.u32 %v2876, 31
    %v4465 = vand.u32 %v2877, 31
    %v4466 = vand.u32 %v2878, 31
    %v4467 = vand.u32 %v2879, 31
    %v4468 = vand.u32 %v2880, 31
    %v4469 = vand.u32 %v2881, 31
    %v4470 = vand.u32 %v2882, 31
    %v4471 = vand.u32 %v2883, 31
    %v4472 = vand.u32 %v2884, 31
    %v4473 = vand.u32 %v2885, 31
    %v4474 = vand.u32 %v2886, 31
    %v4475 = vand.u32 %v2887, 31
    %v4476 = vand.u32 %v2888, 31
    %v4477 = vand.u32 %v2889, 31
    %v4478 = vand.u32 %v2890, 31
    %v4479 = vand.u32 %v2891, 31
    %v4480 = vand.u32 %v2892, 31
    %v4481 = vand.u32 %v2893, 31
    %v4482 = vand.u32 %v2894, 31
    %v4483 = vand.u32 %v2895, 31
    %v4484 = vand.u32 %v2896, 31
    %v4485 = vand.u32 %v2897, 31
    %v4486 = vand.u32 %v2898, 31
    %v4487 = vand.u32 %v2899, 31
    %vm4488 = vcmp.eq.s32.totalorder %v131, %v122
    %vm4489 = vcmp.eq.s32.totalorder %v132, %v122
    %vm4490 = vcmp.eq.s32.totalorder %v133, %v122
    %vm4491 = vcmp.eq.s32.totalorder %v134, %v122
    %vm4492 = vcmp.eq.s32.totalorder %v135, %v122
    %vm4493 = vcmp.eq.s32.totalorder %v136, %v122
    %vm4494 = vcmp.eq.s32.totalorder %v137, %v122
    %vm4495 = vcmp.eq.s32.totalorder %v138, %v122
    %vm4496 = vcmp.eq.s32.totalorder %v4464, %v122
    %vm4497 = vcmp.eq.s32.totalorder %v4465, %v122
    %vm4498 = vcmp.eq.s32.totalorder %v4466, %v122
    %vm4499 = vcmp.eq.s32.totalorder %v4467, %v122
    %vm4500 = vcmp.eq.s32.totalorder %v4468, %v122
    %vm4501 = vcmp.eq.s32.totalorder %v4469, %v122
    %vm4502 = vcmp.eq.s32.totalorder %v4470, %v122
    %vm4503 = vcmp.eq.s32.totalorder %v4471, %v122
    %vm4504 = vcmp.eq.s32.totalorder %v4472, %v122
    %vm4505 = vcmp.eq.s32.totalorder %v4473, %v122
    %vm4506 = vcmp.eq.s32.totalorder %v4474, %v122
    %vm4507 = vcmp.eq.s32.totalorder %v4475, %v122
    %vm4508 = vcmp.eq.s32.totalorder %v4476, %v122
    %vm4509 = vcmp.eq.s32.totalorder %v4477, %v122
    %vm4510 = vcmp.eq.s32.totalorder %v4478, %v122
    %vm4511 = vcmp.eq.s32.totalorder %v4479, %v122
    %vm4512 = vcmp.eq.s32.totalorder %v4480, %v122
    %vm4513 = vcmp.eq.s32.totalorder %v4481, %v122
    %vm4514 = vcmp.eq.s32.totalorder %v4482, %v122
    %vm4515 = vcmp.eq.s32.totalorder %v4483, %v122
    %vm4516 = vcmp.eq.s32.totalorder %v4484, %v122
    %vm4517 = vcmp.eq.s32.totalorder %v4485, %v122
    %vm4518 = vcmp.eq.s32.totalorder %v4486, %v122
    %vm4519 = vcmp.eq.s32.totalorder %v4487, %v122
    %v4520 = vsel %vm4488, 1.0, 0.0
    %v4521 = vsel %vm4489, 1.0, 0.0
    %v4522 = vsel %vm4490, 1.0, 0.0
    %v4523 = vsel %vm4491, 1.0, 0.0
    %v4524 = vsel %vm4492, 1.0, 0.0
    %v4525 = vsel %vm4493, 1.0, 0.0
    %v4526 = vsel %vm4494, 1.0, 0.0
    %v4527 = vsel %vm4495, 1.0, 0.0
    %v4528 = vsel %vm4496, 1.0, 0.0
    %v4529 = vsel %vm4497, 1.0, 0.0
    %v4530 = vsel %vm4498, 1.0, 0.0
    %v4531 = vsel %vm4499, 1.0, 0.0
    %v4532 = vsel %vm4500, 1.0, 0.0
    %v4533 = vsel %vm4501, 1.0, 0.0
    %v4534 = vsel %vm4502, 1.0, 0.0
    %v4535 = vsel %vm4503, 1.0, 0.0
    %v4536 = vsel %vm4504, 1.0, 0.0
    %v4537 = vsel %vm4505, 1.0, 0.0
    %v4538 = vsel %vm4506, 1.0, 0.0
    %v4539 = vsel %vm4507, 1.0, 0.0
    %v4540 = vsel %vm4508, 1.0, 0.0
    %v4541 = vsel %vm4509, 1.0, 0.0
    %v4542 = vsel %vm4510, 1.0, 0.0
    %v4543 = vsel %vm4511, 1.0, 0.0
    %v4544 = vsel %vm4512, 1.0, 0.0
    %v4545 = vsel %vm4513, 1.0, 0.0
    %v4546 = vsel %vm4514, 1.0, 0.0
    %v4547 = vsel %vm4515, 1.0, 0.0
    %v4548 = vsel %vm4516, 1.0, 0.0
    %v4549 = vsel %vm4517, 1.0, 0.0
    %v4550 = vsel %vm4518, 1.0, 0.0
    %v4551 = vsel %vm4519, 1.0, 0.0
    %v4552 = vand.u32 %v122, 31
    %v4553 = vand.u32 %v2992, 31
    %vm4554 = vcmp.eq.s32.totalorder %v4552, %v113
    %vm4555 = vcmp.eq.s32.totalorder %v4553, %v113
    %vm4556 = vcmp.eq.s32.totalorder %v4552, %v114
    %vm4557 = vcmp.eq.s32.totalorder %v4553, %v114
    %vm4558 = vcmp.eq.s32.totalorder %v4552, %v115
    %vm4559 = vcmp.eq.s32.totalorder %v4553, %v115
    %vm4560 = vcmp.eq.s32.totalorder %v4552, %v116
    %vm4561 = vcmp.eq.s32.totalorder %v4553, %v116
    %v4562 = vsel %vm4554, 1.0, 0.0
    %v4563 = vsel %vm4555, 1.0, 0.0
    %v4564 = vsel %vm4556, 1.0, 0.0
    %v4565 = vsel %vm4557, 1.0, 0.0
    %v4566 = vsel %vm4558, 1.0, 0.0
    %v4567 = vsel %vm4559, 1.0, 0.0
    %v4568 = vsel %vm4560, 1.0, 0.0
    %v4569 = vsel %vm4561, 1.0, 0.0
    %v4570 = vld [vmem:[%s6] sm:$0x3]
    %v4571 = vadd.f32 %v4460, %v4462
    %v4572 = vrot.slane %v4571, 4
    %v4573 = vadd.f32 %v4571, %v4572
    %v4574 = vrot.slane %v4573, 2
    %v4575 = vadd.f32 %v4573, %v4574
    %v4576 = vrot.slane %v4575, 1
    %v4577 = vadd.f32 %v4575, %v4576
    %v4578 = vadd.f32 %v4461, %v4463
    %v4579 = vrot.slane %v4578, 4
    %v4580 = vadd.f32 %v4578, %v4579
    %v4581 = vrot.slane %v4580, 2
    %v4582 = vadd.f32 %v4580, %v4581
    %v4583 = vrot.slane %v4582, 1
    %v4584 = vadd.f32 %v4582, %v4583
    %4585 = vmatprep.subr.mxu0 0.0
    %4586 = vmatpush1.msra.mxu0 %v4520
    %4587 = vmatprep.subr.mxu0 0.0
    %4588 = vmatpush1.msra.mxu0 %v4521
    %4589 = vmatprep.subr.mxu0 0.0
    %4590 = vmatpush1.msra.mxu0 %v4522
    %4591 = vmatprep.subr.mxu0 0.0
    %4592 = vmatpush1.msra.mxu0 %v4523
    %4593 = vmatprep.subr.mxu0 0.0
    %4594 = vmatpush1.msra.mxu0 %v4524
    %4595 = vmatprep.subr.mxu0 0.0
    %4596 = vmatpush1.msra.mxu0 %v4525
    %4597 = vmatprep.subr.mxu0 0.0
    %4598 = vmatpush1.msra.mxu0 %v4526
    %4599 = vmatprep.subr.mxu0 0.0
    %4600 = vmatpush1.msra.mxu0 %v4527
    %4601 = vmatprep.subr.mxu0 0.0
    %4602 = vmatpush1.msra.mxu0 %v4528
    %4603 = vmatprep.subr.mxu0 0.0
    %4604 = vmatpush1.msra.mxu0 %v4529
    %4605 = vmatprep.subr.mxu0 0.0
    %4606 = vmatpush1.msra.mxu0 %v4530
    %4607 = vmatprep.subr.mxu0 0.0
    %4608 = vmatpush1.msra.mxu0 %v4531
    %4609 = vmatprep.subr.mxu0 0.0
    %4610 = vmatpush1.msra.mxu0 %v4532
    %4611 = vmatprep.subr.mxu0 0.0
    %4612 = vmatpush1.msra.mxu0 %v4533
    %4613 = vmatprep.subr.mxu0 0.0
    %4614 = vmatpush1.msra.mxu0 %v4534
    %4615 = vmatprep.subr.mxu0 0.0
    %4616 = vmatpush1.msra.mxu0 %v4535
    %4617 = vmatprep.subr.mxu0 0.0
    %4618 = vmatpush1.msra.mxu0 %v4536
    %4619 = vmatprep.subr.mxu0 0.0
    %4620 = vmatpush1.msra.mxu0 %v4537
    %4621 = vmatprep.subr.mxu0 0.0
    %4622 = vmatpush1.msra.mxu0 %v4538
    %4623 = vmatprep.subr.mxu0 0.0
    %4624 = vmatpush1.msra.mxu0 %v4539
    %4625 = vmatprep.subr.mxu0 0.0
    %4626 = vmatpush1.msra.mxu0 %v4540
    %4627 = vmatprep.subr.mxu0 0.0
    %4628 = vmatpush1.msra.mxu0 %v4541
    %4629 = vmatprep.subr.mxu0 0.0
    %4630 = vmatpush1.msra.mxu0 %v4542
    %4631 = vmatprep.subr.mxu0 0.0
    %4632 = vmatpush1.msra.mxu0 %v4543
    %4633 = vmatprep.subr.mxu0 0.0
    %4634 = vmatpush1.msra.mxu0 %v4544
    %4635 = vmatprep.subr.mxu0 0.0
    %4636 = vmatpush1.msra.mxu0 %v4545
    %4637 = vmatprep.subr.mxu0 0.0
    %4638 = vmatpush1.msra.mxu0 %v4546
    %4639 = vmatprep.subr.mxu0 0.0
    %4640 = vmatpush1.msra.mxu0 %v4547
    %4641 = vmatprep.subr.mxu0 0.0
    %4642 = vmatpush1.msra.mxu0 %v4548
    %4643 = vmatprep.subr.mxu0 0.0
    %4644 = vmatpush1.msra.mxu0 %v4549
    %4645 = vmatprep.subr.mxu0 0.0
    %4646 = vmatpush1.msra.mxu0 %v4550
    %4647 = vmatprep.subr.mxu0 0.0
    %4648 = vmatpush1.msra.mxu0 %v4551
    %4649 = vmatprep.mubr.f32.mxu0 %v4584
    %4650 = vmatmul.mubr.f32.gmra.mrb[0].mxu0 %v4577
    %v4651 = vpop.f32.mrb[0].mxu0
    %v4652 = vadd.f32 0.0, %v4651
    %v4653 = vpop.f32.mrb[0].mxu0
    %4654 = vdwg.mxu0
    %v4655 = vmul.f32 %v4652, 0.0078125
    %v4657 = vsel %vm3513, %v4655, 0
    %4659 = vmatprep.subr.mxu0 %v4563
    %4660 = vmatpush1.msra.mxu0 %v4562
    %4661 = vmatprep.subr.mxu0 %v4565
    %4662 = vmatpush1.msra.mxu0 %v4564
    %4663 = vmatprep.subr.mxu0 %v4567
    %4664 = vmatpush1.msra.mxu0 %v4566
    %4665 = vmatprep.subr.mxu0 %v4569
    %4666 = vmatpush1.msra.mxu0 %v4568
    %4667 = vmatprep.subr.mxu0 0.0
    %4668 = vmatpush1.msra.mxu0 0.0
    %4669 = vmatprep.subr.mxu0 0.0
    %4670 = vmatpush1.msra.mxu0 0.0
    %4671 = vmatprep.subr.mxu0 0.0
    %4672 = vmatpush1.msra.mxu0 0.0
    %4673 = vmatprep.subr.mxu0 0.0
    %4674 = vmatpush1.msra.mxu0 0.0
    %4675 = vmatprep.subr.mxu0 0.0
    %4676 = vmatpush1.msra.mxu0 0.0
    %4677 = vmatprep.subr.mxu0 0.0
    %4678 = vmatpush1.msra.mxu0 0.0
    %4679 = vmatprep.subr.mxu0 0.0
    %4680 = vmatpush1.msra.mxu0 0.0
    %4681 = vmatprep.subr.mxu0 0.0
    %4682 = vmatpush1.msra.mxu0 0.0
    %4683 = vmatprep.subr.mxu0 0.0
    %4684 = vmatpush1.msra.mxu0 0.0
    %4685 = vmatprep.subr.mxu0 0.0
    %4686 = vmatpush1.msra.mxu0 0.0
    %4687 = vmatprep.subr.mxu0 0.0
    %4688 = vmatpush1.msra.mxu0 0.0
    %4689 = vmatprep.subr.mxu0 0.0
    %4690 = vmatpush1.msra.mxu0 0.0
    %4691 = vmatprep.subr.mxu0 0.0
    %4692 = vmatpush1.msra.mxu0 0.0
    %4693 = vmatprep.subr.mxu0 0.0
    %4694 = vmatpush1.msra.mxu0 0.0
    %4695 = vmatprep.subr.mxu0 0.0
    %4696 = vmatpush1.msra.mxu0 0.0
    %4697 = vmatprep.subr.mxu0 0.0
    %4698 = vmatpush1.msra.mxu0 0.0
    %4699 = vmatprep.subr.mxu0 0.0
    %4700 = vmatpush1.msra.mxu0 0.0
    %4701 = vmatprep.subr.mxu0 0.0
    %4702 = vmatpush1.msra.mxu0 0.0
    %4703 = vmatprep.subr.mxu0 0.0
    %4704 = vmatpush1.msra.mxu0 0.0
    %4705 = vmatprep.subr.mxu0 0.0
    %4706 = vmatpush1.msra.mxu0 0.0
    %4707 = vmatprep.subr.mxu0 0.0
    %4708 = vmatpush1.msra.mxu0 0.0
    %4709 = vmatprep.subr.mxu0 0.0
    %4710 = vmatpush1.msra.mxu0 0.0
    %4711 = vmatprep.subr.mxu0 0.0
    %4712 = vmatpush1.msra.mxu0 0.0
    %4713 = vmatprep.subr.mxu0 0.0
    %4714 = vmatpush1.msra.mxu0 0.0
    %4715 = vmatprep.subr.mxu0 0.0
    %4716 = vmatpush1.msra.mxu0 0.0
    %4717 = vmatprep.subr.mxu0 0.0
    %4718 = vmatpush1.msra.mxu0 0.0
    %4719 = vmatprep.subr.mxu0 0.0
    %4720 = vmatpush1.msra.mxu0 0.0
    %4721 = vmatprep.subr.mxu0 0.0
    %4722 = vmatpush1.msra.mxu0 0.0
    %4723 = vmatprep.mubr.f32.mxu0 0.0
    %4724 = vmatmul.mubr.f32.gmra.mrb[0].mxu0 %v4657
    %v4725 = vpop.f32.mrb[0].mxu0
    %v4726 = vadd.f32 0.0, %v4725
    %v4727 = vpop.f32.mrb[0].mxu0
    %v4728 = vadd.f32 0.0, %v4727
    %4729 = vdwg.mxu0
    %v4730 = vlaneseq
    %v4731 = vshrl.u32 %v4730, 7
    %v4732 = vsub.s32 0, %v4731
    %v4733 = vrot.slane %v4726, %v4732
    %v4734 = vlaneseq
    %v4735 = vshrl.u32 %v4734, 7
    %v4736 = vsub.s32 0, %v4735
    %v4737 = vrot.slane %v4728, %v4736
    %v4738 = vsub.f32 %v4460, %v4733
    %v4739 = vsub.f32 %v4461, %v4737
    %v4740 = vsub.f32 %v4462, %v4733
    %v4741 = vsub.f32 %v4463, %v4737
    %v4742 = vmul.f32 %v4738, %v4738
    %v4743 = vmul.f32 %v4739, %v4739
    %v4744 = vmul.f32 %v4740, %v4740
    %v4745 = vmul.f32 %v4741, %v4741
    %v4746 = vadd.f32 %v4742, %v4744
    %v4747 = vrot.slane %v4746, 4
    %v4748 = vadd.f32 %v4746, %v4747
    %v4749 = vrot.slane %v4748, 2
    %v4750 = vadd.f32 %v4748, %v4749
    %v4751 = vrot.slane %v4750, 1
    %v4752 = vadd.f32 %v4750, %v4751
    %v4753 = vadd.f32 %v4743, %v4745
    %v4754 = vrot.slane %v4753, 4
    %v4755 = vadd.f32 %v4753, %v4754
    %v4756 = vrot.slane %v4755, 2
    %v4757 = vadd.f32 %v4755, %v4756
    %v4758 = vrot.slane %v4757, 1
    %v4759 = vadd.f32 %v4757, %v4758
    %4760 = vmatprep.subr.mxu0 0.0
    %4761 = vmatpush1.msra.mxu0 %v4520
    %4762 = vmatprep.subr.mxu0 0.0
    %4763 = vmatpush1.msra.mxu0 %v4521
    %4764 = vmatprep.subr.mxu0 0.0
    %4765 = vmatpush1.msra.mxu0 %v4522
    %4766 = vmatprep.subr.mxu0 0.0
    %4767 = vmatpush1.msra.mxu0 %v4523
    %4768 = vmatprep.subr.mxu0 0.0
    %4769 = vmatpush1.msra.mxu0 %v4524
    %4770 = vmatprep.subr.mxu0 0.0
    %4771 = vmatpush1.msra.mxu0 %v4525
    %4772 = vmatprep.subr.mxu0 0.0
    %4773 = vmatpush1.msra.mxu0 %v4526
    %4774 = vmatprep.subr.mxu0 0.0
    %4775 = vmatpush1.msra.mxu0 %v4527
    %4776 = vmatprep.subr.mxu0 0.0
    %4777 = vmatpush1.msra.mxu0 %v4528
    %4778 = vmatprep.subr.mxu0 0.0
    %4779 = vmatpush1.msra.mxu0 %v4529
    %4780 = vmatprep.subr.mxu0 0.0
    %4781 = vmatpush1.msra.mxu0 %v4530
    %4782 = vmatprep.subr.mxu0 0.0
    %4783 = vmatpush1.msra.mxu0 %v4531
    %4784 = vmatprep.subr.mxu0 0.0
    %4785 = vmatpush1.msra.mxu0 %v4532
    %4786 = vmatprep.subr.mxu0 0.0
    %4787 = vmatpush1.msra.mxu0 %v4533
    %4788 = vmatprep.subr.mxu0 0.0
    %4789 = vmatpush1.msra.mxu0 %v4534
    %4790 = vmatprep.subr.mxu0 0.0
    %4791 = vmatpush1.msra.mxu0 %v4535
    %4792 = vmatprep.subr.mxu0 0.0
    %4793 = vmatpush1.msra.mxu0 %v4536
    %4794 = vmatprep.subr.mxu0 0.0
    %4795 = vmatpush1.msra.mxu0 %v4537
    %4796 = vmatprep.subr.mxu0 0.0
    %4797 = vmatpush1.msra.mxu0 %v4538
    %4798 = vmatprep.subr.mxu0 0.0
    %4799 = vmatpush1.msra.mxu0 %v4539
    %4800 = vmatprep.subr.mxu0 0.0
    %4801 = vmatpush1.msra.mxu0 %v4540
    %4802 = vmatprep.subr.mxu0 0.0
    %4803 = vmatpush1.msra.mxu0 %v4541
    %4804 = vmatprep.subr.mxu0 0.0
    %4805 = vmatpush1.msra.mxu0 %v4542
    %4806 = vmatprep.subr.mxu0 0.0
    %4807 = vmatpush1.msra.mxu0 %v4543
    %4808 = vmatprep.subr.mxu0 0.0
    %4809 = vmatpush1.msra.mxu0 %v4544
    %4810 = vmatprep.subr.mxu0 0.0
    %4811 = vmatpush1.msra.mxu0 %v4545
    %4812 = vmatprep.subr.mxu0 0.0
    %4813 = vmatpush1.msra.mxu0 %v4546
    %4814 = vmatprep.subr.mxu0 0.0
    %4815 = vmatpush1.msra.mxu0 %v4547
    %4816 = vmatprep.subr.mxu0 0.0
    %4817 = vmatpush1.msra.mxu0 %v4548
    %4818 = vmatprep.subr.mxu0 0.0
    %4819 = vmatpush1.msra.mxu0 %v4549
    %4820 = vmatprep.subr.mxu0 0.0
    %4821 = vmatpush1.msra.mxu0 %v4550
    %4822 = vmatprep.subr.mxu0 0.0
    %4823 = vmatpush1.msra.mxu0 %v4551
    %4824 = vmatprep.mubr.f32.mxu0 %v4759
    %4825 = vmatmul.mubr.f32.gmra.mrb[0].mxu0 %v4752
    %v4826 = vpop.f32.mrb[0].mxu0
    %v4827 = vadd.f32 0.0, %v4826
    %v4828 = vpop.f32.mrb[0].mxu0
    %4829 = vdwg.mxu0
    %v4830 = vmul.f32 %v4827, 0.0078125
    %v4831 = vadd.f32 %v4830, 1e-05
    %v4832 = vrsqrt.pop %v4831
    %v4833 = vmul.f32 %v4570, %v4832
    %v4835 = vsel %vm3513, %v4833, 0
    %4837 = vmatprep.subr.mxu0 %v4563
    %4838 = vmatpush1.msra.mxu0 %v4562
    %4839 = vmatprep.subr.mxu0 %v4565
    %4840 = vmatpush1.msra.mxu0 %v4564
    %4841 = vmatprep.subr.mxu0 %v4567
    %4842 = vmatpush1.msra.mxu0 %v4566
    %4843 = vmatprep.subr.mxu0 %v4569
    %4844 = vmatpush1.msra.mxu0 %v4568
    %4845 = vmatprep.subr.mxu0 0.0
    %4846 = vmatpush1.msra.mxu0 0.0
    %4847 = vmatprep.subr.mxu0 0.0
    %4848 = vmatpush1.msra.mxu0 0.0
    %4849 = vmatprep.subr.mxu0 0.0
    %4850 = vmatpush1.msra.mxu0 0.0
    %4851 = vmatprep.subr.mxu0 0.0
    %4852 = vmatpush1.msra.mxu0 0.0
    %4853 = vmatprep.subr.mxu0 0.0
    %4854 = vmatpush1.msra.mxu0 0.0
    %4855 = vmatprep.subr.mxu0 0.0
    %4856 = vmatpush1.msra.mxu0 0.0
    %4857 = vmatprep.subr.mxu0 0.0
    %4858 = vmatpush1.msra.mxu0 0.0
    %4859 = vmatprep.subr.mxu0 0.0
    %4860 = vmatpush1.msra.mxu0 0.0
    %4861 = vmatprep.subr.mxu0 0.0
    %4862 = vmatpush1.msra.mxu0 0.0
    %4863 = vmatprep.subr.mxu0 0.0
    %4864 = vmatpush1.msra.mxu0 0.0
    %4865 = vmatprep.subr.mxu0 0.0
    %4866 = vmatpush1.msra.mxu0 0.0
    %4867 = vmatprep.subr.mxu0 0.0
    %4868 = vmatpush1.msra.mxu0 0.0
    %4869 = vmatprep.subr.mxu0 0.0
    %4870 = vmatpush1.msra.mxu0 0.0
    %4871 = vmatprep.subr.mxu0 0.0
    %4872 = vmatpush1.msra.mxu0 0.0
    %4873 = vmatprep.subr.mxu0 0.0
    %4874 = vmatpush1.msra.mxu0 0.0
    %4875 = vmatprep.subr.mxu0 0.0
    %4876 = vmatpush1.msra.mxu0 0.0
    %4877 = vmatprep.subr.mxu0 0.0
    %4878 = vmatpush1.msra.mxu0 0.0
    %4879 = vmatprep.subr.mxu0 0.0
    %4880 = vmatpush1.msra.mxu0 0.0
    %4881 = vmatprep.subr.mxu0 0.0
    %4882 = vmatpush1.msra.mxu0 0.0
    %4883 = vmatprep.subr.mxu0 0.0
    %4884 = vmatpush1.msra.mxu0 0.0
    %4885 = vmatprep.subr.mxu0 0.0
    %4886 = vmatpush1.msra.mxu0 0.0
    %4887 = vmatprep.subr.mxu0 0.0
    %4888 = vmatpush1.msra.mxu0 0.0
    %4889 = vmatprep.subr.mxu0 0.0
    %4890 = vmatpush1.msra.mxu0 0.0
    %4891 = vmatprep.subr.mxu0 0.0
    %4892 = vmatpush1.msra.mxu0 0.0
    %4893 = vmatprep.subr.mxu0 0.0
    %4894 = vmatpush1.msra.mxu0 0.0
    %4895 = vmatprep.subr.mxu0 0.0
    %4896 = vmatpush1.msra.mxu0 0.0
    %4897 = vmatprep.subr.mxu0 0.0
    %4898 = vmatpush1.msra.mxu0 0.0
    %4899 = vmatprep.subr.mxu0 0.0
    %4900 = vmatpush1.msra.mxu0 0.0
    %4901 = vmatprep.mubr.f32.mxu0 0.0
    %4902 = vmatmul.mubr.f32.gmra.mrb[0].mxu0 %v4835
    %v4903 = vpop.f32.mrb[0].mxu0
    %v4904 = vadd.f32 0.0, %v4903
    %v4905 = vpop.f32.mrb[0].mxu0
    %v4906 = vadd.f32 0.0, %v4905
    %4907 = vdwg.mxu0
    %v4908 = vlaneseq
    %v4909 = vshrl.u32 %v4908, 7
    %v4910 = vsub.s32 0, %v4909
    %v4911 = vrot.slane %v4904, %v4910
    %v4912 = vlaneseq
    %v4913 = vshrl.u32 %v4912, 7
    %v4914 = vsub.s32 0, %v4913
    %v4915 = vrot.slane %v4906, %v4914
    %v4916 = vmul.f32 %v4738, %v4911
    %v4917 = vmul.f32 %v4739, %v4915
    %v4918 = vmul.f32 %v4740, %v4911
    %v4919 = vmul.f32 %v4741, %v4915
    %v4921 = vrot.slane %v4570, 1
    %v4922 = vsel %vm3513, %v4921, 0
    %4924 = vmatprep.subr.mxu0 %v4563
    %4925 = vmatpush1.msra.mxu0 %v4562
    %4926 = vmatprep.subr.mxu0 %v4565
    %4927 = vmatpush1.msra.mxu0 %v4564
    %4928 = vmatprep.subr.mxu0 %v4567
    %4929 = vmatpush1.msra.mxu0 %v4566
    %4930 = vmatprep.subr.mxu0 %v4569
    %4931 = vmatpush1.msra.mxu0 %v4568
    %4932 = vmatprep.subr.mxu0 0.0
    %4933 = vmatpush1.msra.mxu0 0.0
    %4934 = vmatprep.subr.mxu0 0.0
    %4935 = vmatpush1.msra.mxu0 0.0
    %4936 = vmatprep.subr.mxu0 0.0
    %4937 = vmatpush1.msra.mxu0 0.0
    %4938 = vmatprep.subr.mxu0 0.0
    %4939 = vmatpush1.msra.mxu0 0.0
    %4940 = vmatprep.subr.mxu0 0.0
    %4941 = vmatpush1.msra.mxu0 0.0
    %4942 = vmatprep.subr.mxu0 0.0
    %4943 = vmatpush1.msra.mxu0 0.0
    %4944 = vmatprep.subr.mxu0 0.0
    %4945 = vmatpush1.msra.mxu0 0.0
    %4946 = vmatprep.subr.mxu0 0.0
    %4947 = vmatpush1.msra.mxu0 0.0
    %4948 = vmatprep.subr.mxu0 0.0
    %4949 = vmatpush1.msra.mxu0 0.0
    %4950 = vmatprep.subr.mxu0 0.0
    %4951 = vmatpush1.msra.mxu0 0.0
    %4952 = vmatprep.subr.mxu0 0.0
    %4953 = vmatpush1.msra.mxu0 0.0
    %4954 = vmatprep.subr.mxu0 0.0
    %4955 = vmatpush1.msra.mxu0 0.0
    %4956 = vmatprep.subr.mxu0 0.0
    %4957 = vmatpush1.msra.mxu0 0.0
    %4958 = vmatprep.subr.mxu0 0.0
    %4959 = vmatpush1.msra.mxu0 0.0
    %4960 = vmatprep.subr.mxu0 0.0
    %4961 = vmatpush1.msra.mxu0 0.0
    %4962 = vmatprep.subr.mxu0 0.0
    %4963 = vmatpush1.msra.mxu0 0.0
    %4964 = vmatprep.subr.mxu0 0.0
    %4965 = vmatpush1.msra.mxu0 0.0
    %4966 = vmatprep.subr.mxu0 0.0
    %4967 = vmatpush1.msra.mxu0 0.0
    %4968 = vmatprep.subr.mxu0 0.0
    %4969 = vmatpush1.msra.mxu0 0.0
    %4970 = vmatprep.subr.mxu0 0.0
    %4971 = vmatpush1.msra.mxu0 0.0
    %4972 = vmatprep.subr.mxu0 0.0
    %4973 = vmatpush1.msra.mxu0 0.0
    %4974 = vmatprep.subr.mxu0 0.0
    %4975 = vmatpush1.msra.mxu0 0.0
    %4976 = vmatprep.subr.mxu0 0.0
    %4977 = vmatpush1.msra.mxu0 0.0
    %4978 = vmatprep.subr.mxu0 0.0
    %4979 = vmatpush1.msra.mxu0 0.0
    %4980 = vmatprep.subr.mxu0 0.0
    %4981 = vmatpush1.msra.mxu0 0.0
    %4982 = vmatprep.subr.mxu0 0.0
    %4983 = vmatpush1.msra.mxu0 0.0
    %4984 = vmatprep.subr.mxu0 0.0
    %4985 = vmatpush1.msra.mxu0 0.0
    %4986 = vmatprep.subr.mxu0 0.0
    %4987 = vmatpush1.msra.mxu0 0.0
    %4988 = vmatprep.mubr.f32.mxu0 0.0
    %4989 = vmatmul.mubr.f32.gmra.mrb[0].mxu0 %v4922
    %v4990 = vpop.f32.mrb[0].mxu0
    %v4991 = vadd.f32 0.0, %v4990
    %v4992 = vpop.f32.mrb[0].mxu0
    %v4993 = vadd.f32 0.0, %v4992
    %4994 = vdwg.mxu0
    %v4995 = vlaneseq
    %v4996 = vshrl.u32 %v4995, 7
    %v4997 = vsub.s32 0, %v4996
    %v4998 = vrot.slane %v4991, %v4997
    %v4999 = vlaneseq
    %v5000 = vshrl.u32 %v4999, 7
    %v5001 = vsub.s32 0, %v5000
    %v5002 = vrot.slane %v4993, %v5001
    %v5003 = vadd.f32 %v4916, %v4998
    %v5004 = vadd.f32 %v4917, %v5002
    %v5005 = vadd.f32 %v4918, %v4998
    %v5006 = vadd.f32 %v4919, %v5002
    %vm5007 = vcmp.gt.f32.partialorder %v5003, 0.0
    %vm5008 = vcmp.gt.f32.partialorder %v5004, 0.0
    %vm5009 = vcmp.gt.f32.partialorder %v5005, 0.0
    %vm5010 = vcmp.gt.f32.partialorder %v5006, 0.0
    %v5011 = vmul.f32 %v5003, 0.2
    %v5012 = vmul.f32 %v5004, 0.2
    %v5013 = vmul.f32 %v5005, 0.2
    %v5014 = vmul.f32 %v5006, 0.2
    %v5015 = vsel %vm5007, %v5003, %v5011
    %v5016 = vsel %vm5008, %v5004, %v5012
    %v5017 = vsel %vm5009, %v5005, %v5013
    %v5018 = vsel %vm5010, %v5006, %v5014
    %v5019 = vshra.s32 %v113, 2
    %v5020 = vand.u32 %v113, 3
    %v5021 = vmul.u32 %v5020, 2
    %v5022 = vadd.s32 %v5021, 4294967295
    %v5023 = vmul.u32 %v5019, 8
    %v5024 = vadd.s32 %v5023, %v5022
    %vm5025 = vcmp.eq.s32.totalorder %v122, %v5024
    %vm5026 = vcmp.ge.s32.totalorder %v5022, 0
    %vm5027 = vmand %vm5025, %vm5026
    %vm5028 = vcmp.lt.s32.totalorder %v5022, 8
    %vm5029 = vmand %vm5027, %vm5028
    %v5030 = vsel %vm5029, 1.0, 0.0
    %v5032 = vsel %vm3093, %v5030, 0
    %5034 = vmatprep.subr.mxu0 %v5016
    %5035 = vmatpush1.msra.mxu0 %v5015
    %5036 = vmatprep.subr.mxu0 %v5018
    %5037 = vmatpush1.msra.mxu0 %v5017
    %5038 = vmatprep.subr.mxu0 0.0
    %5039 = vmatpush1.msra.mxu0 0.0
    %5040 = vmatprep.subr.mxu0 0.0
    %5041 = vmatpush1.msra.mxu0 0.0
    %5042 = vmatprep.subr.mxu0 0.0
    %5043 = vmatpush1.msra.mxu0 0.0
    %5044 = vmatprep.subr.mxu0 0.0
    %5045 = vmatpush1.msra.mxu0 0.0
    %5046 = vmatprep.subr.mxu0 0.0
    %5047 = vmatpush1.msra.mxu0 0.0
    %5048 = vmatprep.subr.mxu0 0.0
    %5049 = vmatpush1.msra.mxu0 0.0
    %5050 = vmatprep.subr.mxu0 0.0
    %5051 = vmatpush1.msra.mxu0 0.0
    %5052 = vmatprep.subr.mxu0 0.0
    %5053 = vmatpush1.msra.mxu0 0.0
    %5054 = vmatprep.subr.mxu0 0.0
    %5055 = vmatpush1.msra.mxu0 0.0
    %5056 = vmatprep.subr.mxu0 0.0
    %5057 = vmatpush1.msra.mxu0 0.0
    %5058 = vmatprep.subr.mxu0 0.0
    %5059 = vmatpush1.msra.mxu0 0.0
    %5060 = vmatprep.subr.mxu0 0.0
    %5061 = vmatpush1.msra.mxu0 0.0
    %5062 = vmatprep.subr.mxu0 0.0
    %5063 = vmatpush1.msra.mxu0 0.0
    %5064 = vmatprep.subr.mxu0 0.0
    %5065 = vmatpush1.msra.mxu0 0.0
    %5066 = vmatprep.subr.mxu0 0.0
    %5067 = vmatpush1.msra.mxu0 0.0
    %5068 = vmatprep.subr.mxu0 0.0
    %5069 = vmatpush1.msra.mxu0 0.0
    %5070 = vmatprep.subr.mxu0 0.0
    %5071 = vmatpush1.msra.mxu0 0.0
    %5072 = vmatprep.subr.mxu0 0.0
    %5073 = vmatpush1.msra.mxu0 0.0
    %5074 = vmatprep.subr.mxu0 0.0
    %5075 = vmatpush1.msra.mxu0 0.0
    %5076 = vmatprep.subr.mxu0 0.0
    %5077 = vmatpush1.msra.mxu0 0.0
    %5078 = vmatprep.subr.mxu0 0.0
    %5079 = vmatpush1.msra.mxu0 0.0
    %5080 = vmatprep.subr.mxu0 0.0
    %5081 = vmatpush1.msra.mxu0 0.0
    %5082 = vmatprep.subr.mxu0 0.0
    %5083 = vmatpush1.msra.mxu0 0.0
    %5084 = vmatprep.subr.mxu0 0.0
    %5085 = vmatpush1.msra.mxu0 0.0
    %5086 = vmatprep.subr.mxu0 0.0
    %5087 = vmatpush1.msra.mxu0 0.0
    %5088 = vmatprep.subr.mxu0 0.0
    %5089 = vmatpush1.msra.mxu0 0.0
    %5090 = vmatprep.subr.mxu0 0.0
    %5091 = vmatpush1.msra.mxu0 0.0
    %5092 = vmatprep.subr.mxu0 0.0
    %5093 = vmatpush1.msra.mxu0 0.0
    %5094 = vmatprep.subr.mxu0 0.0
    %5095 = vmatpush1.msra.mxu0 0.0
    %5096 = vmatprep.subr.mxu0 0.0
    %5097 = vmatpush1.msra.mxu0 0.0
    %5098 = vmatprep.mubr.f32.mxu0 0.0
    %5099 = vmatmul.mubr.f32.gmra.mrb[0].mxu0 %v5032
    %v5100 = vpop.f32.mrb[0].mxu0
    %v5101 = vadd.f32 0.0, %v5100
    %v5102 = vpop.f32.mrb[0].mxu0
    %v5103 = vadd.f32 0.0, %v5102
    %5104 = vdwg.mxu0
    %v5105 = vld [vmem:[#allocation7] sm:$0xff]
    %v5106 = vld [vmem:[#allocation7 + $0x8] sm:$0xff]
    %v5107 = vld [vmem:[#allocation7 + $0x10] sm:$0xff]
    %v5108 = vld [vmem:[#allocation7 + $0x18] sm:$0xff]
    %v5109 = vld [vmem:[#allocation7 + $0x20] sm:$0xff]
    %v5110 = vld [vmem:[#allocation7 + $0x28] sm:$0xff]
    %v5111 = vld [vmem:[#allocation7 + $0x30] sm:$0xff]
    %v5112 = vld [vmem:[#allocation7 + $0x38] sm:$0xff]
    %v5113 = vld [vmem:[#allocation7 + $0x40] sm:$0xff]
    %v5114 = vld [vmem:[#allocation7 + $0x48] sm:$0xff]
    %v5115 = vld [vmem:[#allocation7 + $0x50] sm:$0xff]
    %v5116 = vld [vmem:[#allocation7 + $0x58] sm:$0xff]
    %v5117 = vld [vmem:[#allocation7 + $0x60] sm:$0xff]
    %v5118 = vld [vmem:[#allocation7 + $0x68] sm:$0xff]
    %v5119 = vld [vmem:[#allocation7 + $0x70] sm:$0xff]
    %v5120 = vld [vmem:[#allocation7 + $0x78] sm:$0xff]
    %v5121 = vld [vmem:[#allocation7 + $0x80] sm:$0xff]
    %v5122 = vld [vmem:[#allocation7 + $0x88] sm:$0xff]
    %v5123 = vld [vmem:[#allocation7 + $0x90] sm:$0xff]
    %v5124 = vld [vmem:[#allocation7 + $0x98] sm:$0xff]
    %v5125 = vld [vmem:[#allocation7 + $0xa0] sm:$0xff]
    %v5126 = vld [vmem:[#allocation7 + $0xa8] sm:$0xff]
    %v5127 = vld [vmem:[#allocation7 + $0xb0] sm:$0xff]
    %v5128 = vld [vmem:[#allocation7 + $0xb8] sm:$0xff]
    %v5129 = vld [vmem:[#allocation7 + $0xc0] sm:$0xff]
    %v5130 = vld [vmem:[#allocation7 + $0xc8] sm:$0xff]
    %v5131 = vld [vmem:[#allocation7 + $0xd0] sm:$0xff]
    %v5132 = vld [vmem:[#allocation7 + $0xd8] sm:$0xff]
    %v5133 = vld [vmem:[#allocation7 + $0xe0] sm:$0xff]
    %v5134 = vld [vmem:[#allocation7 + $0xe8] sm:$0xff]
    %v5135 = vld [vmem:[#allocation7 + $0xf0] sm:$0xff]
    %v5136 = vld [vmem:[#allocation7 + $0xf8] sm:$0xff]
    %v5137 = vld [vmem:[#allocation7 + $0x100] sm:$0xff]
    %v5138 = vld [vmem:[#allocation7 + $0x108] sm:$0xff]
    %v5139 = vld [vmem:[#allocation7 + $0x110] sm:$0xff]
    %v5140 = vld [vmem:[#allocation7 + $0x118] sm:$0xff]
    %v5141 = vld [vmem:[#allocation7 + $0x120] sm:$0xff]
    %v5142 = vld [vmem:[#allocation7 + $0x128] sm:$0xff]
    %v5143 = vld [vmem:[#allocation7 + $0x130] sm:$0xff]
    %v5144 = vld [vmem:[#allocation7 + $0x138] sm:$0xff]
    %v5145 = vld [vmem:[#allocation7 + $0x140] sm:$0xff]
    %v5146 = vld [vmem:[#allocation7 + $0x148] sm:$0xff]
    %v5147 = vld [vmem:[#allocation7 + $0x150] sm:$0xff]
    %v5148 = vld [vmem:[#allocation7 + $0x158] sm:$0xff]
    %v5149 = vld [vmem:[#allocation7 + $0x160] sm:$0xff]
    %v5150 = vld [vmem:[#allocation7 + $0x168] sm:$0xff]
    %v5151 = vld [vmem:[#allocation7 + $0x170] sm:$0xff]
    %v5152 = vld [vmem:[#allocation7 + $0x178] sm:$0xff]
    %v5153 = vld [vmem:[#allocation7 + $0x180] sm:$0xff]
    %v5154 = vld [vmem:[#allocation7 + $0x188] sm:$0xff]
    %v5155 = vld [vmem:[#allocation7 + $0x190] sm:$0xff]
    %v5156 = vld [vmem:[#allocation7 + $0x198] sm:$0xff]
    %v5157 = vld [vmem:[#allocation7 + $0x1a0] sm:$0xff]
    %v5158 = vld [vmem:[#allocation7 + $0x1a8] sm:$0xff]
    %v5159 = vld [vmem:[#allocation7 + $0x1b0] sm:$0xff]
    %v5160 = vld [vmem:[#allocation7 + $0x1b8] sm:$0xff]
    %v5161 = vld [vmem:[#allocation7 + $0x1c0] sm:$0xff]
    %v5162 = vld [vmem:[#allocation7 + $0x1c8] sm:$0xff]
    %v5163 = vld [vmem:[#allocation7 + $0x1d0] sm:$0xff]
    %v5164 = vld [vmem:[#allocation7 + $0x1d8] sm:$0xff]
    %v5165 = vld [vmem:[#allocation7 + $0x1e0] sm:$0xff]
    %v5166 = vld [vmem:[#allocation7 + $0x1e8] sm:$0xff]
    %v5167 = vld [vmem:[#allocation7 + $0x1f0] sm:$0xff]
    %v5168 = vld [vmem:[#allocation7 + $0x1f8] sm:$0xff]
    %v5169 = vadd.s32 %v5023, %v5021
    %vm5170 = vcmp.eq.s32.totalorder %v122, %v5169
    %vm5171 = vcmp.ge.s32.totalorder %v5021, 0
    %vm5172 = vmand %vm5170, %vm5171
    %vm5173 = vcmp.lt.s32.totalorder %v5021, 8
    %vm5174 = vmand %vm5172, %vm5173
    %v5175 = vsel %vm5174, 1.0, 0.0
    %v5177 = vsel %vm3093, %v5175, 0
    %5179 = vmatprep.subr.mxu0 %v5016
    %5180 = vmatpush1.msra.mxu0 %v5015
    %5181 = vmatprep.subr.mxu0 %v5018
    %5182 = vmatpush1.msra.mxu0 %v5017
    %5183 = vmatprep.subr.mxu0 0.0
    %5184 = vmatpush1.msra.mxu0 0.0
    %5185 = vmatprep.subr.mxu0 0.0
    %5186 = vmatpush1.msra.mxu0 0.0
    %5187 = vmatprep.subr.mxu0 0.0
    %5188 = vmatpush1.msra.mxu0 0.0
    %5189 = vmatprep.subr.mxu0 0.0
    %5190 = vmatpush1.msra.mxu0 0.0
    %5191 = vmatprep.subr.mxu0 0.0
    %5192 = vmatpush1.msra.mxu0 0.0
    %5193 = vmatprep.subr.mxu0 0.0
    %5194 = vmatpush1.msra.mxu0 0.0
    %5195 = vmatprep.subr.mxu0 0.0
    %5196 = vmatpush1.msra.mxu0 0.0
    %5197 = vmatprep.subr.mxu0 0.0
    %5198 = vmatpush1.msra.mxu0 0.0
    %5199 = vmatprep.subr.mxu0 0.0
    %5200 = vmatpush1.msra.mxu0 0.0
    %5201 = vmatprep.subr.mxu0 0.0
    %5202 = vmatpush1.msra.mxu0 0.0
    %5203 = vmatprep.subr.mxu0 0.0
    %5204 = vmatpush1.msra.mxu0 0.0
    %5205 = vmatprep.subr.mxu0 0.0
    %5206 = vmatpush1.msra.mxu0 0.0
    %5207 = vmatprep.subr.mxu0 0.0
    %5208 = vmatpush1.msra.mxu0 0.0
    %5209 = vmatprep.subr.mxu0 0.0
    %5210 = vmatpush1.msra.mxu0 0.0
    %5211 = vmatprep.subr.mxu0 0.0
    %5212 = vmatpush1.msra.mxu0 0.0
    %5213 = vmatprep.subr.mxu0 0.0
    %5214 = vmatpush1.msra.mxu0 0.0
    %5215 = vmatprep.subr.mxu0 0.0
    %5216 = vmatpush1.msra.mxu0 0.0
    %5217 = vmatprep.subr.mxu0 0.0
    %5218 = vmatpush1.msra.mxu0 0.0
    %5219 = vmatprep.subr.mxu0 0.0
    %5220 = vmatpush1.msra.mxu0 0.0
    %5221 = vmatprep.subr.mxu0 0.0
    %5222 = vmatpush1.msra.mxu0 0.0
    %5223 = vmatprep.subr.mxu0 0.0
    %5224 = vmatpush1.msra.mxu0 0.0
    %5225 = vmatprep.subr.mxu0 0.0
    %5226 = vmatpush1.msra.mxu0 0.0
    %5227 = vmatprep.subr.mxu0 0.0
    %5228 = vmatpush1.msra.mxu0 0.0
    %5229 = vmatprep.subr.mxu0 0.0
    %5230 = vmatpush1.msra.mxu0 0.0
    %5231 = vmatprep.subr.mxu0 0.0
    %5232 = vmatpush1.msra.mxu0 0.0
    %5233 = vmatprep.subr.mxu0 0.0
    %5234 = vmatpush1.msra.mxu0 0.0
    %5235 = vmatprep.subr.mxu0 0.0
    %5236 = vmatpush1.msra.mxu0 0.0
    %5237 = vmatprep.subr.mxu0 0.0
    %5238 = vmatpush1.msra.mxu0 0.0
    %5239 = vmatprep.subr.mxu0 0.0
    %5240 = vmatpush1.msra.mxu0 0.0
    %5241 = vmatprep.subr.mxu0 0.0
    %5242 = vmatpush1.msra.mxu0 0.0
    %5243 = vmatprep.mubr.f32.mxu0 0.0
    %5244 = vmatmul.mubr.f32.gmra.mrb[0].mxu0 %v5177
    %v5245 = vpop.f32.mrb[0].mxu0
    %v5246 = vadd.f32 0.0, %v5245
    %v5247 = vpop.f32.mrb[0].mxu0
    %v5248 = vadd.f32 0.0, %v5247
    %5249 = vdwg.mxu0
    %v5250 = vld [vmem:[#allocation7 + $0x200] sm:$0xff]
    %v5251 = vld [vmem:[#allocation7 + $0x208] sm:$0xff]
    %v5252 = vld [vmem:[#allocation7 + $0x210] sm:$0xff]
    %v5253 = vld [vmem:[#allocation7 + $0x218] sm:$0xff]
    %v5254 = vld [vmem:[#allocation7 + $0x220] sm:$0xff]
    %v5255 = vld [vmem:[#allocation7 + $0x228] sm:$0xff]
    %v5256 = vld [vmem:[#allocation7 + $0x230] sm:$0xff]
    %v5257 = vld [vmem:[#allocation7 + $0x238] sm:$0xff]
    %v5258 = vld [vmem:[#allocation7 + $0x240] sm:$0xff]
    %v5259 = vld [vmem:[#allocation7 + $0x248] sm:$0xff]
    %v5260 = vld [vmem:[#allocation7 + $0x250] sm:$0xff]
    %v5261 = vld [vmem:[#allocation7 + $0x258] sm:$0xff]
    %v5262 = vld [vmem:[#allocation7 + $0x260] sm:$0xff]
    %v5263 = vld [vmem:[#allocation7 + $0x268] sm:$0xff]
    %v5264 = vld [vmem:[#allocation7 + $0x270] sm:$0xff]
    %v5265 = vld [vmem:[#allocation7 + $0x278] sm:$0xff]
    %v5266 = vld [vmem:[#allocation7 + $0x280] sm:$0xff]
    %v5267 = vld [vmem:[#allocation7 + $0x288] sm:$0xff]
    %v5268 = vld [vmem:[#allocation7 + $0x290] sm:$0xff]
    %v5269 = vld [vmem:[#allocation7 + $0x298] sm:$0xff]
    %v5270 = vld [vmem:[#allocation7 + $0x2a0] sm:$0xff]
    %v5271 = vld [vmem:[#allocation7 + $0x2a8] sm:$0xff]
    %v5272 = vld [vmem:[#allocation7 + $0x2b0] sm:$0xff]
    %v5273 = vld [vmem:[#allocation7 + $0x2b8] sm:$0xff]
    %v5274 = vld [vmem:[#allocation7 + $0x2c0] sm:$0xff]
    %v5275 = vld [vmem:[#allocation7 + $0x2c8] sm:$0xff]
    %v5276 = vld [vmem:[#allocation7 + $0x2d0] sm:$0xff]
    %v5277 = vld [vmem:[#allocation7 + $0x2d8] sm:$0xff]
    %v5278 = vld [vmem:[#allocation7 + $0x2e0] sm:$0xff]
    %v5279 = vld [vmem:[#allocation7 + $0x2e8] sm:$0xff]
    %v5280 = vld [vmem:[#allocation7 + $0x2f0] sm:$0xff]
    %v5281 = vld [vmem:[#allocation7 + $0x2f8] sm:$0xff]
    %v5282 = vld [vmem:[#allocation7 + $0x300] sm:$0xff]
    %v5283 = vld [vmem:[#allocation7 + $0x308] sm:$0xff]
    %v5284 = vld [vmem:[#allocation7 + $0x310] sm:$0xff]
    %v5285 = vld [vmem:[#allocation7 + $0x318] sm:$0xff]
    %v5286 = vld [vmem:[#allocation7 + $0x320] sm:$0xff]
    %v5287 = vld [vmem:[#allocation7 + $0x328] sm:$0xff]
    %v5288 = vld [vmem:[#allocation7 + $0x330] sm:$0xff]
    %v5289 = vld [vmem:[#allocation7 + $0x338] sm:$0xff]
    %v5290 = vld [vmem:[#allocation7 + $0x340] sm:$0xff]
    %v5291 = vld [vmem:[#allocation7 + $0x348] sm:$0xff]
    %v5292 = vld [vmem:[#allocation7 + $0x350] sm:$0xff]
    %v5293 = vld [vmem:[#allocation7 + $0x358] sm:$0xff]
    %v5294 = vld [vmem:[#allocation7 + $0x360] sm:$0xff]
    %v5295 = vld [vmem:[#allocation7 + $0x368] sm:$0xff]
    %v5296 = vld [vmem:[#allocation7 + $0x370] sm:$0xff]
    %v5297 = vld [vmem:[#allocation7 + $0x378] sm:$0xff]
    %v5298 = vld [vmem:[#allocation7 + $0x380] sm:$0xff]
    %v5299 = vld [vmem:[#allocation7 + $0x388] sm:$0xff]
    %v5300 = vld [vmem:[#allocation7 + $0x390] sm:$0xff]
    %v5301 = vld [vmem:[#allocation7 + $0x398] sm:$0xff]
    %v5302 = vld [vmem:[#allocation7 + $0x3a0] sm:$0xff]
    %v5303 = vld [vmem:[#allocation7 + $0x3a8] sm:$0xff]
    %v5304 = vld [vmem:[#allocation7 + $0x3b0] sm:$0xff]
    %v5305 = vld [vmem:[#allocation7 + $0x3b8] sm:$0xff]
    %v5306 = vld [vmem:[#allocation7 + $0x3c0] sm:$0xff]
    %v5307 = vld [vmem:[#allocation7 + $0x3c8] sm:$0xff]
    %v5308 = vld [vmem:[#allocation7 + $0x3d0] sm:$0xff]
    %v5309 = vld [vmem:[#allocation7 + $0x3d8] sm:$0xff]
    %v5310 = vld [vmem:[#allocation7 + $0x3e0] sm:$0xff]
    %v5311 = vld [vmem:[#allocation7 + $0x3e8] sm:$0xff]
    %v5312 = vld [vmem:[#allocation7 + $0x3f0] sm:$0xff]
    %v5313 = vld [vmem:[#allocation7 + $0x3f8] sm:$0xff]
    %5314 = vmatprep.subr.mxu0 %v5251
    %5315 = vmatpush1.msra.mxu0 %v5250
    %5316 = vmatprep.subr.mxu0 %v5253
    %5317 = vmatpush1.msra.mxu0 %v5252
    %5318 = vmatprep.subr.mxu0 %v5255
    %5319 = vmatpush1.msra.mxu0 %v5254
    %5320 = vmatprep.subr.mxu0 %v5257
    %5321 = vmatpush1.msra.mxu0 %v5256
    %5322 = vmatprep.subr.mxu0 %v5259
    %5323 = vmatpush1.msra.mxu0 %v5258
    %5324 = vmatprep.subr.mxu0 %v5261
    %5325 = vmatpush1.msra.mxu0 %v5260
    %5326 = vmatprep.subr.mxu0 %v5263
    %5327 = vmatpush1.msra.mxu0 %v5262
    %5328 = vmatprep.subr.mxu0 %v5265
    %5329 = vmatpush1.msra.mxu0 %v5264
    %5330 = vmatprep.subr.mxu0 %v5267
    %5331 = vmatpush1.msra.mxu0 %v5266
    %5332 = vmatprep.subr.mxu0 %v5269
    %5333 = vmatpush1.msra.mxu0 %v5268
    %5334 = vmatprep.subr.mxu0 %v5271
    %5335 = vmatpush1.msra.mxu0 %v5270
    %5336 = vmatprep.subr.mxu0 %v5273
    %5337 = vmatpush1.msra.mxu0 %v5272
    %5338 = vmatprep.subr.mxu0 %v5275
    %5339 = vmatpush1.msra.mxu0 %v5274
    %5340 = vmatprep.subr.mxu0 %v5277
    %5341 = vmatpush1.msra.mxu0 %v5276
    %5342 = vmatprep.subr.mxu0 %v5279
    %5343 = vmatpush1.msra.mxu0 %v5278
    %5344 = vmatprep.subr.mxu0 %v5281
    %5345 = vmatpush1.msra.mxu0 %v5280
    %5346 = vmatprep.subr.mxu0 %v5283
    %5347 = vmatpush1.msra.mxu0 %v5282
    %5348 = vmatprep.subr.mxu0 %v5285
    %5349 = vmatpush1.msra.mxu0 %v5284
    %5350 = vmatprep.subr.mxu0 %v5287
    %5351 = vmatpush1.msra.mxu0 %v5286
    %5352 = vmatprep.subr.mxu0 %v5289
    %5353 = vmatpush1.msra.mxu0 %v5288
    %5354 = vmatprep.subr.mxu0 %v5291
    %5355 = vmatpush1.msra.mxu0 %v5290
    %5356 = vmatprep.subr.mxu0 %v5293
    %5357 = vmatpush1.msra.mxu0 %v5292
    %5358 = vmatprep.subr.mxu0 %v5295
    %5359 = vmatpush1.msra.mxu0 %v5294
    %5360 = vmatprep.subr.mxu0 %v5297
    %5361 = vmatpush1.msra.mxu0 %v5296
    %5362 = vmatprep.subr.mxu0 %v5299
    %5363 = vmatpush1.msra.mxu0 %v5298
    %5364 = vmatprep.subr.mxu0 %v5301
    %5365 = vmatpush1.msra.mxu0 %v5300
    %5366 = vmatprep.subr.mxu0 %v5303
    %5367 = vmatpush1.msra.mxu0 %v5302
    %5368 = vmatprep.subr.mxu0 %v5305
    %5369 = vmatpush1.msra.mxu0 %v5304
    %5370 = vmatprep.subr.mxu0 %v5307
    %5371 = vmatpush1.msra.mxu0 %v5306
    %5372 = vmatprep.subr.mxu0 %v5309
    %5373 = vmatpush1.msra.mxu0 %v5308
    %5374 = vmatprep.subr.mxu0 %v5311
    %5375 = vmatpush1.msra.mxu0 %v5310
    %5376 = vmatprep.subr.mxu0 %v5313
    %5377 = vmatpush1.msra.mxu0 %v5312
    %5378 = vmatprep.mubr.f32.mxu0 %v5248
    %5379 = vmatmul.mubr.f32.gmra.mrb[0].mxu0 %v5246
    %v5380 = vpop.f32.mrb[0].mxu0
    %v5381 = vadd.f32 0.0, %v5380
    %v5382 = vpop.f32.mrb[0].mxu0
    %v5383 = vadd.f32 0.0, %v5382
    %5384 = vdwg.mxu0
    %5385 = vmatprep.subr.mxu0 %v5106
    %5386 = vmatpush1.msra.mxu0 %v5105
    %5387 = vmatprep.subr.mxu0 %v5108
    %5388 = vmatpush1.msra.mxu0 %v5107
    %5389 = vmatprep.subr.mxu0 %v5110
    %5390 = vmatpush1.msra.mxu0 %v5109
    %5391 = vmatprep.subr.mxu0 %v5112
    %5392 = vmatpush1.msra.mxu0 %v5111
    %5393 = vmatprep.subr.mxu0 %v5114
    %5394 = vmatpush1.msra.mxu0 %v5113
    %5395 = vmatprep.subr.mxu0 %v5116
    %5396 = vmatpush1.msra.mxu0 %v5115
    %5397 = vmatprep.subr.mxu0 %v5118
    %5398 = vmatpush1.msra.mxu0 %v5117
    %5399 = vmatprep.subr.mxu0 %v5120
    %5400 = vmatpush1.msra.mxu0 %v5119
    %5401 = vmatprep.subr.mxu0 %v5122
    %5402 = vmatpush1.msra.mxu0 %v5121
    %5403 = vmatprep.subr.mxu0 %v5124
    %5404 = vmatpush1.msra.mxu0 %v5123
    %5405 = vmatprep.subr.mxu0 %v5126
    %5406 = vmatpush1.msra.mxu0 %v5125
    %5407 = vmatprep.subr.mxu0 %v5128
    %5408 = vmatpush1.msra.mxu0 %v5127
    %5409 = vmatprep.subr.mxu0 %v5130
    %5410 = vmatpush1.msra.mxu0 %v5129
    %5411 = vmatprep.subr.mxu0 %v5132
    %5412 = vmatpush1.msra.mxu0 %v5131
    %5413 = vmatprep.subr.mxu0 %v5134
    %5414 = vmatpush1.msra.mxu0 %v5133
    %5415 = vmatprep.subr.mxu0 %v5136
    %5416 = vmatpush1.msra.mxu0 %v5135
    %5417 = vmatprep.subr.mxu0 %v5138
    %5418 = vmatpush1.msra.mxu0 %v5137
    %5419 = vmatprep.subr.mxu0 %v5140
    %5420 = vmatpush1.msra.mxu0 %v5139
    %5421 = vmatprep.subr.mxu0 %v5142
    %5422 = vmatpush1.msra.mxu0 %v5141
    %5423 = vmatprep.subr.mxu0 %v5144
    %5424 = vmatpush1.msra.mxu0 %v5143
    %5425 = vmatprep.subr.mxu0 %v5146
    %5426 = vmatpush1.msra.mxu0 %v5145
    %5427 = vmatprep.subr.mxu0 %v5148
    %5428 = vmatpush1.msra.mxu0 %v5147
    %5429 = vmatprep.subr.mxu0 %v5150
    %5430 = vmatpush1.msra.mxu0 %v5149
    %5431 = vmatprep.subr.mxu0 %v5152
    %5432 = vmatpush1.msra.mxu0 %v5151
    %5433 = vmatprep.subr.mxu0 %v5154
    %5434 = vmatpush1.msra.mxu0 %v5153
    %5435 = vmatprep.subr.mxu0 %v5156
    %5436 = vmatpush1.msra.mxu0 %v5155
    %5437 = vmatprep.subr.mxu0 %v5158
    %5438 = vmatpush1.msra.mxu0 %v5157
    %5439 = vmatprep.subr.mxu0 %v5160
    %5440 = vmatpush1.msra.mxu0 %v5159
    %5441 = vmatprep.subr.mxu0 %v5162
    %5442 = vmatpush1.msra.mxu0 %v5161
    %5443 = vmatprep.subr.mxu0 %v5164
    %5444 = vmatpush1.msra.mxu0 %v5163
    %5445 = vmatprep.subr.mxu0 %v5166
    %5446 = vmatpush1.msra.mxu0 %v5165
    %5447 = vmatprep.subr.mxu0 %v5168
    %5448 = vmatpush1.msra.mxu0 %v5167
    %5449 = vmatprep.mubr.f32.mxu0 %v5103
    %5450 = vmatmul.mubr.f32.gmra.mrb[0].mxu0 %v5101
    %v5451 = vpop.f32.mrb[0].mxu0
    %v5452 = vadd.f32 %v5381, %v5451
    %v5453 = vpop.f32.mrb[0].mxu0
    %v5454 = vadd.f32 %v5383, %v5453
    %5455 = vdwg.mxu0
    %v5456 = vadd.s32 %v5021, 1
    %v5457 = vadd.s32 %v5023, %v5456
    %vm5458 = vcmp.eq.s32.totalorder %v122, %v5457
    %vm5459 = vcmp.ge.s32.totalorder %v5456, 0
    %vm5460 = vmand %vm5458, %vm5459
    %vm5461 = vcmp.lt.s32.totalorder %v5456, 8
    %vm5462 = vmand %vm5460, %vm5461
    %v5463 = vsel %vm5462, 1.0, 0.0
    %v5465 = vsel %vm3093, %v5463, 0
    %5467 = vmatprep.subr.mxu0 %v5016
    %5468 = vmatpush1.msra.mxu0 %v5015
    %5469 = vmatprep.subr.mxu0 %v5018
    %5470 = vmatpush1.msra.mxu0 %v5017
    %5471 = vmatprep.subr.mxu0 0.0
    %5472 = vmatpush1.msra.mxu0 0.0
    %5473 = vmatprep.subr.mxu0 0.0
    %5474 = vmatpush1.msra.mxu0 0.0
    %5475 = vmatprep.subr.mxu0 0.0
    %5476 = vmatpush1.msra.mxu0 0.0
    %5477 = vmatprep.subr.mxu0 0.0
    %5478 = vmatpush1.msra.mxu0 0.0
    %5479 = vmatprep.subr.mxu0 0.0
    %5480 = vmatpush1.msra.mxu0 0.0
    %5481 = vmatprep.subr.mxu0 0.0
    %5482 = vmatpush1.msra.mxu0 0.0
    %5483 = vmatprep.subr.mxu0 0.0
    %5484 = vmatpush1.msra.mxu0 0.0
    %5485 = vmatprep.subr.mxu0 0.0
    %5486 = vmatpush1.msra.mxu0 0.0
    %5487 = vmatprep.subr.mxu0 0.0
    %5488 = vmatpush1.msra.mxu0 0.0
    %5489 = vmatprep.subr.mxu0 0.0
    %5490 = vmatpush1.msra.mxu0 0.0
    %5491 = vmatprep.subr.mxu0 0.0
    %5492 = vmatpush1.msra.mxu0 0.0
    %5493 = vmatprep.subr.mxu0 0.0
    %5494 = vmatpush1.msra.mxu0 0.0
    %5495 = vmatprep.subr.mxu0 0.0
    %5496 = vmatpush1.msra.mxu0 0.0
    %5497 = vmatprep.subr.mxu0 0.0
    %5498 = vmatpush1.msra.mxu0 0.0
    %5499 = vmatprep.subr.mxu0 0.0
    %5500 = vmatpush1.msra.mxu0 0.0
    %5501 = vmatprep.subr.mxu0 0.0
    %5502 = vmatpush1.msra.mxu0 0.0
    %5503 = vmatprep.subr.mxu0 0.0
    %5504 = vmatpush1.msra.mxu0 0.0
    %5505 = vmatprep.subr.mxu0 0.0
    %5506 = vmatpush1.msra.mxu0 0.0
    %5507 = vmatprep.subr.mxu0 0.0
    %5508 = vmatpush1.msra.mxu0 0.0
    %5509 = vmatprep.subr.mxu0 0.0
    %5510 = vmatpush1.msra.mxu0 0.0
    %5511 = vmatprep.subr.mxu0 0.0
    %5512 = vmatpush1.msra.mxu0 0.0
    %5513 = vmatprep.subr.mxu0 0.0
    %5514 = vmatpush1.msra.mxu0 0.0
    %5515 = vmatprep.subr.mxu0 0.0
    %5516 = vmatpush1.msra.mxu0 0.0
    %5517 = vmatprep.subr.mxu0 0.0
    %5518 = vmatpush1.msra.mxu0 0.0
    %5519 = vmatprep.subr.mxu0 0.0
    %5520 = vmatpush1.msra.mxu0 0.0
    %5521 = vmatprep.subr.mxu0 0.0
    %5522 = vmatpush1.msra.mxu0 0.0
    %5523 = vmatprep.subr.mxu0 0.0
    %5524 = vmatpush1.msra.mxu0 0.0
    %5525 = vmatprep.subr.mxu0 0.0
    %5526 = vmatpush1.msra.mxu0 0.0
    %5527 = vmatprep.subr.mxu0 0.0
    %5528 = vmatpush1.msra.mxu0 0.0
    %5529 = vmatprep.subr.mxu0 0.0
    %5530 = vmatpush1.msra.mxu0 0.0
    %5531 = vmatprep.mubr.f32.mxu0 0.0
    %5532 = vmatmul.mubr.f32.gmra.mrb[0].mxu0 %v5465
    %v5533 = vpop.f32.mrb[0].mxu0
    %v5534 = vadd.f32 0.0, %v5533
    %v5535 = vpop.f32.mrb[0].mxu0
    %v5536 = vadd.f32 0.0, %v5535
    %5537 = vdwg.mxu0
    %v5538 = vld [vmem:[#allocation7 + $0x400] sm:$0xff]
    %v5539 = vld [vmem:[#allocation7 + $0x408] sm:$0xff]
    %v5540 = vld [vmem:[#allocation7 + $0x410] sm:$0xff]
    %v5541 = vld [vmem:[#allocation7 + $0x418] sm:$0xff]
    %v5542 = vld [vmem:[#allocation7 + $0x420] sm:$0xff]
    %v5543 = vld [vmem:[#allocation7 + $0x428] sm:$0xff]
    %v5544 = vld [vmem:[#allocation7 + $0x430] sm:$0xff]
    %v5545 = vld [vmem:[#allocation7 + $0x438] sm:$0xff]
    %v5546 = vld [vmem:[#allocation7 + $0x440] sm:$0xff]
    %v5547 = vld [vmem:[#allocation7 + $0x448] sm:$0xff]
    %v5548 = vld [vmem:[#allocation7 + $0x450] sm:$0xff]
    %v5549 = vld [vmem:[#allocation7 + $0x458] sm:$0xff]
    %v5550 = vld [vmem:[#allocation7 + $0x460] sm:$0xff]
    %v5551 = vld [vmem:[#allocation7 + $0x468] sm:$0xff]
    %v5552 = vld [vmem:[#allocation7 + $0x470] sm:$0xff]
    %v5553 = vld [vmem:[#allocation7 + $0x478] sm:$0xff]
    %v5554 = vld [vmem:[#allocation7 + $0x480] sm:$0xff]
    %v5555 = vld [vmem:[#allocation7 + $0x488] sm:$0xff]
    %v5556 = vld [vmem:[#allocation7 + $0x490] sm:$0xff]
    %v5557 = vld [vmem:[#allocation7 + $0x498] sm:$0xff]
    %v5558 = vld [vmem:[#allocation7 + $0x4a0] sm:$0xff]
    %v5559 = vld [vmem:[#allocation7 + $0x4a8] sm:$0xff]
    %v5560 = vld [vmem:[#allocation7 + $0x4b0] sm:$0xff]
    %v5561 = vld [vmem:[#allocation7 + $0x4b8] sm:$0xff]
    %v5562 = vld [vmem:[#allocation7 + $0x4c0] sm:$0xff]
    %v5563 = vld [vmem:[#allocation7 + $0x4c8] sm:$0xff]
    %v5564 = vld [vmem:[#allocation7 + $0x4d0] sm:$0xff]
    %v5565 = vld [vmem:[#allocation7 + $0x4d8] sm:$0xff]
    %v5566 = vld [vmem:[#allocation7 + $0x4e0] sm:$0xff]
    %v5567 = vld [vmem:[#allocation7 + $0x4e8] sm:$0xff]
    %v5568 = vld [vmem:[#allocation7 + $0x4f0] sm:$0xff]
    %v5569 = vld [vmem:[#allocation7 + $0x4f8] sm:$0xff]
    %v5570 = vld [vmem:[#allocation7 + $0x500] sm:$0xff]
    %v5571 = vld [vmem:[#allocation7 + $0x508] sm:$0xff]
    %v5572 = vld [vmem:[#allocation7 + $0x510] sm:$0xff]
    %v5573 = vld [vmem:[#allocation7 + $0x518] sm:$0xff]
    %v5574 = vld [vmem:[#allocation7 + $0x520] sm:$0xff]
    %v5575 = vld [vmem:[#allocation7 + $0x528] sm:$0xff]
    %v5576 = vld [vmem:[#allocation7 + $0x530] sm:$0xff]
    %v5577 = vld [vmem:[#allocation7 + $0x538] sm:$0xff]
    %v5578 = vld [vmem:[#allocation7 + $0x540] sm:$0xff]
    %v5579 = vld [vmem:[#allocation7 + $0x548] sm:$0xff]
    %v5580 = vld [vmem:[#allocation7 + $0x550] sm:$0xff]
    %v5581 = vld [vmem:[#allocation7 + $0x558] sm:$0xff]
    %v5582 = vld [vmem:[#allocation7 + $0x560] sm:$0xff]
    %v5583 = vld [vmem:[#allocation7 + $0x568] sm:$0xff]
    %v5584 = vld [vmem:[#allocation7 + $0x570] sm:$0xff]
    %v5585 = vld [vmem:[#allocation7 + $0x578] sm:$0xff]
    %v5586 = vld [vmem:[#allocation7 + $0x580] sm:$0xff]
    %v5587 = vld [vmem:[#allocation7 + $0x588] sm:$0xff]
    %v5588 = vld [vmem:[#allocation7 + $0x590] sm:$0xff]
    %v5589 = vld [vmem:[#allocation7 + $0x598] sm:$0xff]
    %v5590 = vld [vmem:[#allocation7 + $0x5a0] sm:$0xff]
    %v5591 = vld [vmem:[#allocation7 + $0x5a8] sm:$0xff]
    %v5592 = vld [vmem:[#allocation7 + $0x5b0] sm:$0xff]
    %v5593 = vld [vmem:[#allocation7 + $0x5b8] sm:$0xff]
    %v5594 = vld [vmem:[#allocation7 + $0x5c0] sm:$0xff]
    %v5595 = vld [vmem:[#allocation7 + $0x5c8] sm:$0xff]
    %v5596 = vld [vmem:[#allocation7 + $0x5d0] sm:$0xff]
    %v5597 = vld [vmem:[#allocation7 + $0x5d8] sm:$0xff]
    %v5598 = vld [vmem:[#allocation7 + $0x5e0] sm:$0xff]
    %v5599 = vld [vmem:[#allocation7 + $0x5e8] sm:$0xff]
    %v5600 = vld [vmem:[#allocation7 + $0x5f0] sm:$0xff]
    %v5601 = vld [vmem:[#allocation7 + $0x5f8] sm:$0xff]
    %5602 = vmatprep.subr.mxu0 %v5539
    %5603 = vmatpush1.msra.mxu0 %v5538
    %5604 = vmatprep.subr.mxu0 %v5541
    %5605 = vmatpush1.msra.mxu0 %v5540
    %5606 = vmatprep.subr.mxu0 %v5543
    %5607 = vmatpush1.msra.mxu0 %v5542
    %5608 = vmatprep.subr.mxu0 %v5545
    %5609 = vmatpush1.msra.mxu0 %v5544
    %5610 = vmatprep.subr.mxu0 %v5547
    %5611 = vmatpush1.msra.mxu0 %v5546
    %5612 = vmatprep.subr.mxu0 %v5549
    %5613 = vmatpush1.msra.mxu0 %v5548
    %5614 = vmatprep.subr.mxu0 %v5551
    %5615 = vmatpush1.msra.mxu0 %v5550
    %5616 = vmatprep.subr.mxu0 %v5553
    %5617 = vmatpush1.msra.mxu0 %v5552
    %5618 = vmatprep.subr.mxu0 %v5555
    %5619 = vmatpush1.msra.mxu0 %v5554
    %5620 = vmatprep.subr.mxu0 %v5557
    %5621 = vmatpush1.msra.mxu0 %v5556
    %5622 = vmatprep.subr.mxu0 %v5559
    %5623 = vmatpush1.msra.mxu0 %v5558
    %5624 = vmatprep.subr.mxu0 %v5561
    %5625 = vmatpush1.msra.mxu0 %v5560
    %5626 = vmatprep.subr.mxu0 %v5563
    %5627 = vmatpush1.msra.mxu0 %v5562
    %5628 = vmatprep.subr.mxu0 %v5565
    %5629 = vmatpush1.msra.mxu0 %v5564
    %5630 = vmatprep.subr.mxu0 %v5567
    %5631 = vmatpush1.msra.mxu0 %v5566
    %5632 = vmatprep.subr.mxu0 %v5569
    %5633 = vmatpush1.msra.mxu0 %v5568
    %5634 = vmatprep.subr.mxu0 %v5571
    %5635 = vmatpush1.msra.mxu0 %v5570
    %5636 = vmatprep.subr.mxu0 %v5573
    %5637 = vmatpush1.msra.mxu0 %v5572
    %5638 = vmatprep.subr.mxu0 %v5575
    %5639 = vmatpush1.msra.mxu0 %v5574
    %5640 = vmatprep.subr.mxu0 %v5577
    %5641 = vmatpush1.msra.mxu0 %v5576
    %5642 = vmatprep.subr.mxu0 %v5579
    %5643 = vmatpush1.msra.mxu0 %v5578
    %5644 = vmatprep.subr.mxu0 %v5581
    %5645 = vmatpush1.msra.mxu0 %v5580
    %5646 = vmatprep.subr.mxu0 %v5583
    %5647 = vmatpush1.msra.mxu0 %v5582
    %5648 = vmatprep.subr.mxu0 %v5585
    %5649 = vmatpush1.msra.mxu0 %v5584
    %5650 = vmatprep.subr.mxu0 %v5587
    %5651 = vmatpush1.msra.mxu0 %v5586
    %5652 = vmatprep.subr.mxu0 %v5589
    %5653 = vmatpush1.msra.mxu0 %v5588
    %5654 = vmatprep.subr.mxu0 %v5591
    %5655 = vmatpush1.msra.mxu0 %v5590
    %5656 = vmatprep.subr.mxu0 %v5593
    %5657 = vmatpush1.msra.mxu0 %v5592
    %5658 = vmatprep.subr.mxu0 %v5595
    %5659 = vmatpush1.msra.mxu0 %v5594
    %5660 = vmatprep.subr.mxu0 %v5597
    %5661 = vmatpush1.msra.mxu0 %v5596
    %5662 = vmatprep.subr.mxu0 %v5599
    %5663 = vmatpush1.msra.mxu0 %v5598
    %5664 = vmatprep.subr.mxu0 %v5601
    %5665 = vmatpush1.msra.mxu0 %v5600
    %5666 = vmatprep.mubr.f32.mxu0 %v5536
    %5667 = vmatmul.mubr.f32.gmra.mrb[0].mxu0 %v5534
    %v5668 = vpop.f32.mrb[0].mxu0
    %v5669 = vadd.f32 0.0, %v5668
    %v5670 = vpop.f32.mrb[0].mxu0
    %v5671 = vadd.f32 0.0, %v5670
    %5672 = vdwg.mxu0
    %v5673 = vadd.f32 %v5452, %v5669
    %v5674 = vadd.f32 %v5454, %v5671
    %v5675 = vadd.s32 %v5021, 2
    %v5676 = vadd.s32 %v5023, %v5675
    %vm5677 = vcmp.eq.s32.totalorder %v122, %v5676
    %vm5678 = vcmp.ge.s32.totalorder %v5675, 0
    %vm5679 = vmand %vm5677, %vm5678
    %vm5680 = vcmp.lt.s32.totalorder %v5675, 8
    %vm5681 = vmand %vm5679, %vm5680
    %v5682 = vsel %vm5681, 1.0, 0.0
    %v5684 = vsel %vm3093, %v5682, 0
    %5686 = vmatprep.subr.mxu0 %v5016
    %5687 = vmatpush1.msra.mxu0 %v5015
    %5688 = vmatprep.subr.mxu0 %v5018
    %5689 = vmatpush1.msra.mxu0 %v5017
    %5690 = vmatprep.subr.mxu0 0.0
    %5691 = vmatpush1.msra.mxu0 0.0
    %5692 = vmatprep.subr.mxu0 0.0
    %5693 = vmatpush1.msra.mxu0 0.0
    %5694 = vmatprep.subr.mxu0 0.0
    %5695 = vmatpush1.msra.mxu0 0.0
    %5696 = vmatprep.subr.mxu0 0.0
    %5697 = vmatpush1.msra.mxu0 0.0
    %5698 = vmatprep.subr.mxu0 0.0
    %5699 = vmatpush1.msra.mxu0 0.0
    %5700 = vmatprep.subr.mxu0 0.0
    %5701 = vmatpush1.msra.mxu0 0.0
    %5702 = vmatprep.subr.mxu0 0.0
    %5703 = vmatpush1.msra.mxu0 0.0
    %5704 = vmatprep.subr.mxu0 0.0
    %5705 = vmatpush1.msra.mxu0 0.0
    %5706 = vmatprep.subr.mxu0 0.0
    %5707 = vmatpush1.msra.mxu0 0.0
    %5708 = vmatprep.subr.mxu0 0.0
    %5709 = vmatpush1.msra.mxu0 0.0
    %5710 = vmatprep.subr.mxu0 0.0
    %5711 = vmatpush1.msra.mxu0 0.0
    %5712 = vmatprep.subr.mxu0 0.0
    %5713 = vmatpush1.msra.mxu0 0.0
    %5714 = vmatprep.subr.mxu0 0.0
    %5715 = vmatpush1.msra.mxu0 0.0
    %5716 = vmatprep.subr.mxu0 0.0
    %5717 = vmatpush1.msra.mxu0 0.0
    %5718 = vmatprep.subr.mxu0 0.0
    %5719 = vmatpush1.msra.mxu0 0.0
    %5720 = vmatprep.subr.mxu0 0.0
    %5721 = vmatpush1.msra.mxu0 0.0
    %5722 = vmatprep.subr.mxu0 0.0
    %5723 = vmatpush1.msra.mxu0 0.0
    %5724 = vmatprep.subr.mxu0 0.0
    %5725 = vmatpush1.msra.mxu0 0.0
    %5726 = vmatprep.subr.mxu0 0.0
    %5727 = vmatpush1.msra.mxu0 0.0
    %5728 = vmatprep.subr.mxu0 0.0
    %5729 = vmatpush1.msra.mxu0 0.0
    %5730 = vmatprep.subr.mxu0 0.0
    %5731 = vmatpush1.msra.mxu0 0.0
    %5732 = vmatprep.subr.mxu0 0.0
    %5733 = vmatpush1.msra.mxu0 0.0
    %5734 = vmatprep.subr.mxu0 0.0
    %5735 = vmatpush1.msra.mxu0 0.0
    %5736 = vmatprep.subr.mxu0 0.0
    %5737 = vmatpush1.msra.mxu0 0.0
    %5738 = vmatprep.subr.mxu0 0.0
    %5739 = vmatpush1.msra.mxu0 0.0
    %5740 = vmatprep.subr.mxu0 0.0
    %5741 = vmatpush1.msra.mxu0 0.0
    %5742 = vmatprep.subr.mxu0 0.0
    %5743 = vmatpush1.msra.mxu0 0.0
    %5744 = vmatprep.subr.mxu0 0.0
    %5745 = vmatpush1.msra.mxu0 0.0
    %5746 = vmatprep.subr.mxu0 0.0
    %5747 = vmatpush1.msra.mxu0 0.0
    %5748 = vmatprep.subr.mxu0 0.0
    %5749 = vmatpush1.msra.mxu0 0.0
    %5750 = vmatprep.mubr.f32.mxu0 0.0
    %5751 = vmatmul.mubr.f32.gmra.mrb[0].mxu0 %v5684
    %v5752 = vpop.f32.mrb[0].mxu0
    %v5753 = vadd.f32 0.0, %v5752
    %v5754 = vpop.f32.mrb[0].mxu0
    %v5755 = vadd.f32 0.0, %v5754
    %5756 = vdwg.mxu0
    %v5757 = vld [vmem:[#allocation7 + $0x600] sm:$0xff]
    %v5758 = vld [vmem:[#allocation7 + $0x608] sm:$0xff]
    %v5759 = vld [vmem:[#allocation7 + $0x610] sm:$0xff]
    %v5760 = vld [vmem:[#allocation7 + $0x618] sm:$0xff]
    %v5761 = vld [vmem:[#allocation7 + $0x620] sm:$0xff]
    %v5762 = vld [vmem:[#allocation7 + $0x628] sm:$0xff]
    %v5763 = vld [vmem:[#allocation7 + $0x630] sm:$0xff]
    %v5764 = vld [vmem:[#allocation7 + $0x638] sm:$0xff]
    %v5765 = vld [vmem:[#allocation7 + $0x640] sm:$0xff]
    %v5766 = vld [vmem:[#allocation7 + $0x648] sm:$0xff]
    %v5767 = vld [vmem:[#allocation7 + $0x650] sm:$0xff]
    %v5768 = vld [vmem:[#allocation7 + $0x658] sm:$0xff]
    %v5769 = vld [vmem:[#allocation7 + $0x660] sm:$0xff]
    %v5770 = vld [vmem:[#allocation7 + $0x668] sm:$0xff]
    %v5771 = vld [vmem:[#allocation7 + $0x670] sm:$0xff]
    %v5772 = vld [vmem:[#allocation7 + $0x678] sm:$0xff]
    %v5773 = vld [vmem:[#allocation7 + $0x680] sm:$0xff]
    %v5774 = vld [vmem:[#allocation7 + $0x688] sm:$0xff]
    %v5775 = vld [vmem:[#allocation7 + $0x690] sm:$0xff]
    %v5776 = vld [vmem:[#allocation7 + $0x698] sm:$0xff]
    %v5777 = vld [vmem:[#allocation7 + $0x6a0] sm:$0xff]
    %v5778 = vld [vmem:[#allocation7 + $0x6a8] sm:$0xff]
    %v5779 = vld [vmem:[#allocation7 + $0x6b0] sm:$0xff]
    %v5780 = vld [vmem:[#allocation7 + $0x6b8] sm:$0xff]
    %v5781 = vld [vmem:[#allocation7 + $0x6c0] sm:$0xff]
    %v5782 = vld [vmem:[#allocation7 + $0x6c8] sm:$0xff]
    %v5783 = vld [vmem:[#allocation7 + $0x6d0] sm:$0xff]
    %v5784 = vld [vmem:[#allocation7 + $0x6d8] sm:$0xff]
    %v5785 = vld [vmem:[#allocation7 + $0x6e0] sm:$0xff]
    %v5786 = vld [vmem:[#allocation7 + $0x6e8] sm:$0xff]
    %v5787 = vld [vmem:[#allocation7 + $0x6f0] sm:$0xff]
    %v5788 = vld [vmem:[#allocation7 + $0x6f8] sm:$0xff]
    %v5789 = vld [vmem:[#allocation7 + $0x700] sm:$0xff]
    %v5790 = vld [vmem:[#allocation7 + $0x708] sm:$0xff]
    %v5791 = vld [vmem:[#allocation7 + $0x710] sm:$0xff]
    %v5792 = vld [vmem:[#allocation7 + $0x718] sm:$0xff]
    %v5793 = vld [vmem:[#allocation7 + $0x720] sm:$0xff]
    %v5794 = vld [vmem:[#allocation7 + $0x728] sm:$0xff]
    %v5795 = vld [vmem:[#allocation7 + $0x730] sm:$0xff]
    %v5796 = vld [vmem:[#allocation7 + $0x738] sm:$0xff]
    %v5797 = vld [vmem:[#allocation7 + $0x740] sm:$0xff]
    %v5798 = vld [vmem:[#allocation7 + $0x748] sm:$0xff]
    %v5799 = vld [vmem:[#allocation7 + $0x750] sm:$0xff]
    %v5800 = vld [vmem:[#allocation7 + $0x758] sm:$0xff]
    %v5801 = vld [vmem:[#allocation7 + $0x760] sm:$0xff]
    %v5802 = vld [vmem:[#allocation7 + $0x768] sm:$0xff]
    %v5803 = vld [vmem:[#allocation7 + $0x770] sm:$0xff]
    %v5804 = vld [vmem:[#allocation7 + $0x778] sm:$0xff]
    %v5805 = vld [vmem:[#allocation7 + $0x780] sm:$0xff]
    %v5806 = vld [vmem:[#allocation7 + $0x788] sm:$0xff]
    %v5807 = vld [vmem:[#allocation7 + $0x790] sm:$0xff]
    %v5808 = vld [vmem:[#allocation7 + $0x798] sm:$0xff]
    %v5809 = vld [vmem:[#allocation7 + $0x7a0] sm:$0xff]
    %v5810 = vld [vmem:[#allocation7 + $0x7a8] sm:$0xff]
    %v5811 = vld [vmem:[#allocation7 + $0x7b0] sm:$0xff]
    %v5812 = vld [vmem:[#allocation7 + $0x7b8] sm:$0xff]
    %v5813 = vld [vmem:[#allocation7 + $0x7c0] sm:$0xff]
    %v5814 = vld [vmem:[#allocation7 + $0x7c8] sm:$0xff]
    %v5815 = vld [vmem:[#allocation7 + $0x7d0] sm:$0xff]
    %v5816 = vld [vmem:[#allocation7 + $0x7d8] sm:$0xff]
    %v5817 = vld [vmem:[#allocation7 + $0x7e0] sm:$0xff]
    %v5818 = vld [vmem:[#allocation7 + $0x7e8] sm:$0xff]
    %v5819 = vld [vmem:[#allocation7 + $0x7f0] sm:$0xff]
    %v5820 = vld [vmem:[#allocation7 + $0x7f8] sm:$0xff]
    %5821 = vmatprep.subr.mxu0 %v5758
    %5822 = vmatpush1.msra.mxu0 %v5757
    %5823 = vmatprep.subr.mxu0 %v5760
    %5824 = vmatpush1.msra.mxu0 %v5759
    %5825 = vmatprep.subr.mxu0 %v5762
    %5826 = vmatpush1.msra.mxu0 %v5761
    %5827 = vmatprep.subr.mxu0 %v5764
    %5828 = vmatpush1.msra.mxu0 %v5763
    %5829 = vmatprep.subr.mxu0 %v5766
    %5830 = vmatpush1.msra.mxu0 %v5765
    %5831 = vmatprep.subr.mxu0 %v5768
    %5832 = vmatpush1.msra.mxu0 %v5767
    %5833 = vmatprep.subr.mxu0 %v5770
    %5834 = vmatpush1.msra.mxu0 %v5769
    %5835 = vmatprep.subr.mxu0 %v5772
    %5836 = vmatpush1.msra.mxu0 %v5771
    %5837 = vmatprep.subr.mxu0 %v5774
    %5838 = vmatpush1.msra.mxu0 %v5773
    %5839 = vmatprep.subr.mxu0 %v5776
    %5840 = vmatpush1.msra.mxu0 %v5775
    %5841 = vmatprep.subr.mxu0 %v5778
    %5842 = vmatpush1.msra.mxu0 %v5777
    %5843 = vmatprep.subr.mxu0 %v5780
    %5844 = vmatpush1.msra.mxu0 %v5779
    %5845 = vmatprep.subr.mxu0 %v5782
    %5846 = vmatpush1.msra.mxu0 %v5781
    %5847 = vmatprep.subr.mxu0 %v5784
    %5848 = vmatpush1.msra.mxu0 %v5783
    %5849 = vmatprep.subr.mxu0 %v5786
    %5850 = vmatpush1.msra.mxu0 %v5785
    %5851 = vmatprep.subr.mxu0 %v5788
    %5852 = vmatpush1.msra.mxu0 %v5787
    %5853 = vmatprep.subr.mxu0 %v5790
    %5854 = vmatpush1.msra.mxu0 %v5789
    %5855 = vmatprep.subr.mxu0 %v5792
    %5856 = vmatpush1.msra.mxu0 %v5791
    %5857 = vmatprep.subr.mxu0 %v5794
    %5858 = vmatpush1.msra.mxu0 %v5793
    %5859 = vmatprep.subr.mxu0 %v5796
    %5860 = vmatpush1.msra.mxu0 %v5795
    %5861 = vmatprep.subr.mxu0 %v5798
    %5862 = vmatpush1.msra.mxu0 %v5797
    %5863 = vmatprep.subr.mxu0 %v5800
    %5864 = vmatpush1.msra.mxu0 %v5799
    %5865 = vmatprep.subr.mxu0 %v5802
    %5866 = vmatpush1.msra.mxu0 %v5801
    %5867 = vmatprep.subr.mxu0 %v5804
    %5868 = vmatpush1.msra.mxu0 %v5803
    %5869 = vmatprep.subr.mxu0 %v5806
    %5870 = vmatpush1.msra.mxu0 %v5805
    %5871 = vmatprep.subr.mxu0 %v5808
    %5872 = vmatpush1.msra.mxu0 %v5807
    %5873 = vmatprep.subr.mxu0 %v5810
    %5874 = vmatpush1.msra.mxu0 %v5809
    %5875 = vmatprep.subr.mxu0 %v5812
    %5876 = vmatpush1.msra.mxu0 %v5811
    %5877 = vmatprep.subr.mxu0 %v5814
    %5878 = vmatpush1.msra.mxu0 %v5813
    %5879 = vmatprep.subr.mxu0 %v5816
    %5880 = vmatpush1.msra.mxu0 %v5815
    %5881 = vmatprep.subr.mxu0 %v5818
    %5882 = vmatpush1.msra.mxu0 %v5817
    %5883 = vmatprep.subr.mxu0 %v5820
    %5884 = vmatpush1.msra.mxu0 %v5819
    %5885 = vmatprep.mubr.f32.mxu0 %v5755
    %5886 = vmatmul.mubr.f32.gmra.mrb[0].mxu0 %v5753
    %v5887 = vpop.f32.mrb[0].mxu0
    %v5888 = vadd.f32 0.0, %v5887
    %v5889 = vpop.f32.mrb[0].mxu0
    %v5890 = vadd.f32 0.0, %v5889
    %5891 = vdwg.mxu0
    %v5892 = vadd.f32 %v5673, %v5888
    %v5893 = vadd.f32 %v5674, %v5890
    %v5894 = vand.u32 %v113, 63
    %v5895 = vand.u32 %v114, 63
    %v5896 = vand.u32 %v115, 63
    %v5897 = vand.u32 %v116, 63
    %v5898 = vand.u32 %v117, 63
    %v5899 = vand.u32 %v118, 63
    %v5900 = vand.u32 %v119, 63
    %v5901 = vand.u32 %v120, 63
    %v5902 = vand.u32 %v2876, 63
    %v5903 = vand.u32 %v2877, 63
    %v5904 = vand.u32 %v2878, 63
    %v5905 = vand.u32 %v2879, 63
    %v5906 = vand.u32 %v2880, 63
    %v5907 = vand.u32 %v2881, 63
    %v5908 = vand.u32 %v2882, 63
    %v5909 = vand.u32 %v2883, 63
    %v5910 = vand.u32 %v2884, 63
    %v5911 = vand.u32 %v2885, 63
    %v5912 = vand.u32 %v2886, 63
    %v5913 = vand.u32 %v2887, 63
    %v5914 = vand.u32 %v2888, 63
    %v5915 = vand.u32 %v2889, 63
    %v5916 = vand.u32 %v2890, 63
    %v5917 = vand.u32 %v2891, 63
    %v5918 = vand.u32 %v2892, 63
    %v5919 = vand.u32 %v2893, 63
    %v5920 = vand.u32 %v2894, 63
    %v5921 = vand.u32 %v2895, 63
    %v5922 = vand.u32 %v2896, 63
    %v5923 = vand.u32 %v2897, 63
    %v5924 = vand.u32 %v2898, 63
    %v5925 = vand.u32 %v2899, 63
    %vm5926 = vcmp.eq.s32.totalorder %v5894, %v122
    %vm5927 = vcmp.eq.s32.totalorder %v5895, %v122
    %vm5928 = vcmp.eq.s32.totalorder %v5896, %v122
    %vm5929 = vcmp.eq.s32.totalorder %v5897, %v122
    %vm5930 = vcmp.eq.s32.totalorder %v5898, %v122
    %vm5931 = vcmp.eq.s32.totalorder %v5899, %v122
    %vm5932 = vcmp.eq.s32.totalorder %v5900, %v122
    %vm5933 = vcmp.eq.s32.totalorder %v5901, %v122
    %vm5934 = vcmp.eq.s32.totalorder %v5902, %v122
    %vm5935 = vcmp.eq.s32.totalorder %v5903, %v122
    %vm5936 = vcmp.eq.s32.totalorder %v5904, %v122
    %vm5937 = vcmp.eq.s32.totalorder %v5905, %v122
    %vm5938 = vcmp.eq.s32.totalorder %v5906, %v122
    %vm5939 = vcmp.eq.s32.totalorder %v5907, %v122
    %vm5940 = vcmp.eq.s32.totalorder %v5908, %v122
    %vm5941 = vcmp.eq.s32.totalorder %v5909, %v122
    %vm5942 = vcmp.eq.s32.totalorder %v5910, %v122
    %vm5943 = vcmp.eq.s32.totalorder %v5911, %v122
    %vm5944 = vcmp.eq.s32.totalorder %v5912, %v122
    %vm5945 = vcmp.eq.s32.totalorder %v5913, %v122
    %vm5946 = vcmp.eq.s32.totalorder %v5914, %v122
    %vm5947 = vcmp.eq.s32.totalorder %v5915, %v122
    %vm5948 = vcmp.eq.s32.totalorder %v5916, %v122
    %vm5949 = vcmp.eq.s32.totalorder %v5917, %v122
    %vm5950 = vcmp.eq.s32.totalorder %v5918, %v122
    %vm5951 = vcmp.eq.s32.totalorder %v5919, %v122
    %vm5952 = vcmp.eq.s32.totalorder %v5920, %v122
    %vm5953 = vcmp.eq.s32.totalorder %v5921, %v122
    %vm5954 = vcmp.eq.s32.totalorder %v5922, %v122
    %vm5955 = vcmp.eq.s32.totalorder %v5923, %v122
    %vm5956 = vcmp.eq.s32.totalorder %v5924, %v122
    %vm5957 = vcmp.eq.s32.totalorder %v5925, %v122
    %v5958 = vsel %vm5926, 1.0, 0.0
    %v5959 = vsel %vm5927, 1.0, 0.0
    %v5960 = vsel %vm5928, 1.0, 0.0
    %v5961 = vsel %vm5929, 1.0, 0.0
    %v5962 = vsel %vm5930, 1.0, 0.0
    %v5963 = vsel %vm5931, 1.0, 0.0
    %v5964 = vsel %vm5932, 1.0, 0.0
    %v5965 = vsel %vm5933, 1.0, 0.0
    %v5966 = vsel %vm5934, 1.0, 0.0
    %v5967 = vsel %vm5935, 1.0, 0.0
    %v5968 = vsel %vm5936, 1.0, 0.0
    %v5969 = vsel %vm5937, 1.0, 0.0
    %v5970 = vsel %vm5938, 1.0, 0.0
    %v5971 = vsel %vm5939, 1.0, 0.0
    %v5972 = vsel %vm5940, 1.0, 0.0
    %v5973 = vsel %vm5941, 1.0, 0.0
    %v5974 = vsel %vm5942, 1.0, 0.0
    %v5975 = vsel %vm5943, 1.0, 0.0
    %v5976 = vsel %vm5944, 1.0, 0.0
    %v5977 = vsel %vm5945, 1.0, 0.0
    %v5978 = vsel %vm5946, 1.0, 0.0
    %v5979 = vsel %vm5947, 1.0, 0.0
    %v5980 = vsel %vm5948, 1.0, 0.0
    %v5981 = vsel %vm5949, 1.0, 0.0
    %v5982 = vsel %vm5950, 1.0, 0.0
    %v5983 = vsel %vm5951, 1.0, 0.0
    %v5984 = vsel %vm5952, 1.0, 0.0
    %v5985 = vsel %vm5953, 1.0, 0.0
    %v5986 = vsel %vm5954, 1.0, 0.0
    %v5987 = vsel %vm5955, 1.0, 0.0
    %v5988 = vsel %vm5956, 1.0, 0.0
    %v5989 = vsel %vm5957, 1.0, 0.0
    %v5990 = vand.u32 %v122, 63
    %v5991 = vand.u32 %v2992, 63
    %vm5992 = vcmp.eq.s32.totalorder %v5990, %v113
    %vm5993 = vcmp.eq.s32.totalorder %v5991, %v113
    %vm5994 = vcmp.eq.s32.totalorder %v5990, %v114
    %vm5995 = vcmp.eq.s32.totalorder %v5991, %v114
    %vm5996 = vcmp.eq.s32.totalorder %v5990, %v115
    %vm5997 = vcmp.eq.s32.totalorder %v5991, %v115
    %vm5998 = vcmp.eq.s32.totalorder %v5990, %v116
    %vm5999 = vcmp.eq.s32.totalorder %v5991, %v116
    %vm6000 = vcmp.eq.s32.totalorder %v5990, %v117
    %vm6001 = vcmp.eq.s32.totalorder %v5991, %v117
    %vm6002 = vcmp.eq.s32.totalorder %v5990, %v118
    %vm6003 = vcmp.eq.s32.totalorder %v5991, %v118
    %vm6004 = vcmp.eq.s32.totalorder %v5990, %v119
    %vm6005 = vcmp.eq.s32.totalorder %v5991, %v119
    %vm6006 = vcmp.eq.s32.totalorder %v5990, %v120
    %vm6007 = vcmp.eq.s32.totalorder %v5991, %v120
    %v6008 = vsel %vm5992, 1.0, 0.0
    %v6009 = vsel %vm5993, 1.0, 0.0
    %v6010 = vsel %vm5994, 1.0, 0.0
    %v6011 = vsel %vm5995, 1.0, 0.0
    %v6012 = vsel %vm5996, 1.0, 0.0
    %v6013 = vsel %vm5997, 1.0, 0.0
    %v6014 = vsel %vm5998, 1.0, 0.0
    %v6015 = vsel %vm5999, 1.0, 0.0
    %v6016 = vsel %vm6000, 1.0, 0.0
    %v6017 = vsel %vm6001, 1.0, 0.0
    %v6018 = vsel %vm6002, 1.0, 0.0
    %v6019 = vsel %vm6003, 1.0, 0.0
    %v6020 = vsel %vm6004, 1.0, 0.0
    %v6021 = vsel %vm6005, 1.0, 0.0
    %v6022 = vsel %vm6006, 1.0, 0.0
    %v6023 = vsel %vm6007, 1.0, 0.0
    %v6024 = vld [vmem:[%s8] sm:$0x3]
    %v6025 = vrot.slane %v5892, 4
    %v6026 = vadd.f32 %v5892, %v6025
    %v6027 = vrot.slane %v6026, 2
    %v6028 = vadd.f32 %v6026, %v6027
    %v6029 = vrot.slane %v6028, 1
    %v6030 = vadd.f32 %v6028, %v6029
    %v6031 = vrot.slane %v5893, 4
    %v6032 = vadd.f32 %v5893, %v6031
    %v6033 = vrot.slane %v6032, 2
    %v6034 = vadd.f32 %v6032, %v6033
    %v6035 = vrot.slane %v6034, 1
    %v6036 = vadd.f32 %v6034, %v6035
    %6037 = vmatprep.subr.mxu0 0.0
    %6038 = vmatpush1.msra.mxu0 %v5958
    %6039 = vmatprep.subr.mxu0 0.0
    %6040 = vmatpush1.msra.mxu0 %v5959
    %6041 = vmatprep.subr.mxu0 0.0
    %6042 = vmatpush1.msra.mxu0 %v5960
    %6043 = vmatprep.subr.mxu0 0.0
    %6044 = vmatpush1.msra.mxu0 %v5961
    %6045 = vmatprep.subr.mxu0 0.0
    %6046 = vmatpush1.msra.mxu0 %v5962
    %6047 = vmatprep.subr.mxu0 0.0
    %6048 = vmatpush1.msra.mxu0 %v5963
    %6049 = vmatprep.subr.mxu0 0.0
    %6050 = vmatpush1.msra.mxu0 %v5964
    %6051 = vmatprep.subr.mxu0 0.0
    %6052 = vmatpush1.msra.mxu0 %v5965
    %6053 = vmatprep.subr.mxu0 0.0
    %6054 = vmatpush1.msra.mxu0 %v5966
    %6055 = vmatprep.subr.mxu0 0.0
    %6056 = vmatpush1.msra.mxu0 %v5967
    %6057 = vmatprep.subr.mxu0 0.0
    %6058 = vmatpush1.msra.mxu0 %v5968
    %6059 = vmatprep.subr.mxu0 0.0
    %6060 = vmatpush1.msra.mxu0 %v5969
    %6061 = vmatprep.subr.mxu0 0.0
    %6062 = vmatpush1.msra.mxu0 %v5970
    %6063 = vmatprep.subr.mxu0 0.0
    %6064 = vmatpush1.msra.mxu0 %v5971
    %6065 = vmatprep.subr.mxu0 0.0
    %6066 = vmatpush1.msra.mxu0 %v5972
    %6067 = vmatprep.subr.mxu0 0.0
    %6068 = vmatpush1.msra.mxu0 %v5973
    %6069 = vmatprep.subr.mxu0 0.0
    %6070 = vmatpush1.msra.mxu0 %v5974
    %6071 = vmatprep.subr.mxu0 0.0
    %6072 = vmatpush1.msra.mxu0 %v5975
    %6073 = vmatprep.subr.mxu0 0.0
    %6074 = vmatpush1.msra.mxu0 %v5976
    %6075 = vmatprep.subr.mxu0 0.0
    %6076 = vmatpush1.msra.mxu0 %v5977
    %6077 = vmatprep.subr.mxu0 0.0
    %6078 = vmatpush1.msra.mxu0 %v5978
    %6079 = vmatprep.subr.mxu0 0.0
    %6080 = vmatpush1.msra.mxu0 %v5979
    %6081 = vmatprep.subr.mxu0 0.0
    %6082 = vmatpush1.msra.mxu0 %v5980
    %6083 = vmatprep.subr.mxu0 0.0
    %6084 = vmatpush1.msra.mxu0 %v5981
    %6085 = vmatprep.subr.mxu0 0.0
    %6086 = vmatpush1.msra.mxu0 %v5982
    %6087 = vmatprep.subr.mxu0 0.0
    %6088 = vmatpush1.msra.mxu0 %v5983
    %6089 = vmatprep.subr.mxu0 0.0
    %6090 = vmatpush1.msra.mxu0 %v5984
    %6091 = vmatprep.subr.mxu0 0.0
    %6092 = vmatpush1.msra.mxu0 %v5985
    %6093 = vmatprep.subr.mxu0 0.0
    %6094 = vmatpush1.msra.mxu0 %v5986
    %6095 = vmatprep.subr.mxu0 0.0
    %6096 = vmatpush1.msra.mxu0 %v5987
    %6097 = vmatprep.subr.mxu0 0.0
    %6098 = vmatpush1.msra.mxu0 %v5988
    %6099 = vmatprep.subr.mxu0 0.0
    %6100 = vmatpush1.msra.mxu0 %v5989
    %6101 = vmatprep.mubr.f32.mxu0 %v6036
    %6102 = vmatmul.mubr.f32.gmra.mrb[0].mxu0 %v6030
    %v6103 = vpop.f32.mrb[0].mxu0
    %v6104 = vadd.f32 0.0, %v6103
    %v6105 = vpop.f32.mrb[0].mxu0
    %6106 = vdwg.mxu0
    %v6107 = vmul.f32 %v6104, 0.03125
    %v6109 = vsel %vm597, %v6107, 0
    %6111 = vmatprep.subr.mxu0 %v6009
    %6112 = vmatpush1.msra.mxu0 %v6008
    %6113 = vmatprep.subr.mxu0 %v6011
    %6114 = vmatpush1.msra.mxu0 %v6010
    %6115 = vmatprep.subr.mxu0 %v6013
    %6116 = vmatpush1.msra.mxu0 %v6012
    %6117 = vmatprep.subr.mxu0 %v6015
    %6118 = vmatpush1.msra.mxu0 %v6014
    %6119 = vmatprep.subr.mxu0 %v6017
    %6120 = vmatpush1.msra.mxu0 %v6016
    %6121 = vmatprep.subr.mxu0 %v6019
    %6122 = vmatpush1.msra.mxu0 %v6018
    %6123 = vmatprep.subr.mxu0 %v6021
    %6124 = vmatpush1.msra.mxu0 %v6020
    %6125 = vmatprep.subr.mxu0 %v6023
    %6126 = vmatpush1.msra.mxu0 %v6022
    %6127 = vmatprep.subr.mxu0 0.0
    %6128 = vmatpush1.msra.mxu0 0.0
    %6129 = vmatprep.subr.mxu0 0.0
    %6130 = vmatpush1.msra.mxu0 0.0
    %6131 = vmatprep.subr.mxu0 0.0
    %6132 = vmatpush1.msra.mxu0 0.0
    %6133 = vmatprep.subr.mxu0 0.0
    %6134 = vmatpush1.msra.mxu0 0.0
    %6135 = vmatprep.subr.mxu0 0.0
    %6136 = vmatpush1.msra.mxu0 0.0
    %6137 = vmatprep.subr.mxu0 0.0
    %6138 = vmatpush1.msra.mxu0 0.0
    %6139 = vmatprep.subr.mxu0 0.0
    %6140 = vmatpush1.msra.mxu0 0.0
    %6141 = vmatprep.subr.mxu0 0.0
    %6142 = vmatpush1.msra.mxu0 0.0
    %6143 = vmatprep.subr.mxu0 0.0
    %6144 = vmatpush1.msra.mxu0 0.0
    %6145 = vmatprep.subr.mxu0 0.0
    %6146 = vmatpush1.msra.mxu0 0.0
    %6147 = vmatprep.subr.mxu0 0.0
    %6148 = vmatpush1.msra.mxu0 0.0
    %6149 = vmatprep.subr.mxu0 0.0
    %6150 = vmatpush1.msra.mxu0 0.0
    %6151 = vmatprep.subr.mxu0 0.0
    %6152 = vmatpush1.msra.mxu0 0.0
    %6153 = vmatprep.subr.mxu0 0.0
    %6154 = vmatpush1.msra.mxu0 0.0
    %6155 = vmatprep.subr.mxu0 0.0
    %6156 = vmatpush1.msra.mxu0 0.0
    %6157 = vmatprep.subr.mxu0 0.0
    %6158 = vmatpush1.msra.mxu0 0.0
    %6159 = vmatprep.subr.mxu0 0.0
    %6160 = vmatpush1.msra.mxu0 0.0
    %6161 = vmatprep.subr.mxu0 0.0
    %6162 = vmatpush1.msra.mxu0 0.0
    %6163 = vmatprep.subr.mxu0 0.0
    %6164 = vmatpush1.msra.mxu0 0.0
    %6165 = vmatprep.subr.mxu0 0.0
    %6166 = vmatpush1.msra.mxu0 0.0
    %6167 = vmatprep.subr.mxu0 0.0
    %6168 = vmatpush1.msra.mxu0 0.0
    %6169 = vmatprep.subr.mxu0 0.0
    %6170 = vmatpush1.msra.mxu0 0.0
    %6171 = vmatprep.subr.mxu0 0.0
    %6172 = vmatpush1.msra.mxu0 0.0
    %6173 = vmatprep.subr.mxu0 0.0
    %6174 = vmatpush1.msra.mxu0 0.0
    %6175 = vmatprep.mubr.f32.mxu0 0.0
    %6176 = vmatmul.mubr.f32.gmra.mrb[0].mxu0 %v6109
    %v6177 = vpop.f32.mrb[0].mxu0
    %v6178 = vadd.f32 0.0, %v6177
    %v6179 = vpop.f32.mrb[0].mxu0
    %v6180 = vadd.f32 0.0, %v6179
    %6181 = vdwg.mxu0
    %v6182 = vlaneseq
    %v6183 = vshrl.u32 %v6182, 7
    %v6184 = vsub.s32 0, %v6183
    %v6185 = vrot.slane %v6178, %v6184
    %v6186 = vlaneseq
    %v6187 = vshrl.u32 %v6186, 7
    %v6188 = vsub.s32 0, %v6187
    %v6189 = vrot.slane %v6180, %v6188
    %v6190 = vsub.f32 %v5892, %v6185
    %v6191 = vsub.f32 %v5893, %v6189
    %v6192 = vmul.f32 %v6190, %v6190
    %v6193 = vmul.f32 %v6191, %v6191
    %v6194 = vrot.slane %v6192, 4
    %v6195 = vadd.f32 %v6192, %v6194
    %v6196 = vrot.slane %v6195, 2
    %v6197 = vadd.f32 %v6195, %v6196
    %v6198 = vrot.slane %v6197, 1
    %v6199 = vadd.f32 %v6197, %v6198
    %v6200 = vrot.slane %v6193, 4
    %v6201 = vadd.f32 %v6193, %v6200
    %v6202 = vrot.slane %v6201, 2
    %v6203 = vadd.f32 %v6201, %v6202
    %v6204 = vrot.slane %v6203, 1
    %v6205 = vadd.f32 %v6203, %v6204
    %6206 = vmatprep.subr.mxu0 0.0
    %6207 = vmatpush1.msra.mxu0 %v5958
    %6208 = vmatprep.subr.mxu0 0.0
    %6209 = vmatpush1.msra.mxu0 %v5959
    %6210 = vmatprep.subr.mxu0 0.0
    %6211 = vmatpush1.msra.mxu0 %v5960
    %6212 = vmatprep.subr.mxu0 0.0
    %6213 = vmatpush1.msra.mxu0 %v5961
    %6214 = vmatprep.subr.mxu0 0.0
    %6215 = vmatpush1.msra.mxu0 %v5962
    %6216 = vmatprep.subr.mxu0 0.0
    %6217 = vmatpush1.msra.mxu0 %v5963
    %6218 = vmatprep.subr.mxu0 0.0
    %6219 = vmatpush1.msra.mxu0 %v5964
    %6220 = vmatprep.subr.mxu0 0.0
    %6221 = vmatpush1.msra.mxu0 %v5965
    %6222 = vmatprep.subr.mxu0 0.0
    %6223 = vmatpush1.msra.mxu0 %v5966
    %6224 = vmatprep.subr.mxu0 0.0
    %6225 = vmatpush1.msra.mxu0 %v5967
    %6226 = vmatprep.subr.mxu0 0.0
    %6227 = vmatpush1.msra.mxu0 %v5968
    %6228 = vmatprep.subr.mxu0 0.0
    %6229 = vmatpush1.msra.mxu0 %v5969
    %6230 = vmatprep.subr.mxu0 0.0
    %6231 = vmatpush1.msra.mxu0 %v5970
    %6232 = vmatprep.subr.mxu0 0.0
    %6233 = vmatpush1.msra.mxu0 %v5971
    %6234 = vmatprep.subr.mxu0 0.0
    %6235 = vmatpush1.msra.mxu0 %v5972
    %6236 = vmatprep.subr.mxu0 0.0
    %6237 = vmatpush1.msra.mxu0 %v5973
    %6238 = vmatprep.subr.mxu0 0.0
    %6239 = vmatpush1.msra.mxu0 %v5974
    %6240 = vmatprep.subr.mxu0 0.0
    %6241 = vmatpush1.msra.mxu0 %v5975
    %6242 = vmatprep.subr.mxu0 0.0
    %6243 = vmatpush1.msra.mxu0 %v5976
    %6244 = vmatprep.subr.mxu0 0.0
    %6245 = vmatpush1.msra.mxu0 %v5977
    %6246 = vmatprep.subr.mxu0 0.0
    %6247 = vmatpush1.msra.mxu0 %v5978
    %6248 = vmatprep.subr.mxu0 0.0
    %6249 = vmatpush1.msra.mxu0 %v5979
    %6250 = vmatprep.subr.mxu0 0.0
    %6251 = vmatpush1.msra.mxu0 %v5980
    %6252 = vmatprep.subr.mxu0 0.0
    %6253 = vmatpush1.msra.mxu0 %v5981
    %6254 = vmatprep.subr.mxu0 0.0
    %6255 = vmatpush1.msra.mxu0 %v5982
    %6256 = vmatprep.subr.mxu0 0.0
    %6257 = vmatpush1.msra.mxu0 %v5983
    %6258 = vmatprep.subr.mxu0 0.0
    %6259 = vmatpush1.msra.mxu0 %v5984
    %6260 = vmatprep.subr.mxu0 0.0
    %6261 = vmatpush1.msra.mxu0 %v5985
    %6262 = vmatprep.subr.mxu0 0.0
    %6263 = vmatpush1.msra.mxu0 %v5986
    %6264 = vmatprep.subr.mxu0 0.0
    %6265 = vmatpush1.msra.mxu0 %v5987
    %6266 = vmatprep.subr.mxu0 0.0
    %6267 = vmatpush1.msra.mxu0 %v5988
    %6268 = vmatprep.subr.mxu0 0.0
    %6269 = vmatpush1.msra.mxu0 %v5989
    %6270 = vmatprep.mubr.f32.mxu0 %v6205
    %6271 = vmatmul.mubr.f32.gmra.mrb[0].mxu0 %v6199
    %v6272 = vpop.f32.mrb[0].mxu0
    %v6273 = vadd.f32 0.0, %v6272
    %v6274 = vpop.f32.mrb[0].mxu0
    %6275 = vdwg.mxu0
    %v6276 = vmul.f32 %v6273, 0.03125
    %v6277 = vadd.f32 %v6276, 1e-05
    %v6278 = vrsqrt.pop %v6277
    %v6279 = vmul.f32 %v6024, %v6278
    %v6281 = vsel %vm597, %v6279, 0
    %6283 = vmatprep.subr.mxu0 %v6009
    %6284 = vmatpush1.msra.mxu0 %v6008
    %6285 = vmatprep.subr.mxu0 %v6011
    %6286 = vmatpush1.msra.mxu0 %v6010
    %6287 = vmatprep.subr.mxu0 %v6013
    %6288 = vmatpush1.msra.mxu0 %v6012
    %6289 = vmatprep.subr.mxu0 %v6015
    %6290 = vmatpush1.msra.mxu0 %v6014
    %6291 = vmatprep.subr.mxu0 %v6017
    %6292 = vmatpush1.msra.mxu0 %v6016
    %6293 = vmatprep.subr.mxu0 %v6019
    %6294 = vmatpush1.msra.mxu0 %v6018
    %6295 = vmatprep.subr.mxu0 %v6021
    %6296 = vmatpush1.msra.mxu0 %v6020
    %6297 = vmatprep.subr.mxu0 %v6023
    %6298 = vmatpush1.msra.mxu0 %v6022
    %6299 = vmatprep.subr.mxu0 0.0
    %6300 = vmatpush1.msra.mxu0 0.0
    %6301 = vmatprep.subr.mxu0 0.0
    %6302 = vmatpush1.msra.mxu0 0.0
    %6303 = vmatprep.subr.mxu0 0.0
    %6304 = vmatpush1.msra.mxu0 0.0
    %6305 = vmatprep.subr.mxu0 0.0
    %6306 = vmatpush1.msra.mxu0 0.0
    %6307 = vmatprep.subr.mxu0 0.0
    %6308 = vmatpush1.msra.mxu0 0.0
    %6309 = vmatprep.subr.mxu0 0.0
    %6310 = vmatpush1.msra.mxu0 0.0
    %6311 = vmatprep.subr.mxu0 0.0
    %6312 = vmatpush1.msra.mxu0 0.0
    %6313 = vmatprep.subr.mxu0 0.0
    %6314 = vmatpush1.msra.mxu0 0.0
    %6315 = vmatprep.subr.mxu0 0.0
    %6316 = vmatpush1.msra.mxu0 0.0
    %6317 = vmatprep.subr.mxu0 0.0
    %6318 = vmatpush1.msra.mxu0 0.0
    %6319 = vmatprep.subr.mxu0 0.0
    %6320 = vmatpush1.msra.mxu0 0.0
    %6321 = vmatprep.subr.mxu0 0.0
    %6322 = vmatpush1.msra.mxu0 0.0
    %6323 = vmatprep.subr.mxu0 0.0
    %6324 = vmatpush1.msra.mxu0 0.0
    %6325 = vmatprep.subr.mxu0 0.0
    %6326 = vmatpush1.msra.mxu0 0.0
    %6327 = vmatprep.subr.mxu0 0.0
    %6328 = vmatpush1.msra.mxu0 0.0
    %6329 = vmatprep.subr.mxu0 0.0
    %6330 = vmatpush1.msra.mxu0 0.0
    %6331 = vmatprep.subr.mxu0 0.0
    %6332 = vmatpush1.msra.mxu0 0.0
    %6333 = vmatprep.subr.mxu0 0.0
    %6334 = vmatpush1.msra.mxu0 0.0
    %6335 = vmatprep.subr.mxu0 0.0
    %6336 = vmatpush1.msra.mxu0 0.0
    %6337 = vmatprep.subr.mxu0 0.0
    %6338 = vmatpush1.msra.mxu0 0.0
    %6339 = vmatprep.subr.mxu0 0.0
    %6340 = vmatpush1.msra.mxu0 0.0
    %6341 = vmatprep.subr.mxu0 0.0
    %6342 = vmatpush1.msra.mxu0 0.0
    %6343 = vmatprep.subr.mxu0 0.0
    %6344 = vmatpush1.msra.mxu0 0.0
    %6345 = vmatprep.subr.mxu0 0.0
    %6346 = vmatpush1.msra.mxu0 0.0
    %6347 = vmatprep.mubr.f32.mxu0 0.0
    %6348 = vmatmul.mubr.f32.gmra.mrb[0].mxu0 %v6281
    %v6349 = vpop.f32.mrb[0].mxu0
    %v6350 = vadd.f32 0.0, %v6349
    %v6351 = vpop.f32.mrb[0].mxu0
    %v6352 = vadd.f32 0.0, %v6351
    %6353 = vdwg.mxu0
    %v6354 = vlaneseq
    %v6355 = vshrl.u32 %v6354, 7
    %v6356 = vsub.s32 0, %v6355
    %v6357 = vrot.slane %v6350, %v6356
    %v6358 = vlaneseq
    %v6359 = vshrl.u32 %v6358, 7
    %v6360 = vsub.s32 0, %v6359
    %v6361 = vrot.slane %v6352, %v6360
    %v6362 = vmul.f32 %v6190, %v6357
    %v6363 = vmul.f32 %v6191, %v6361
    %v6365 = vrot.slane %v6024, 1
    %v6366 = vsel %vm597, %v6365, 0
    %6368 = vmatprep.subr.mxu0 %v6009
    %6369 = vmatpush1.msra.mxu0 %v6008
    %6370 = vmatprep.subr.mxu0 %v6011
    %6371 = vmatpush1.msra.mxu0 %v6010
    %6372 = vmatprep.subr.mxu0 %v6013
    %6373 = vmatpush1.msra.mxu0 %v6012
    %6374 = vmatprep.subr.mxu0 %v6015
    %6375 = vmatpush1.msra.mxu0 %v6014
    %6376 = vmatprep.subr.mxu0 %v6017
    %6377 = vmatpush1.msra.mxu0 %v6016
    %6378 = vmatprep.subr.mxu0 %v6019
    %6379 = vmatpush1.msra.mxu0 %v6018
    %6380 = vmatprep.subr.mxu0 %v6021
    %6381 = vmatpush1.msra.mxu0 %v6020
    %6382 = vmatprep.subr.mxu0 %v6023
    %6383 = vmatpush1.msra.mxu0 %v6022
    %6384 = vmatprep.subr.mxu0 0.0
    %6385 = vmatpush1.msra.mxu0 0.0
    %6386 = vmatprep.subr.mxu0 0.0
    %6387 = vmatpush1.msra.mxu0 0.0
    %6388 = vmatprep.subr.mxu0 0.0
    %6389 = vmatpush1.msra.mxu0 0.0
    %6390 = vmatprep.subr.mxu0 0.0
    %6391 = vmatpush1.msra.mxu0 0.0
    %6392 = vmatprep.subr.mxu0 0.0
    %6393 = vmatpush1.msra.mxu0 0.0
    %6394 = vmatprep.subr.mxu0 0.0
    %6395 = vmatpush1.msra.mxu0 0.0
    %6396 = vmatprep.subr.mxu0 0.0
    %6397 = vmatpush1.msra.mxu0 0.0
    %6398 = vmatprep.subr.mxu0 0.0
    %6399 = vmatpush1.msra.mxu0 0.0
    %6400 = vmatprep.subr.mxu0 0.0
    %6401 = vmatpush1.msra.mxu0 0.0
    %6402 = vmatprep.subr.mxu0 0.0
    %6403 = vmatpush1.msra.mxu0 0.0
    %6404 = vmatprep.subr.mxu0 0.0
    %6405 = vmatpush1.msra.mxu0 0.0
    %6406 = vmatprep.subr.mxu0 0.0
    %6407 = vmatpush1.msra.mxu0 0.0
    %6408 = vmatprep.subr.mxu0 0.0
    %6409 = vmatpush1.msra.mxu0 0.0
    %6410 = vmatprep.subr.mxu0 0.0
    %6411 = vmatpush1.msra.mxu0 0.0
    %6412 = vmatprep.subr.mxu0 0.0
    %6413 = vmatpush1.msra.mxu0 0.0
    %6414 = vmatprep.subr.mxu0 0.0
    %6415 = vmatpush1.msra.mxu0 0.0
    %6416 = vmatprep.subr.mxu0 0.0
    %6417 = vmatpush1.msra.mxu0 0.0
    %6418 = vmatprep.subr.mxu0 0.0
    %6419 = vmatpush1.msra.mxu0 0.0
    %6420 = vmatprep.subr.mxu0 0.0
    %6421 = vmatpush1.msra.mxu0 0.0
    %6422 = vmatprep.subr.mxu0 0.0
    %6423 = vmatpush1.msra.mxu0 0.0
    %6424 = vmatprep.subr.mxu0 0.0
    %6425 = vmatpush1.msra.mxu0 0.0
    %6426 = vmatprep.subr.mxu0 0.0
    %6427 = vmatpush1.msra.mxu0 0.0
    %6428 = vmatprep.subr.mxu0 0.0
    %6429 = vmatpush1.msra.mxu0 0.0
    %6430 = vmatprep.subr.mxu0 0.0
    %6431 = vmatpush1.msra.mxu0 0.0
    %6432 = vmatprep.mubr.f32.mxu0 0.0
    %6433 = vmatmul.mubr.f32.gmra.mrb[0].mxu0 %v6366
    %v6434 = vpop.f32.mrb[0].mxu0
    %v6435 = vadd.f32 0.0, %v6434
    %v6436 = vpop.f32.mrb[0].mxu0
    %v6437 = vadd.f32 0.0, %v6436
    %6438 = vdwg.mxu0
    %v6439 = vlaneseq
    %v6440 = vshrl.u32 %v6439, 7
    %v6441 = vsub.s32 0, %v6440
    %v6442 = vrot.slane %v6435, %v6441
    %v6443 = vlaneseq
    %v6444 = vshrl.u32 %v6443, 7
    %v6445 = vsub.s32 0, %v6444
    %v6446 = vrot.slane %v6437, %v6445
    %v6447 = vadd.f32 %v6362, %v6442
    %v6448 = vadd.f32 %v6363, %v6446
    %vm6449 = vcmp.gt.f32.partialorder %v6447, 0.0
    %vm6450 = vcmp.gt.f32.partialorder %v6448, 0.0
    %v6451 = vmul.f32 %v6447, 0.2
    %v6452 = vmul.f32 %v6448, 0.2
    %v6453 = vsel %vm6449, %v6447, %v6451
    %v6454 = vsel %vm6450, %v6448, %v6452
    %v6455 = vmul.u32 %v113, 4
    %vm6456 = vcmp.eq.s32.totalorder %v122, %v6455
    %v6457 = vsel %vm6456, 1.0, 0.0
    %vm6458 = vcmask 64512
    %v6460 = vsel %vm6458, %v6457, 0
    %6462 = vmatprep.subr.mxu0 %v6454
    %6463 = vmatpush1.msra.mxu0 %v6453
    %6464 = vmatprep.subr.mxu0 0.0
    %6465 = vmatpush1.msra.mxu0 0.0
    %6466 = vmatprep.subr.mxu0 0.0
    %6467 = vmatpush1.msra.mxu0 0.0
    %6468 = vmatprep.subr.mxu0 0.0
    %6469 = vmatpush1.msra.mxu0 0.0
    %6470 = vmatprep.subr.mxu0 0.0
    %6471 = vmatpush1.msra.mxu0 0.0
    %6472 = vmatprep.subr.mxu0 0.0
    %6473 = vmatpush1.msra.mxu0 0.0
    %6474 = vmatprep.subr.mxu0 0.0
    %6475 = vmatpush1.msra.mxu0 0.0
    %6476 = vmatprep.subr.mxu0 0.0
    %6477 = vmatpush1.msra.mxu0 0.0
    %6478 = vmatprep.subr.mxu0 0.0
    %6479 = vmatpush1.msra.mxu0 0.0
    %6480 = vmatprep.subr.mxu0 0.0
    %6481 = vmatpush1.msra.mxu0 0.0
    %6482 = vmatprep.subr.mxu0 0.0
    %6483 = vmatpush1.msra.mxu0 0.0
    %6484 = vmatprep.subr.mxu0 0.0
    %6485 = vmatpush1.msra.mxu0 0.0
    %6486 = vmatprep.subr.mxu0 0.0
    %6487 = vmatpush1.msra.mxu0 0.0
    %6488 = vmatprep.subr.mxu0 0.0
    %6489 = vmatpush1.msra.mxu0 0.0
    %6490 = vmatprep.subr.mxu0 0.0
    %6491 = vmatpush1.msra.mxu0 0.0
    %6492 = vmatprep.subr.mxu0 0.0
    %6493 = vmatpush1.msra.mxu0 0.0
    %6494 = vmatprep.subr.mxu0 0.0
    %6495 = vmatpush1.msra.mxu0 0.0
    %6496 = vmatprep.subr.mxu0 0.0
    %6497 = vmatpush1.msra.mxu0 0.0
    %6498 = vmatprep.subr.mxu0 0.0
    %6499 = vmatpush1.msra.mxu0 0.0
    %6500 = vmatprep.subr.mxu0 0.0
    %6501 = vmatpush1.msra.mxu0 0.0
    %6502 = vmatprep.subr.mxu0 0.0
    %6503 = vmatpush1.msra.mxu0 0.0
    %6504 = vmatprep.subr.mxu0 0.0
    %6505 = vmatpush1.msra.mxu0 0.0
    %6506 = vmatprep.subr.mxu0 0.0
    %6507 = vmatpush1.msra.mxu0 0.0
    %6508 = vmatprep.subr.mxu0 0.0
    %6509 = vmatpush1.msra.mxu0 0.0
    %6510 = vmatprep.subr.mxu0 0.0
    %6511 = vmatpush1.msra.mxu0 0.0
    %6512 = vmatprep.subr.mxu0 0.0
    %6513 = vmatpush1.msra.mxu0 0.0
    %6514 = vmatprep.subr.mxu0 0.0
    %6515 = vmatpush1.msra.mxu0 0.0
    %6516 = vmatprep.subr.mxu0 0.0
    %6517 = vmatpush1.msra.mxu0 0.0
    %6518 = vmatprep.subr.mxu0 0.0
    %6519 = vmatpush1.msra.mxu0 0.0
    %6520 = vmatprep.subr.mxu0 0.0
    %6521 = vmatpush1.msra.mxu0 0.0
    %6522 = vmatprep.subr.mxu0 0.0
    %6523 = vmatpush1.msra.mxu0 0.0
    %6524 = vmatprep.subr.mxu0 0.0
    %6525 = vmatpush1.msra.mxu0 0.0
    %6526 = vmatprep.mubr.f32.mxu0 0.0
    %6527 = vmatmul.mubr.f32.gmra.mrb[0].mxu0 %v6460
    %v6528 = vpop.f32.mrb[0].mxu0
    %v6529 = vadd.f32 0.0, %v6528
    %v6530 = vpop.f32.mrb[0].mxu0
    %v6531 = vadd.f32 0.0, %v6530
    %6532 = vdwg.mxu0
    %v6533 = vld [vmem:[%s9] sm:$0xff]
    %v6534 = vld [vmem:[%s9 + $0x8] sm:$0xff]
    %v6535 = vld [vmem:[%s9 + $0x10] sm:$0xff]
    %v6536 = vld [vmem:[%s9 + $0x18] sm:$0xff]
    %v6537 = vld [vmem:[%s9 + $0x20] sm:$0xff]
    %v6538 = vld [vmem:[%s9 + $0x28] sm:$0xff]
    %v6539 = vld [vmem:[%s9 + $0x30] sm:$0xff]
    %v6540 = vld [vmem:[%s9 + $0x38] sm:$0xff]
    %v6541 = vld [vmem:[%s9 + $0x40] sm:$0xff]
    %v6542 = vld [vmem:[%s9 + $0x48] sm:$0xff]
    %v6543 = vld [vmem:[%s9 + $0x50] sm:$0xff]
    %v6544 = vld [vmem:[%s9 + $0x58] sm:$0xff]
    %v6545 = vld [vmem:[%s9 + $0x60] sm:$0xff]
    %v6546 = vld [vmem:[%s9 + $0x68] sm:$0xff]
    %v6547 = vld [vmem:[%s9 + $0x70] sm:$0xff]
    %v6548 = vld [vmem:[%s9 + $0x78] sm:$0xff]
    %v6549 = vld [vmem:[%s9 + $0x80] sm:$0xff]
    %v6550 = vld [vmem:[%s9 + $0x88] sm:$0xff]
    %v6551 = vld [vmem:[%s9 + $0x90] sm:$0xff]
    %v6552 = vld [vmem:[%s9 + $0x98] sm:$0xff]
    %v6553 = vld [vmem:[%s9 + $0xa0] sm:$0xff]
    %v6554 = vld [vmem:[%s9 + $0xa8] sm:$0xff]
    %v6555 = vld [vmem:[%s9 + $0xb0] sm:$0xff]
    %v6556 = vld [vmem:[%s9 + $0xb8] sm:$0xff]
    %v6557 = vld [vmem:[%s9 + $0xc0] sm:$0xff]
    %v6558 = vld [vmem:[%s9 + $0xc8] sm:$0xff]
    %v6559 = vld [vmem:[%s9 + $0xd0] sm:$0xff]
    %v6560 = vld [vmem:[%s9 + $0xd8] sm:$0xff]
    %v6561 = vld [vmem:[%s9 + $0xe0] sm:$0xff]
    %v6562 = vld [vmem:[%s9 + $0xe8] sm:$0xff]
    %v6563 = vld [vmem:[%s9 + $0xf0] sm:$0xff]
    %v6564 = vld [vmem:[%s9 + $0xf8] sm:$0xff]
    %v6565 = vadd.s32 %v6455, 1
    %vm6566 = vcmp.eq.s32.totalorder %v122, %v6565
    %v6567 = vsel %vm6566, 1.0, 0.0
    %v6569 = vsel %vm6458, %v6567, 0
    %6571 = vmatprep.subr.mxu0 %v6454
    %6572 = vmatpush1.msra.mxu0 %v6453
    %6573 = vmatprep.subr.mxu0 0.0
    %6574 = vmatpush1.msra.mxu0 0.0
    %6575 = vmatprep.subr.mxu0 0.0
    %6576 = vmatpush1.msra.mxu0 0.0
    %6577 = vmatprep.subr.mxu0 0.0
    %6578 = vmatpush1.msra.mxu0 0.0
    %6579 = vmatprep.subr.mxu0 0.0
    %6580 = vmatpush1.msra.mxu0 0.0
    %6581 = vmatprep.subr.mxu0 0.0
    %6582 = vmatpush1.msra.mxu0 0.0
    %6583 = vmatprep.subr.mxu0 0.0
    %6584 = vmatpush1.msra.mxu0 0.0
    %6585 = vmatprep.subr.mxu0 0.0
    %6586 = vmatpush1.msra.mxu0 0.0
    %6587 = vmatprep.subr.mxu0 0.0
    %6588 = vmatpush1.msra.mxu0 0.0
    %6589 = vmatprep.subr.mxu0 0.0
    %6590 = vmatpush1.msra.mxu0 0.0
    %6591 = vmatprep.subr.mxu0 0.0
    %6592 = vmatpush1.msra.mxu0 0.0
    %6593 = vmatprep.subr.mxu0 0.0
    %6594 = vmatpush1.msra.mxu0 0.0
    %6595 = vmatprep.subr.mxu0 0.0
    %6596 = vmatpush1.msra.mxu0 0.0
    %6597 = vmatprep.subr.mxu0 0.0
    %6598 = vmatpush1.msra.mxu0 0.0
    %6599 = vmatprep.subr.mxu0 0.0
    %6600 = vmatpush1.msra.mxu0 0.0
    %6601 = vmatprep.subr.mxu0 0.0
    %6602 = vmatpush1.msra.mxu0 0.0
    %6603 = vmatprep.subr.mxu0 0.0
    %6604 = vmatpush1.msra.mxu0 0.0
    %6605 = vmatprep.subr.mxu0 0.0
    %6606 = vmatpush1.msra.mxu0 0.0
    %6607 = vmatprep.subr.mxu0 0.0
    %6608 = vmatpush1.msra.mxu0 0.0
    %6609 = vmatprep.subr.mxu0 0.0
    %6610 = vmatpush1.msra.mxu0 0.0
    %6611 = vmatprep.subr.mxu0 0.0
    %6612 = vmatpush1.msra.mxu0 0.0
    %6613 = vmatprep.subr.mxu0 0.0
    %6614 = vmatpush1.msra.mxu0 0.0
    %6615 = vmatprep.subr.mxu0 0.0
    %6616 = vmatpush1.msra.mxu0 0.0
    %6617 = vmatprep.subr.mxu0 0.0
    %6618 = vmatpush1.msra.mxu0 0.0
    %6619 = vmatprep.subr.mxu0 0.0
    %6620 = vmatpush1.msra.mxu0 0.0
    %6621 = vmatprep.subr.mxu0 0.0
    %6622 = vmatpush1.msra.mxu0 0.0
    %6623 = vmatprep.subr.mxu0 0.0
    %6624 = vmatpush1.msra.mxu0 0.0
    %6625 = vmatprep.subr.mxu0 0.0
    %6626 = vmatpush1.msra.mxu0 0.0
    %6627 = vmatprep.subr.mxu0 0.0
    %6628 = vmatpush1.msra.mxu0 0.0
    %6629 = vmatprep.subr.mxu0 0.0
    %6630 = vmatpush1.msra.mxu0 0.0
    %6631 = vmatprep.subr.mxu0 0.0
    %6632 = vmatpush1.msra.mxu0 0.0
    %6633 = vmatprep.subr.mxu0 0.0
    %6634 = vmatpush1.msra.mxu0 0.0
    %6635 = vmatprep.mubr.f32.mxu0 0.0
    %6636 = vmatmul.mubr.f32.gmra.mrb[0].mxu0 %v6569
    %v6637 = vpop.f32.mrb[0].mxu0
    %v6638 = vadd.f32 0.0, %v6637
    %v6639 = vpop.f32.mrb[0].mxu0
    %v6640 = vadd.f32 0.0, %v6639
    %6641 = vdwg.mxu0
    %v6642 = vld [vmem:[%s9 + $0x100] sm:$0xff]
    %v6643 = vld [vmem:[%s9 + $0x108] sm:$0xff]
    %v6644 = vld [vmem:[%s9 + $0x110] sm:$0xff]
    %v6645 = vld [vmem:[%s9 + $0x118] sm:$0xff]
    %v6646 = vld [vmem:[%s9 + $0x120] sm:$0xff]
    %v6647 = vld [vmem:[%s9 + $0x128] sm:$0xff]
    %v6648 = vld [vmem:[%s9 + $0x130] sm:$0xff]
    %v6649 = vld [vmem:[%s9 + $0x138] sm:$0xff]
    %v6650 = vld [vmem:[%s9 + $0x140] sm:$0xff]
    %v6651 = vld [vmem:[%s9 + $0x148] sm:$0xff]
    %v6652 = vld [vmem:[%s9 + $0x150] sm:$0xff]
    %v6653 = vld [vmem:[%s9 + $0x158] sm:$0xff]
    %v6654 = vld [vmem:[%s9 + $0x160] sm:$0xff]
    %v6655 = vld [vmem:[%s9 + $0x168] sm:$0xff]
    %v6656 = vld [vmem:[%s9 + $0x170] sm:$0xff]
    %v6657 = vld [vmem:[%s9 + $0x178] sm:$0xff]
    %v6658 = vld [vmem:[%s9 + $0x180] sm:$0xff]
    %v6659 = vld [vmem:[%s9 + $0x188] sm:$0xff]
    %v6660 = vld [vmem:[%s9 + $0x190] sm:$0xff]
    %v6661 = vld [vmem:[%s9 + $0x198] sm:$0xff]
    %v6662 = vld [vmem:[%s9 + $0x1a0] sm:$0xff]
    %v6663 = vld [vmem:[%s9 + $0x1a8] sm:$0xff]
    %v6664 = vld [vmem:[%s9 + $0x1b0] sm:$0xff]
    %v6665 = vld [vmem:[%s9 + $0x1b8] sm:$0xff]
    %v6666 = vld [vmem:[%s9 + $0x1c0] sm:$0xff]
    %v6667 = vld [vmem:[%s9 + $0x1c8] sm:$0xff]
    %v6668 = vld [vmem:[%s9 + $0x1d0] sm:$0xff]
    %v6669 = vld [vmem:[%s9 + $0x1d8] sm:$0xff]
    %v6670 = vld [vmem:[%s9 + $0x1e0] sm:$0xff]
    %v6671 = vld [vmem:[%s9 + $0x1e8] sm:$0xff]
    %v6672 = vld [vmem:[%s9 + $0x1f0] sm:$0xff]
    %v6673 = vld [vmem:[%s9 + $0x1f8] sm:$0xff]
    %6674 = vmatprep.subr.mxu0 0.0
    %6675 = vmatpush1.msra.mxu0 %v6642
    %6676 = vmatprep.subr.mxu0 0.0
    %6677 = vmatpush1.msra.mxu0 %v6643
    %6678 = vmatprep.subr.mxu0 0.0
    %6679 = vmatpush1.msra.mxu0 %v6644
    %6680 = vmatprep.subr.mxu0 0.0
    %6681 = vmatpush1.msra.mxu0 %v6645
    %6682 = vmatprep.subr.mxu0 0.0
    %6683 = vmatpush1.msra.mxu0 %v6646
    %6684 = vmatprep.subr.mxu0 0.0
    %6685 = vmatpush1.msra.mxu0 %v6647
    %6686 = vmatprep.subr.mxu0 0.0
    %6687 = vmatpush1.msra.mxu0 %v6648
    %6688 = vmatprep.subr.mxu0 0.0
    %6689 = vmatpush1.msra.mxu0 %v6649
    %6690 = vmatprep.subr.mxu0 0.0
    %6691 = vmatpush1.msra.mxu0 %v6650
    %6692 = vmatprep.subr.mxu0 0.0
    %6693 = vmatpush1.msra.mxu0 %v6651
    %6694 = vmatprep.subr.mxu0 0.0
    %6695 = vmatpush1.msra.mxu0 %v6652
    %6696 = vmatprep.subr.mxu0 0.0
    %6697 = vmatpush1.msra.mxu0 %v6653
    %6698 = vmatprep.subr.mxu0 0.0
    %6699 = vmatpush1.msra.mxu0 %v6654
    %6700 = vmatprep.subr.mxu0 0.0
    %6701 = vmatpush1.msra.mxu0 %v6655
    %6702 = vmatprep.subr.mxu0 0.0
    %6703 = vmatpush1.msra.mxu0 %v6656
    %6704 = vmatprep.subr.mxu0 0.0
    %6705 = vmatpush1.msra.mxu0 %v6657
    %6706 = vmatprep.subr.mxu0 0.0
    %6707 = vmatpush1.msra.mxu0 %v6658
    %6708 = vmatprep.subr.mxu0 0.0
    %6709 = vmatpush1.msra.mxu0 %v6659
    %6710 = vmatprep.subr.mxu0 0.0
    %6711 = vmatpush1.msra.mxu0 %v6660
    %6712 = vmatprep.subr.mxu0 0.0
    %6713 = vmatpush1.msra.mxu0 %v6661
    %6714 = vmatprep.subr.mxu0 0.0
    %6715 = vmatpush1.msra.mxu0 %v6662
    %6716 = vmatprep.subr.mxu0 0.0
    %6717 = vmatpush1.msra.mxu0 %v6663
    %6718 = vmatprep.subr.mxu0 0.0
    %6719 = vmatpush1.msra.mxu0 %v6664
    %6720 = vmatprep.subr.mxu0 0.0
    %6721 = vmatpush1.msra.mxu0 %v6665
    %6722 = vmatprep.subr.mxu0 0.0
    %6723 = vmatpush1.msra.mxu0 %v6666
    %6724 = vmatprep.subr.mxu0 0.0
    %6725 = vmatpush1.msra.mxu0 %v6667
    %6726 = vmatprep.subr.mxu0 0.0
    %6727 = vmatpush1.msra.mxu0 %v6668
    %6728 = vmatprep.subr.mxu0 0.0
    %6729 = vmatpush1.msra.mxu0 %v6669
    %6730 = vmatprep.subr.mxu0 0.0
    %6731 = vmatpush1.msra.mxu0 %v6670
    %6732 = vmatprep.subr.mxu0 0.0
    %6733 = vmatpush1.msra.mxu0 %v6671
    %6734 = vmatprep.subr.mxu0 0.0
    %6735 = vmatpush1.msra.mxu0 %v6672
    %6736 = vmatprep.subr.mxu0 0.0
    %6737 = vmatpush1.msra.mxu0 %v6673
    %6738 = vmatprep.mubr.f32.mxu0 %v6640
    %6739 = vmatmul.mubr.f32.gmra.mrb[0].mxu0 %v6638
    %v6740 = vpop.f32.mrb[0].mxu0
    %v6741 = vadd.f32 0.0, %v6740
    %v6742 = vpop.f32.mrb[0].mxu0
    %6743 = vdwg.mxu0
    %6744 = vmatprep.subr.mxu0 0.0
    %6745 = vmatpush1.msra.mxu0 %v6533
    %6746 = vmatprep.subr.mxu0 0.0
    %6747 = vmatpush1.msra.mxu0 %v6534
    %6748 = vmatprep.subr.mxu0 0.0
    %6749 = vmatpush1.msra.mxu0 %v6535
    %6750 = vmatprep.subr.mxu0 0.0
    %6751 = vmatpush1.msra.mxu0 %v6536
    %6752 = vmatprep.subr.mxu0 0.0
    %6753 = vmatpush1.msra.mxu0 %v6537
    %6754 = vmatprep.subr.mxu0 0.0
    %6755 = vmatpush1.msra.mxu0 %v6538
    %6756 = vmatprep.subr.mxu0 0.0
    %6757 = vmatpush1.msra.mxu0 %v6539
    %6758 = vmatprep.subr.mxu0 0.0
    %6759 = vmatpush1.msra.mxu0 %v6540
    %6760 = vmatprep.subr.mxu0 0.0
    %6761 = vmatpush1.msra.mxu0 %v6541
    %6762 = vmatprep.subr.mxu0 0.0
    %6763 = vmatpush1.msra.mxu0 %v6542
    %6764 = vmatprep.subr.mxu0 0.0
    %6765 = vmatpush1.msra.mxu0 %v6543
    %6766 = vmatprep.subr.mxu0 0.0
    %6767 = vmatpush1.msra.mxu0 %v6544
    %6768 = vmatprep.subr.mxu0 0.0
    %6769 = vmatpush1.msra.mxu0 %v6545
    %6770 = vmatprep.subr.mxu0 0.0
    %6771 = vmatpush1.msra.mxu0 %v6546
    %6772 = vmatprep.subr.mxu0 0.0
    %6773 = vmatpush1.msra.mxu0 %v6547
    %6774 = vmatprep.subr.mxu0 0.0
    %6775 = vmatpush1.msra.mxu0 %v6548
    %6776 = vmatprep.subr.mxu0 0.0
    %6777 = vmatpush1.msra.mxu0 %v6549
    %6778 = vmatprep.subr.mxu0 0.0
    %6779 = vmatpush1.msra.mxu0 %v6550
    %6780 = vmatprep.subr.mxu0 0.0
    %6781 = vmatpush1.msra.mxu0 %v6551
    %6782 = vmatprep.subr.mxu0 0.0
    %6783 = vmatpush1.msra.mxu0 %v6552
    %6784 = vmatprep.subr.mxu0 0.0
    %6785 = vmatpush1.msra.mxu0 %v6553
    %6786 = vmatprep.subr.mxu0 0.0
    %6787 = vmatpush1.msra.mxu0 %v6554
    %6788 = vmatprep.subr.mxu0 0.0
    %6789 = vmatpush1.msra.mxu0 %v6555
    %6790 = vmatprep.subr.mxu0 0.0
    %6791 = vmatpush1.msra.mxu0 %v6556
    %6792 = vmatprep.subr.mxu0 0.0
    %6793 = vmatpush1.msra.mxu0 %v6557
    %6794 = vmatprep.subr.mxu0 0.0
    %6795 = vmatpush1.msra.mxu0 %v6558
    %6796 = vmatprep.subr.mxu0 0.0
    %6797 = vmatpush1.msra.mxu0 %v6559
    %6798 = vmatprep.subr.mxu0 0.0
    %6799 = vmatpush1.msra.mxu0 %v6560
    %6800 = vmatprep.subr.mxu0 0.0
    %6801 = vmatpush1.msra.mxu0 %v6561
    %6802 = vmatprep.subr.mxu0 0.0
    %6803 = vmatpush1.msra.mxu0 %v6562
    %6804 = vmatprep.subr.mxu0 0.0
    %6805 = vmatpush1.msra.mxu0 %v6563
    %6806 = vmatprep.subr.mxu0 0.0
    %6807 = vmatpush1.msra.mxu0 %v6564
    %6808 = vmatprep.mubr.f32.mxu0 %v6531
    %6809 = vmatmul.mubr.f32.gmra.mrb[0].mxu0 %v6529
    %v6810 = vpop.f32.mrb[0].mxu0
    %v6811 = vadd.f32 %v6741, %v6810
    %v6812 = vpop.f32.mrb[0].mxu0
    %6813 = vdwg.mxu0
    %v6814 = vadd.s32 %v6455, 2
    %vm6815 = vcmp.eq.s32.totalorder %v122, %v6814
    %v6816 = vsel %vm6815, 1.0, 0.0
    %v6818 = vsel %vm6458, %v6816, 0
    %6820 = vmatprep.subr.mxu0 %v6454
    %6821 = vmatpush1.msra.mxu0 %v6453
    %6822 = vmatprep.subr.mxu0 0.0
    %6823 = vmatpush1.msra.mxu0 0.0
    %6824 = vmatprep.subr.mxu0 0.0
    %6825 = vmatpush1.msra.mxu0 0.0
    %6826 = vmatprep.subr.mxu0 0.0
    %6827 = vmatpush1.msra.mxu0 0.0
    %6828 = vmatprep.subr.mxu0 0.0
    %6829 = vmatpush1.msra.mxu0 0.0
    %6830 = vmatprep.subr.mxu0 0.0
    %6831 = vmatpush1.msra.mxu0 0.0
    %6832 = vmatprep.subr.mxu0 0.0
    %6833 = vmatpush1.msra.mxu0 0.0
    %6834 = vmatprep.subr.mxu0 0.0
    %6835 = vmatpush1.msra.mxu0 0.0
    %6836 = vmatprep.subr.mxu0 0.0
    %6837 = vmatpush1.msra.mxu0 0.0
    %6838 = vmatprep.subr.mxu0 0.0
    %6839 = vmatpush1.msra.mxu0 0.0
    %6840 = vmatprep.subr.mxu0 0.0
    %6841 = vmatpush1.msra.mxu0 0.0
    %6842 = vmatprep.subr.mxu0 0.0
    %6843 = vmatpush1.msra.mxu0 0.0
    %6844 = vmatprep.subr.mxu0 0.0
    %6845 = vmatpush1.msra.mxu0 0.0
    %6846 = vmatprep.subr.mxu0 0.0
    %6847 = vmatpush1.msra.mxu0 0.0
    %6848 = vmatprep.subr.mxu0 0.0
    %6849 = vmatpush1.msra.mxu0 0.0
    %6850 = vmatprep.subr.mxu0 0.0
    %6851 = vmatpush1.msra.mxu0 0.0
    %6852 = vmatprep.subr.mxu0 0.0
    %6853 = vmatpush1.msra.mxu0 0.0
    %6854 = vmatprep.subr.mxu0 0.0
    %6855 = vmatpush1.msra.mxu0 0.0
    %6856 = vmatprep.subr.mxu0 0.0
    %6857 = vmatpush1.msra.mxu0 0.0
    %6858 = vmatprep.subr.mxu0 0.0
    %6859 = vmatpush1.msra.mxu0 0.0
    %6860 = vmatprep.subr.mxu0 0.0
    %6861 = vmatpush1.msra.mxu0 0.0
    %6862 = vmatprep.subr.mxu0 0.0
    %6863 = vmatpush1.msra.mxu0 0.0
    %6864 = vmatprep.subr.mxu0 0.0
    %6865 = vmatpush1.msra.mxu0 0.0
    %6866 = vmatprep.subr.mxu0 0.0
    %6867 = vmatpush1.msra.mxu0 0.0
    %6868 = vmatprep.subr.mxu0 0.0
    %6869 = vmatpush1.msra.mxu0 0.0
    %6870 = vmatprep.subr.mxu0 0.0
    %6871 = vmatpush1.msra.mxu0 0.0
    %6872 = vmatprep.subr.mxu0 0.0
    %6873 = vmatpush1.msra.mxu0 0.0
    %6874 = vmatprep.subr.mxu0 0.0
    %6875 = vmatpush1.msra.mxu0 0.0
    %6876 = vmatprep.subr.mxu0 0.0
    %6877 = vmatpush1.msra.mxu0 0.0
    %6878 = vmatprep.subr.mxu0 0.0
    %6879 = vmatpush1.msra.mxu0 0.0
    %6880 = vmatprep.subr.mxu0 0.0
    %6881 = vmatpush1.msra.mxu0 0.0
    %6882 = vmatprep.subr.mxu0 0.0
    %6883 = vmatpush1.msra.mxu0 0.0
    %6884 = vmatprep.mubr.f32.mxu0 0.0
    %6885 = vmatmul.mubr.f32.gmra.mrb[0].mxu0 %v6818
    %v6886 = vpop.f32.mrb[0].mxu0
    %v6887 = vadd.f32 0.0, %v6886
    %v6888 = vpop.f32.mrb[0].mxu0
    %v6889 = vadd.f32 0.0, %v6888
    %6890 = vdwg.mxu0
    %v6891 = vld [vmem:[%s9 + $0x200] sm:$0xff]
    %v6892 = vld [vmem:[%s9 + $0x208] sm:$0xff]
    %v6893 = vld [vmem:[%s9 + $0x210] sm:$0xff]
    %v6894 = vld [vmem:[%s9 + $0x218] sm:$0xff]
    %v6895 = vld [vmem:[%s9 + $0x220] sm:$0xff]
    %v6896 = vld [vmem:[%s9 + $0x228] sm:$0xff]
    %v6897 = vld [vmem:[%s9 + $0x230] sm:$0xff]
    %v6898 = vld [vmem:[%s9 + $0x238] sm:$0xff]
    %v6899 = vld [vmem:[%s9 + $0x240] sm:$0xff]
    %v6900 = vld [vmem:[%s9 + $0x248] sm:$0xff]
    %v6901 = vld [vmem:[%s9 + $0x250] sm:$0xff]
    %v6902 = vld [vmem:[%s9 + $0x258] sm:$0xff]
    %v6903 = vld [vmem:[%s9 + $0x260] sm:$0xff]
    %v6904 = vld [vmem:[%s9 + $0x268] sm:$0xff]
    %v6905 = vld [vmem:[%s9 + $0x270] sm:$0xff]
    %v6906 = vld [vmem:[%s9 + $0x278] sm:$0xff]
    %v6907 = vld [vmem:[%s9 + $0x280] sm:$0xff]
    %v6908 = vld [vmem:[%s9 + $0x288] sm:$0xff]
    %v6909 = vld [vmem:[%s9 + $0x290] sm:$0xff]
    %v6910 = vld [vmem:[%s9 + $0x298] sm:$0xff]
    %v6911 = vld [vmem:[%s9 + $0x2a0] sm:$0xff]
    %v6912 = vld [vmem:[%s9 + $0x2a8] sm:$0xff]
    %v6913 = vld [vmem:[%s9 + $0x2b0] sm:$0xff]
    %v6914 = vld [vmem:[%s9 + $0x2b8] sm:$0xff]
    %v6915 = vld [vmem:[%s9 + $0x2c0] sm:$0xff]
    %v6916 = vld [vmem:[%s9 + $0x2c8] sm:$0xff]
    %v6917 = vld [vmem:[%s9 + $0x2d0] sm:$0xff]
    %v6918 = vld [vmem:[%s9 + $0x2d8] sm:$0xff]
    %v6919 = vld [vmem:[%s9 + $0x2e0] sm:$0xff]
    %v6920 = vld [vmem:[%s9 + $0x2e8] sm:$0xff]
    %v6921 = vld [vmem:[%s9 + $0x2f0] sm:$0xff]
    %v6922 = vld [vmem:[%s9 + $0x2f8] sm:$0xff]
    %6923 = vmatprep.subr.mxu0 0.0
    %6924 = vmatpush1.msra.mxu0 %v6891
    %6925 = vmatprep.subr.mxu0 0.0
    %6926 = vmatpush1.msra.mxu0 %v6892
    %6927 = vmatprep.subr.mxu0 0.0
    %6928 = vmatpush1.msra.mxu0 %v6893
    %6929 = vmatprep.subr.mxu0 0.0
    %6930 = vmatpush1.msra.mxu0 %v6894
    %6931 = vmatprep.subr.mxu0 0.0
    %6932 = vmatpush1.msra.mxu0 %v6895
    %6933 = vmatprep.subr.mxu0 0.0
    %6934 = vmatpush1.msra.mxu0 %v6896
    %6935 = vmatprep.subr.mxu0 0.0
    %6936 = vmatpush1.msra.mxu0 %v6897
    %6937 = vmatprep.subr.mxu0 0.0
    %6938 = vmatpush1.msra.mxu0 %v6898
    %6939 = vmatprep.subr.mxu0 0.0
    %6940 = vmatpush1.msra.mxu0 %v6899
    %6941 = vmatprep.subr.mxu0 0.0
    %6942 = vmatpush1.msra.mxu0 %v6900
    %6943 = vmatprep.subr.mxu0 0.0
    %6944 = vmatpush1.msra.mxu0 %v6901
    %6945 = vmatprep.subr.mxu0 0.0
    %6946 = vmatpush1.msra.mxu0 %v6902
    %6947 = vmatprep.subr.mxu0 0.0
    %6948 = vmatpush1.msra.mxu0 %v6903
    %6949 = vmatprep.subr.mxu0 0.0
    %6950 = vmatpush1.msra.mxu0 %v6904
    %6951 = vmatprep.subr.mxu0 0.0
    %6952 = vmatpush1.msra.mxu0 %v6905
    %6953 = vmatprep.subr.mxu0 0.0
    %6954 = vmatpush1.msra.mxu0 %v6906
    %6955 = vmatprep.subr.mxu0 0.0
    %6956 = vmatpush1.msra.mxu0 %v6907
    %6957 = vmatprep.subr.mxu0 0.0
    %6958 = vmatpush1.msra.mxu0 %v6908
    %6959 = vmatprep.subr.mxu0 0.0
    %6960 = vmatpush1.msra.mxu0 %v6909
    %6961 = vmatprep.subr.mxu0 0.0
    %6962 = vmatpush1.msra.mxu0 %v6910
    %6963 = vmatprep.subr.mxu0 0.0
    %6964 = vmatpush1.msra.mxu0 %v6911
    %6965 = vmatprep.subr.mxu0 0.0
    %6966 = vmatpush1.msra.mxu0 %v6912
    %6967 = vmatprep.subr.mxu0 0.0
    %6968 = vmatpush1.msra.mxu0 %v6913
    %6969 = vmatprep.subr.mxu0 0.0
    %6970 = vmatpush1.msra.mxu0 %v6914
    %6971 = vmatprep.subr.mxu0 0.0
    %6972 = vmatpush1.msra.mxu0 %v6915
    %6973 = vmatprep.subr.mxu0 0.0
    %6974 = vmatpush1.msra.mxu0 %v6916
    %6975 = vmatprep.subr.mxu0 0.0
    %6976 = vmatpush1.msra.mxu0 %v6917
    %6977 = vmatprep.subr.mxu0 0.0
    %6978 = vmatpush1.msra.mxu0 %v6918
    %6979 = vmatprep.subr.mxu0 0.0
    %6980 = vmatpush1.msra.mxu0 %v6919
    %6981 = vmatprep.subr.mxu0 0.0
    %6982 = vmatpush1.msra.mxu0 %v6920
    %6983 = vmatprep.subr.mxu0 0.0
    %6984 = vmatpush1.msra.mxu0 %v6921
    %6985 = vmatprep.subr.mxu0 0.0
    %6986 = vmatpush1.msra.mxu0 %v6922
    %6987 = vmatprep.mubr.f32.mxu0 %v6889
    %6988 = vmatmul.mubr.f32.gmra.mrb[0].mxu0 %v6887
    %v6989 = vpop.f32.mrb[0].mxu0
    %v6990 = vadd.f32 0.0, %v6989
    %v6991 = vpop.f32.mrb[0].mxu0
    %6992 = vdwg.mxu0
    %v6993 = vadd.f32 %v6811, %v6990
    %v6994 = vadd.s32 %v6455, 3
    %vm6995 = vcmp.eq.s32.totalorder %v122, %v6994
    %v6996 = vsel %vm6995, 1.0, 0.0
    %v6998 = vsel %vm6458, %v6996, 0
    %7000 = vmatprep.subr.mxu0 %v6454
    %7001 = vmatpush1.msra.mxu0 %v6453
    %7002 = vmatprep.subr.mxu0 0.0
    %7003 = vmatpush1.msra.mxu0 0.0
    %7004 = vmatprep.subr.mxu0 0.0
    %7005 = vmatpush1.msra.mxu0 0.0
    %7006 = vmatprep.subr.mxu0 0.0
    %7007 = vmatpush1.msra.mxu0 0.0
    %7008 = vmatprep.subr.mxu0 0.0
    %7009 = vmatpush1.msra.mxu0 0.0
    %7010 = vmatprep.subr.mxu0 0.0
    %7011 = vmatpush1.msra.mxu0 0.0
    %7012 = vmatprep.subr.mxu0 0.0
    %7013 = vmatpush1.msra.mxu0 0.0
    %7014 = vmatprep.subr.mxu0 0.0
    %7015 = vmatpush1.msra.mxu0 0.0
    %7016 = vmatprep.subr.mxu0 0.0
    %7017 = vmatpush1.msra.mxu0 0.0
    %7018 = vmatprep.subr.mxu0 0.0
    %7019 = vmatpush1.msra.mxu0 0.0
    %7020 = vmatprep.subr.mxu0 0.0
    %7021 = vmatpush1.msra.mxu0 0.0
    %7022 = vmatprep.subr.mxu0 0.0
    %7023 = vmatpush1.msra.mxu0 0.0
    %7024 = vmatprep.subr.mxu0 0.0
    %7025 = vmatpush1.msra.mxu0 0.0
    %7026 = vmatprep.subr.mxu0 0.0
    %7027 = vmatpush1.msra.mxu0 0.0
    %7028 = vmatprep.subr.mxu0 0.0
    %7029 = vmatpush1.msra.mxu0 0.0
    %7030 = vmatprep.subr.mxu0 0.0
    %7031 = vmatpush1.msra.mxu0 0.0
    %7032 = vmatprep.subr.mxu0 0.0
    %7033 = vmatpush1.msra.mxu0 0.0
    %7034 = vmatprep.subr.mxu0 0.0
    %7035 = vmatpush1.msra.mxu0 0.0
    %7036 = vmatprep.subr.mxu0 0.0
    %7037 = vmatpush1.msra.mxu0 0.0
    %7038 = vmatprep.subr.mxu0 0.0
    %7039 = vmatpush1.msra.mxu0 0.0
    %7040 = vmatprep.subr.mxu0 0.0
    %7041 = vmatpush1.msra.mxu0 0.0
    %7042 = vmatprep.subr.mxu0 0.0
    %7043 = vmatpush1.msra.mxu0 0.0
    %7044 = vmatprep.subr.mxu0 0.0
    %7045 = vmatpush1.msra.mxu0 0.0
    %7046 = vmatprep.subr.mxu0 0.0
    %7047 = vmatpush1.msra.mxu0 0.0
    %7048 = vmatprep.subr.mxu0 0.0
    %7049 = vmatpush1.msra.mxu0 0.0
    %7050 = vmatprep.subr.mxu0 0.0
    %7051 = vmatpush1.msra.mxu0 0.0
    %7052 = vmatprep.subr.mxu0 0.0
    %7053 = vmatpush1.msra.mxu0 0.0
    %7054 = vmatprep.subr.mxu0 0.0
    %7055 = vmatpush1.msra.mxu0 0.0
    %7056 = vmatprep.subr.mxu0 0.0
    %7057 = vmatpush1.msra.mxu0 0.0
    %7058 = vmatprep.subr.mxu0 0.0
    %7059 = vmatpush1.msra.mxu0 0.0
    %7060 = vmatprep.subr.mxu0 0.0
    %7061 = vmatpush1.msra.mxu0 0.0
    %7062 = vmatprep.subr.mxu0 0.0
    %7063 = vmatpush1.msra.mxu0 0.0
    %7064 = vmatprep.mubr.f32.mxu0 0.0
    %7065 = vmatmul.mubr.f32.gmra.mrb[0].mxu0 %v6998
    %v7066 = vpop.f32.mrb[0].mxu0
    %v7067 = vadd.f32 0.0, %v7066
    %v7068 = vpop.f32.mrb[0].mxu0
    %v7069 = vadd.f32 0.0, %v7068
    %7070 = vdwg.mxu0
    %v7071 = vld [vmem:[%s9 + $0x300] sm:$0xff]
    %v7072 = vld [vmem:[%s9 + $0x308] sm:$0xff]
    %v7073 = vld [vmem:[%s9 + $0x310] sm:$0xff]
    %v7074 = vld [vmem:[%s9 + $0x318] sm:$0xff]
    %v7075 = vld [vmem:[%s9 + $0x320] sm:$0xff]
    %v7076 = vld [vmem:[%s9 + $0x328] sm:$0xff]
    %v7077 = vld [vmem:[%s9 + $0x330] sm:$0xff]
    %v7078 = vld [vmem:[%s9 + $0x338] sm:$0xff]
    %v7079 = vld [vmem:[%s9 + $0x340] sm:$0xff]
    %v7080 = vld [vmem:[%s9 + $0x348] sm:$0xff]
    %v7081 = vld [vmem:[%s9 + $0x350] sm:$0xff]
    %v7082 = vld [vmem:[%s9 + $0x358] sm:$0xff]
    %v7083 = vld [vmem:[%s9 + $0x360] sm:$0xff]
    %v7084 = vld [vmem:[%s9 + $0x368] sm:$0xff]
    %v7085 = vld [vmem:[%s9 + $0x370] sm:$0xff]
    %v7086 = vld [vmem:[%s9 + $0x378] sm:$0xff]
    %v7087 = vld [vmem:[%s9 + $0x380] sm:$0xff]
    %v7088 = vld [vmem:[%s9 + $0x388] sm:$0xff]
    %v7089 = vld [vmem:[%s9 + $0x390] sm:$0xff]
    %v7090 = vld [vmem:[%s9 + $0x398] sm:$0xff]
    %v7091 = vld [vmem:[%s9 + $0x3a0] sm:$0xff]
    %v7092 = vld [vmem:[%s9 + $0x3a8] sm:$0xff]
    %v7093 = vld [vmem:[%s9 + $0x3b0] sm:$0xff]
    %v7094 = vld [vmem:[%s9 + $0x3b8] sm:$0xff]
    %v7095 = vld [vmem:[%s9 + $0x3c0] sm:$0xff]
    %v7096 = vld [vmem:[%s9 + $0x3c8] sm:$0xff]
    %v7097 = vld [vmem:[%s9 + $0x3d0] sm:$0xff]
    %v7098 = vld [vmem:[%s9 + $0x3d8] sm:$0xff]
    %v7099 = vld [vmem:[%s9 + $0x3e0] sm:$0xff]
    %v7100 = vld [vmem:[%s9 + $0x3e8] sm:$0xff]
    %v7101 = vld [vmem:[%s9 + $0x3f0] sm:$0xff]
    %v7102 = vld [vmem:[%s9 + $0x3f8] sm:$0xff]
    %7103 = vmatprep.subr.mxu0 0.0
    %7104 = vmatpush1.msra.mxu0 %v7071
    %7105 = vmatprep.subr.mxu0 0.0
    %7106 = vmatpush1.msra.mxu0 %v7072
    %7107 = vmatprep.subr.mxu0 0.0
    %7108 = vmatpush1.msra.mxu0 %v7073
    %7109 = vmatprep.subr.mxu0 0.0
    %7110 = vmatpush1.msra.mxu0 %v7074
    %7111 = vmatprep.subr.mxu0 0.0
    %7112 = vmatpush1.msra.mxu0 %v7075
    %7113 = vmatprep.subr.mxu0 0.0
    %7114 = vmatpush1.msra.mxu0 %v7076
    %7115 = vmatprep.subr.mxu0 0.0
    %7116 = vmatpush1.msra.mxu0 %v7077
    %7117 = vmatprep.subr.mxu0 0.0
    %7118 = vmatpush1.msra.mxu0 %v7078
    %7119 = vmatprep.subr.mxu0 0.0
    %7120 = vmatpush1.msra.mxu0 %v7079
    %7121 = vmatprep.subr.mxu0 0.0
    %7122 = vmatpush1.msra.mxu0 %v7080
    %7123 = vmatprep.subr.mxu0 0.0
    %7124 = vmatpush1.msra.mxu0 %v7081
    %7125 = vmatprep.subr.mxu0 0.0
    %7126 = vmatpush1.msra.mxu0 %v7082
    %7127 = vmatprep.subr.mxu0 0.0
    %7128 = vmatpush1.msra.mxu0 %v7083
    %7129 = vmatprep.subr.mxu0 0.0
    %7130 = vmatpush1.msra.mxu0 %v7084
    %7131 = vmatprep.subr.mxu0 0.0
    %7132 = vmatpush1.msra.mxu0 %v7085
    %7133 = vmatprep.subr.mxu0 0.0
    %7134 = vmatpush1.msra.mxu0 %v7086
    %7135 = vmatprep.subr.mxu0 0.0
    %7136 = vmatpush1.msra.mxu0 %v7087
    %7137 = vmatprep.subr.mxu0 0.0
    %7138 = vmatpush1.msra.mxu0 %v7088
    %7139 = vmatprep.subr.mxu0 0.0
    %7140 = vmatpush1.msra.mxu0 %v7089
    %7141 = vmatprep.subr.mxu0 0.0
    %7142 = vmatpush1.msra.mxu0 %v7090
    %7143 = vmatprep.subr.mxu0 0.0
    %7144 = vmatpush1.msra.mxu0 %v7091
    %7145 = vmatprep.subr.mxu0 0.0
    %7146 = vmatpush1.msra.mxu0 %v7092
    %7147 = vmatprep.subr.mxu0 0.0
    %7148 = vmatpush1.msra.mxu0 %v7093
    %7149 = vmatprep.subr.mxu0 0.0
    %7150 = vmatpush1.msra.mxu0 %v7094
    %7151 = vmatprep.subr.mxu0 0.0
    %7152 = vmatpush1.msra.mxu0 %v7095
    %7153 = vmatprep.subr.mxu0 0.0
    %7154 = vmatpush1.msra.mxu0 %v7096
    %7155 = vmatprep.subr.mxu0 0.0
    %7156 = vmatpush1.msra.mxu0 %v7097
    %7157 = vmatprep.subr.mxu0 0.0
    %7158 = vmatpush1.msra.mxu0 %v7098
    %7159 = vmatprep.subr.mxu0 0.0
    %7160 = vmatpush1.msra.mxu0 %v7099
    %7161 = vmatprep.subr.mxu0 0.0
    %7162 = vmatpush1.msra.mxu0 %v7100
    %7163 = vmatprep.subr.mxu0 0.0
    %7164 = vmatpush1.msra.mxu0 %v7101
    %7165 = vmatprep.subr.mxu0 0.0
    %7166 = vmatpush1.msra.mxu0 %v7102
    %7167 = vmatprep.mubr.f32.mxu0 %v7069
    %7168 = vmatmul.mubr.f32.gmra.mrb[0].mxu0 %v7067
    %v7169 = vpop.f32.mrb[0].mxu0
    %v7170 = vadd.f32 0.0, %v7169
    %v7171 = vpop.f32.mrb[0].mxu0
    %7172 = vdwg.mxu0
    %v7173 = vadd.f32 %v6993, %v7170
    %v7174 = vld [vmem:[%s10] sm:$0x1]
    %v7176 = vlaneseq
    %v7177 = vshrl.u32 %v7176, 7
    %v7178 = vsub.s32 0, %v7177
    %v7179 = vrot.slane %v7174, %v7178
    %v7181 = vadd.f32 %v7173, %v7179
    %v7182 = vtanh.pop %v7181
    %vm7183 = vcmask 123904
    %7184 = vst.msk [vmem:[#allocation8] sm:$0x3] %vm7183, %v7182
    // Predicated region
    $region58: #{encoder_forward.1} parent=1 // pred_check
      _
    $region59: #{encoder_forward.1} parent=1 // pred_check_branch
      %7186 = sbr.rel (0) target = $region61
    $region60: #{encoder_forward.1} parent=1 // pred_region
      %s7188 = ssub.s32 32, 32
      %7189 = vsyncadd [#allocation4], %s7188
      %s7191 = sshll.u32 [#allocation8], 4
      %s7192 = int_to_ptr.vmem [resolvable:$true] %s7191
      %7194 = dma.vmem_to_hbm [thread:$0]  %s7192, 32, %s11, [#allocation4]
    $region61: #{encoder_forward.1} parent=1 // pred_fallthru
      _
    // Predicated region
    $region62: #{encoder_forward.1} parent=1 // pred_check
      _
    $region63: #{encoder_forward.1} parent=1 // pred_check_branch
      %7196 = sbr.rel (0) target = $region65
    $region64: #{encoder_forward.1} parent=1 // pred_region
      %7197 = dma.done [#allocation4], 32
    $region65: #{encoder_forward.1} parent=1 // pred_fallthru
      _
    %7198 = vsyncpa [#allocation3], 1
    %7199 = vsyncpa [#allocation6], 1
    %7200 = vsyncpa [#allocation4], 1

</llo_original>
